<compile_context>
chip_gen: v6e
topology: v6e:2x2x1
jax: 0.10.0
libtpu: 0.0.40
codegen_flags: <defaults>
</compile_context>

<pallas_src>
import functools

import jax
import jax.numpy as jnp
from jax import lax
from jax.experimental import pallas as pl
from jax.experimental.pallas import tpu as pltpu

_PAR = pltpu.CompilerParams(dimension_semantics=("parallel",))
# TODO(synk): at production sizes (D=768, I=3072) additionally single-buffer the
# constant-index weight operands (pipeline_mode=pl.Buffered(1)) and set
# vmem_limit_bytes explicitly for v7x's 64 MiB VMEM; at these toy shapes the
# default double-buffered bf16 weights fit comfortably.


# ---------------------------------------------------------------------------
# Small helpers
# ---------------------------------------------------------------------------
def _round_up(x, m):
    return ((x + m - 1) // m) * m


def _pick_row_tile(m, target=256):
    """Row tile: multiple of 8, aims for >= 2 grid steps (megacore), <= target."""
    if m >= 2 * target:
        return target
    half = (m + 1) // 2
    return min(_round_up(max(half, 8), 8), _round_up(m, 8))


def _pick_batch_tile(b, max_bt=8):
    """Largest divisor of b (<= max_bt) that still leaves >= 2 grid steps."""
    best = 1
    for bt in range(1, min(b, max_bt) + 1):
        if b % bt == 0 and (b // bt >= 2 or b == 1):
            best = bt
    return best


def _layernorm_f32(x, gamma, beta, eps):
    mu = jnp.mean(x, axis=-1, keepdims=True)
    var = jnp.mean(jnp.square(x - mu), axis=-1, keepdims=True)
    return (x - mu) * lax.rsqrt(var + eps) * gamma + beta


def _gelu_tanh(x):
    # TODO(synk): tanh-approximate GELU; PyTorch nn.GELU() default is exact erf.
    c = 0.7978845608028654  # sqrt(2/pi)
    return 0.5 * x * (1.0 + jnp.tanh(c * (x + 0.044715 * x * x * x)))


def _heads(m2d, num_heads):
    """[L, D] f32 -> head-major [H, L, hd] bf16 (single relayout, MXU operand)."""
    l, d = m2d.shape
    hd = d // num_heads
    return m2d.reshape(l, num_heads, hd).transpose(1, 0, 2).astype(jnp.bfloat16)


def _mha_core(q, k, v, num_heads, bias=None):
    """Head-batched attention for one batch item. Returns [Lq, D] f32 context."""
    lq, d = q.shape
    qh = _heads(q, num_heads)                              # [H, Lq, hd]
    kh = _heads(k, num_heads)                              # [H, Lk, hd]
    vh = _heads(v, num_heads)                              # [H, Lk, hd]
    s = jnp.einsum("hqd,hkd->hqk", qh, kh,
                   preferred_element_type=jnp.float32)     # [H, Lq, Lk]
    if bias is not None:
        s = s + bias
    s = s - jnp.max(s, axis=-1, keepdims=True)
    p = jnp.exp(s)
    p = p / jnp.sum(p, axis=-1, keepdims=True)             # exact divide
    ctx = jnp.einsum("hqk,hkd->hqd", p.astype(jnp.bfloat16), vh,
                     preferred_element_type=jnp.float32)   # [H, Lq, hd]
    return ctx.transpose(1, 0, 2).reshape(lq, d)           # [Lq, D]


# ---------------------------------------------------------------------------
# Fused Pallas kernels
# ---------------------------------------------------------------------------
def _self_attn_kernel(x_ref, ng_ref, nb_ref, wqkv_ref, bqkv_ref, wo_ref, bo_ref,
                      o_ref, *, num_heads, eps):
    """Fused: LN -> packed QKV -> head-batched MHA -> out-proj -> +residual."""
    bt, lq, d = x_ref.shape
    scale = 1.0 / float(d // num_heads) ** 0.5

    x = x_ref[...].astype(jnp.float32).reshape(bt * lq, d)
    h = _layernorm_f32(x, ng_ref[...], nb_ref[...], eps)

    # one packed QKV matmul over all Bt*Lq rows (bf16 operands, f32 accum)
    qkv = jnp.dot(h.astype(jnp.bfloat16), wqkv_ref[...],
                  preferred_element_type=jnp.float32) + bqkv_ref[...]
    q = qkv[:, :d] * scale
    k = qkv[:, d:2 * d]
    v = qkv[:, 2 * d:]

    ctx = []
    for b in range(bt):                              # static unroll over Bt
        rs = slice(b * lq, (b + 1) * lq)
        ctx.append(_mha_core(q[rs], k[rs], v[rs], num_heads))
    ctx_all = ctx[0] if bt == 1 else jnp.concatenate(ctx, axis=0)

    # single full-K out-projection on the concatenated context
    out = x + bo_ref[...] + jnp.dot(ctx_all.astype(jnp.bfloat16), wo_ref[...],
                                    preferred_element_type=jnp.float32)
    o_ref[...] = out.reshape(bt, lq, d).astype(o_ref.dtype)


def _cross_attn_kernel(x_ref, k_ref, v_ref, ng_ref, nb_ref, wq_ref, bq_ref,
                       wo_ref, bo_ref, o_ref, *, num_heads, eps, kv_len):
    """Fused: LN -> Q proj -> head-batched MHA over precomputed K/V -> proj -> +res."""
    bt, lq, d = x_ref.shape
    lk = k_ref.shape[1]
    scale = 1.0 / float(d // num_heads) ** 0.5

    x = x_ref[...].astype(jnp.float32).reshape(bt * lq, d)
    h = _layernorm_f32(x, ng_ref[...], nb_ref[...], eps)
    q = (jnp.dot(h.astype(jnp.bfloat16), wq_ref[...],
                 preferred_element_type=jnp.float32) + bq_ref[...]) * scale

    k = k_ref[...].astype(jnp.float32)
    v = v_ref[...].astype(jnp.float32)

    if kv_len < lk:        # additive mask for lane-padded keys (static shapes)
        key_idx = lax.broadcasted_iota(jnp.int32, (1, 1, lk), 2)
        bias = jnp.where(key_idx < kv_len, 0.0, -1e30).astype(jnp.float32)
    else:
        bias = None

    ctx = []
    for b in range(bt):                              # static unroll over Bt
        rs = slice(b * lq, (b + 1) * lq)
        ctx.append(_mha_core(q[rs], k[b], v[b], num_heads, bias))
    ctx_all = ctx[0] if bt == 1 else jnp.concatenate(ctx, axis=0)

    out = x + bo_ref[...] + jnp.dot(ctx_all.astype(jnp.bfloat16), wo_ref[...],
                                    preferred_element_type=jnp.float32)
    o_ref[...] = out.reshape(bt, lq, d).astype(o_ref.dtype)


def _kv_proj_kernel(t_ref, wkv_ref, bkv_ref, k_ref, v_ref):
    """Hoisted cross-attention K/V projection over flattened image tokens."""
    d = t_ref.shape[-1]
    kv = jnp.dot(t_ref[...].astype(jnp.bfloat16), wkv_ref[...],
                 preferred_element_type=jnp.float32) + bkv_ref[...]
    k_ref[...] = kv[:, :d].astype(k_ref.dtype)
    v_ref[...] = kv[:, d:].astype(v_ref.dtype)


def _ffn_kernel(x_ref, ng_ref, nb_ref, w1_ref, b1_ref, w2_ref, b2_ref, o_ref,
                *, eps):
    """Fused: LN -> W1 -> GELU -> W2 -> +residual (rows = flattened B*L tokens)."""
    x = x_ref[...].astype(jnp.float32)
    h = _layernorm_f32(x, ng_ref[...], nb_ref[...], eps)
    h1 = jnp.dot(h.astype(jnp.bfloat16), w1_ref[...],
                 preferred_element_type=jnp.float32) + b1_ref[...]
    g = _gelu_tanh(h1)
    h2 = jnp.dot(g.astype(jnp.bfloat16), w2_ref[...],
                 preferred_element_type=jnp.float32) + b2_ref[...]
    o_ref[...] = (x + h2).astype(o_ref.dtype)


def _final_ln_kernel(x_ref, ng_ref, nb_ref, o_ref, *, eps):
    x = x_ref[...].astype(jnp.float32)
    o_ref[...] = _layernorm_f32(x, ng_ref[...], nb_ref[...], eps).astype(o_ref.dtype)


# ---------------------------------------------------------------------------
# Wrappers (one pallas_call per fused block)
# ---------------------------------------------------------------------------
def self_attn_block(x, p, num_heads, *, eps=1e-5):
    B, Lq, D = x.shape
    Bt = _pick_batch_tile(B)
    kernel = functools.partial(_self_attn_kernel, num_heads=num_heads, eps=eps)
    return pl.pallas_call(
        kernel,
        grid=(B // Bt,),
        in_specs=[
            pl.BlockSpec((Bt, Lq, D), lambda b: (b, 0, 0)),
            pl.BlockSpec((1, D), lambda b: (0, 0)),
            pl.BlockSpec((1, D), lambda b: (0, 0)),
            pl.BlockSpec((D, 3 * D), lambda b: (0, 0)),
            pl.BlockSpec((1, 3 * D), lambda b: (0, 0)),
            pl.BlockSpec((D, D), lambda b: (0, 0)),
            pl.BlockSpec((1, D), lambda b: (0, 0)),
        ],
        out_specs=pl.BlockSpec((Bt, Lq, D), lambda b: (b, 0, 0)),
        out_shape=jax.ShapeDtypeStruct((B, Lq, D), x.dtype),
        compiler_params=_PAR,
    )(x, p["norm_g"], p["norm_b"], p["w_qkv"], p["b_qkv"], p["w_o"], p["b_o"])


def cross_attn_block(x, k, v, p, num_heads, kv_len, *, eps=1e-5):
    B, Lq, D = x.shape
    Lk = k.shape[1]
    Bt = _pick_batch_tile(B)
    kernel = functools.partial(_cross_attn_kernel, num_heads=num_heads, eps=eps,
                               kv_len=kv_len)
    return pl.pallas_call(
        kernel,
        grid=(B // Bt,),
        in_specs=[
            pl.BlockSpec((Bt, Lq, D), lambda b: (b, 0, 0)),
            pl.BlockSpec((Bt, Lk, D), lambda b: (b, 0, 0)),
            pl.BlockSpec((Bt, Lk, D), lambda b: (b, 0, 0)),
            pl.BlockSpec((1, D), lambda b: (0, 0)),
            pl.BlockSpec((1, D), lambda b: (0, 0)),
            pl.BlockSpec((D, D), lambda b: (0, 0)),
            pl.BlockSpec((1, D), lambda b: (0, 0)),
            pl.BlockSpec((D, D), lambda b: (0, 0)),
            pl.BlockSpec((1, D), lambda b: (0, 0)),
        ],
        out_specs=pl.BlockSpec((Bt, Lq, D), lambda b: (b, 0, 0)),
        out_shape=jax.ShapeDtypeStruct((B, Lq, D), x.dtype),
        compiler_params=_PAR,
    )(x, k, v, p["norm_g"], p["norm_b"], p["w_q"], p["b_q"], p["w_o"], p["b_o"])


def kv_projection(image_feats, p, lk_pad):
    """Project image tokens to K/V once per layer over the flattened batch."""
    B, Lk, D = image_feats.shape
    M = B * Lk
    TM = _pick_row_tile(M)
    Mp = _round_up(M, TM)
    t = image_feats.reshape(M, D)
    if Mp != M:
        t = jnp.pad(t, ((0, Mp - M), (0, 0)))
    k, v = pl.pallas_call(
        _kv_proj_kernel,
        grid=(Mp // TM,),
        in_specs=[
            pl.BlockSpec((TM, D), lambda i: (i, 0)),
            pl.BlockSpec((D, 2 * D), lambda i: (0, 0)),
            pl.BlockSpec((1, 2 * D), lambda i: (0, 0)),
        ],
        out_specs=[
            pl.BlockSpec((TM, D), lambda i: (i, 0)),
            pl.BlockSpec((TM, D), lambda i: (i, 0)),
        ],
        out_shape=(jax.ShapeDtypeStruct((Mp, D), jnp.bfloat16),
                   jax.ShapeDtypeStruct((Mp, D), jnp.bfloat16)),
        compiler_params=_PAR,
    )(t, p["w_kv"], p["b_kv"])
    k = k[:M].reshape(B, Lk, D)
    v = v[:M].reshape(B, Lk, D)
    if lk_pad != Lk:   # lane-dense key length; padded keys masked in the kernel
        pad = ((0, 0), (0, lk_pad - Lk), (0, 0))
        k = jnp.pad(k, pad)
        v = jnp.pad(v, pad)
    return k, v


def ffn_block(x, p, *, eps=1e-5):
    B, L, D = x.shape
    M = B * L
    TM = _pick_row_tile(M)
    Mp = _round_up(M, TM)
    xf = x.reshape(M, D)
    if Mp != M:
        xf = jnp.pad(xf, ((0, Mp - M), (0, 0)))
    d_ff = p["w1"].shape[1]
    out = pl.pallas_call(
        functools.partial(_ffn_kernel, eps=eps),
        grid=(Mp // TM,),
        in_specs=[
            pl.BlockSpec((TM, D), lambda i: (i, 0)),
            pl.BlockSpec((1, D), lambda i: (0, 0)),
            pl.BlockSpec((1, D), lambda i: (0, 0)),
            pl.BlockSpec((D, d_ff), lambda i: (0, 0)),
            pl.BlockSpec((1, d_ff), lambda i: (0, 0)),
            pl.BlockSpec((d_ff, D), lambda i: (0, 0)),
            pl.BlockSpec((1, D), lambda i: (0, 0)),
        ],
        out_specs=pl.BlockSpec((TM, D), lambda i: (i, 0)),
        out_shape=jax.ShapeDtypeStruct((Mp, D), x.dtype),
        compiler_params=_PAR,
    )(xf, p["norm_g"], p["norm_b"], p["w1"], p["b1"], p["w2"], p["b2"])
    return out[:M].reshape(B, L, D)


def final_layernorm(x, gamma, beta, *, eps=1e-5):
    B, L, D = x.shape
    M = B * L
    TM = _pick_row_tile(M)
    Mp = _round_up(M, TM)
    xf = x.reshape(M, D)
    if Mp != M:
        xf = jnp.pad(xf, ((0, Mp - M), (0, 0)))
    out = pl.pallas_call(
        functools.partial(_final_ln_kernel, eps=eps),
        grid=(Mp // TM,),
        in_specs=[
            pl.BlockSpec((TM, D), lambda i: (i, 0)),
            pl.BlockSpec((1, D), lambda i: (0, 0)),
            pl.BlockSpec((1, D), lambda i: (0, 0)),
        ],
        out_specs=pl.BlockSpec((TM, D), lambda i: (i, 0)),
        out_shape=jax.ShapeDtypeStruct((Mp, D), x.dtype),
        compiler_params=_PAR,
    )(xf, gamma, beta)
    return out[:M].reshape(B, L, D)


def qformer_forward(image_feats, params, num_heads):
    B, Lk, _ = image_feats.shape
    qt = params["query_tokens"]
    x = jnp.broadcast_to(qt, (B, qt.shape[1], qt.shape[2]))
    lk_pad = _round_up(Lk, 128)       # lane-dense key length for cross-attention
    for lp in params["layers"]:
        # self-attention block (norm1 + MHA + residual, fused; no kv operand)
        x = self_attn_block(x, lp["self_attn"], num_heads)
        # cross-attention block (norm2 + MHA over image feats + residual, fused)
        if lp["cross_attn"] is not None:
            k, v = kv_projection(image_feats, lp["cross_attn"], lk_pad)
            x = cross_attn_block(x, k, v, lp["cross_attn"], num_heads, kv_len=Lk)
        # FFN block (LN + W1 + GELU + W2 + residual, fused, row-tiled over B*L)
        x = ffn_block(x, lp["ffn"])
    return final_layernorm(x, params["norm_g"], params["norm_b"])


# ---------------------------------------------------------------------------
# Deterministic parameter initialization (weights bf16, biases/LN f32)
# ---------------------------------------------------------------------------
def _init_self_attn(key, D):
    ks = jax.random.split(key, 4)
    s = 0.02
    w = [jax.random.normal(ks[i], (D, D), jnp.float32) * s for i in range(4)]
    return {
        "norm_g": jnp.ones((1, D), jnp.float32),
        "norm_b": jnp.zeros((1, D), jnp.float32),
        "w_qkv": jnp.concatenate(w[:3], axis=1).astype(jnp.bfloat16),  # [D, 3D]
        "b_qkv": jnp.zeros((1, 3 * D), jnp.float32),
        "w_o": w[3].astype(jnp.bfloat16),
        "b_o": jnp.zeros((1, D), jnp.float32),
    }


def _init_cross_attn(key, D):
    ks = jax.random.split(key, 4)
    s = 0.02
    w_q, w_k, w_v, w_o = [jax.random.normal(ks[i], (D, D), jnp.float32) * s
                          for i in range(4)]
    return {
        "norm_g": jnp.ones((1, D), jnp.float32),
        "norm_b": jnp.zeros((1, D), jnp.float32),
        "w_q": w_q.astype(jnp.bfloat16),
        "b_q": jnp.zeros((1, D), jnp.float32),
        "w_kv": jnp.concatenate([w_k, w_v], axis=1).astype(jnp.bfloat16),  # [D, 2D]
        "b_kv": jnp.zeros((1, 2 * D), jnp.float32),
        "w_o": w_o.astype(jnp.bfloat16),
        "b_o": jnp.zeros((1, D), jnp.float32),
    }


def init_qformer_params(key, *, num_query_tokens, hidden_size, intermediate_size,
                        num_layers, cross_attention_frequency):
    D, F = hidden_size, intermediate_size
    keys = jax.random.split(key, num_layers + 1)
    params = {
        "query_tokens": jax.random.normal(keys[0], (1, num_query_tokens, D),
                                          jnp.float32),
        "norm_g": jnp.ones((1, D), jnp.float32),
        "norm_b": jnp.zeros((1, D), jnp.float32),
        "layers": [],
    }
    for i in range(num_layers):
        lk = jax.random.split(keys[i + 1], 4)
        add_cross = (i % cross_attention_frequency) == 0
        params["layers"].append({
            "self_attn": _init_self_attn(lk[0], D),
            "cross_attn": _init_cross_attn(lk[1], D) if add_cross else None,
            "ffn": {
                "norm_g": jnp.ones((1, D), jnp.float32),
                "norm_b": jnp.zeros((1, D), jnp.float32),
                "w1": (jax.random.normal(lk[2], (D, F), jnp.float32) * 0.02
                       ).astype(jnp.bfloat16),
                "b1": jnp.zeros((1, F), jnp.float32),
                "w2": (jax.random.normal(lk[3], (F, D), jnp.float32) * 0.02
                       ).astype(jnp.bfloat16),
                "b2": jnp.zeros((1, D), jnp.float32),
            },
        })
    return params


# ---------------------------------------------------------------------------
if __name__ == "__main__":
    # small config consistent with the module
    B, N_IMG = 2, 16          # batch, image tokens from frozen vision encoder
    NUM_QUERY_TOKENS = 8
    HIDDEN = 32
    NUM_HEADS = 4
    INTERMEDIATE = 64
    NUM_LAYERS = 2
    CROSS_FREQ = 2            # layer 0 has cross-attention, layer 1 does not

    key = jax.random.PRNGKey(0)
    k_param, k_input = jax.random.split(key)

    params = init_qformer_params(
        k_param,
        num_query_tokens=NUM_QUERY_TOKENS,
        hidden_size=HIDDEN,
        intermediate_size=INTERMEDIATE,
        num_layers=NUM_LAYERS,
        cross_attention_frequency=CROSS_FREQ,
    )
    image_feats = jax.random.normal(k_input, (B, N_IMG, HIDDEN), jnp.float32)

    fwd = jax.jit(qformer_forward, static_argnums=2)
    out = fwd(image_feats, params, NUM_HEADS)
    out = jax.block_until_ready(out)
    assert out.shape == (B, NUM_QUERY_TOKENS, HIDDEN)
    assert bool(jnp.all(jnp.isfinite(out)))
    print("KERNEL_OK")
</pallas_src>

<mosaic_0001>
module attributes {stable_mosaic.version = 11 : i64} {
  func.func @_self_attn_kernel(%arg0: i32, %arg1: memref<1x8x32xf32, #tpu.memory_space<vmem>>, %arg2: memref<1x32xf32, #tpu.memory_space<vmem>>, %arg3: memref<1x32xf32, #tpu.memory_space<vmem>>, %arg4: memref<32x96xbf16, #tpu.memory_space<vmem>>, %arg5: memref<1x96xf32, #tpu.memory_space<vmem>>, %arg6: memref<32x32xbf16, #tpu.memory_space<vmem>>, %arg7: memref<1x32xf32, #tpu.memory_space<vmem>>, %arg8: memref<1x8x32xf32, #tpu.memory_space<vmem>>) attributes {dimension_semantics = [#tpu.dimension_semantics<parallel>], iteration_bounds = array<i64: 2>, scalar_prefetch = 0 : i64, scratch_operands = 0 : i64, tpu.core_type = #tpu.core_type<tc>, window_params = [{transform_indices = @transform_0, window_bounds = array<i64: 1, 8, 32>}, {pipeline_mode = #tpu.pipeline_mode<synchronous>, transform_indices = @transform_1, window_bounds = array<i64: 1, 32>}, {pipeline_mode = #tpu.pipeline_mode<synchronous>, transform_indices = @transform_2, window_bounds = array<i64: 1, 32>}, {pipeline_mode = #tpu.pipeline_mode<synchronous>, transform_indices = @transform_3, window_bounds = array<i64: 32, 96>}, {pipeline_mode = #tpu.pipeline_mode<synchronous>, transform_indices = @transform_4, window_bounds = array<i64: 1, 96>}, {pipeline_mode = #tpu.pipeline_mode<synchronous>, transform_indices = @transform_5, window_bounds = array<i64: 32, 32>}, {pipeline_mode = #tpu.pipeline_mode<synchronous>, transform_indices = @transform_6, window_bounds = array<i64: 1, 32>}, {transform_indices = @transform_7, window_bounds = array<i64: 1, 8, 32>}]} {
    %c0 = arith.constant 0 : index
    %c0_0 = arith.constant 0 : index
    %c0_1 = arith.constant 0 : index
    %0 = vector.load %arg1[%c0, %c0_0, %c0_1] : memref<1x8x32xf32, #tpu.memory_space<vmem>>, vector<1x8x32xf32>
    %1 = vector.shape_cast %0 : vector<1x8x32xf32> to vector<8x32xf32>
    %c0_2 = arith.constant 0 : index
    %c0_3 = arith.constant 0 : index
    %2 = vector.load %arg2[%c0_2, %c0_3] : memref<1x32xf32, #tpu.memory_space<vmem>>, vector<1x32xf32>
    %c0_4 = arith.constant 0 : index
    %c0_5 = arith.constant 0 : index
    %3 = vector.load %arg3[%c0_4, %c0_5] : memref<1x32xf32, #tpu.memory_space<vmem>>, vector<1x32xf32>
    %cst = arith.constant dense<0.000000e+00> : vector<8xf32>
    %4 = vector.multi_reduction <add>, %1, %cst [1] : vector<8x32xf32> to vector<8xf32>
    %5 = vector.shape_cast %4 : vector<8xf32> to vector<8x1xf32>
    %cst_6 = arith.constant 3.200000e+01 : f32
    %6 = vector.broadcast %cst_6 : f32 to vector<8x1xf32>
    %7 = arith.divf %5, %6 : vector<8x1xf32>
    %8 = vector.broadcast %7 : vector<8x1xf32> to vector<8x32xf32>
    %9 = arith.subf %1, %8 : vector<8x32xf32>
    %10 = arith.mulf %9, %9 : vector<8x32xf32>
    %cst_7 = arith.constant dense<0.000000e+00> : vector<8xf32>
    %11 = vector.multi_reduction <add>, %10, %cst_7 [1] : vector<8x32xf32> to vector<8xf32>
    %12 = vector.shape_cast %11 : vector<8xf32> to vector<8x1xf32>
    %cst_8 = arith.constant 3.200000e+01 : f32
    %13 = vector.broadcast %cst_8 : f32 to vector<8x1xf32>
    %14 = arith.divf %12, %13 : vector<8x1xf32>
    %15 = vector.broadcast %7 : vector<8x1xf32> to vector<8x32xf32>
    %16 = arith.subf %1, %15 : vector<8x32xf32>
    %cst_9 = arith.constant 9.99999974E-6 : f32
    %17 = vector.broadcast %cst_9 : f32 to vector<8x1xf32>
    %18 = arith.addf %14, %17 : vector<8x1xf32>
    %19 = math.rsqrt %18 : vector<8x1xf32>
    %20 = vector.broadcast %19 : vector<8x1xf32> to vector<8x32xf32>
    %21 = arith.mulf %16, %20 : vector<8x32xf32>
    %22 = vector.broadcast %2 : vector<1x32xf32> to vector<8x32xf32>
    %23 = arith.mulf %21, %22 : vector<8x32xf32>
    %24 = vector.broadcast %3 : vector<1x32xf32> to vector<8x32xf32>
    %25 = arith.addf %23, %24 : vector<8x32xf32>
    %26 = arith.truncf %25 : vector<8x32xf32> to vector<8x32xbf16>
    %c0_10 = arith.constant 0 : index
    %c0_11 = arith.constant 0 : index
    %27 = vector.load %arg4[%c0_10, %c0_11] : memref<32x96xbf16, #tpu.memory_space<vmem>>, vector<32x96xbf16>
    %cst_12 = arith.constant dense<0.000000e+00> : vector<8x96xf32>
    %28 = tpu.matmul %26, %27, %cst_12 {dimension_numbers = #tpu.dot_dimension_numbers<[1], [0], [0], [1], [0, 0, 1, 1], [], []>} : vector<8x32xbf16>, vector<32x96xbf16>, vector<8x96xf32> -> vector<8x96xf32>
    %c0_13 = arith.constant 0 : index
    %c0_14 = arith.constant 0 : index
    %29 = vector.load %arg5[%c0_13, %c0_14] : memref<1x96xf32, #tpu.memory_space<vmem>>, vector<1x96xf32>
    %30 = vector.broadcast %29 : vector<1x96xf32> to vector<8x96xf32>
    %31 = arith.addf %28, %30 : vector<8x96xf32>
    %32 = vector.extract_strided_slice %31 {offsets = [0, 0], sizes = [8, 32], strides = [1, 1]} : vector<8x96xf32> to vector<8x32xf32>
    %cst_15 = arith.constant 0.353553385 : f32
    %33 = vector.broadcast %cst_15 : f32 to vector<8x32xf32>
    %34 = arith.mulf %32, %33 : vector<8x32xf32>
    %35 = vector.extract_strided_slice %31 {offsets = [0, 32], sizes = [8, 32], strides = [1, 1]} : vector<8x96xf32> to vector<8x32xf32>
    %36 = vector.extract_strided_slice %31 {offsets = [0, 64], sizes = [8, 32], strides = [1, 1]} : vector<8x96xf32> to vector<8x32xf32>
    %37 = vector.shape_cast %34 : vector<8x32xf32> to vector<8x4x8xf32>
    %38 = tpu.transpose %37, [1, 0, 2] : vector<8x4x8xf32> -> vector<4x8x8xf32>
    %39 = arith.truncf %38 : vector<4x8x8xf32> to vector<4x8x8xbf16>
    %40 = vector.shape_cast %35 : vector<8x32xf32> to vector<8x4x8xf32>
    %41 = tpu.transpose %40, [1, 0, 2] : vector<8x4x8xf32> -> vector<4x8x8xf32>
    %42 = arith.truncf %41 : vector<4x8x8xf32> to vector<4x8x8xbf16>
    %43 = vector.shape_cast %36 : vector<8x32xf32> to vector<8x4x8xf32>
    %44 = tpu.transpose %43, [1, 0, 2] : vector<8x4x8xf32> -> vector<4x8x8xf32>
    %45 = arith.truncf %44 : vector<4x8x8xf32> to vector<4x8x8xbf16>
    "tpu.trace_start"() <{level = 10 : i32, message = "hqd,hkd->hqk"}> : () -> ()
    %cst_16 = arith.constant dense<0.000000e+00> : vector<4x8x8xf32>
    %46 = tpu.matmul %39, %42, %cst_16 {dimension_numbers = #tpu.dot_dimension_numbers<[2], [2], [1], [1], [0, 0, 0, 1, 1, 1], [0], [0]>} : vector<4x8x8xbf16>, vector<4x8x8xbf16>, vector<4x8x8xf32> -> vector<4x8x8xf32>
    "tpu.trace_stop"() : () -> ()
    %cst_17 = arith.constant dense<0xFF800000> : vector<4x8xf32>
    %47 = vector.multi_reduction <maximumf>, %46, %cst_17 [2] : vector<4x8x8xf32> to vector<4x8xf32>
    %48 = vector.shape_cast %47 : vector<4x8xf32> to vector<4x8x1xf32>
    %49 = vector.broadcast %48 : vector<4x8x1xf32> to vector<4x8x8xf32>
    %50 = arith.subf %46, %49 : vector<4x8x8xf32>
    %51 = math.exp %50 : vector<4x8x8xf32>
    %cst_18 = arith.constant dense<0.000000e+00> : vector<4x8xf32>
    %52 = vector.multi_reduction <add>, %51, %cst_18 [2] : vector<4x8x8xf32> to vector<4x8xf32>
    %53 = vector.shape_cast %52 : vector<4x8xf32> to vector<4x8x1xf32>
    %54 = vector.broadcast %53 : vector<4x8x1xf32> to vector<4x8x8xf32>
    %55 = arith.divf %51, %54 : vector<4x8x8xf32>
    %56 = arith.truncf %55 : vector<4x8x8xf32> to vector<4x8x8xbf16>
    "tpu.trace_start"() <{level = 10 : i32, message = "hqk,hkd->hqd"}> : () -> ()
    %cst_19 = arith.constant dense<0.000000e+00> : vector<4x8x8xf32>
    %57 = tpu.matmul %56, %45, %cst_19 {dimension_numbers = #tpu.dot_dimension_numbers<[2], [1], [1], [2], [0, 0, 0, 1, 1, 2], [0], [0]>} : vector<4x8x8xbf16>, vector<4x8x8xbf16>, vector<4x8x8xf32> -> vector<4x8x8xf32>
    "tpu.trace_stop"() : () -> ()
    %58 = tpu.transpose %57, [1, 0, 2] : vector<4x8x8xf32> -> vector<8x4x8xf32>
    %59 = vector.shape_cast %58 : vector<8x4x8xf32> to vector<8x32xf32>
    %c0_20 = arith.constant 0 : index
    %c0_21 = arith.constant 0 : index
    %60 = vector.load %arg7[%c0_20, %c0_21] : memref<1x32xf32, #tpu.memory_space<vmem>>, vector<1x32xf32>
    %61 = vector.broadcast %60 : vector<1x32xf32> to vector<8x32xf32>
    %62 = arith.addf %1, %61 : vector<8x32xf32>
    %63 = arith.truncf %59 : vector<8x32xf32> to vector<8x32xbf16>
    %c0_22 = arith.constant 0 : index
    %c0_23 = arith.constant 0 : index
    %64 = vector.load %arg6[%c0_22, %c0_23] : memref<32x32xbf16, #tpu.memory_space<vmem>>, vector<32x32xbf16>
    %cst_24 = arith.constant dense<0.000000e+00> : vector<8x32xf32>
    %65 = tpu.matmul %63, %64, %cst_24 {dimension_numbers = #tpu.dot_dimension_numbers<[1], [0], [0], [1], [0, 0, 1, 1], [], []>} : vector<8x32xbf16>, vector<32x32xbf16>, vector<8x32xf32> -> vector<8x32xf32>
    %66 = arith.addf %62, %65 : vector<8x32xf32>
    %67 = vector.shape_cast %66 : vector<8x32xf32> to vector<1x8x32xf32>
    %c0_25 = arith.constant 0 : index
    %c0_26 = arith.constant 0 : index
    %c0_27 = arith.constant 0 : index
    %68 = vector.load %arg8[%c0_25, %c0_26, %c0_27] : memref<1x8x32xf32, #tpu.memory_space<vmem>>, vector<1x8x32xf32>
    tpu.vector_store %arg8[%c0_25, %c0_26, %c0_27], %67 {strides = array<i32>} : memref<1x8x32xf32, #tpu.memory_space<vmem>>, vector<1x8x32xf32>,
    return
  }
  func.func @transform_0(%arg0: i32) -> (i32, i32, i32) {
    %c0_i32 = arith.constant 0 : i32
    %c0_i32_0 = arith.constant 0 : i32
    %c0_i32_1 = arith.constant 0 : i32
    return %arg0, %c0_i32, %c0_i32_0 : i32, i32, i32
  }
  func.func @transform_1(%arg0: i32) -> (i32, i32) {
    %c0_i32 = arith.constant 0 : i32
    %c0_i32_0 = arith.constant 0 : i32
    %c0_i32_1 = arith.constant 0 : i32
    return %c0_i32, %c0_i32_0 : i32, i32
  }
  func.func @transform_2(%arg0: i32) -> (i32, i32) {
    %c0_i32 = arith.constant 0 : i32
    %c0_i32_0 = arith.constant 0 : i32
    %c0_i32_1 = arith.constant 0 : i32
    return %c0_i32, %c0_i32_0 : i32, i32
  }
  func.func @transform_3(%arg0: i32) -> (i32, i32) {
    %c0_i32 = arith.constant 0 : i32
    %c0_i32_0 = arith.constant 0 : i32
    %c0_i32_1 = arith.constant 0 : i32
    return %c0_i32, %c0_i32_0 : i32, i32
  }
  func.func @transform_4(%arg0: i32) -> (i32, i32) {
    %c0_i32 = arith.constant 0 : i32
    %c0_i32_0 = arith.constant 0 : i32
    %c0_i32_1 = arith.constant 0 : i32
    return %c0_i32, %c0_i32_0 : i32, i32
  }
  func.func @transform_5(%arg0: i32) -> (i32, i32) {
    %c0_i32 = arith.constant 0 : i32
    %c0_i32_0 = arith.constant 0 : i32
    %c0_i32_1 = arith.constant 0 : i32
    return %c0_i32, %c0_i32_0 : i32, i32
  }
  func.func @transform_6(%arg0: i32) -> (i32, i32) {
    %c0_i32 = arith.constant 0 : i32
    %c0_i32_0 = arith.constant 0 : i32
    %c0_i32_1 = arith.constant 0 : i32
    return %c0_i32, %c0_i32_0 : i32, i32
  }
  func.func @transform_7(%arg0: i32) -> (i32, i32, i32) {
    %c0_i32 = arith.constant 0 : i32
    %c0_i32_0 = arith.constant 0 : i32
    %c0_i32_1 = arith.constant 0 : i32
    return %arg0, %c0_i32, %c0_i32_0 : i32, i32, i32
  }
}

module attributes {stable_mosaic.version = 11 : i64} {
  func.func @_kv_proj_kernel(%arg0: i32, %arg1: memref<16x32xf32, #tpu.memory_space<vmem>>, %arg2: memref<32x64xbf16, #tpu.memory_space<vmem>>, %arg3: memref<1x64xf32, #tpu.memory_space<vmem>>, %arg4: memref<16x32xbf16, #tpu.memory_space<vmem>>, %arg5: memref<16x32xbf16, #tpu.memory_space<vmem>>) attributes {dimension_semantics = [#tpu.dimension_semantics<parallel>], iteration_bounds = array<i64: 2>, scalar_prefetch = 0 : i64, scratch_operands = 0 : i64, tpu.core_type = #tpu.core_type<tc>, window_params = [{transform_indices = @transform_0, window_bounds = array<i64: 16, 32>}, {pipeline_mode = #tpu.pipeline_mode<synchronous>, transform_indices = @transform_1, window_bounds = array<i64: 32, 64>}, {pipeline_mode = #tpu.pipeline_mode<synchronous>, transform_indices = @transform_2, window_bounds = array<i64: 1, 64>}, {transform_indices = @transform_3, window_bounds = array<i64: 16, 32>}, {transform_indices = @transform_4, window_bounds = array<i64: 16, 32>}]} {
    %c0 = arith.constant 0 : index
    %c0_0 = arith.constant 0 : index
    %0 = vector.load %arg1[%c0, %c0_0] : memref<16x32xf32, #tpu.memory_space<vmem>>, vector<16x32xf32>
    %1 = arith.truncf %0 : vector<16x32xf32> to vector<16x32xbf16>
    %c0_1 = arith.constant 0 : index
    %c0_2 = arith.constant 0 : index
    %2 = vector.load %arg2[%c0_1, %c0_2] : memref<32x64xbf16, #tpu.memory_space<vmem>>, vector<32x64xbf16>
    %cst = arith.constant dense<0.000000e+00> : vector<16x64xf32>
    %3 = tpu.matmul %1, %2, %cst {dimension_numbers = #tpu.dot_dimension_numbers<[1], [0], [0], [1], [0, 0, 1, 1], [], []>} : vector<16x32xbf16>, vector<32x64xbf16>, vector<16x64xf32> -> vector<16x64xf32>
    %c0_3 = arith.constant 0 : index
    %c0_4 = arith.constant 0 : index
    %4 = vector.load %arg3[%c0_3, %c0_4] : memref<1x64xf32, #tpu.memory_space<vmem>>, vector<1x64xf32>
    %5 = vector.broadcast %4 : vector<1x64xf32> to vector<16x64xf32>
    %6 = arith.addf %3, %5 : vector<16x64xf32>
    %7 = vector.extract_strided_slice %6 {offsets = [0, 0], sizes = [16, 32], strides = [1, 1]} : vector<16x64xf32> to vector<16x32xf32>
    %8 = arith.truncf %7 : vector<16x32xf32> to vector<16x32xbf16>
    %c0_5 = arith.constant 0 : index
    %c0_6 = arith.constant 0 : index
    %9 = vector.load %arg4[%c0_5, %c0_6] : memref<16x32xbf16, #tpu.memory_space<vmem>>, vector<16x32xbf16>
    tpu.vector_store %arg4[%c0_5, %c0_6], %8 {strides = array<i32>} : memref<16x32xbf16, #tpu.memory_space<vmem>>, vector<16x32xbf16>,
    %10 = vector.extract_strided_slice %6 {offsets = [0, 32], sizes = [16, 32], strides = [1, 1]} : vector<16x64xf32> to vector<16x32xf32>
    %11 = arith.truncf %10 : vector<16x32xf32> to vector<16x32xbf16>
    %c0_7 = arith.constant 0 : index
    %c0_8 = arith.constant 0 : index
    %12 = vector.load %arg5[%c0_7, %c0_8] : memref<16x32xbf16, #tpu.memory_space<vmem>>, vector<16x32xbf16>
    tpu.vector_store %arg5[%c0_7, %c0_8], %11 {strides = array<i32>} : memref<16x32xbf16, #tpu.memory_space<vmem>>, vector<16x32xbf16>,
    return
  }
  func.func @transform_0(%arg0: i32) -> (i32, i32) {
    %c0_i32 = arith.constant 0 : i32
    %c0_i32_0 = arith.constant 0 : i32
    return %arg0, %c0_i32 : i32, i32
  }
  func.func @transform_1(%arg0: i32) -> (i32, i32) {
    %c0_i32 = arith.constant 0 : i32
    %c0_i32_0 = arith.constant 0 : i32
    %c0_i32_1 = arith.constant 0 : i32
    return %c0_i32, %c0_i32_0 : i32, i32
  }
  func.func @transform_2(%arg0: i32) -> (i32, i32) {
    %c0_i32 = arith.constant 0 : i32
    %c0_i32_0 = arith.constant 0 : i32
    %c0_i32_1 = arith.constant 0 : i32
    return %c0_i32, %c0_i32_0 : i32, i32
  }
  func.func @transform_3(%arg0: i32) -> (i32, i32) {
    %c0_i32 = arith.constant 0 : i32
    %c0_i32_0 = arith.constant 0 : i32
    return %arg0, %c0_i32 : i32, i32
  }
  func.func @transform_4(%arg0: i32) -> (i32, i32) {
    %c0_i32 = arith.constant 0 : i32
    %c0_i32_0 = arith.constant 0 : i32
    return %arg0, %c0_i32 : i32, i32
  }
}

module attributes {stable_mosaic.version = 11 : i64} {
  func.func @_cross_attn_kernel(%arg0: i32, %arg1: memref<1x8x32xf32, #tpu.memory_space<vmem>>, %arg2: memref<1x128x32xbf16, #tpu.memory_space<vmem>>, %arg3: memref<1x128x32xbf16, #tpu.memory_space<vmem>>, %arg4: memref<1x32xf32, #tpu.memory_space<vmem>>, %arg5: memref<1x32xf32, #tpu.memory_space<vmem>>, %arg6: memref<32x32xbf16, #tpu.memory_space<vmem>>, %arg7: memref<1x32xf32, #tpu.memory_space<vmem>>, %arg8: memref<32x32xbf16, #tpu.memory_space<vmem>>, %arg9: memref<1x32xf32, #tpu.memory_space<vmem>>, %arg10: memref<1x8x32xf32, #tpu.memory_space<vmem>>) attributes {dimension_semantics = [#tpu.dimension_semantics<parallel>], iteration_bounds = array<i64: 2>, scalar_prefetch = 0 : i64, scratch_operands = 0 : i64, tpu.core_type = #tpu.core_type<tc>, window_params = [{transform_indices = @transform_0, window_bounds = array<i64: 1, 8, 32>}, {transform_indices = @transform_1, window_bounds = array<i64: 1, 128, 32>}, {transform_indices = @transform_2, window_bounds = array<i64: 1, 128, 32>}, {pipeline_mode = #tpu.pipeline_mode<synchronous>, transform_indices = @transform_3, window_bounds = array<i64: 1, 32>}, {pipeline_mode = #tpu.pipeline_mode<synchronous>, transform_indices = @transform_4, window_bounds = array<i64: 1, 32>}, {pipeline_mode = #tpu.pipeline_mode<synchronous>, transform_indices = @transform_5, window_bounds = array<i64: 32, 32>}, {pipeline_mode = #tpu.pipeline_mode<synchronous>, transform_indices = @transform_6, window_bounds = array<i64: 1, 32>}, {pipeline_mode = #tpu.pipeline_mode<synchronous>, transform_indices = @transform_7, window_bounds = array<i64: 32, 32>}, {pipeline_mode = #tpu.pipeline_mode<synchronous>, transform_indices = @transform_8, window_bounds = array<i64: 1, 32>}, {transform_indices = @transform_9, window_bounds = array<i64: 1, 8, 32>}]} {
    %c0 = arith.constant 0 : index
    %c0_0 = arith.constant 0 : index
    %c0_1 = arith.constant 0 : index
    %0 = vector.load %arg1[%c0, %c0_0, %c0_1] : memref<1x8x32xf32, #tpu.memory_space<vmem>>, vector<1x8x32xf32>
    %1 = vector.shape_cast %0 : vector<1x8x32xf32> to vector<8x32xf32>
    %c0_2 = arith.constant 0 : index
    %c0_3 = arith.constant 0 : index
    %2 = vector.load %arg4[%c0_2, %c0_3] : memref<1x32xf32, #tpu.memory_space<vmem>>, vector<1x32xf32>
    %c0_4 = arith.constant 0 : index
    %c0_5 = arith.constant 0 : index
    %3 = vector.load %arg5[%c0_4, %c0_5] : memref<1x32xf32, #tpu.memory_space<vmem>>, vector<1x32xf32>
    %cst = arith.constant dense<0.000000e+00> : vector<8xf32>
    %4 = vector.multi_reduction <add>, %1, %cst [1] : vector<8x32xf32> to vector<8xf32>
    %5 = vector.shape_cast %4 : vector<8xf32> to vector<8x1xf32>
    %cst_6 = arith.constant 3.200000e+01 : f32
    %6 = vector.broadcast %cst_6 : f32 to vector<8x1xf32>
    %7 = arith.divf %5, %6 : vector<8x1xf32>
    %8 = vector.broadcast %7 : vector<8x1xf32> to vector<8x32xf32>
    %9 = arith.subf %1, %8 : vector<8x32xf32>
    %10 = arith.mulf %9, %9 : vector<8x32xf32>
    %cst_7 = arith.constant dense<0.000000e+00> : vector<8xf32>
    %11 = vector.multi_reduction <add>, %10, %cst_7 [1] : vector<8x32xf32> to vector<8xf32>
    %12 = vector.shape_cast %11 : vector<8xf32> to vector<8x1xf32>
    %cst_8 = arith.constant 3.200000e+01 : f32
    %13 = vector.broadcast %cst_8 : f32 to vector<8x1xf32>
    %14 = arith.divf %12, %13 : vector<8x1xf32>
    %15 = vector.broadcast %7 : vector<8x1xf32> to vector<8x32xf32>
    %16 = arith.subf %1, %15 : vector<8x32xf32>
    %cst_9 = arith.constant 9.99999974E-6 : f32
    %17 = vector.broadcast %cst_9 : f32 to vector<8x1xf32>
    %18 = arith.addf %14, %17 : vector<8x1xf32>
    %19 = math.rsqrt %18 : vector<8x1xf32>
    %20 = vector.broadcast %19 : vector<8x1xf32> to vector<8x32xf32>
    %21 = arith.mulf %16, %20 : vector<8x32xf32>
    %22 = vector.broadcast %2 : vector<1x32xf32> to vector<8x32xf32>
    %23 = arith.mulf %21, %22 : vector<8x32xf32>
    %24 = vector.broadcast %3 : vector<1x32xf32> to vector<8x32xf32>
    %25 = arith.addf %23, %24 : vector<8x32xf32>
    %26 = arith.truncf %25 : vector<8x32xf32> to vector<8x32xbf16>
    %c0_10 = arith.constant 0 : index
    %c0_11 = arith.constant 0 : index
    %27 = vector.load %arg6[%c0_10, %c0_11] : memref<32x32xbf16, #tpu.memory_space<vmem>>, vector<32x32xbf16>
    %cst_12 = arith.constant dense<0.000000e+00> : vector<8x32xf32>
    %28 = tpu.matmul %26, %27, %cst_12 {dimension_numbers = #tpu.dot_dimension_numbers<[1], [0], [0], [1], [0, 0, 1, 1], [], []>} : vector<8x32xbf16>, vector<32x32xbf16>, vector<8x32xf32> -> vector<8x32xf32>
    %c0_13 = arith.constant 0 : index
    %c0_14 = arith.constant 0 : index
    %29 = vector.load %arg7[%c0_13, %c0_14] : memref<1x32xf32, #tpu.memory_space<vmem>>, vector<1x32xf32>
    %30 = vector.broadcast %29 : vector<1x32xf32> to vector<8x32xf32>
    %31 = arith.addf %28, %30 : vector<8x32xf32>
    %cst_15 = arith.constant 0.353553385 : f32
    %32 = vector.broadcast %cst_15 : f32 to vector<8x32xf32>
    %33 = arith.mulf %31, %32 : vector<8x32xf32>
    %c0_16 = arith.constant 0 : index
    %c0_17 = arith.constant 0 : index
    %c0_18 = arith.constant 0 : index
    %34 = vector.load %arg2[%c0_16, %c0_17, %c0_18] : memref<1x128x32xbf16, #tpu.memory_space<vmem>>, vector<1x128x32xbf16>
    %35 = arith.extf %34 : vector<1x128x32xbf16> to vector<1x128x32xf32>
    %c0_19 = arith.constant 0 : index
    %c0_20 = arith.constant 0 : index
    %c0_21 = arith.constant 0 : index
    %36 = vector.load %arg3[%c0_19, %c0_20, %c0_21] : memref<1x128x32xbf16, #tpu.memory_space<vmem>>, vector<1x128x32xbf16>
    %37 = arith.extf %36 : vector<1x128x32xbf16> to vector<1x128x32xf32>
    %38 = tpu.iota {dimensions = array<i32: 2>} : vector<1x1x128xi32>
    %c16_i32 = arith.constant 16 : i32
    %39 = vector.broadcast %c16_i32 : i32 to vector<1x1x128xi32>
    %40 = arith.cmpi slt, %38, %39 : vector<1x1x128xi32>
    %cst_22 = arith.constant 0.000000e+00 : f32
    %cst_23 = arith.constant -1.000000e+30 : f32
    %41 = vector.broadcast %cst_22 : f32 to vector<1x1x128xf32>
    %42 = vector.broadcast %cst_23 : f32 to vector<1x1x128xf32>
    %43 = arith.select %40, %41, %42 : vector<1x1x128xi1>, vector<1x1x128xf32>
    %44 = vector.shape_cast %35 : vector<1x128x32xf32> to vector<128x32xf32>
    %45 = vector.shape_cast %37 : vector<1x128x32xf32> to vector<128x32xf32>
    %46 = vector.shape_cast %33 : vector<8x32xf32> to vector<8x4x8xf32>
    %47 = tpu.transpose %46, [1, 0, 2] : vector<8x4x8xf32> -> vector<4x8x8xf32>
    %48 = arith.truncf %47 : vector<4x8x8xf32> to vector<4x8x8xbf16>
    %49 = vector.shape_cast %44 : vector<128x32xf32> to vector<128x4x8xf32>
    %50 = tpu.transpose %49, [1, 0, 2] : vector<128x4x8xf32> -> vector<4x128x8xf32>
    %51 = arith.truncf %50 : vector<4x128x8xf32> to vector<4x128x8xbf16>
    %52 = vector.shape_cast %45 : vector<128x32xf32> to vector<128x4x8xf32>
    %53 = tpu.transpose %52, [1, 0, 2] : vector<128x4x8xf32> -> vector<4x128x8xf32>
    %54 = arith.truncf %53 : vector<4x128x8xf32> to vector<4x128x8xbf16>
    "tpu.trace_start"() <{level = 10 : i32, message = "hqd,hkd->hqk"}> : () -> ()
    %cst_24 = arith.constant dense<0.000000e+00> : vector<4x8x128xf32>
    %55 = tpu.matmul %48, %51, %cst_24 {dimension_numbers = #tpu.dot_dimension_numbers<[2], [2], [1], [1], [0, 0, 0, 1, 1, 1], [0], [0]>} : vector<4x8x8xbf16>, vector<4x128x8xbf16>, vector<4x8x128xf32> -> vector<4x8x128xf32>
    "tpu.trace_stop"() : () -> ()
    %56 = vector.broadcast %43 : vector<1x1x128xf32> to vector<4x8x128xf32>
    %57 = arith.addf %55, %56 : vector<4x8x128xf32>
    %cst_25 = arith.constant dense<0xFF800000> : vector<4x8xf32>
    %58 = vector.multi_reduction <maximumf>, %57, %cst_25 [2] : vector<4x8x128xf32> to vector<4x8xf32>
    %59 = vector.shape_cast %58 : vector<4x8xf32> to vector<4x8x1xf32>
    %60 = vector.broadcast %59 : vector<4x8x1xf32> to vector<4x8x128xf32>
    %61 = arith.subf %57, %60 : vector<4x8x128xf32>
    %62 = math.exp %61 : vector<4x8x128xf32>
    %cst_26 = arith.constant dense<0.000000e+00> : vector<4x8xf32>
    %63 = vector.multi_reduction <add>, %62, %cst_26 [2] : vector<4x8x128xf32> to vector<4x8xf32>
    %64 = vector.shape_cast %63 : vector<4x8xf32> to vector<4x8x1xf32>
    %65 = vector.broadcast %64 : vector<4x8x1xf32> to vector<4x8x128xf32>
    %66 = arith.divf %62, %65 : vector<4x8x128xf32>
    %67 = arith.truncf %66 : vector<4x8x128xf32> to vector<4x8x128xbf16>
    "tpu.trace_start"() <{level = 10 : i32, message = "hqk,hkd->hqd"}> : () -> ()
    %cst_27 = arith.constant dense<0.000000e+00> : vector<4x8x8xf32>
    %68 = tpu.matmul %67, %54, %cst_27 {dimension_numbers = #tpu.dot_dimension_numbers<[2], [1], [1], [2], [0, 0, 0, 1, 1, 2], [0], [0]>} : vector<4x8x128xbf16>, vector<4x128x8xbf16>, vector<4x8x8xf32> -> vector<4x8x8xf32>
    "tpu.trace_stop"() : () -> ()
    %69 = tpu.transpose %68, [1, 0, 2] : vector<4x8x8xf32> -> vector<8x4x8xf32>
    %70 = vector.shape_cast %69 : vector<8x4x8xf32> to vector<8x32xf32>
    %c0_28 = arith.constant 0 : index
    %c0_29 = arith.constant 0 : index
    %71 = vector.load %arg9[%c0_28, %c0_29] : memref<1x32xf32, #tpu.memory_space<vmem>>, vector<1x32xf32>
    %72 = vector.broadcast %71 : vector<1x32xf32> to vector<8x32xf32>
    %73 = arith.addf %1, %72 : vector<8x32xf32>
    %74 = arith.truncf %70 : vector<8x32xf32> to vector<8x32xbf16>
    %c0_30 = arith.constant 0 : index
    %c0_31 = arith.constant 0 : index
    %75 = vector.load %arg8[%c0_30, %c0_31] : memref<32x32xbf16, #tpu.memory_space<vmem>>, vector<32x32xbf16>
    %cst_32 = arith.constant dense<0.000000e+00> : vector<8x32xf32>
    %76 = tpu.matmul %74, %75, %cst_32 {dimension_numbers = #tpu.dot_dimension_numbers<[1], [0], [0], [1], [0, 0, 1, 1], [], []>} : vector<8x32xbf16>, vector<32x32xbf16>, vector<8x32xf32> -> vector<8x32xf32>
    %77 = arith.addf %73, %76 : vector<8x32xf32>
    %78 = vector.shape_cast %77 : vector<8x32xf32> to vector<1x8x32xf32>
    %c0_33 = arith.constant 0 : index
    %c0_34 = arith.constant 0 : index
    %c0_35 = arith.constant 0 : index
    %79 = vector.load %arg10[%c0_33, %c0_34, %c0_35] : memref<1x8x32xf32, #tpu.memory_space<vmem>>, vector<1x8x32xf32>
    tpu.vector_store %arg10[%c0_33, %c0_34, %c0_35], %78 {strides = array<i32>} : memref<1x8x32xf32, #tpu.memory_space<vmem>>, vector<1x8x32xf32>,
    return
  }
  func.func @transform_0(%arg0: i32) -> (i32, i32, i32) {
    %c0_i32 = arith.constant 0 : i32
    %c0_i32_0 = arith.constant 0 : i32
    %c0_i32_1 = arith.constant 0 : i32
    return %arg0, %c0_i32, %c0_i32_0 : i32, i32, i32
  }
  func.func @transform_1(%arg0: i32) -> (i32, i32, i32) {
    %c0_i32 = arith.constant 0 : i32
    %c0_i32_0 = arith.constant 0 : i32
    %c0_i32_1 = arith.constant 0 : i32
    return %arg0, %c0_i32, %c0_i32_0 : i32, i32, i32
  }
  func.func @transform_2(%arg0: i32) -> (i32, i32, i32) {
    %c0_i32 = arith.constant 0 : i32
    %c0_i32_0 = arith.constant 0 : i32
    %c0_i32_1 = arith.constant 0 : i32
    return %arg0, %c0_i32, %c0_i32_0 : i32, i32, i32
  }
  func.func @transform_3(%arg0: i32) -> (i32, i32) {
    %c0_i32 = arith.constant 0 : i32
    %c0_i32_0 = arith.constant 0 : i32
    %c0_i32_1 = arith.constant 0 : i32
    return %c0_i32, %c0_i32_0 : i32, i32
  }
  func.func @transform_4(%arg0: i32) -> (i32, i32) {
    %c0_i32 = arith.constant 0 : i32
    %c0_i32_0 = arith.constant 0 : i32
    %c0_i32_1 = arith.constant 0 : i32
    return %c0_i32, %c0_i32_0 : i32, i32
  }
  func.func @transform_5(%arg0: i32) -> (i32, i32) {
    %c0_i32 = arith.constant 0 : i32
    %c0_i32_0 = arith.constant 0 : i32
    %c0_i32_1 = arith.constant 0 : i32
    return %c0_i32, %c0_i32_0 : i32, i32
  }
  func.func @transform_6(%arg0: i32) -> (i32, i32) {
    %c0_i32 = arith.constant 0 : i32
    %c0_i32_0 = arith.constant 0 : i32
    %c0_i32_1 = arith.constant 0 : i32
    return %c0_i32, %c0_i32_0 : i32, i32
  }
  func.func @transform_7(%arg0: i32) -> (i32, i32) {
    %c0_i32 = arith.constant 0 : i32
    %c0_i32_0 = arith.constant 0 : i32
    %c0_i32_1 = arith.constant 0 : i32
    return %c0_i32, %c0_i32_0 : i32, i32
  }
  func.func @transform_8(%arg0: i32) -> (i32, i32) {
    %c0_i32 = arith.constant 0 : i32
    %c0_i32_0 = arith.constant 0 : i32
    %c0_i32_1 = arith.constant 0 : i32
    return %c0_i32, %c0_i32_0 : i32, i32
  }
  func.func @transform_9(%arg0: i32) -> (i32, i32, i32) {
    %c0_i32 = arith.constant 0 : i32
    %c0_i32_0 = arith.constant 0 : i32
    %c0_i32_1 = arith.constant 0 : i32
    return %arg0, %c0_i32, %c0_i32_0 : i32, i32, i32
  }
}

module attributes {stable_mosaic.version = 11 : i64} {
  func.func @_final_ln_kernel(%arg0: i32, %arg1: memref<8x32xf32, #tpu.memory_space<vmem>>, %arg2: memref<1x32xf32, #tpu.memory_space<vmem>>, %arg3: memref<1x32xf32, #tpu.memory_space<vmem>>, %arg4: memref<8x32xf32, #tpu.memory_space<vmem>>) attributes {dimension_semantics = [#tpu.dimension_semantics<parallel>], iteration_bounds = array<i64: 2>, scalar_prefetch = 0 : i64, scratch_operands = 0 : i64, tpu.core_type = #tpu.core_type<tc>, window_params = [{transform_indices = @transform_0, window_bounds = array<i64: 8, 32>}, {pipeline_mode = #tpu.pipeline_mode<synchronous>, transform_indices = @transform_1, window_bounds = array<i64: 1, 32>}, {pipeline_mode = #tpu.pipeline_mode<synchronous>, transform_indices = @transform_2, window_bounds = array<i64: 1, 32>}, {transform_indices = @transform_3, window_bounds = array<i64: 8, 32>}]} {
    %c0 = arith.constant 0 : index
    %c0_0 = arith.constant 0 : index
    %0 = vector.load %arg1[%c0, %c0_0] : memref<8x32xf32, #tpu.memory_space<vmem>>, vector<8x32xf32>
    %c0_1 = arith.constant 0 : index
    %c0_2 = arith.constant 0 : index
    %1 = vector.load %arg2[%c0_1, %c0_2] : memref<1x32xf32, #tpu.memory_space<vmem>>, vector<1x32xf32>
    %c0_3 = arith.constant 0 : index
    %c0_4 = arith.constant 0 : index
    %2 = vector.load %arg3[%c0_3, %c0_4] : memref<1x32xf32, #tpu.memory_space<vmem>>, vector<1x32xf32>
    %cst = arith.constant dense<0.000000e+00> : vector<8xf32>
    %3 = vector.multi_reduction <add>, %0, %cst [1] : vector<8x32xf32> to vector<8xf32>
    %4 = vector.shape_cast %3 : vector<8xf32> to vector<8x1xf32>
    %cst_5 = arith.constant 3.200000e+01 : f32
    %5 = vector.broadcast %cst_5 : f32 to vector<8x1xf32>
    %6 = arith.divf %4, %5 : vector<8x1xf32>
    %7 = vector.broadcast %6 : vector<8x1xf32> to vector<8x32xf32>
    %8 = arith.subf %0, %7 : vector<8x32xf32>
    %9 = arith.mulf %8, %8 : vector<8x32xf32>
    %cst_6 = arith.constant dense<0.000000e+00> : vector<8xf32>
    %10 = vector.multi_reduction <add>, %9, %cst_6 [1] : vector<8x32xf32> to vector<8xf32>
    %11 = vector.shape_cast %10 : vector<8xf32> to vector<8x1xf32>
    %cst_7 = arith.constant 3.200000e+01 : f32
    %12 = vector.broadcast %cst_7 : f32 to vector<8x1xf32>
    %13 = arith.divf %11, %12 : vector<8x1xf32>
    %14 = vector.broadcast %6 : vector<8x1xf32> to vector<8x32xf32>
    %15 = arith.subf %0, %14 : vector<8x32xf32>
    %cst_8 = arith.constant 9.99999974E-6 : f32
    %16 = vector.broadcast %cst_8 : f32 to vector<8x1xf32>
    %17 = arith.addf %13, %16 : vector<8x1xf32>
    %18 = math.rsqrt %17 : vector<8x1xf32>
    %19 = vector.broadcast %18 : vector<8x1xf32> to vector<8x32xf32>
    %20 = arith.mulf %15, %19 : vector<8x32xf32>
    %21 = vector.broadcast %1 : vector<1x32xf32> to vector<8x32xf32>
    %22 = arith.mulf %20, %21 : vector<8x32xf32>
    %23 = vector.broadcast %2 : vector<1x32xf32> to vector<8x32xf32>
    %24 = arith.addf %22, %23 : vector<8x32xf32>
    %c0_9 = arith.constant 0 : index
    %c0_10 = arith.constant 0 : index
    %25 = vector.load %arg4[%c0_9, %c0_10] : memref<8x32xf32, #tpu.memory_space<vmem>>, vector<8x32xf32>
    tpu.vector_store %arg4[%c0_9, %c0_10], %24 {strides = array<i32>} : memref<8x32xf32, #tpu.memory_space<vmem>>, vector<8x32xf32>,
    return
  }
  func.func @transform_0(%arg0: i32) -> (i32, i32) {
    %c0_i32 = arith.constant 0 : i32
    %c0_i32_0 = arith.constant 0 : i32
    return %arg0, %c0_i32 : i32, i32
  }
  func.func @transform_1(%arg0: i32) -> (i32, i32) {
    %c0_i32 = arith.constant 0 : i32
    %c0_i32_0 = arith.constant 0 : i32
    %c0_i32_1 = arith.constant 0 : i32
    return %c0_i32, %c0_i32_0 : i32, i32
  }
  func.func @transform_2(%arg0: i32) -> (i32, i32) {
    %c0_i32 = arith.constant 0 : i32
    %c0_i32_0 = arith.constant 0 : i32
    %c0_i32_1 = arith.constant 0 : i32
    return %c0_i32, %c0_i32_0 : i32, i32
  }
  func.func @transform_3(%arg0: i32) -> (i32, i32) {
    %c0_i32 = arith.constant 0 : i32
    %c0_i32_0 = arith.constant 0 : i32
    return %arg0, %c0_i32 : i32, i32
  }
}

module attributes {stable_mosaic.version = 11 : i64} {
  func.func @_ffn_kernel(%arg0: i32, %arg1: memref<8x32xf32, #tpu.memory_space<vmem>>, %arg2: memref<1x32xf32, #tpu.memory_space<vmem>>, %arg3: memref<1x32xf32, #tpu.memory_space<vmem>>, %arg4: memref<32x64xbf16, #tpu.memory_space<vmem>>, %arg5: memref<1x64xf32, #tpu.memory_space<vmem>>, %arg6: memref<64x32xbf16, #tpu.memory_space<vmem>>, %arg7: memref<1x32xf32, #tpu.memory_space<vmem>>, %arg8: memref<8x32xf32, #tpu.memory_space<vmem>>) attributes {dimension_semantics = [#tpu.dimension_semantics<parallel>], iteration_bounds = array<i64: 2>, scalar_prefetch = 0 : i64, scratch_operands = 0 : i64, tpu.core_type = #tpu.core_type<tc>, window_params = [{transform_indices = @transform_0, window_bounds = array<i64: 8, 32>}, {pipeline_mode = #tpu.pipeline_mode<synchronous>, transform_indices = @transform_1, window_bounds = array<i64: 1, 32>}, {pipeline_mode = #tpu.pipeline_mode<synchronous>, transform_indices = @transform_2, window_bounds = array<i64: 1, 32>}, {pipeline_mode = #tpu.pipeline_mode<synchronous>, transform_indices = @transform_3, window_bounds = array<i64: 32, 64>}, {pipeline_mode = #tpu.pipeline_mode<synchronous>, transform_indices = @transform_4, window_bounds = array<i64: 1, 64>}, {pipeline_mode = #tpu.pipeline_mode<synchronous>, transform_indices = @transform_5, window_bounds = array<i64: 64, 32>}, {pipeline_mode = #tpu.pipeline_mode<synchronous>, transform_indices = @transform_6, window_bounds = array<i64: 1, 32>}, {transform_indices = @transform_7, window_bounds = array<i64: 8, 32>}]} {
    %c0 = arith.constant 0 : index
    %c0_0 = arith.constant 0 : index
    %0 = vector.load %arg1[%c0, %c0_0] : memref<8x32xf32, #tpu.memory_space<vmem>>, vector<8x32xf32>
    %c0_1 = arith.constant 0 : index
    %c0_2 = arith.constant 0 : index
    %1 = vector.load %arg2[%c0_1, %c0_2] : memref<1x32xf32, #tpu.memory_space<vmem>>, vector<1x32xf32>
    %c0_3 = arith.constant 0 : index
    %c0_4 = arith.constant 0 : index
    %2 = vector.load %arg3[%c0_3, %c0_4] : memref<1x32xf32, #tpu.memory_space<vmem>>, vector<1x32xf32>
    %cst = arith.constant dense<0.000000e+00> : vector<8xf32>
    %3 = vector.multi_reduction <add>, %0, %cst [1] : vector<8x32xf32> to vector<8xf32>
    %4 = vector.shape_cast %3 : vector<8xf32> to vector<8x1xf32>
    %cst_5 = arith.constant 3.200000e+01 : f32
    %5 = vector.broadcast %cst_5 : f32 to vector<8x1xf32>
    %6 = arith.divf %4, %5 : vector<8x1xf32>
    %7 = vector.broadcast %6 : vector<8x1xf32> to vector<8x32xf32>
    %8 = arith.subf %0, %7 : vector<8x32xf32>
    %9 = arith.mulf %8, %8 : vector<8x32xf32>
    %cst_6 = arith.constant dense<0.000000e+00> : vector<8xf32>
    %10 = vector.multi_reduction <add>, %9, %cst_6 [1] : vector<8x32xf32> to vector<8xf32>
    %11 = vector.shape_cast %10 : vector<8xf32> to vector<8x1xf32>
    %cst_7 = arith.constant 3.200000e+01 : f32
    %12 = vector.broadcast %cst_7 : f32 to vector<8x1xf32>
    %13 = arith.divf %11, %12 : vector<8x1xf32>
    %14 = vector.broadcast %6 : vector<8x1xf32> to vector<8x32xf32>
    %15 = arith.subf %0, %14 : vector<8x32xf32>
    %cst_8 = arith.constant 9.99999974E-6 : f32
    %16 = vector.broadcast %cst_8 : f32 to vector<8x1xf32>
    %17 = arith.addf %13, %16 : vector<8x1xf32>
    %18 = math.rsqrt %17 : vector<8x1xf32>
    %19 = vector.broadcast %18 : vector<8x1xf32> to vector<8x32xf32>
    %20 = arith.mulf %15, %19 : vector<8x32xf32>
    %21 = vector.broadcast %1 : vector<1x32xf32> to vector<8x32xf32>
    %22 = arith.mulf %20, %21 : vector<8x32xf32>
    %23 = vector.broadcast %2 : vector<1x32xf32> to vector<8x32xf32>
    %24 = arith.addf %22, %23 : vector<8x32xf32>
    %25 = arith.truncf %24 : vector<8x32xf32> to vector<8x32xbf16>
    %c0_9 = arith.constant 0 : index
    %c0_10 = arith.constant 0 : index
    %26 = vector.load %arg4[%c0_9, %c0_10] : memref<32x64xbf16, #tpu.memory_space<vmem>>, vector<32x64xbf16>
    %cst_11 = arith.constant dense<0.000000e+00> : vector<8x64xf32>
    %27 = tpu.matmul %25, %26, %cst_11 {dimension_numbers = #tpu.dot_dimension_numbers<[1], [0], [0], [1], [0, 0, 1, 1], [], []>} : vector<8x32xbf16>, vector<32x64xbf16>, vector<8x64xf32> -> vector<8x64xf32>
    %c0_12 = arith.constant 0 : index
    %c0_13 = arith.constant 0 : index
    %28 = vector.load %arg5[%c0_12, %c0_13] : memref<1x64xf32, #tpu.memory_space<vmem>>, vector<1x64xf32>
    %29 = vector.broadcast %28 : vector<1x64xf32> to vector<8x64xf32>
    %30 = arith.addf %27, %29 : vector<8x64xf32>
    %cst_14 = arith.constant 5.000000e-01 : f32
    %31 = vector.broadcast %cst_14 : f32 to vector<8x64xf32>
    %32 = arith.mulf %31, %30 : vector<8x64xf32>
    %cst_15 = arith.constant 4.471500e-02 : f32
    %33 = vector.broadcast %cst_15 : f32 to vector<8x64xf32>
    %34 = arith.mulf %33, %30 : vector<8x64xf32>
    %35 = arith.mulf %34, %30 : vector<8x64xf32>
    %36 = arith.mulf %35, %30 : vector<8x64xf32>
    %37 = arith.addf %30, %36 : vector<8x64xf32>
    %cst_16 = arith.constant 0.797884583 : f32
    %38 = vector.broadcast %cst_16 : f32 to vector<8x64xf32>
    %39 = arith.mulf %38, %37 : vector<8x64xf32>
    %40 = math.tanh %39 : vector<8x64xf32>
    %cst_17 = arith.constant 1.000000e+00 : f32
    %41 = vector.broadcast %cst_17 : f32 to vector<8x64xf32>
    %42 = arith.addf %41, %40 : vector<8x64xf32>
    %43 = arith.mulf %32, %42 : vector<8x64xf32>
    %44 = arith.truncf %43 : vector<8x64xf32> to vector<8x64xbf16>
    %c0_18 = arith.constant 0 : index
    %c0_19 = arith.constant 0 : index
    %45 = vector.load %arg6[%c0_18, %c0_19] : memref<64x32xbf16, #tpu.memory_space<vmem>>, vector<64x32xbf16>
    %cst_20 = arith.constant dense<0.000000e+00> : vector<8x32xf32>
    %46 = tpu.matmul %44, %45, %cst_20 {dimension_numbers = #tpu.dot_dimension_numbers<[1], [0], [0], [1], [0, 0, 1, 1], [], []>} : vector<8x64xbf16>, vector<64x32xbf16>, vector<8x32xf32> -> vector<8x32xf32>
    %c0_21 = arith.constant 0 : index
    %c0_22 = arith.constant 0 : index
    %47 = vector.load %arg7[%c0_21, %c0_22] : memref<1x32xf32, #tpu.memory_space<vmem>>, vector<1x32xf32>
    %48 = vector.broadcast %47 : vector<1x32xf32> to vector<8x32xf32>
    %49 = arith.addf %46, %48 : vector<8x32xf32>
    %50 = arith.addf %0, %49 : vector<8x32xf32>
    %c0_23 = arith.constant 0 : index
    %c0_24 = arith.constant 0 : index
    %51 = vector.load %arg8[%c0_23, %c0_24] : memref<8x32xf32, #tpu.memory_space<vmem>>, vector<8x32xf32>
    tpu.vector_store %arg8[%c0_23, %c0_24], %50 {strides = array<i32>} : memref<8x32xf32, #tpu.memory_space<vmem>>, vector<8x32xf32>,
    return
  }
  func.func @transform_0(%arg0: i32) -> (i32, i32) {
    %c0_i32 = arith.constant 0 : i32
    %c0_i32_0 = arith.constant 0 : i32
    return %arg0, %c0_i32 : i32, i32
  }
  func.func @transform_1(%arg0: i32) -> (i32, i32) {
    %c0_i32 = arith.constant 0 : i32
    %c0_i32_0 = arith.constant 0 : i32
    %c0_i32_1 = arith.constant 0 : i32
    return %c0_i32, %c0_i32_0 : i32, i32
  }
  func.func @transform_2(%arg0: i32) -> (i32, i32) {
    %c0_i32 = arith.constant 0 : i32
    %c0_i32_0 = arith.constant 0 : i32
    %c0_i32_1 = arith.constant 0 : i32
    return %c0_i32, %c0_i32_0 : i32, i32
  }
  func.func @transform_3(%arg0: i32) -> (i32, i32) {
    %c0_i32 = arith.constant 0 : i32
    %c0_i32_0 = arith.constant 0 : i32
    %c0_i32_1 = arith.constant 0 : i32
    return %c0_i32, %c0_i32_0 : i32, i32
  }
  func.func @transform_4(%arg0: i32) -> (i32, i32) {
    %c0_i32 = arith.constant 0 : i32
    %c0_i32_0 = arith.constant 0 : i32
    %c0_i32_1 = arith.constant 0 : i32
    return %c0_i32, %c0_i32_0 : i32, i32
  }
  func.func @transform_5(%arg0: i32) -> (i32, i32) {
    %c0_i32 = arith.constant 0 : i32
    %c0_i32_0 = arith.constant 0 : i32
    %c0_i32_1 = arith.constant 0 : i32
    return %c0_i32, %c0_i32_0 : i32, i32
  }
  func.func @transform_6(%arg0: i32) -> (i32, i32) {
    %c0_i32 = arith.constant 0 : i32
    %c0_i32_0 = arith.constant 0 : i32
    %c0_i32_1 = arith.constant 0 : i32
    return %c0_i32, %c0_i32_0 : i32, i32
  }
  func.func @transform_7(%arg0: i32) -> (i32, i32) {
    %c0_i32 = arith.constant 0 : i32
    %c0_i32_0 = arith.constant 0 : i32
    return %arg0, %c0_i32 : i32, i32
  }
}

</mosaic_0001>

<llo_original>
// kernel: qformer_forward.8
$region0: #{qformer_forward.8}
  #allocation0 [shape = 'u32[]', space=smem, size = 0x4, offset = 0x4, fixed_abs, tag = 'smem constant byte address 0x4 - core index']
  #allocation1 [shape = 'u32[144,128]{1,0:T(1,128)}', space=vmem, size = 0x12000, scoped, tag = 'internal scratch']
  %s0 = inlined_call_operand.vmem [shape: f32[32,32], index: 0, kind: input, shape index: {}]
  %s1 = inlined_call_operand.vmem [shape: bf16[32,64], index: 1, kind: input, shape index: {}]
  %s2 = inlined_call_operand.vmem [shape: f32[1,64], index: 2, kind: input, shape index: {}]
  %s3 = inlined_call_operand.vmem [shape: bf16[32,32], index: 3, kind: output, shape index: {0}]
  %s4 = inlined_call_operand.vmem [shape: bf16[32,32], index: 4, kind: output, shape index: {1}]
  %5 = xla_tuple %s3, %s4
  %s6 = sld [smem:[#allocation0]]
  $region53: #{qformer_forward.8} parent=0
    _
  %s8 = ssub.s32 1, %s6
  %s9 = scalar_select 0, %s8, %s6
  loop: start=0, step=1, limit=4
  $region2: #{qformer_forward.8} parent=0 // loop_pre_header
    _
  $region3: #{qformer_forward.8} parent=0 // loop_header
    %s11 = sphi 0, %s15
    %p12 = scmp.ge.s32.totalorder %s11, 4
    %s21 = sphi 0, %s23
    %s24 = sphi 0, %s21
    %s25 = sphi 0, %s24
    %s41 = sphi 0, %s25
    %s45 = sphi 0, %s45
    %s47 = sphi 0, %s45
    %s48 = sphi 0, %s47
    %s62 = sphi 0, %s48
    %s66 = sphi 0, %s66
    %s68 = sphi 0, %s66
    %s69 = sphi 0, %s68
    %s83 = sphi 0, %s69
    %s89 = sphi 0, %s91
    %s92 = sphi 0, %s89
    %s93 = sphi 0, %s92
    %s109 = sphi 0, %s93
    %s115 = sphi 0, %s117
    %s118 = sphi 0, %s115
    %s119 = sphi 0, %s118
    %s135 = sphi 0, %s119
  $region4: #{qformer_forward.8} parent=0 // loop_header_branch
    %14 = sbr.rel (%p12) target = $region8
  $region5: #{qformer_forward.8} parent=0 // loop_body
    %s16 = ssub.s32 %s11, 1
    %s17 = ssub.s32 %s11, 2
    %s18 = sadd.s32 %s11, 1
    %s19 = ssub.s32 %s11, %s18
    %p20 = scmp.eq.s32.totalorder %s19, 0
    %s22 = sadd.s32 %s21, 1
    %s23 = scalar_select %p20, %s21, %s22
    %p26 = pneg %p20
    %p27 = scmp.eq.s32.totalorder %s11, 1
    %p28 = por %p26, %p27
    %p29 = scmp.ne.s32.totalorder %s21, %s24
    %p30 = scmp.eq.s32.totalorder %s11, 0
    %p31 = por %p29, %p30
    %p32 = scmp.ne.s32.totalorder %s21, %s24
    %p33 = scmp.eq.s32.totalorder %s16, 1
    %p34 = por %p32, %p33
    %p35 = scmp.ne.s32.totalorder %s24, %s25
    %p36 = scmp.eq.s32.totalorder %s16, 0
    %p37 = por %p35, %p36
    %p38 = scmp.ne.s32.totalorder %s24, %s25
    %p39 = scmp.eq.s32.totalorder %s17, 1
    %p40 = por %p38, %p39
    %p42 = scmp.ne.s32.totalorder %s25, %s41
    %p43 = scmp.eq.s32.totalorder %s17, 0
    %p44 = por %p42, %p43
    %s46 = sadd.s32 %s45, 1
    %p49 = scmp.eq.s32.totalorder %s11, 1
    %p50 = scmp.ne.s32.totalorder %s45, %s47
    %p51 = scmp.eq.s32.totalorder %s11, 0
    %p52 = por %p50, %p51
    %p53 = scmp.ne.s32.totalorder %s45, %s47
    %p54 = scmp.eq.s32.totalorder %s16, 1
    %p55 = por %p53, %p54
    %p56 = scmp.ne.s32.totalorder %s47, %s48
    %p57 = scmp.eq.s32.totalorder %s16, 0
    %p58 = por %p56, %p57
    %p59 = scmp.ne.s32.totalorder %s47, %s48
    %p60 = scmp.eq.s32.totalorder %s17, 1
    %p61 = por %p59, %p60
    %p63 = scmp.ne.s32.totalorder %s48, %s62
    %p64 = scmp.eq.s32.totalorder %s17, 0
    %p65 = por %p63, %p64
    %s67 = sadd.s32 %s66, 1
    %p70 = scmp.eq.s32.totalorder %s11, 1
    %p71 = scmp.ne.s32.totalorder %s66, %s68
    %p72 = scmp.eq.s32.totalorder %s11, 0
    %p73 = por %p71, %p72
    %p74 = scmp.ne.s32.totalorder %s66, %s68
    %p75 = scmp.eq.s32.totalorder %s16, 1
    %p76 = por %p74, %p75
    %p77 = scmp.ne.s32.totalorder %s68, %s69
    %p78 = scmp.eq.s32.totalorder %s16, 0
    %p79 = por %p77, %p78
    %p80 = scmp.ne.s32.totalorder %s68, %s69
    %p81 = scmp.eq.s32.totalorder %s17, 1
    %p82 = por %p80, %p81
    %p84 = scmp.ne.s32.totalorder %s69, %s83
    %p85 = scmp.eq.s32.totalorder %s17, 0
    %p86 = por %p84, %p85
    %s87 = ssub.s32 %s11, %s18
    %p88 = scmp.eq.s32.totalorder %s87, 0
    %s90 = sadd.s32 %s89, 1
    %s91 = scalar_select %p88, %s89, %s90
    %p94 = pneg %p88
    %p95 = scmp.eq.s32.totalorder %s11, 1
    %p96 = por %p94, %p95
    %p97 = scmp.ne.s32.totalorder %s89, %s92
    %p98 = scmp.eq.s32.totalorder %s11, 0
    %p99 = por %p97, %p98
    %p100 = scmp.ne.s32.totalorder %s89, %s92
    %p101 = scmp.eq.s32.totalorder %s16, 1
    %p102 = por %p100, %p101
    %p103 = scmp.ne.s32.totalorder %s92, %s93
    %p104 = scmp.eq.s32.totalorder %s16, 0
    %p105 = por %p103, %p104
    %p106 = scmp.ne.s32.totalorder %s92, %s93
    %p107 = scmp.eq.s32.totalorder %s17, 1
    %p108 = por %p106, %p107
    %p110 = scmp.ne.s32.totalorder %s93, %s109
    %p111 = scmp.eq.s32.totalorder %s17, 0
    %p112 = por %p110, %p111
    %s113 = ssub.s32 %s11, %s18
    %p114 = scmp.eq.s32.totalorder %s113, 0
    %s116 = sadd.s32 %s115, 1
    %s117 = scalar_select %p114, %s115, %s116
    %p120 = pneg %p114
    %p121 = scmp.eq.s32.totalorder %s11, 1
    %p122 = por %p120, %p121
    %p123 = scmp.ne.s32.totalorder %s115, %s118
    %p124 = scmp.eq.s32.totalorder %s11, 0
    %p125 = por %p123, %p124
    %p126 = scmp.ne.s32.totalorder %s115, %s118
    %p127 = scmp.eq.s32.totalorder %s16, 1
    %p128 = por %p126, %p127
    %p129 = scmp.ne.s32.totalorder %s118, %s119
    %p130 = scmp.eq.s32.totalorder %s16, 0
    %p131 = por %p129, %p130
    %p132 = scmp.ne.s32.totalorder %s118, %s119
    %p133 = scmp.eq.s32.totalorder %s17, 1
    %p134 = por %p132, %p133
    %p136 = scmp.ne.s32.totalorder %s119, %s135
    %p137 = scmp.eq.s32.totalorder %s17, 0
    %p138 = por %p136, %p137
    %p139 = scmp.le.s32.totalorder 1, %s11
    %p140 = scmp.lt.s32.totalorder %s11, 3
    %p141 = pnand %p139, %p140
    %p142 = pneg %p141
    // Predicated region
    $region9: #{qformer_forward.8} parent=5 // pred_check
      _
    $region10: #{qformer_forward.8} parent=5 // pred_check_branch
      %144 = sbr.rel (%p141) target = $region12
    $region11: #{qformer_forward.8} parent=5 // pred_region
      %s145 = ssub.s32 %s11, 1
      // Predicated region
      $region13: #{qformer_forward.8} parent=11 // pred_check
        %p146 = pneg %p58
      $region14: #{qformer_forward.8} parent=11 // pred_check_branch
        %148 = sbr.rel (%p146) target = $region16
      $region15: #{qformer_forward.8} parent=11 // pred_region
        _
      $region16: #{qformer_forward.8} parent=11 // pred_fallthru
        _
      // Predicated region
      $region17: #{qformer_forward.8} parent=11 // pred_check
        %p149 = pneg %p79
      $region18: #{qformer_forward.8} parent=11 // pred_check_branch
        %151 = sbr.rel (%p149) target = $region20
      $region19: #{qformer_forward.8} parent=11 // pred_region
        _
      $region20: #{qformer_forward.8} parent=11 // pred_fallthru
        _
    $region12: #{qformer_forward.8} parent=5 // pred_fallthru
      _
    %p152 = scmp.lt.s32.totalorder %s11, 2
    // Predicated region
    $region21: #{qformer_forward.8} parent=5 // pred_check
      %p153 = pneg %p152
    $region22: #{qformer_forward.8} parent=5 // pred_check_branch
      %155 = sbr.rel (%p153) target = $region24
    $region23: #{qformer_forward.8} parent=5 // pred_region
      // Predicated region
      $region25: #{qformer_forward.8} parent=23 // pred_check
        %p156 = pneg %p31
      $region26: #{qformer_forward.8} parent=23 // pred_check_branch
        %158 = sbr.rel (%p156) target = $region28
      $region27: #{qformer_forward.8} parent=23 // pred_region
        %s159 = smul.u32 2, %s11
        %p160 = scmp.lt.s32.totalorder %s159, 3
        %s161 = scalar_select %p160, %s159, 3
        %s162 = smul.addr %s161, 8
        %s163 = scalar_lea.vmem %s0, %s162
        %s164 = smul.u32 2, %s11
      $region28: #{qformer_forward.8} parent=23 // pred_fallthru
        _
    $region24: #{qformer_forward.8} parent=5 // pred_fallthru
      _
    %p165 = scmp.le.s32.totalorder 1, %s11
    %p166 = scmp.lt.s32.totalorder %s11, 3
    %p167 = pnand %p165, %p166
    %p168 = pneg %p167
    // Predicated region
    $region29: #{qformer_forward.8} parent=5 // pred_check
      _
    $region30: #{qformer_forward.8} parent=5 // pred_check_branch
      %170 = sbr.rel (%p167) target = $region32
    $region31: #{qformer_forward.8} parent=5 // pred_region
      %s171 = ssub.s32 %s11, 1
      %s172 = smul.u32 2, %s16
      %p173 = scmp.lt.s32.totalorder %s172, 3
      %s174 = scalar_select %p173, %s172, 3
      %s175 = smul.addr %s174, 8
      %s176 = scalar_lea.vmem %s0, %s175
      %p177 = pneg %p37
      %p178 = pneg %p34
      %p179 = pneg %p58
      %p180 = pneg %p55
      %p181 = pneg %p79
      %p182 = pneg %p76
      %p183 = pneg %p105
      %p184 = pneg %p102
      %s185 = smul.u32 2, %s16
      %p186 = scmp.lt.s32.totalorder %s185, 3
      %s187 = scalar_select %p186, %s185, 3
      %s188 = smul.addr %s187, 4
      %s189 = scalar_lea.vmem %s3, %s188
      %p190 = pneg %p131
      %p191 = pneg %p128
      %s192 = smul.u32 2, %s16
      %p193 = scmp.lt.s32.totalorder %s192, 3
      %s194 = scalar_select %p193, %s192, 3
      %s195 = smul.addr %s194, 4
      %s196 = scalar_lea.vmem %s4, %s195
      %s197 = smul.u32 2, %s16
      %p198 = scmp.lt.s32.totalorder %s197, 3
      %s199 = scalar_select %p198, %s197, 3
      %s200 = smul.addr %s199, 8
      %s201 = scalar_lea.vmem %s0, %s200
      %s202 = smul.u32 2, %s16
      %s203 = smul.u32 2, %s16
      %p204 = scmp.lt.s32.totalorder %s203, 3
      %s205 = scalar_select %p204, %s203, 3
      %s206 = smul.addr %s205, 4
      %s207 = scalar_lea.vmem %s3, %s206
      %s208 = smul.u32 2, %s16
      %s209 = smul.u32 2, %s16
      %p210 = scmp.lt.s32.totalorder %s209, 3
      %s211 = scalar_select %p210, %s209, 3
      %s212 = smul.addr %s211, 4
      %s213 = scalar_lea.vmem %s4, %s212
      %s214 = smul.u32 2, %s16
      %v216 = vld [vmem:[%s201] sm:$0xff]
      %v217 = vld [vmem:[%s201 + $0x8] sm:$0xff]
      %v218 = vpack.c.bf16 %v217, %v216
      %v219 = vld [vmem:[%s1] sm:$0xf]
      %v220 = vld [vmem:[%s1 + $0x4] sm:$0xf]
      %v221 = vld [vmem:[%s1 + $0x8] sm:$0xf]
      %v222 = vld [vmem:[%s1 + $0xc] sm:$0xf]
      %v223 = vld [vmem:[%s2] sm:$0x1]
      %v225 = vlaneseq
      %v226 = vshrl.u32 %v225, 7
      %v227 = vsub.s32 0, %v226
      %v228 = vrot.slane %v223, %v227
      %v234 = vunpack.c.l.b16 %v219
      %v235 = vunpack.c.l.b16 %v220
      %v236 = vunpack.c.l.b16 %v221
      %v237 = vunpack.c.l.b16 %v222
      %v238 = vpack.c.b16 %v235, %v234
      %v239 = vpack.c.b16 %v237, %v236
      %vm242 = vcmask 261120
      %v244 = vsel %vm242, %v218, 0
      %246 = vmatprep.subr.bf16.mxu0 0
      %247 = vmatpush1.bf16.msra.mxu0 0
      %248 = vmatprep.subr.bf16.mxu0 0
      %249 = vmatpush1.bf16.msra.mxu0 0
      %250 = vmatprep.subr.bf16.mxu0 0
      %251 = vmatpush1.bf16.msra.mxu0 0
      %252 = vmatprep.subr.bf16.mxu0 0
      %253 = vmatpush1.bf16.msra.mxu0 0
      %254 = vmatprep.subr.bf16.mxu0 0
      %255 = vmatpush1.bf16.msra.mxu0 0
      %256 = vmatprep.subr.bf16.mxu0 0
      %257 = vmatpush1.bf16.msra.mxu0 0
      %258 = vmatprep.subr.bf16.mxu0 0
      %259 = vmatpush1.bf16.msra.mxu0 %v239
      %260 = vmatprep.subr.bf16.mxu0 0
      %261 = vmatpush1.bf16.msra.mxu0 %v238
      %262 = vmatprep.subr.bf16.mxu0 0
      %263 = vmatpush2.bf16.msra.mxu0 0
      %264 = vmatprep.subr.bf16.mxu0 0
      %265 = vmatpush2.bf16.msra.mxu0 0
      %266 = vmatprep.subr.bf16.mxu0 0
      %267 = vmatpush2.bf16.msra.mxu0 0
      %268 = vmatprep.subr.bf16.mxu0 0
      %269 = vmatpush2.bf16.msra.mxu0 0
      %270 = vmatprep.subr.bf16.mxu0 0
      %271 = vmatpush2.bf16.msra.mxu0 0
      %272 = vmatprep.subr.bf16.mxu0 0
      %273 = vmatpush2.bf16.msra.mxu0 0
      %274 = vmatprep.subr.bf16.mxu0 0
      %275 = vmatpush2.bf16.msra.mxu0 0
      %276 = vmatprep.subr.bf16.mxu0 0
      %277 = vmatpush2.bf16.msra.mxu0 0
      %278 = vmatprep.mubr.bf16.mxu0 0
      %279 = vmatmul.mubr.bf16.gmra.mxu0 %v244
      %v280 = vpop.f32.mrf.mxu0
      %v281 = vadd.f32 %v228, %v280
      %v282 = vpop.f32.mrf.mxu0
      %v283 = vpop.f32.mrf.mxu0
      %v284 = vadd.f32 %v228, %v283
      %v285 = vpop.f32.mrf.mxu0
      %286 = vdwg.mxu0
      %v287 = vpack.c.bf16 %v284, %v281
      %v289 = vunpack.c.l.b16 %v287
      %v290 = vunpack.c.h.b16 %v287
      %v291 = vpack.c.b16 %v289, %v289
      %v292 = vpack.c.b16 %v290, %v290
      %vm295 = vcmask 257024
      %296 = vst.msk [vmem:[%s207] sm:$0xf] %vm295, %v291
      %297 = vst.msk [vmem:[%s207 + $0x4] sm:$0xf] %vm295, %v292
      %298 = vrot.lane.b32.xlu0 %v291, 96
      %v299 = vpop.permute.xlu0 %298
      %300 = vrot.lane.b32.xlu0 %v292, 96
      %v301 = vpop.permute.xlu0 %300
      %304 = vst.msk [vmem:[%s213] sm:$0xf] %vm295, %v299
      %305 = vst.msk [vmem:[%s213 + $0x4] sm:$0xf] %vm295, %v301
      %s306 = smul.u32 2, %s16
      %p307 = scmp.lt.s32.totalorder %s306, 3
      %s308 = scalar_select %p307, %s306, 3
      %s309 = smul.addr %s308, 4
      %s310 = scalar_lea.vmem %s3, %s309
      %s311 = smul.u32 2, %s16
      %p312 = scmp.lt.s32.totalorder %s311, 3
      %s313 = scalar_select %p312, %s311, 3
      %s314 = smul.addr %s313, 4
      %s315 = scalar_lea.vmem %s4, %s314
      // Predicated region
      $region33: #{qformer_forward.8} parent=31 // pred_check
        %p316 = pneg %p102
      $region34: #{qformer_forward.8} parent=31 // pred_check_branch
        %318 = sbr.rel (%p316) target = $region36
      $region35: #{qformer_forward.8} parent=31 // pred_region
        %s319 = smul.u32 2, %s16
      $region36: #{qformer_forward.8} parent=31 // pred_fallthru
        _
      // Predicated region
      $region37: #{qformer_forward.8} parent=31 // pred_check
        %p320 = pneg %p128
      $region38: #{qformer_forward.8} parent=31 // pred_check_branch
        %322 = sbr.rel (%p320) target = $region40
      $region39: #{qformer_forward.8} parent=31 // pred_region
        %s323 = smul.u32 2, %s16
      $region40: #{qformer_forward.8} parent=31 // pred_fallthru
        _
    $region32: #{qformer_forward.8} parent=5 // pred_fallthru
      _
    %p324 = scmp.le.s32.totalorder 2, %s11
    // Predicated region
    $region41: #{qformer_forward.8} parent=5 // pred_check
      %p325 = pneg %p324
    $region42: #{qformer_forward.8} parent=5 // pred_check_branch
      %327 = sbr.rel (%p325) target = $region44
    $region43: #{qformer_forward.8} parent=5 // pred_region
      %s328 = ssub.s32 %s11, 2
      // Predicated region
      $region45: #{qformer_forward.8} parent=43 // pred_check
        %p329 = pneg %p108
      $region46: #{qformer_forward.8} parent=43 // pred_check_branch
        %331 = sbr.rel (%p329) target = $region48
      $region47: #{qformer_forward.8} parent=43 // pred_region
        %s332 = smul.u32 2, %s17
        %p333 = scmp.lt.s32.totalorder %s332, 3
        %s334 = scalar_select %p333, %s332, 3
        %s335 = smul.addr %s334, 4
        %s336 = scalar_lea.vmem %s3, %s335
      $region48: #{qformer_forward.8} parent=43 // pred_fallthru
        _
      // Predicated region
      $region49: #{qformer_forward.8} parent=43 // pred_check
        %p337 = pneg %p134
      $region50: #{qformer_forward.8} parent=43 // pred_check_branch
        %339 = sbr.rel (%p337) target = $region52
      $region51: #{qformer_forward.8} parent=43 // pred_region
        %s340 = smul.u32 2, %s17
        %p341 = scmp.lt.s32.totalorder %s340, 3
        %s342 = scalar_select %p341, %s340, 3
        %s343 = smul.addr %s342, 4
        %s344 = scalar_lea.vmem %s4, %s343
      $region52: #{qformer_forward.8} parent=43 // pred_fallthru
        _
    $region44: #{qformer_forward.8} parent=5 // pred_fallthru
      _
  $region6: #{qformer_forward.8} parent=0 // loop_footer
    %s15 = sadd.s32 1, %s11
  $region7: #{qformer_forward.8} parent=0 // loop_footer_branch
    %10 = sbr.rel target = $region3
  $region8: #{qformer_forward.8} parent=0 // loop_exit
    _

// kernel: qformer_forward.7
$region0: #{qformer_forward.7}
  #allocation0 [shape = 'u32[]', space=smem, size = 0x4, offset = 0x4, fixed_abs, tag = 'smem constant byte address 0x4 - core index']
  #allocation1 [shape = 'u32[144,128]{1,0:T(1,128)}', space=vmem, size = 0x12000, scoped, tag = 'internal scratch']
  %s0 = inlined_call_operand.vmem [shape: f32[2,8,32], index: 0, kind: input, shape index: {}]
  %s1 = inlined_call_operand.vmem [shape: f32[1,32], index: 1, kind: input, shape index: {}]
  %s2 = inlined_call_operand.vmem [shape: f32[1,32], index: 2, kind: input, shape index: {}]
  %s3 = inlined_call_operand.vmem [shape: bf16[32,96], index: 3, kind: input, shape index: {}]
  %s4 = inlined_call_operand.vmem [shape: f32[1,96], index: 4, kind: input, shape index: {}]
  %s5 = inlined_call_operand.vmem [shape: bf16[32,32], index: 5, kind: input, shape index: {}]
  %s6 = inlined_call_operand.vmem [shape: f32[1,32], index: 6, kind: input, shape index: {}]
  %s7 = inlined_call_operand.vmem [shape: f32[2,8,32], index: 7, kind: output, shape index: {}]
  %s8 = sld [smem:[#allocation0]]
  $region61: #{qformer_forward.7} parent=0
    _
  %s10 = ssub.s32 1, %s8
  %s11 = scalar_select 0, %s10, %s8
  loop: start=0, step=1, limit=4
  $region2: #{qformer_forward.7} parent=0 // loop_pre_header
    _
  $region3: #{qformer_forward.7} parent=0 // loop_header
    %s13 = sphi 0, %s17
    %p14 = scmp.ge.s32.totalorder %s13, 4
    %s23 = sphi 0, %s25
    %s26 = sphi 0, %s23
    %s27 = sphi 0, %s26
    %s43 = sphi 0, %s27
    %s47 = sphi 0, %s47
    %s49 = sphi 0, %s47
    %s50 = sphi 0, %s49
    %s64 = sphi 0, %s50
    %s68 = sphi 0, %s68
    %s70 = sphi 0, %s68
    %s71 = sphi 0, %s70
    %s85 = sphi 0, %s71
    %s89 = sphi 0, %s89
    %s91 = sphi 0, %s89
    %s92 = sphi 0, %s91
    %s106 = sphi 0, %s92
    %s110 = sphi 0, %s110
    %s112 = sphi 0, %s110
    %s113 = sphi 0, %s112
    %s127 = sphi 0, %s113
    %s131 = sphi 0, %s131
    %s133 = sphi 0, %s131
    %s134 = sphi 0, %s133
    %s148 = sphi 0, %s134
    %s152 = sphi 0, %s152
    %s154 = sphi 0, %s152
    %s155 = sphi 0, %s154
    %s169 = sphi 0, %s155
    %s175 = sphi 0, %s177
    %s178 = sphi 0, %s175
    %s179 = sphi 0, %s178
    %s195 = sphi 0, %s179
  $region4: #{qformer_forward.7} parent=0 // loop_header_branch
    %16 = sbr.rel (%p14) target = $region8
  $region5: #{qformer_forward.7} parent=0 // loop_body
    %s18 = ssub.s32 %s13, 1
    %s19 = ssub.s32 %s13, 2
    %s20 = sadd.s32 %s13, 1
    %s21 = ssub.s32 %s13, %s20
    %p22 = scmp.eq.s32.totalorder %s21, 0
    %s24 = sadd.s32 %s23, 1
    %s25 = scalar_select %p22, %s23, %s24
    %p28 = pneg %p22
    %p29 = scmp.eq.s32.totalorder %s13, 1
    %p30 = por %p28, %p29
    %p31 = scmp.ne.s32.totalorder %s23, %s26
    %p32 = scmp.eq.s32.totalorder %s13, 0
    %p33 = por %p31, %p32
    %p34 = scmp.ne.s32.totalorder %s23, %s26
    %p35 = scmp.eq.s32.totalorder %s18, 1
    %p36 = por %p34, %p35
    %p37 = scmp.ne.s32.totalorder %s26, %s27
    %p38 = scmp.eq.s32.totalorder %s18, 0
    %p39 = por %p37, %p38
    %p40 = scmp.ne.s32.totalorder %s26, %s27
    %p41 = scmp.eq.s32.totalorder %s19, 1
    %p42 = por %p40, %p41
    %p44 = scmp.ne.s32.totalorder %s27, %s43
    %p45 = scmp.eq.s32.totalorder %s19, 0
    %p46 = por %p44, %p45
    %s48 = sadd.s32 %s47, 1
    %p51 = scmp.eq.s32.totalorder %s13, 1
    %p52 = scmp.ne.s32.totalorder %s47, %s49
    %p53 = scmp.eq.s32.totalorder %s13, 0
    %p54 = por %p52, %p53
    %p55 = scmp.ne.s32.totalorder %s47, %s49
    %p56 = scmp.eq.s32.totalorder %s18, 1
    %p57 = por %p55, %p56
    %p58 = scmp.ne.s32.totalorder %s49, %s50
    %p59 = scmp.eq.s32.totalorder %s18, 0
    %p60 = por %p58, %p59
    %p61 = scmp.ne.s32.totalorder %s49, %s50
    %p62 = scmp.eq.s32.totalorder %s19, 1
    %p63 = por %p61, %p62
    %p65 = scmp.ne.s32.totalorder %s50, %s64
    %p66 = scmp.eq.s32.totalorder %s19, 0
    %p67 = por %p65, %p66
    %s69 = sadd.s32 %s68, 1
    %p72 = scmp.eq.s32.totalorder %s13, 1
    %p73 = scmp.ne.s32.totalorder %s68, %s70
    %p74 = scmp.eq.s32.totalorder %s13, 0
    %p75 = por %p73, %p74
    %p76 = scmp.ne.s32.totalorder %s68, %s70
    %p77 = scmp.eq.s32.totalorder %s18, 1
    %p78 = por %p76, %p77
    %p79 = scmp.ne.s32.totalorder %s70, %s71
    %p80 = scmp.eq.s32.totalorder %s18, 0
    %p81 = por %p79, %p80
    %p82 = scmp.ne.s32.totalorder %s70, %s71
    %p83 = scmp.eq.s32.totalorder %s19, 1
    %p84 = por %p82, %p83
    %p86 = scmp.ne.s32.totalorder %s71, %s85
    %p87 = scmp.eq.s32.totalorder %s19, 0
    %p88 = por %p86, %p87
    %s90 = sadd.s32 %s89, 1
    %p93 = scmp.eq.s32.totalorder %s13, 1
    %p94 = scmp.ne.s32.totalorder %s89, %s91
    %p95 = scmp.eq.s32.totalorder %s13, 0
    %p96 = por %p94, %p95
    %p97 = scmp.ne.s32.totalorder %s89, %s91
    %p98 = scmp.eq.s32.totalorder %s18, 1
    %p99 = por %p97, %p98
    %p100 = scmp.ne.s32.totalorder %s91, %s92
    %p101 = scmp.eq.s32.totalorder %s18, 0
    %p102 = por %p100, %p101
    %p103 = scmp.ne.s32.totalorder %s91, %s92
    %p104 = scmp.eq.s32.totalorder %s19, 1
    %p105 = por %p103, %p104
    %p107 = scmp.ne.s32.totalorder %s92, %s106
    %p108 = scmp.eq.s32.totalorder %s19, 0
    %p109 = por %p107, %p108
    %s111 = sadd.s32 %s110, 1
    %p114 = scmp.eq.s32.totalorder %s13, 1
    %p115 = scmp.ne.s32.totalorder %s110, %s112
    %p116 = scmp.eq.s32.totalorder %s13, 0
    %p117 = por %p115, %p116
    %p118 = scmp.ne.s32.totalorder %s110, %s112
    %p119 = scmp.eq.s32.totalorder %s18, 1
    %p120 = por %p118, %p119
    %p121 = scmp.ne.s32.totalorder %s112, %s113
    %p122 = scmp.eq.s32.totalorder %s18, 0
    %p123 = por %p121, %p122
    %p124 = scmp.ne.s32.totalorder %s112, %s113
    %p125 = scmp.eq.s32.totalorder %s19, 1
    %p126 = por %p124, %p125
    %p128 = scmp.ne.s32.totalorder %s113, %s127
    %p129 = scmp.eq.s32.totalorder %s19, 0
    %p130 = por %p128, %p129
    %s132 = sadd.s32 %s131, 1
    %p135 = scmp.eq.s32.totalorder %s13, 1
    %p136 = scmp.ne.s32.totalorder %s131, %s133
    %p137 = scmp.eq.s32.totalorder %s13, 0
    %p138 = por %p136, %p137
    %p139 = scmp.ne.s32.totalorder %s131, %s133
    %p140 = scmp.eq.s32.totalorder %s18, 1
    %p141 = por %p139, %p140
    %p142 = scmp.ne.s32.totalorder %s133, %s134
    %p143 = scmp.eq.s32.totalorder %s18, 0
    %p144 = por %p142, %p143
    %p145 = scmp.ne.s32.totalorder %s133, %s134
    %p146 = scmp.eq.s32.totalorder %s19, 1
    %p147 = por %p145, %p146
    %p149 = scmp.ne.s32.totalorder %s134, %s148
    %p150 = scmp.eq.s32.totalorder %s19, 0
    %p151 = por %p149, %p150
    %s153 = sadd.s32 %s152, 1
    %p156 = scmp.eq.s32.totalorder %s13, 1
    %p157 = scmp.ne.s32.totalorder %s152, %s154
    %p158 = scmp.eq.s32.totalorder %s13, 0
    %p159 = por %p157, %p158
    %p160 = scmp.ne.s32.totalorder %s152, %s154
    %p161 = scmp.eq.s32.totalorder %s18, 1
    %p162 = por %p160, %p161
    %p163 = scmp.ne.s32.totalorder %s154, %s155
    %p164 = scmp.eq.s32.totalorder %s18, 0
    %p165 = por %p163, %p164
    %p166 = scmp.ne.s32.totalorder %s154, %s155
    %p167 = scmp.eq.s32.totalorder %s19, 1
    %p168 = por %p166, %p167
    %p170 = scmp.ne.s32.totalorder %s155, %s169
    %p171 = scmp.eq.s32.totalorder %s19, 0
    %p172 = por %p170, %p171
    %s173 = ssub.s32 %s13, %s20
    %p174 = scmp.eq.s32.totalorder %s173, 0
    %s176 = sadd.s32 %s175, 1
    %s177 = scalar_select %p174, %s175, %s176
    %p180 = pneg %p174
    %p181 = scmp.eq.s32.totalorder %s13, 1
    %p182 = por %p180, %p181
    %p183 = scmp.ne.s32.totalorder %s175, %s178
    %p184 = scmp.eq.s32.totalorder %s13, 0
    %p185 = por %p183, %p184
    %p186 = scmp.ne.s32.totalorder %s175, %s178
    %p187 = scmp.eq.s32.totalorder %s18, 1
    %p188 = por %p186, %p187
    %p189 = scmp.ne.s32.totalorder %s178, %s179
    %p190 = scmp.eq.s32.totalorder %s18, 0
    %p191 = por %p189, %p190
    %p192 = scmp.ne.s32.totalorder %s178, %s179
    %p193 = scmp.eq.s32.totalorder %s19, 1
    %p194 = por %p192, %p193
    %p196 = scmp.ne.s32.totalorder %s179, %s195
    %p197 = scmp.eq.s32.totalorder %s19, 0
    %p198 = por %p196, %p197
    %p199 = scmp.le.s32.totalorder 1, %s13
    %p200 = scmp.lt.s32.totalorder %s13, 3
    %p201 = pnand %p199, %p200
    %p202 = pneg %p201
    // Predicated region
    $region9: #{qformer_forward.7} parent=5 // pred_check
      _
    $region10: #{qformer_forward.7} parent=5 // pred_check_branch
      %204 = sbr.rel (%p201) target = $region12
    $region11: #{qformer_forward.7} parent=5 // pred_region
      %s205 = ssub.s32 %s13, 1
      // Predicated region
      $region13: #{qformer_forward.7} parent=11 // pred_check
        %p206 = pneg %p60
      $region14: #{qformer_forward.7} parent=11 // pred_check_branch
        %208 = sbr.rel (%p206) target = $region16
      $region15: #{qformer_forward.7} parent=11 // pred_region
        _
      $region16: #{qformer_forward.7} parent=11 // pred_fallthru
        _
      // Predicated region
      $region17: #{qformer_forward.7} parent=11 // pred_check
        %p209 = pneg %p81
      $region18: #{qformer_forward.7} parent=11 // pred_check_branch
        %211 = sbr.rel (%p209) target = $region20
      $region19: #{qformer_forward.7} parent=11 // pred_region
        _
      $region20: #{qformer_forward.7} parent=11 // pred_fallthru
        _
      // Predicated region
      $region21: #{qformer_forward.7} parent=11 // pred_check
        %p212 = pneg %p102
      $region22: #{qformer_forward.7} parent=11 // pred_check_branch
        %214 = sbr.rel (%p212) target = $region24
      $region23: #{qformer_forward.7} parent=11 // pred_region
        _
      $region24: #{qformer_forward.7} parent=11 // pred_fallthru
        _
      // Predicated region
      $region25: #{qformer_forward.7} parent=11 // pred_check
        %p215 = pneg %p123
      $region26: #{qformer_forward.7} parent=11 // pred_check_branch
        %217 = sbr.rel (%p215) target = $region28
      $region27: #{qformer_forward.7} parent=11 // pred_region
        _
      $region28: #{qformer_forward.7} parent=11 // pred_fallthru
        _
      // Predicated region
      $region29: #{qformer_forward.7} parent=11 // pred_check
        %p218 = pneg %p144
      $region30: #{qformer_forward.7} parent=11 // pred_check_branch
        %220 = sbr.rel (%p218) target = $region32
      $region31: #{qformer_forward.7} parent=11 // pred_region
        _
      $region32: #{qformer_forward.7} parent=11 // pred_fallthru
        _
      // Predicated region
      $region33: #{qformer_forward.7} parent=11 // pred_check
        %p221 = pneg %p165
      $region34: #{qformer_forward.7} parent=11 // pred_check_branch
        %223 = sbr.rel (%p221) target = $region36
      $region35: #{qformer_forward.7} parent=11 // pred_region
        _
      $region36: #{qformer_forward.7} parent=11 // pred_fallthru
        _
    $region12: #{qformer_forward.7} parent=5 // pred_fallthru
      _
    %p224 = scmp.lt.s32.totalorder %s13, 2
    // Predicated region
    $region37: #{qformer_forward.7} parent=5 // pred_check
      %p225 = pneg %p224
    $region38: #{qformer_forward.7} parent=5 // pred_check_branch
      %227 = sbr.rel (%p225) target = $region40
    $region39: #{qformer_forward.7} parent=5 // pred_region
      // Predicated region
      $region41: #{qformer_forward.7} parent=39 // pred_check
        %p228 = pneg %p33
      $region42: #{qformer_forward.7} parent=39 // pred_check_branch
        %230 = sbr.rel (%p228) target = $region44
      $region43: #{qformer_forward.7} parent=39 // pred_region
        %p231 = scmp.lt.s32.totalorder %s13, 1
        %s232 = scalar_select %p231, %s13, 1
        %s233 = smul.addr %s232, 8
        %s234 = scalar_lea.vmem %s0, %s233
      $region44: #{qformer_forward.7} parent=39 // pred_fallthru
        _
    $region40: #{qformer_forward.7} parent=5 // pred_fallthru
      _
    %p235 = scmp.le.s32.totalorder 1, %s13
    %p236 = scmp.lt.s32.totalorder %s13, 3
    %p237 = pnand %p235, %p236
    %p238 = pneg %p237
    // Predicated region
    $region45: #{qformer_forward.7} parent=5 // pred_check
      _
    $region46: #{qformer_forward.7} parent=5 // pred_check_branch
      %240 = sbr.rel (%p237) target = $region48
    $region47: #{qformer_forward.7} parent=5 // pred_region
      %s241 = ssub.s32 %s13, 1
      %p242 = scmp.lt.s32.totalorder %s18, 1
      %s243 = scalar_select %p242, %s18, 1
      %s244 = smul.addr %s243, 8
      %s245 = scalar_lea.vmem %s0, %s244
      %p246 = pneg %p39
      %p247 = pneg %p36
      %p248 = pneg %p60
      %p249 = pneg %p57
      %p250 = pneg %p81
      %p251 = pneg %p78
      %p252 = pneg %p102
      %p253 = pneg %p99
      %p254 = pneg %p123
      %p255 = pneg %p120
      %p256 = pneg %p144
      %p257 = pneg %p141
      %p258 = pneg %p165
      %p259 = pneg %p162
      %p260 = pneg %p191
      %p261 = pneg %p188
      %p262 = scmp.lt.s32.totalorder %s18, 1
      %s263 = scalar_select %p262, %s18, 1
      %s264 = smul.addr %s263, 8
      %s265 = scalar_lea.vmem %s7, %s264
      %p266 = scmp.lt.s32.totalorder %s18, 1
      %s267 = scalar_select %p266, %s18, 1
      %s268 = smul.addr %s267, 8
      %s269 = scalar_lea.vmem %s0, %s268
      %p270 = scmp.lt.s32.totalorder %s18, 1
      %s271 = scalar_select %p270, %s18, 1
      %s272 = smul.addr %s271, 8
      %s273 = scalar_lea.vmem %s7, %s272
      %v275 = vld [vmem:[%s269] sm:$0xff]
      %v276 = vld [vmem:[%s1] sm:$0x1]
      %v277 = vld [vmem:[%s2] sm:$0x1]
      %vm278 = vcmask 261120
      %v279 = vsel %vm278, %v275, 0.0
      %280 = vadd.xlane.f32.xlu0 %v279
      %v281 = vpop.xlane.xlu0 %280
      %v282 = vrcp.pop 32.0
      %v283 = vmul.f32 %v281, %v282
      %v284 = vsub.f32 %v275, %v283
      %v285 = vmul.f32 %v284, %v284
      %v286 = vsel %vm278, %v285, 0.0
      %287 = vadd.xlane.f32.xlu0 %v286
      %v288 = vpop.xlane.xlu0 %287
      %v289 = vmul.f32 %v288, %v282
      %v290 = vadd.f32 %v289, 1e-05
      %v291 = vrsqrt.pop %v290
      %v292 = vmul.f32 %v284, %v291
      %v294 = vlaneseq
      %v295 = vshrl.u32 %v294, 7
      %v296 = vsub.s32 0, %v295
      %v297 = vrot.slane %v276, %v296
      %v299 = vmul.f32 %v292, %v297
      %v301 = vlaneseq
      %v302 = vshrl.u32 %v301, 7
      %v303 = vsub.s32 0, %v302
      %v304 = vrot.slane %v277, %v303
      %v306 = vadd.f32 %v299, %v304
      %v307 = vpack.c.bf16 %v306, %v306
      %v308 = vld [vmem:[%s3] sm:$0xf]
      %v309 = vld [vmem:[%s3 + $0x4] sm:$0xf]
      %v310 = vld [vmem:[%s3 + $0x8] sm:$0xf]
      %v311 = vld [vmem:[%s3 + $0xc] sm:$0xf]
      %v312 = vld [vmem:[%s4] sm:$0x1]
      %v314 = vlaneseq
      %v315 = vshrl.u32 %v314, 7
      %v316 = vsub.s32 0, %v315
      %v317 = vrot.slane %v312, %v316
      %v323 = vunpack.c.l.b16 %v308
      %v324 = vunpack.c.l.b16 %v309
      %v325 = vunpack.c.l.b16 %v310
      %v326 = vunpack.c.l.b16 %v311
      %v327 = vpack.c.b16 %v324, %v323
      %v328 = vpack.c.b16 %v326, %v325
      %v332 = vsel %vm278, %v307, 0
      %334 = vmatprep.subr.bf16.mxu0 0
      %335 = vmatpush1.bf16.msra.mxu0 0
      %336 = vmatprep.subr.bf16.mxu0 0
      %337 = vmatpush1.bf16.msra.mxu0 0
      %338 = vmatprep.subr.bf16.mxu0 0
      %339 = vmatpush1.bf16.msra.mxu0 0
      %340 = vmatprep.subr.bf16.mxu0 0
      %341 = vmatpush1.bf16.msra.mxu0 0
      %342 = vmatprep.subr.bf16.mxu0 0
      %343 = vmatpush1.bf16.msra.mxu0 0
      %344 = vmatprep.subr.bf16.mxu0 0
      %345 = vmatpush1.bf16.msra.mxu0 0
      %346 = vmatprep.subr.bf16.mxu0 0
      %347 = vmatpush1.bf16.msra.mxu0 %v328
      %348 = vmatprep.subr.bf16.mxu0 0
      %349 = vmatpush1.bf16.msra.mxu0 %v327
      %350 = vmatprep.subr.bf16.mxu0 0
      %351 = vmatpush2.bf16.msra.mxu0 0
      %352 = vmatprep.subr.bf16.mxu0 0
      %353 = vmatpush2.bf16.msra.mxu0 0
      %354 = vmatprep.subr.bf16.mxu0 0
      %355 = vmatpush2.bf16.msra.mxu0 0
      %356 = vmatprep.subr.bf16.mxu0 0
      %357 = vmatpush2.bf16.msra.mxu0 0
      %358 = vmatprep.subr.bf16.mxu0 0
      %359 = vmatpush2.bf16.msra.mxu0 0
      %360 = vmatprep.subr.bf16.mxu0 0
      %361 = vmatpush2.bf16.msra.mxu0 0
      %362 = vmatprep.subr.bf16.mxu0 0
      %363 = vmatpush2.bf16.msra.mxu0 0
      %364 = vmatprep.subr.bf16.mxu0 0
      %365 = vmatpush2.bf16.msra.mxu0 0
      %366 = vmatprep.mubr.bf16.mxu0 0
      %367 = vmatmul.mubr.bf16.gmra.mxu0 %v332
      %v368 = vpop.f32.mrf.mxu0
      %v369 = vadd.f32 %v317, %v368
      %v370 = vpop.f32.mrf.mxu0
      %v371 = vpop.f32.mrf.mxu0
      %v372 = vpop.f32.mrf.mxu0
      %373 = vdwg.mxu0
      %v374 = vmul.f32 %v369, 0.35355338
      %376 = vrot.lane.b32.xlu0 %v374, 120
      %v377 = vpop.permute.xlu0 %376
      %379 = vrot.lane.b32.xlu0 %v374, 112
      %v380 = vpop.permute.xlu0 %379
      %382 = vrot.lane.b32.xlu0 %v374, 104
      %v383 = vpop.permute.xlu0 %382
      %v385 = vcombine.low %v374, %v380
      %v386 = vcombine.high %v374, %v380
      %v388 = vunpack.c.l.s4 1983009808
      %v389 = vunpack.c.0.s8 %v388
      %v390 = vlaneseq
      %v391 = vshrl.u32 %v390, 7
      %v392 = vsub.s32 %v389, %v391
      %v393 = vrot.slane %v385, %v392
      %v395 = vunpack.c.l.s4 1983009808
      %v396 = vunpack.c.0.s8 %v395
      %v397 = vlaneseq
      %v398 = vshrl.u32 %v397, 7
      %v399 = vsub.s32 %v396, %v398
      %v400 = vrot.slane %v386, %v399
      %v401 = vcombine.low %v377, %v383
      %v402 = vcombine.high %v377, %v383
      %v404 = vunpack.c.l.s4 1983009808
      %v405 = vunpack.c.0.s8 %v404
      %v406 = vlaneseq
      %v407 = vshrl.u32 %v406, 7
      %v408 = vsub.s32 %v405, %v407
      %v409 = vrot.slane %v401, %v408
      %v411 = vunpack.c.l.s4 1983009808
      %v412 = vunpack.c.0.s8 %v411
      %v413 = vlaneseq
      %v414 = vshrl.u32 %v413, 7
      %v415 = vsub.s32 %v412, %v414
      %v416 = vrot.slane %v402, %v415
      %v417 = vcombine.low %v393, %v409
      %v418 = vcombine.high %v393, %v409
      %v420 = vunpack.c.l.s4 1934713408
      %v421 = vunpack.c.0.s8 %v420
      %v422 = vlaneseq
      %v423 = vshrl.u32 %v422, 7
      %v424 = vsub.s32 %v421, %v423
      %v425 = vrot.slane %v417, %v424
      %v427 = vunpack.c.l.s4 1934713408
      %v428 = vunpack.c.0.s8 %v427
      %v429 = vlaneseq
      %v430 = vshrl.u32 %v429, 7
      %v431 = vsub.s32 %v428, %v430
      %v432 = vrot.slane %v418, %v431
      %v433 = vcombine.low %v400, %v416
      %v434 = vcombine.high %v400, %v416
      %v436 = vunpack.c.l.s4 1934713408
      %v437 = vunpack.c.0.s8 %v436
      %v438 = vlaneseq
      %v439 = vshrl.u32 %v438, 7
      %v440 = vsub.s32 %v437, %v439
      %v441 = vrot.slane %v433, %v440
      %v443 = vunpack.c.l.s4 1934713408
      %v444 = vunpack.c.0.s8 %v443
      %v445 = vlaneseq
      %v446 = vshrl.u32 %v445, 7
      %v447 = vsub.s32 %v444, %v446
      %v448 = vrot.slane %v434, %v447
      %v449 = vcombine.high %v425, 0.0
      %v450 = vcombine.high %v432, 0.0
      %v451 = vcombine.high %v441, 0.0
      %v452 = vcombine.high %v448, 0.0
      %v453 = vcombine.low %v425, %v432
      %v455 = vunpack.c.l.s4 1983009808
      %v456 = vunpack.c.0.s8 %v455
      %v457 = vlaneseq
      %v458 = vshrl.u32 %v457, 7
      %v459 = vsub.s32 %v456, %v458
      %v460 = vrot.slane %v453, %v459
      %v461 = vcombine.low %v449, %v450
      %v463 = vunpack.c.l.s4 1983009808
      %v464 = vunpack.c.0.s8 %v463
      %v465 = vlaneseq
      %v466 = vshrl.u32 %v465, 7
      %v467 = vsub.s32 %v464, %v466
      %v468 = vrot.slane %v461, %v467
      %v469 = vcombine.low %v441, %v448
      %v471 = vunpack.c.l.s4 1983009808
      %v472 = vunpack.c.0.s8 %v471
      %v473 = vlaneseq
      %v474 = vshrl.u32 %v473, 7
      %v475 = vsub.s32 %v472, %v474
      %v476 = vrot.slane %v469, %v475
      %v477 = vcombine.low %v451, %v452
      %v479 = vunpack.c.l.s4 1983009808
      %v480 = vunpack.c.0.s8 %v479
      %v481 = vlaneseq
      %v482 = vshrl.u32 %v481, 7
      %v483 = vsub.s32 %v480, %v482
      %v484 = vrot.slane %v477, %v483
      %v485 = vcombine.low %v460, %v468
      %v486 = vcombine.high %v460, %v468
      %v488 = vunpack.c.l.s4 1934713408
      %v489 = vunpack.c.0.s8 %v488
      %v490 = vlaneseq
      %v491 = vshrl.u32 %v490, 7
      %v492 = vsub.s32 %v489, %v491
      %v493 = vrot.slane %v485, %v492
      %v495 = vunpack.c.l.s4 1934713408
      %v496 = vunpack.c.0.s8 %v495
      %v497 = vlaneseq
      %v498 = vshrl.u32 %v497, 7
      %v499 = vsub.s32 %v496, %v498
      %v500 = vrot.slane %v486, %v499
      %v501 = vcombine.low %v476, %v484
      %v502 = vcombine.high %v476, %v484
      %v504 = vunpack.c.l.s4 1934713408
      %v505 = vunpack.c.0.s8 %v504
      %v506 = vlaneseq
      %v507 = vshrl.u32 %v506, 7
      %v508 = vsub.s32 %v505, %v507
      %v509 = vrot.slane %v501, %v508
      %v511 = vunpack.c.l.s4 1934713408
      %v512 = vunpack.c.0.s8 %v511
      %v513 = vlaneseq
      %v514 = vshrl.u32 %v513, 7
      %v515 = vsub.s32 %v512, %v514
      %v516 = vrot.slane %v502, %v515
      %v517 = vcombine.low %v493, %v509
      %v518 = vcombine.high %v493, %v509
      %v519 = vcombine.low %v500, %v516
      %v520 = vcombine.high %v500, %v516
      %v521 = vpack.c.bf16 %v517, %v517
      %v522 = vpack.c.bf16 %v518, %v518
      %v523 = vpack.c.bf16 %v519, %v519
      %v524 = vpack.c.bf16 %v520, %v520
      %526 = vrot.lane.b32.xlu0 %v369, 120
      %v527 = vpop.permute.xlu0 %526
      %528 = vrot.lane.b32.xlu0 %v369, 112
      %v529 = vpop.permute.xlu0 %528
      %530 = vrot.lane.b32.xlu0 %v369, 104
      %v531 = vpop.permute.xlu0 %530
      %532 = vrot.lane.b32.xlu0 %v369, 96
      %v533 = vpop.permute.xlu0 %532
      %534 = vrot.lane.b32.xlu0 %v527, 96
      %v535 = vpop.permute.xlu0 %534
      %536 = vrot.lane.b32.xlu0 %v529, 96
      %v537 = vpop.permute.xlu0 %536
      %538 = vrot.lane.b32.xlu0 %v531, 96
      %v539 = vpop.permute.xlu0 %538
      %v544 = vcombine.low %v533, %v537
      %v545 = vcombine.high %v533, %v537
      %v547 = vunpack.c.l.s4 1983009808
      %v548 = vunpack.c.0.s8 %v547
      %v549 = vlaneseq
      %v550 = vshrl.u32 %v549, 7
      %v551 = vsub.s32 %v548, %v550
      %v552 = vrot.slane %v544, %v551
      %v554 = vunpack.c.l.s4 1983009808
      %v555 = vunpack.c.0.s8 %v554
      %v556 = vlaneseq
      %v557 = vshrl.u32 %v556, 7
      %v558 = vsub.s32 %v555, %v557
      %v559 = vrot.slane %v545, %v558
      %v560 = vcombine.low %v535, %v539
      %v561 = vcombine.high %v535, %v539
      %v563 = vunpack.c.l.s4 1983009808
      %v564 = vunpack.c.0.s8 %v563
      %v565 = vlaneseq
      %v566 = vshrl.u32 %v565, 7
      %v567 = vsub.s32 %v564, %v566
      %v568 = vrot.slane %v560, %v567
      %v570 = vunpack.c.l.s4 1983009808
      %v571 = vunpack.c.0.s8 %v570
      %v572 = vlaneseq
      %v573 = vshrl.u32 %v572, 7
      %v574 = vsub.s32 %v571, %v573
      %v575 = vrot.slane %v561, %v574
      %v576 = vcombine.low %v552, %v568
      %v577 = vcombine.high %v552, %v568
      %v579 = vunpack.c.l.s4 1934713408
      %v580 = vunpack.c.0.s8 %v579
      %v581 = vlaneseq
      %v582 = vshrl.u32 %v581, 7
      %v583 = vsub.s32 %v580, %v582
      %v584 = vrot.slane %v576, %v583
      %v586 = vunpack.c.l.s4 1934713408
      %v587 = vunpack.c.0.s8 %v586
      %v588 = vlaneseq
      %v589 = vshrl.u32 %v588, 7
      %v590 = vsub.s32 %v587, %v589
      %v591 = vrot.slane %v577, %v590
      %v592 = vcombine.low %v559, %v575
      %v593 = vcombine.high %v559, %v575
      %v595 = vunpack.c.l.s4 1934713408
      %v596 = vunpack.c.0.s8 %v595
      %v597 = vlaneseq
      %v598 = vshrl.u32 %v597, 7
      %v599 = vsub.s32 %v596, %v598
      %v600 = vrot.slane %v592, %v599
      %v602 = vunpack.c.l.s4 1934713408
      %v603 = vunpack.c.0.s8 %v602
      %v604 = vlaneseq
      %v605 = vshrl.u32 %v604, 7
      %v606 = vsub.s32 %v603, %v605
      %v607 = vrot.slane %v593, %v606
      %v608 = vcombine.high %v584, 0.0
      %v609 = vcombine.high %v591, 0.0
      %v610 = vcombine.high %v600, 0.0
      %v611 = vcombine.high %v607, 0.0
      %v612 = vcombine.low %v584, %v591
      %v614 = vunpack.c.l.s4 1983009808
      %v615 = vunpack.c.0.s8 %v614
      %v616 = vlaneseq
      %v617 = vshrl.u32 %v616, 7
      %v618 = vsub.s32 %v615, %v617
      %v619 = vrot.slane %v612, %v618
      %v620 = vcombine.low %v608, %v609
      %v622 = vunpack.c.l.s4 1983009808
      %v623 = vunpack.c.0.s8 %v622
      %v624 = vlaneseq
      %v625 = vshrl.u32 %v624, 7
      %v626 = vsub.s32 %v623, %v625
      %v627 = vrot.slane %v620, %v626
      %v628 = vcombine.low %v600, %v607
      %v630 = vunpack.c.l.s4 1983009808
      %v631 = vunpack.c.0.s8 %v630
      %v632 = vlaneseq
      %v633 = vshrl.u32 %v632, 7
      %v634 = vsub.s32 %v631, %v633
      %v635 = vrot.slane %v628, %v634
      %v636 = vcombine.low %v610, %v611
      %v638 = vunpack.c.l.s4 1983009808
      %v639 = vunpack.c.0.s8 %v638
      %v640 = vlaneseq
      %v641 = vshrl.u32 %v640, 7
      %v642 = vsub.s32 %v639, %v641
      %v643 = vrot.slane %v636, %v642
      %v644 = vcombine.low %v619, %v627
      %v645 = vcombine.high %v619, %v627
      %v647 = vunpack.c.l.s4 1934713408
      %v648 = vunpack.c.0.s8 %v647
      %v649 = vlaneseq
      %v650 = vshrl.u32 %v649, 7
      %v651 = vsub.s32 %v648, %v650
      %v652 = vrot.slane %v644, %v651
      %v654 = vunpack.c.l.s4 1934713408
      %v655 = vunpack.c.0.s8 %v654
      %v656 = vlaneseq
      %v657 = vshrl.u32 %v656, 7
      %v658 = vsub.s32 %v655, %v657
      %v659 = vrot.slane %v645, %v658
      %v660 = vcombine.low %v635, %v643
      %v661 = vcombine.high %v635, %v643
      %v663 = vunpack.c.l.s4 1934713408
      %v664 = vunpack.c.0.s8 %v663
      %v665 = vlaneseq
      %v666 = vshrl.u32 %v665, 7
      %v667 = vsub.s32 %v664, %v666
      %v668 = vrot.slane %v660, %v667
      %v670 = vunpack.c.l.s4 1934713408
      %v671 = vunpack.c.0.s8 %v670
      %v672 = vlaneseq
      %v673 = vshrl.u32 %v672, 7
      %v674 = vsub.s32 %v671, %v673
      %v675 = vrot.slane %v661, %v674
      %v676 = vcombine.low %v652, %v668
      %v677 = vcombine.high %v652, %v668
      %v678 = vcombine.low %v659, %v675
      %v679 = vcombine.high %v659, %v675
      %v680 = vpack.c.bf16 %v676, %v676
      %v681 = vpack.c.bf16 %v677, %v677
      %v682 = vpack.c.bf16 %v678, %v678
      %v683 = vpack.c.bf16 %v679, %v679
      %684 = vrot.lane.b32.xlu0 %v369, 64
      %v685 = vpop.permute.xlu0 %684
      %686 = vrot.lane.b32.xlu0 %v527, 64
      %v687 = vpop.permute.xlu0 %686
      %688 = vrot.lane.b32.xlu0 %v529, 64
      %v689 = vpop.permute.xlu0 %688
      %690 = vrot.lane.b32.xlu0 %v531, 64
      %v691 = vpop.permute.xlu0 %690
      %v696 = vcombine.low %v685, %v689
      %v697 = vcombine.high %v685, %v689
      %v699 = vunpack.c.l.s4 1983009808
      %v700 = vunpack.c.0.s8 %v699
      %v701 = vlaneseq
      %v702 = vshrl.u32 %v701, 7
      %v703 = vsub.s32 %v700, %v702
      %v704 = vrot.slane %v696, %v703
      %v706 = vunpack.c.l.s4 1983009808
      %v707 = vunpack.c.0.s8 %v706
      %v708 = vlaneseq
      %v709 = vshrl.u32 %v708, 7
      %v710 = vsub.s32 %v707, %v709
      %v711 = vrot.slane %v697, %v710
      %v712 = vcombine.low %v687, %v691
      %v713 = vcombine.high %v687, %v691
      %v715 = vunpack.c.l.s4 1983009808
      %v716 = vunpack.c.0.s8 %v715
      %v717 = vlaneseq
      %v718 = vshrl.u32 %v717, 7
      %v719 = vsub.s32 %v716, %v718
      %v720 = vrot.slane %v712, %v719
      %v722 = vunpack.c.l.s4 1983009808
      %v723 = vunpack.c.0.s8 %v722
      %v724 = vlaneseq
      %v725 = vshrl.u32 %v724, 7
      %v726 = vsub.s32 %v723, %v725
      %v727 = vrot.slane %v713, %v726
      %v728 = vcombine.low %v704, %v720
      %v729 = vcombine.high %v704, %v720
      %v731 = vunpack.c.l.s4 1934713408
      %v732 = vunpack.c.0.s8 %v731
      %v733 = vlaneseq
      %v734 = vshrl.u32 %v733, 7
      %v735 = vsub.s32 %v732, %v734
      %v736 = vrot.slane %v728, %v735
      %v738 = vunpack.c.l.s4 1934713408
      %v739 = vunpack.c.0.s8 %v738
      %v740 = vlaneseq
      %v741 = vshrl.u32 %v740, 7
      %v742 = vsub.s32 %v739, %v741
      %v743 = vrot.slane %v729, %v742
      %v744 = vcombine.low %v711, %v727
      %v745 = vcombine.high %v711, %v727
      %v747 = vunpack.c.l.s4 1934713408
      %v748 = vunpack.c.0.s8 %v747
      %v749 = vlaneseq
      %v750 = vshrl.u32 %v749, 7
      %v751 = vsub.s32 %v748, %v750
      %v752 = vrot.slane %v744, %v751
      %v754 = vunpack.c.l.s4 1934713408
      %v755 = vunpack.c.0.s8 %v754
      %v756 = vlaneseq
      %v757 = vshrl.u32 %v756, 7
      %v758 = vsub.s32 %v755, %v757
      %v759 = vrot.slane %v745, %v758
      %v760 = vcombine.high %v736, 0.0
      %v761 = vcombine.high %v743, 0.0
      %v762 = vcombine.high %v752, 0.0
      %v763 = vcombine.high %v759, 0.0
      %v764 = vcombine.low %v736, %v743
      %v766 = vunpack.c.l.s4 1983009808
      %v767 = vunpack.c.0.s8 %v766
      %v768 = vlaneseq
      %v769 = vshrl.u32 %v768, 7
      %v770 = vsub.s32 %v767, %v769
      %v771 = vrot.slane %v764, %v770
      %v772 = vcombine.low %v760, %v761
      %v774 = vunpack.c.l.s4 1983009808
      %v775 = vunpack.c.0.s8 %v774
      %v776 = vlaneseq
      %v777 = vshrl.u32 %v776, 7
      %v778 = vsub.s32 %v775, %v777
      %v779 = vrot.slane %v772, %v778
      %v780 = vcombine.low %v752, %v759
      %v782 = vunpack.c.l.s4 1983009808
      %v783 = vunpack.c.0.s8 %v782
      %v784 = vlaneseq
      %v785 = vshrl.u32 %v784, 7
      %v786 = vsub.s32 %v783, %v785
      %v787 = vrot.slane %v780, %v786
      %v788 = vcombine.low %v762, %v763
      %v790 = vunpack.c.l.s4 1983009808
      %v791 = vunpack.c.0.s8 %v790
      %v792 = vlaneseq
      %v793 = vshrl.u32 %v792, 7
      %v794 = vsub.s32 %v791, %v793
      %v795 = vrot.slane %v788, %v794
      %v796 = vcombine.low %v771, %v779
      %v797 = vcombine.high %v771, %v779
      %v799 = vunpack.c.l.s4 1934713408
      %v800 = vunpack.c.0.s8 %v799
      %v801 = vlaneseq
      %v802 = vshrl.u32 %v801, 7
      %v803 = vsub.s32 %v800, %v802
      %v804 = vrot.slane %v796, %v803
      %v806 = vunpack.c.l.s4 1934713408
      %v807 = vunpack.c.0.s8 %v806
      %v808 = vlaneseq
      %v809 = vshrl.u32 %v808, 7
      %v810 = vsub.s32 %v807, %v809
      %v811 = vrot.slane %v797, %v810
      %v812 = vcombine.low %v787, %v795
      %v813 = vcombine.high %v787, %v795
      %v815 = vunpack.c.l.s4 1934713408
      %v816 = vunpack.c.0.s8 %v815
      %v817 = vlaneseq
      %v818 = vshrl.u32 %v817, 7
      %v819 = vsub.s32 %v816, %v818
      %v820 = vrot.slane %v812, %v819
      %v822 = vunpack.c.l.s4 1934713408
      %v823 = vunpack.c.0.s8 %v822
      %v824 = vlaneseq
      %v825 = vshrl.u32 %v824, 7
      %v826 = vsub.s32 %v823, %v825
      %v827 = vrot.slane %v813, %v826
      %v828 = vcombine.low %v804, %v820
      %v829 = vcombine.high %v804, %v820
      %v830 = vcombine.low %v811, %v827
      %v831 = vcombine.high %v811, %v827
      %v832 = vpack.c.bf16 %v828, %v828
      %v833 = vpack.c.bf16 %v829, %v829
      %v834 = vpack.c.bf16 %v830, %v830
      %v835 = vpack.c.bf16 %v831, %v831
      %vm836 = vcmask 64512
      %v838 = vsel %vm836, %v521, 0
      %v841 = vsel %vm836, %v680, 0
      %843 = vmatprep.subr.bf16.mxu0 0
      %844 = vmatpush1.bf16.xpose.msra.mxu0 0
      %845 = vmatprep.subr.bf16.mxu0 0
      %846 = vmatpush1.bf16.xpose.msra.mxu0 0
      %847 = vmatprep.subr.bf16.mxu0 0
      %848 = vmatpush1.bf16.xpose.msra.mxu0 0
      %849 = vmatprep.subr.bf16.mxu0 0
      %850 = vmatpush1.bf16.xpose.msra.mxu0 0
      %851 = vmatprep.subr.bf16.mxu0 0
      %852 = vmatpush1.bf16.xpose.msra.mxu0 0
      %853 = vmatprep.subr.bf16.mxu0 0
      %854 = vmatpush1.bf16.xpose.msra.mxu0 0
      %855 = vmatprep.subr.bf16.mxu0 0
      %856 = vmatpush1.bf16.xpose.msra.mxu0 0
      %857 = vmatprep.subr.bf16.mxu0 0
      %858 = vmatpush1.bf16.xpose.msra.mxu0 %v841
      %859 = vmatprep.subr.bf16.mxu0 0
      %860 = vmatpush2.bf16.xpose.msra.mxu0 0
      %861 = vmatprep.subr.bf16.mxu0 0
      %862 = vmatpush2.bf16.xpose.msra.mxu0 0
      %863 = vmatprep.subr.bf16.mxu0 0
      %864 = vmatpush2.bf16.xpose.msra.mxu0 0
      %865 = vmatprep.subr.bf16.mxu0 0
      %866 = vmatpush2.bf16.xpose.msra.mxu0 0
      %867 = vmatprep.subr.bf16.mxu0 0
      %868 = vmatpush2.bf16.xpose.msra.mxu0 0
      %869 = vmatprep.subr.bf16.mxu0 0
      %870 = vmatpush2.bf16.xpose.msra.mxu0 0
      %871 = vmatprep.subr.bf16.mxu0 0
      %872 = vmatpush2.bf16.xpose.msra.mxu0 0
      %873 = vmatprep.subr.bf16.mxu0 0
      %874 = vmatpush2.bf16.xpose.msra.mxu0 0
      %875 = vmatprep.mubr.bf16.mxu0 0
      %876 = vmatmul.mubr.bf16.gmra.mxu0 %v838
      %v877 = vpop.f32.mrf.mxu0
      %v878 = vadd.f32 0.0, %v877
      %v879 = vpop.f32.mrf.mxu0
      %v880 = vpop.f32.mrf.mxu0
      %v881 = vpop.f32.mrf.mxu0
      %882 = vdwg.mxu0
      %v884 = vsel %vm836, %v522, 0
      %v887 = vsel %vm836, %v681, 0
      %889 = vmatprep.subr.bf16.mxu0 0
      %890 = vmatpush1.bf16.xpose.msra.mxu0 0
      %891 = vmatprep.subr.bf16.mxu0 0
      %892 = vmatpush1.bf16.xpose.msra.mxu0 0
      %893 = vmatprep.subr.bf16.mxu0 0
      %894 = vmatpush1.bf16.xpose.msra.mxu0 0
      %895 = vmatprep.subr.bf16.mxu0 0
      %896 = vmatpush1.bf16.xpose.msra.mxu0 0
      %897 = vmatprep.subr.bf16.mxu0 0
      %898 = vmatpush1.bf16.xpose.msra.mxu0 0
      %899 = vmatprep.subr.bf16.mxu0 0
      %900 = vmatpush1.bf16.xpose.msra.mxu0 0
      %901 = vmatprep.subr.bf16.mxu0 0
      %902 = vmatpush1.bf16.xpose.msra.mxu0 0
      %903 = vmatprep.subr.bf16.mxu0 0
      %904 = vmatpush1.bf16.xpose.msra.mxu0 %v887
      %905 = vmatprep.subr.bf16.mxu0 0
      %906 = vmatpush2.bf16.xpose.msra.mxu0 0
      %907 = vmatprep.subr.bf16.mxu0 0
      %908 = vmatpush2.bf16.xpose.msra.mxu0 0
      %909 = vmatprep.subr.bf16.mxu0 0
      %910 = vmatpush2.bf16.xpose.msra.mxu0 0
      %911 = vmatprep.subr.bf16.mxu0 0
      %912 = vmatpush2.bf16.xpose.msra.mxu0 0
      %913 = vmatprep.subr.bf16.mxu0 0
      %914 = vmatpush2.bf16.xpose.msra.mxu0 0
      %915 = vmatprep.subr.bf16.mxu0 0
      %916 = vmatpush2.bf16.xpose.msra.mxu0 0
      %917 = vmatprep.subr.bf16.mxu0 0
      %918 = vmatpush2.bf16.xpose.msra.mxu0 0
      %919 = vmatprep.subr.bf16.mxu0 0
      %920 = vmatpush2.bf16.xpose.msra.mxu0 0
      %921 = vmatprep.mubr.bf16.mxu0 0
      %922 = vmatmul.mubr.bf16.gmra.mxu0 %v884
      %v923 = vpop.f32.mrf.mxu0
      %v924 = vadd.f32 0.0, %v923
      %v925 = vpop.f32.mrf.mxu0
      %v926 = vpop.f32.mrf.mxu0
      %v927 = vpop.f32.mrf.mxu0
      %928 = vdwg.mxu0
      %v930 = vsel %vm836, %v523, 0
      %v933 = vsel %vm836, %v682, 0
      %935 = vmatprep.subr.bf16.mxu0 0
      %936 = vmatpush1.bf16.xpose.msra.mxu0 0
      %937 = vmatprep.subr.bf16.mxu0 0
      %938 = vmatpush1.bf16.xpose.msra.mxu0 0
      %939 = vmatprep.subr.bf16.mxu0 0
      %940 = vmatpush1.bf16.xpose.msra.mxu0 0
      %941 = vmatprep.subr.bf16.mxu0 0
      %942 = vmatpush1.bf16.xpose.msra.mxu0 0
      %943 = vmatprep.subr.bf16.mxu0 0
      %944 = vmatpush1.bf16.xpose.msra.mxu0 0
      %945 = vmatprep.subr.bf16.mxu0 0
      %946 = vmatpush1.bf16.xpose.msra.mxu0 0
      %947 = vmatprep.subr.bf16.mxu0 0
      %948 = vmatpush1.bf16.xpose.msra.mxu0 0
      %949 = vmatprep.subr.bf16.mxu0 0
      %950 = vmatpush1.bf16.xpose.msra.mxu0 %v933
      %951 = vmatprep.subr.bf16.mxu0 0
      %952 = vmatpush2.bf16.xpose.msra.mxu0 0
      %953 = vmatprep.subr.bf16.mxu0 0
      %954 = vmatpush2.bf16.xpose.msra.mxu0 0
      %955 = vmatprep.subr.bf16.mxu0 0
      %956 = vmatpush2.bf16.xpose.msra.mxu0 0
      %957 = vmatprep.subr.bf16.mxu0 0
      %958 = vmatpush2.bf16.xpose.msra.mxu0 0
      %959 = vmatprep.subr.bf16.mxu0 0
      %960 = vmatpush2.bf16.xpose.msra.mxu0 0
      %961 = vmatprep.subr.bf16.mxu0 0
      %962 = vmatpush2.bf16.xpose.msra.mxu0 0
      %963 = vmatprep.subr.bf16.mxu0 0
      %964 = vmatpush2.bf16.xpose.msra.mxu0 0
      %965 = vmatprep.subr.bf16.mxu0 0
      %966 = vmatpush2.bf16.xpose.msra.mxu0 0
      %967 = vmatprep.mubr.bf16.mxu0 0
      %968 = vmatmul.mubr.bf16.gmra.mxu0 %v930
      %v969 = vpop.f32.mrf.mxu0
      %v970 = vadd.f32 0.0, %v969
      %v971 = vpop.f32.mrf.mxu0
      %v972 = vpop.f32.mrf.mxu0
      %v973 = vpop.f32.mrf.mxu0
      %974 = vdwg.mxu0
      %v976 = vsel %vm836, %v524, 0
      %v979 = vsel %vm836, %v683, 0
      %981 = vmatprep.subr.bf16.mxu0 0
      %982 = vmatpush1.bf16.xpose.msra.mxu0 0
      %983 = vmatprep.subr.bf16.mxu0 0
      %984 = vmatpush1.bf16.xpose.msra.mxu0 0
      %985 = vmatprep.subr.bf16.mxu0 0
      %986 = vmatpush1.bf16.xpose.msra.mxu0 0
      %987 = vmatprep.subr.bf16.mxu0 0
      %988 = vmatpush1.bf16.xpose.msra.mxu0 0
      %989 = vmatprep.subr.bf16.mxu0 0
      %990 = vmatpush1.bf16.xpose.msra.mxu0 0
      %991 = vmatprep.subr.bf16.mxu0 0
      %992 = vmatpush1.bf16.xpose.msra.mxu0 0
      %993 = vmatprep.subr.bf16.mxu0 0
      %994 = vmatpush1.bf16.xpose.msra.mxu0 0
      %995 = vmatprep.subr.bf16.mxu0 0
      %996 = vmatpush1.bf16.xpose.msra.mxu0 %v979
      %997 = vmatprep.subr.bf16.mxu0 0
      %998 = vmatpush2.bf16.xpose.msra.mxu0 0
      %999 = vmatprep.subr.bf16.mxu0 0
      %1000 = vmatpush2.bf16.xpose.msra.mxu0 0
      %1001 = vmatprep.subr.bf16.mxu0 0
      %1002 = vmatpush2.bf16.xpose.msra.mxu0 0
      %1003 = vmatprep.subr.bf16.mxu0 0
      %1004 = vmatpush2.bf16.xpose.msra.mxu0 0
      %1005 = vmatprep.subr.bf16.mxu0 0
      %1006 = vmatpush2.bf16.xpose.msra.mxu0 0
      %1007 = vmatprep.subr.bf16.mxu0 0
      %1008 = vmatpush2.bf16.xpose.msra.mxu0 0
      %1009 = vmatprep.subr.bf16.mxu0 0
      %1010 = vmatpush2.bf16.xpose.msra.mxu0 0
      %1011 = vmatprep.subr.bf16.mxu0 0
      %1012 = vmatpush2.bf16.xpose.msra.mxu0 0
      %1013 = vmatprep.mubr.bf16.mxu0 0
      %1014 = vmatmul.mubr.bf16.gmra.mxu0 %v976
      %v1015 = vpop.f32.mrf.mxu0
      %v1016 = vadd.f32 0.0, %v1015
      %v1017 = vpop.f32.mrf.mxu0
      %v1018 = vpop.f32.mrf.mxu0
      %v1019 = vpop.f32.mrf.mxu0
      %1020 = vdwg.mxu0
      %v1021 = vsel %vm836, %v878, -inf
      %1022 = vmax.xlane.f32.xlu0 %v1021
      %v1023 = vpop.xlane.xlu0 %1022
      %v1024 = vsel %vm836, %v924, -inf
      %1025 = vmax.xlane.f32.xlu0 %v1024
      %v1026 = vpop.xlane.xlu0 %1025
      %v1027 = vsel %vm836, %v970, -inf
      %1028 = vmax.xlane.f32.xlu0 %v1027
      %v1029 = vpop.xlane.xlu0 %1028
      %v1030 = vsel %vm836, %v1016, -inf
      %1031 = vmax.xlane.f32.xlu0 %v1030
      %v1032 = vpop.xlane.xlu0 %1031
      %v1033 = vsub.f32 %v878, %v1023
      %v1034 = vsub.f32 %v924, %v1026
      %v1035 = vsub.f32 %v970, %v1029
      %v1036 = vsub.f32 %v1016, %v1032
      %v1037 = vmul.f32 %v1033, 1.442695
      %v1038 = vpow.pop %v1037
      %v1039 = vmul.f32 %v1034, 1.442695
      %v1040 = vpow.pop %v1039
      %v1041 = vmul.f32 %v1035, 1.442695
      %v1042 = vpow.pop %v1041
      %v1043 = vmul.f32 %v1036, 1.442695
      %v1044 = vpow.pop %v1043
      %v1045 = vsel %vm836, %v1038, 0.0
      %1046 = vadd.xlane.f32.xlu0 %v1045
      %v1047 = vpop.xlane.xlu0 %1046
      %v1048 = vsel %vm836, %v1040, 0.0
      %1049 = vadd.xlane.f32.xlu0 %v1048
      %v1050 = vpop.xlane.xlu0 %1049
      %v1051 = vsel %vm836, %v1042, 0.0
      %1052 = vadd.xlane.f32.xlu0 %v1051
      %v1053 = vpop.xlane.xlu0 %1052
      %v1054 = vsel %vm836, %v1044, 0.0
      %1055 = vadd.xlane.f32.xlu0 %v1054
      %v1056 = vpop.xlane.xlu0 %1055
      %v1057 = vrcp.pop %v1047
      %v1058 = vmul.f32 %v1038, %v1057
      %v1059 = vrcp.pop %v1050
      %v1060 = vmul.f32 %v1040, %v1059
      %v1061 = vrcp.pop %v1053
      %v1062 = vmul.f32 %v1042, %v1061
      %v1063 = vrcp.pop %v1056
      %v1064 = vmul.f32 %v1044, %v1063
      %v1065 = vpack.c.bf16 %v1058, %v1058
      %v1066 = vpack.c.bf16 %v1060, %v1060
      %v1067 = vpack.c.bf16 %v1062, %v1062
      %v1068 = vpack.c.bf16 %v1064, %v1064
      %v1070 = vsel %vm836, %v1065, 0
      %vm1072 = vcmask 1043456
      %v1074 = vsel %vm1072, %v832, 0
      %1076 = vmatprep.subr.bf16.mxu0 0
      %1077 = vmatpush1.bf16.msra.mxu0 0
      %1078 = vmatprep.subr.bf16.mxu0 0
      %1079 = vmatpush1.bf16.msra.mxu0 0
      %1080 = vmatprep.subr.bf16.mxu0 0
      %1081 = vmatpush1.bf16.msra.mxu0 0
      %1082 = vmatprep.subr.bf16.mxu0 0
      %1083 = vmatpush1.bf16.msra.mxu0 0
      %1084 = vmatprep.subr.bf16.mxu0 0
      %1085 = vmatpush1.bf16.msra.mxu0 0
      %1086 = vmatprep.subr.bf16.mxu0 0
      %1087 = vmatpush1.bf16.msra.mxu0 0
      %1088 = vmatprep.subr.bf16.mxu0 0
      %1089 = vmatpush1.bf16.msra.mxu0 0
      %1090 = vmatprep.subr.bf16.mxu0 0
      %1091 = vmatpush1.bf16.msra.mxu0 %v1074
      %1092 = vmatprep.subr.bf16.mxu0 0
      %1093 = vmatpush2.bf16.msra.mxu0 0
      %1094 = vmatprep.subr.bf16.mxu0 0
      %1095 = vmatpush2.bf16.msra.mxu0 0
      %1096 = vmatprep.subr.bf16.mxu0 0
      %1097 = vmatpush2.bf16.msra.mxu0 0
      %1098 = vmatprep.subr.bf16.mxu0 0
      %1099 = vmatpush2.bf16.msra.mxu0 0
      %1100 = vmatprep.subr.bf16.mxu0 0
      %1101 = vmatpush2.bf16.msra.mxu0 0
      %1102 = vmatprep.subr.bf16.mxu0 0
      %1103 = vmatpush2.bf16.msra.mxu0 0
      %1104 = vmatprep.subr.bf16.mxu0 0
      %1105 = vmatpush2.bf16.msra.mxu0 0
      %1106 = vmatprep.subr.bf16.mxu0 0
      %1107 = vmatpush2.bf16.msra.mxu0 0
      %1108 = vmatprep.mubr.bf16.mxu0 0
      %1109 = vmatmul.mubr.bf16.gmra.mxu0 %v1070
      %v1110 = vpop.f32.mrf.mxu0
      %v1111 = vadd.f32 0.0, %v1110
      %v1112 = vpop.f32.mrf.mxu0
      %v1113 = vpop.f32.mrf.mxu0
      %v1114 = vpop.f32.mrf.mxu0
      %1115 = vdwg.mxu0
      %v1117 = vsel %vm836, %v1066, 0
      %v1120 = vsel %vm1072, %v833, 0
      %1122 = vmatprep.subr.bf16.mxu0 0
      %1123 = vmatpush1.bf16.msra.mxu0 0
      %1124 = vmatprep.subr.bf16.mxu0 0
      %1125 = vmatpush1.bf16.msra.mxu0 0
      %1126 = vmatprep.subr.bf16.mxu0 0
      %1127 = vmatpush1.bf16.msra.mxu0 0
      %1128 = vmatprep.subr.bf16.mxu0 0
      %1129 = vmatpush1.bf16.msra.mxu0 0
      %1130 = vmatprep.subr.bf16.mxu0 0
      %1131 = vmatpush1.bf16.msra.mxu0 0
      %1132 = vmatprep.subr.bf16.mxu0 0
      %1133 = vmatpush1.bf16.msra.mxu0 0
      %1134 = vmatprep.subr.bf16.mxu0 0
      %1135 = vmatpush1.bf16.msra.mxu0 0
      %1136 = vmatprep.subr.bf16.mxu0 0
      %1137 = vmatpush1.bf16.msra.mxu0 %v1120
      %1138 = vmatprep.subr.bf16.mxu0 0
      %1139 = vmatpush2.bf16.msra.mxu0 0
      %1140 = vmatprep.subr.bf16.mxu0 0
      %1141 = vmatpush2.bf16.msra.mxu0 0
      %1142 = vmatprep.subr.bf16.mxu0 0
      %1143 = vmatpush2.bf16.msra.mxu0 0
      %1144 = vmatprep.subr.bf16.mxu0 0
      %1145 = vmatpush2.bf16.msra.mxu0 0
      %1146 = vmatprep.subr.bf16.mxu0 0
      %1147 = vmatpush2.bf16.msra.mxu0 0
      %1148 = vmatprep.subr.bf16.mxu0 0
      %1149 = vmatpush2.bf16.msra.mxu0 0
      %1150 = vmatprep.subr.bf16.mxu0 0
      %1151 = vmatpush2.bf16.msra.mxu0 0
      %1152 = vmatprep.subr.bf16.mxu0 0
      %1153 = vmatpush2.bf16.msra.mxu0 0
      %1154 = vmatprep.mubr.bf16.mxu0 0
      %1155 = vmatmul.mubr.bf16.gmra.mxu0 %v1117
      %v1156 = vpop.f32.mrf.mxu0
      %v1157 = vadd.f32 0.0, %v1156
      %v1158 = vpop.f32.mrf.mxu0
      %v1159 = vpop.f32.mrf.mxu0
      %v1160 = vpop.f32.mrf.mxu0
      %1161 = vdwg.mxu0
      %v1163 = vsel %vm836, %v1067, 0
      %v1166 = vsel %vm1072, %v834, 0
      %1168 = vmatprep.subr.bf16.mxu0 0
      %1169 = vmatpush1.bf16.msra.mxu0 0
      %1170 = vmatprep.subr.bf16.mxu0 0
      %1171 = vmatpush1.bf16.msra.mxu0 0
      %1172 = vmatprep.subr.bf16.mxu0 0
      %1173 = vmatpush1.bf16.msra.mxu0 0
      %1174 = vmatprep.subr.bf16.mxu0 0
      %1175 = vmatpush1.bf16.msra.mxu0 0
      %1176 = vmatprep.subr.bf16.mxu0 0
      %1177 = vmatpush1.bf16.msra.mxu0 0
      %1178 = vmatprep.subr.bf16.mxu0 0
      %1179 = vmatpush1.bf16.msra.mxu0 0
      %1180 = vmatprep.subr.bf16.mxu0 0
      %1181 = vmatpush1.bf16.msra.mxu0 0
      %1182 = vmatprep.subr.bf16.mxu0 0
      %1183 = vmatpush1.bf16.msra.mxu0 %v1166
      %1184 = vmatprep.subr.bf16.mxu0 0
      %1185 = vmatpush2.bf16.msra.mxu0 0
      %1186 = vmatprep.subr.bf16.mxu0 0
      %1187 = vmatpush2.bf16.msra.mxu0 0
      %1188 = vmatprep.subr.bf16.mxu0 0
      %1189 = vmatpush2.bf16.msra.mxu0 0
      %1190 = vmatprep.subr.bf16.mxu0 0
      %1191 = vmatpush2.bf16.msra.mxu0 0
      %1192 = vmatprep.subr.bf16.mxu0 0
      %1193 = vmatpush2.bf16.msra.mxu0 0
      %1194 = vmatprep.subr.bf16.mxu0 0
      %1195 = vmatpush2.bf16.msra.mxu0 0
      %1196 = vmatprep.subr.bf16.mxu0 0
      %1197 = vmatpush2.bf16.msra.mxu0 0
      %1198 = vmatprep.subr.bf16.mxu0 0
      %1199 = vmatpush2.bf16.msra.mxu0 0
      %1200 = vmatprep.mubr.bf16.mxu0 0
      %1201 = vmatmul.mubr.bf16.gmra.mxu0 %v1163
      %v1202 = vpop.f32.mrf.mxu0
      %v1203 = vadd.f32 0.0, %v1202
      %v1204 = vpop.f32.mrf.mxu0
      %v1205 = vpop.f32.mrf.mxu0
      %v1206 = vpop.f32.mrf.mxu0
      %1207 = vdwg.mxu0
      %v1209 = vsel %vm836, %v1068, 0
      %v1212 = vsel %vm1072, %v835, 0
      %1214 = vmatprep.subr.bf16.mxu0 0
      %1215 = vmatpush1.bf16.msra.mxu0 0
      %1216 = vmatprep.subr.bf16.mxu0 0
      %1217 = vmatpush1.bf16.msra.mxu0 0
      %1218 = vmatprep.subr.bf16.mxu0 0
      %1219 = vmatpush1.bf16.msra.mxu0 0
      %1220 = vmatprep.subr.bf16.mxu0 0
      %1221 = vmatpush1.bf16.msra.mxu0 0
      %1222 = vmatprep.subr.bf16.mxu0 0
      %1223 = vmatpush1.bf16.msra.mxu0 0
      %1224 = vmatprep.subr.bf16.mxu0 0
      %1225 = vmatpush1.bf16.msra.mxu0 0
      %1226 = vmatprep.subr.bf16.mxu0 0
      %1227 = vmatpush1.bf16.msra.mxu0 0
      %1228 = vmatprep.subr.bf16.mxu0 0
      %1229 = vmatpush1.bf16.msra.mxu0 %v1212
      %1230 = vmatprep.subr.bf16.mxu0 0
      %1231 = vmatpush2.bf16.msra.mxu0 0
      %1232 = vmatprep.subr.bf16.mxu0 0
      %1233 = vmatpush2.bf16.msra.mxu0 0
      %1234 = vmatprep.subr.bf16.mxu0 0
      %1235 = vmatpush2.bf16.msra.mxu0 0
      %1236 = vmatprep.subr.bf16.mxu0 0
      %1237 = vmatpush2.bf16.msra.mxu0 0
      %1238 = vmatprep.subr.bf16.mxu0 0
      %1239 = vmatpush2.bf16.msra.mxu0 0
      %1240 = vmatprep.subr.bf16.mxu0 0
      %1241 = vmatpush2.bf16.msra.mxu0 0
      %1242 = vmatprep.subr.bf16.mxu0 0
      %1243 = vmatpush2.bf16.msra.mxu0 0
      %1244 = vmatprep.subr.bf16.mxu0 0
      %1245 = vmatpush2.bf16.msra.mxu0 0
      %1246 = vmatprep.mubr.bf16.mxu0 0
      %1247 = vmatmul.mubr.bf16.gmra.mxu0 %v1209
      %v1248 = vpop.f32.mrf.mxu0
      %v1249 = vadd.f32 0.0, %v1248
      %v1250 = vpop.f32.mrf.mxu0
      %v1251 = vpop.f32.mrf.mxu0
      %v1252 = vpop.f32.mrf.mxu0
      %1253 = vdwg.mxu0
      %v1254 = vcombine.low %v1111, %v1203
      %v1255 = vcombine.high %v1111, %v1203
      %v1257 = vunpack.c.l.s4 1983009808
      %v1258 = vunpack.c.0.s8 %v1257
      %v1259 = vlaneseq
      %v1260 = vshrl.u32 %v1259, 7
      %v1261 = vsub.s32 %v1258, %v1260
      %v1262 = vrot.slane %v1254, %v1261
      %v1264 = vunpack.c.l.s4 1983009808
      %v1265 = vunpack.c.0.s8 %v1264
      %v1266 = vlaneseq
      %v1267 = vshrl.u32 %v1266, 7
      %v1268 = vsub.s32 %v1265, %v1267
      %v1269 = vrot.slane %v1255, %v1268
      %v1270 = vcombine.low %v1157, %v1249
      %v1271 = vcombine.high %v1157, %v1249
      %v1273 = vunpack.c.l.s4 1983009808
      %v1274 = vunpack.c.0.s8 %v1273
      %v1275 = vlaneseq
      %v1276 = vshrl.u32 %v1275, 7
      %v1277 = vsub.s32 %v1274, %v1276
      %v1278 = vrot.slane %v1270, %v1277
      %v1280 = vunpack.c.l.s4 1983009808
      %v1281 = vunpack.c.0.s8 %v1280
      %v1282 = vlaneseq
      %v1283 = vshrl.u32 %v1282, 7
      %v1284 = vsub.s32 %v1281, %v1283
      %v1285 = vrot.slane %v1271, %v1284
      %v1286 = vcombine.low %v1262, %v1278
      %v1287 = vcombine.high %v1262, %v1278
      %v1289 = vunpack.c.l.s4 1934713408
      %v1290 = vunpack.c.0.s8 %v1289
      %v1291 = vlaneseq
      %v1292 = vshrl.u32 %v1291, 7
      %v1293 = vsub.s32 %v1290, %v1292
      %v1294 = vrot.slane %v1286, %v1293
      %v1296 = vunpack.c.l.s4 1934713408
      %v1297 = vunpack.c.0.s8 %v1296
      %v1298 = vlaneseq
      %v1299 = vshrl.u32 %v1298, 7
      %v1300 = vsub.s32 %v1297, %v1299
      %v1301 = vrot.slane %v1287, %v1300
      %v1302 = vcombine.low %v1269, %v1285
      %v1303 = vcombine.high %v1269, %v1285
      %v1305 = vunpack.c.l.s4 1934713408
      %v1306 = vunpack.c.0.s8 %v1305
      %v1307 = vlaneseq
      %v1308 = vshrl.u32 %v1307, 7
      %v1309 = vsub.s32 %v1306, %v1308
      %v1310 = vrot.slane %v1302, %v1309
      %v1312 = vunpack.c.l.s4 1934713408
      %v1313 = vunpack.c.0.s8 %v1312
      %v1314 = vlaneseq
      %v1315 = vshrl.u32 %v1314, 7
      %v1316 = vsub.s32 %v1313, %v1315
      %v1317 = vrot.slane %v1303, %v1316
      %v1318 = vcombine.high %v1294, 0.0
      %v1319 = vcombine.high %v1301, 0.0
      %v1320 = vcombine.high %v1310, 0.0
      %v1321 = vcombine.high %v1317, 0.0
      %v1322 = vcombine.low %v1294, %v1301
      %v1324 = vunpack.c.l.s4 1983009808
      %v1325 = vunpack.c.0.s8 %v1324
      %v1326 = vlaneseq
      %v1327 = vshrl.u32 %v1326, 7
      %v1328 = vsub.s32 %v1325, %v1327
      %v1329 = vrot.slane %v1322, %v1328
      %v1330 = vcombine.low %v1318, %v1319
      %v1332 = vunpack.c.l.s4 1983009808
      %v1333 = vunpack.c.0.s8 %v1332
      %v1334 = vlaneseq
      %v1335 = vshrl.u32 %v1334, 7
      %v1336 = vsub.s32 %v1333, %v1335
      %v1337 = vrot.slane %v1330, %v1336
      %v1338 = vcombine.low %v1310, %v1317
      %v1340 = vunpack.c.l.s4 1983009808
      %v1341 = vunpack.c.0.s8 %v1340
      %v1342 = vlaneseq
      %v1343 = vshrl.u32 %v1342, 7
      %v1344 = vsub.s32 %v1341, %v1343
      %v1345 = vrot.slane %v1338, %v1344
      %v1346 = vcombine.low %v1320, %v1321
      %v1348 = vunpack.c.l.s4 1983009808
      %v1349 = vunpack.c.0.s8 %v1348
      %v1350 = vlaneseq
      %v1351 = vshrl.u32 %v1350, 7
      %v1352 = vsub.s32 %v1349, %v1351
      %v1353 = vrot.slane %v1346, %v1352
      %v1354 = vcombine.low %v1329, %v1337
      %v1355 = vcombine.high %v1329, %v1337
      %v1357 = vunpack.c.l.s4 1934713408
      %v1358 = vunpack.c.0.s8 %v1357
      %v1359 = vlaneseq
      %v1360 = vshrl.u32 %v1359, 7
      %v1361 = vsub.s32 %v1358, %v1360
      %v1362 = vrot.slane %v1354, %v1361
      %v1364 = vunpack.c.l.s4 1934713408
      %v1365 = vunpack.c.0.s8 %v1364
      %v1366 = vlaneseq
      %v1367 = vshrl.u32 %v1366, 7
      %v1368 = vsub.s32 %v1365, %v1367
      %v1369 = vrot.slane %v1355, %v1368
      %v1370 = vcombine.low %v1345, %v1353
      %v1371 = vcombine.high %v1345, %v1353
      %v1373 = vunpack.c.l.s4 1934713408
      %v1374 = vunpack.c.0.s8 %v1373
      %v1375 = vlaneseq
      %v1376 = vshrl.u32 %v1375, 7
      %v1377 = vsub.s32 %v1374, %v1376
      %v1378 = vrot.slane %v1370, %v1377
      %v1380 = vunpack.c.l.s4 1934713408
      %v1381 = vunpack.c.0.s8 %v1380
      %v1382 = vlaneseq
      %v1383 = vshrl.u32 %v1382, 7
      %v1384 = vsub.s32 %v1381, %v1383
      %v1385 = vrot.slane %v1371, %v1384
      %v1386 = vcombine.low %v1362, %v1378
      %v1387 = vcombine.high %v1362, %v1378
      %v1388 = vcombine.low %v1369, %v1385
      %v1389 = vcombine.high %v1369, %v1385
      %1391 = vrot.lane.b32.xlu0 %v1387, 8
      %v1392 = vpop.permute.xlu0 %1391
      %1395 = vrot.lane.b32.xlu0 %v1388, 16
      %v1396 = vpop.permute.xlu0 %1395
      %1399 = vrot.lane.b32.xlu0 %v1389, 24
      %v1400 = vpop.permute.xlu0 %1399
      %v1402 = vsel %vm836, %v1386, %v1392
      %vm1403 = vcmask 130048
      %v1404 = vsel %vm1403, %v1402, %v1396
      %vm1405 = vcmask 195584
      %v1406 = vsel %vm1405, %v1404, %v1400
      %v1407 = vld [vmem:[%s6] sm:$0x1]
      %v1409 = vlaneseq
      %v1410 = vshrl.u32 %v1409, 7
      %v1411 = vsub.s32 0, %v1410
      %v1412 = vrot.slane %v1407, %v1411
      %v1414 = vadd.f32 %v275, %v1412
      %v1415 = vpack.c.bf16 %v1406, %v1406
      %v1416 = vld [vmem:[%s5] sm:$0xf]
      %v1417 = vld [vmem:[%s5 + $0x4] sm:$0xf]
      %v1418 = vld [vmem:[%s5 + $0x8] sm:$0xf]
      %v1419 = vld [vmem:[%s5 + $0xc] sm:$0xf]
      %v1424 = vunpack.c.l.b16 %v1416
      %v1425 = vunpack.c.l.b16 %v1417
      %v1426 = vunpack.c.l.b16 %v1418
      %v1427 = vunpack.c.l.b16 %v1419
      %v1428 = vpack.c.b16 %v1425, %v1424
      %v1429 = vpack.c.b16 %v1427, %v1426
      %v1433 = vsel %vm278, %v1415, 0
      %1435 = vmatprep.subr.bf16.mxu0 0
      %1436 = vmatpush1.bf16.msra.mxu0 0
      %1437 = vmatprep.subr.bf16.mxu0 0
      %1438 = vmatpush1.bf16.msra.mxu0 0
      %1439 = vmatprep.subr.bf16.mxu0 0
      %1440 = vmatpush1.bf16.msra.mxu0 0
      %1441 = vmatprep.subr.bf16.mxu0 0
      %1442 = vmatpush1.bf16.msra.mxu0 0
      %1443 = vmatprep.subr.bf16.mxu0 0
      %1444 = vmatpush1.bf16.msra.mxu0 0
      %1445 = vmatprep.subr.bf16.mxu0 0
      %1446 = vmatpush1.bf16.msra.mxu0 0
      %1447 = vmatprep.subr.bf16.mxu0 0
      %1448 = vmatpush1.bf16.msra.mxu0 %v1429
      %1449 = vmatprep.subr.bf16.mxu0 0
      %1450 = vmatpush1.bf16.msra.mxu0 %v1428
      %1451 = vmatprep.subr.bf16.mxu0 0
      %1452 = vmatpush2.bf16.msra.mxu0 0
      %1453 = vmatprep.subr.bf16.mxu0 0
      %1454 = vmatpush2.bf16.msra.mxu0 0
      %1455 = vmatprep.subr.bf16.mxu0 0
      %1456 = vmatpush2.bf16.msra.mxu0 0
      %1457 = vmatprep.subr.bf16.mxu0 0
      %1458 = vmatpush2.bf16.msra.mxu0 0
      %1459 = vmatprep.subr.bf16.mxu0 0
      %1460 = vmatpush2.bf16.msra.mxu0 0
      %1461 = vmatprep.subr.bf16.mxu0 0
      %1462 = vmatpush2.bf16.msra.mxu0 0
      %1463 = vmatprep.subr.bf16.mxu0 0
      %1464 = vmatpush2.bf16.msra.mxu0 0
      %1465 = vmatprep.subr.bf16.mxu0 0
      %1466 = vmatpush2.bf16.msra.mxu0 0
      %1467 = vmatprep.mubr.bf16.mxu0 0
      %1468 = vmatmul.mubr.bf16.gmra.mxu0 %v1433
      %v1469 = vpop.f32.mrf.mxu0
      %v1470 = vadd.f32 0.0, %v1469
      %v1471 = vpop.f32.mrf.mxu0
      %v1472 = vpop.f32.mrf.mxu0
      %v1473 = vpop.f32.mrf.mxu0
      %1474 = vdwg.mxu0
      %v1475 = vadd.f32 %v1414, %v1470
      %1476 = vst.msk [vmem:[%s273] sm:$0xff] %vm278, %v1475
      %p1477 = scmp.lt.s32.totalorder %s18, 1
      %s1478 = scalar_select %p1477, %s18, 1
      %s1479 = smul.addr %s1478, 8
      %s1480 = scalar_lea.vmem %s7, %s1479
      // Predicated region
      $region49: #{qformer_forward.7} parent=47 // pred_check
        %p1481 = pneg %p188
      $region50: #{qformer_forward.7} parent=47 // pred_check_branch
        %1483 = sbr.rel (%p1481) target = $region52
      $region51: #{qformer_forward.7} parent=47 // pred_region
        _
      $region52: #{qformer_forward.7} parent=47 // pred_fallthru
        _
    $region48: #{qformer_forward.7} parent=5 // pred_fallthru
      _
    %p1484 = scmp.le.s32.totalorder 2, %s13
    // Predicated region
    $region53: #{qformer_forward.7} parent=5 // pred_check
      %p1485 = pneg %p1484
    $region54: #{qformer_forward.7} parent=5 // pred_check_branch
      %1487 = sbr.rel (%p1485) target = $region56
    $region55: #{qformer_forward.7} parent=5 // pred_region
      %s1488 = ssub.s32 %s13, 2
      // Predicated region
      $region57: #{qformer_forward.7} parent=55 // pred_check
        %p1489 = pneg %p194
      $region58: #{qformer_forward.7} parent=55 // pred_check_branch
        %1491 = sbr.rel (%p1489) target = $region60
      $region59: #{qformer_forward.7} parent=55 // pred_region
        %p1492 = scmp.lt.s32.totalorder %s19, 1
        %s1493 = scalar_select %p1492, %s19, 1
        %s1494 = smul.addr %s1493, 8
        %s1495 = scalar_lea.vmem %s7, %s1494
      $region60: #{qformer_forward.7} parent=55 // pred_fallthru
        _
    $region56: #{qformer_forward.7} parent=5 // pred_fallthru
      _
  $region6: #{qformer_forward.7} parent=0 // loop_footer
    %s17 = sadd.s32 1, %s13
  $region7: #{qformer_forward.7} parent=0 // loop_footer_branch
    %12 = sbr.rel target = $region3
  $region8: #{qformer_forward.7} parent=0 // loop_exit
    _

// kernel: qformer_forward.13
$region0: #{qformer_forward.13}
  #allocation0 [shape = 'u32[]', space=smem, size = 0x4, offset = 0x4, fixed_abs, tag = 'smem constant byte address 0x4 - core index']
  #allocation1 [shape = 'u32[144,128]{1,0:T(1,128)}', space=vmem, size = 0x12000, scoped, tag = 'internal scratch']
  %s0 = inlined_call_operand.vmem [shape: f32[16,32], index: 0, kind: input, shape index: {}]
  %s1 = inlined_call_operand.vmem [shape: f32[1,32], index: 1, kind: input, shape index: {}]
  %s2 = inlined_call_operand.vmem [shape: f32[1,32], index: 2, kind: input, shape index: {}]
  %s3 = inlined_call_operand.hbm [shape: f32[16,32], index: 3, kind: output, shape index: {}]
  %s4 = sld [smem:[#allocation0]]
  $region45: #{qformer_forward.13} parent=0
    _
  %s6 = ssub.s32 1, %s4
  %s7 = scalar_select 0, %s6, %s4
  $region1: #{qformer_forward.13} parent=0
    #allocation2 [shape = 'u8[8192]{0}', space=vmem, size = 0x2000, scoped, tag = 'output window, operand 0']
    #allocation3 [shape = 's32[2]{0}', space=sflag, size = 0x8, scoped, tag = 'scoped memory for qformer_forward.13']
    %8 = vsyncpa [#allocation3], 0
    %s9 = scalar_lea.sflag [#allocation3], 1
    %10 = vsyncpa %s9, 0
    loop: start=0, step=1, limit=4
    $region2: #{qformer_forward.13} parent=1 // loop_pre_header
      _
    $region3: #{qformer_forward.13} parent=1 // loop_header
      %s12 = sphi 0, %s16
      %p13 = scmp.ge.s32.totalorder %s12, 4
      %s22 = sphi 0, %s24
      %s25 = sphi 0, %s22
      %s26 = sphi 0, %s25
      %s42 = sphi 0, %s26
      %s46 = sphi 0, %s46
      %s48 = sphi 0, %s46
      %s49 = sphi 0, %s48
      %s63 = sphi 0, %s49
      %s67 = sphi 0, %s67
      %s69 = sphi 0, %s67
      %s70 = sphi 0, %s69
      %s84 = sphi 0, %s70
      %s90 = sphi 0, %s92
      %s93 = sphi 0, %s90
      %s94 = sphi 0, %s93
      %s110 = sphi 0, %s94
    $region4: #{qformer_forward.13} parent=1 // loop_header_branch
      %15 = sbr.rel (%p13) target = $region8
    $region5: #{qformer_forward.13} parent=1 // loop_body
      %s17 = ssub.s32 %s12, 1
      %s18 = ssub.s32 %s12, 2
      %s19 = sadd.s32 %s12, 1
      %s20 = ssub.s32 %s12, %s19
      %p21 = scmp.eq.s32.totalorder %s20, 0
      %s23 = sadd.s32 %s22, 1
      %s24 = scalar_select %p21, %s22, %s23
      %p27 = pneg %p21
      %p28 = scmp.eq.s32.totalorder %s12, 1
      %p29 = por %p27, %p28
      %p30 = scmp.ne.s32.totalorder %s22, %s25
      %p31 = scmp.eq.s32.totalorder %s12, 0
      %p32 = por %p30, %p31
      %p33 = scmp.ne.s32.totalorder %s22, %s25
      %p34 = scmp.eq.s32.totalorder %s17, 1
      %p35 = por %p33, %p34
      %p36 = scmp.ne.s32.totalorder %s25, %s26
      %p37 = scmp.eq.s32.totalorder %s17, 0
      %p38 = por %p36, %p37
      %p39 = scmp.ne.s32.totalorder %s25, %s26
      %p40 = scmp.eq.s32.totalorder %s18, 1
      %p41 = por %p39, %p40
      %p43 = scmp.ne.s32.totalorder %s26, %s42
      %p44 = scmp.eq.s32.totalorder %s18, 0
      %p45 = por %p43, %p44
      %s47 = sadd.s32 %s46, 1
      %p50 = scmp.eq.s32.totalorder %s12, 1
      %p51 = scmp.ne.s32.totalorder %s46, %s48
      %p52 = scmp.eq.s32.totalorder %s12, 0
      %p53 = por %p51, %p52
      %p54 = scmp.ne.s32.totalorder %s46, %s48
      %p55 = scmp.eq.s32.totalorder %s17, 1
      %p56 = por %p54, %p55
      %p57 = scmp.ne.s32.totalorder %s48, %s49
      %p58 = scmp.eq.s32.totalorder %s17, 0
      %p59 = por %p57, %p58
      %p60 = scmp.ne.s32.totalorder %s48, %s49
      %p61 = scmp.eq.s32.totalorder %s18, 1
      %p62 = por %p60, %p61
      %p64 = scmp.ne.s32.totalorder %s49, %s63
      %p65 = scmp.eq.s32.totalorder %s18, 0
      %p66 = por %p64, %p65
      %s68 = sadd.s32 %s67, 1
      %p71 = scmp.eq.s32.totalorder %s12, 1
      %p72 = scmp.ne.s32.totalorder %s67, %s69
      %p73 = scmp.eq.s32.totalorder %s12, 0
      %p74 = por %p72, %p73
      %p75 = scmp.ne.s32.totalorder %s67, %s69
      %p76 = scmp.eq.s32.totalorder %s17, 1
      %p77 = por %p75, %p76
      %p78 = scmp.ne.s32.totalorder %s69, %s70
      %p79 = scmp.eq.s32.totalorder %s17, 0
      %p80 = por %p78, %p79
      %p81 = scmp.ne.s32.totalorder %s69, %s70
      %p82 = scmp.eq.s32.totalorder %s18, 1
      %p83 = por %p81, %p82
      %p85 = scmp.ne.s32.totalorder %s70, %s84
      %p86 = scmp.eq.s32.totalorder %s18, 0
      %p87 = por %p85, %p86
      %s88 = ssub.s32 %s12, %s19
      %p89 = scmp.eq.s32.totalorder %s88, 0
      %s91 = sadd.s32 %s90, 1
      %s92 = scalar_select %p89, %s90, %s91
      %p95 = pneg %p89
      %p96 = scmp.eq.s32.totalorder %s12, 1
      %p97 = por %p95, %p96
      %p98 = scmp.ne.s32.totalorder %s90, %s93
      %p99 = scmp.eq.s32.totalorder %s12, 0
      %p100 = por %p98, %p99
      %p101 = scmp.ne.s32.totalorder %s90, %s93
      %p102 = scmp.eq.s32.totalorder %s17, 1
      %p103 = por %p101, %p102
      %p104 = scmp.ne.s32.totalorder %s93, %s94
      %p105 = scmp.eq.s32.totalorder %s17, 0
      %p106 = por %p104, %p105
      %p107 = scmp.ne.s32.totalorder %s93, %s94
      %p108 = scmp.eq.s32.totalorder %s18, 1
      %p109 = por %p107, %p108
      %p111 = scmp.ne.s32.totalorder %s94, %s110
      %p112 = scmp.eq.s32.totalorder %s18, 0
      %p113 = por %p111, %p112
      %p114 = scmp.le.s32.totalorder 1, %s12
      %p115 = scmp.lt.s32.totalorder %s12, 3
      %p116 = pnand %p114, %p115
      %p117 = pneg %p116
      // Predicated region
      $region9: #{qformer_forward.13} parent=5 // pred_check
        _
      $region10: #{qformer_forward.13} parent=5 // pred_check_branch
        %119 = sbr.rel (%p116) target = $region12
      $region11: #{qformer_forward.13} parent=5 // pred_region
        %s120 = ssub.s32 %s12, 1
        // Predicated region
        $region13: #{qformer_forward.13} parent=11 // pred_check
          %p121 = pneg %p59
        $region14: #{qformer_forward.13} parent=11 // pred_check_branch
          %123 = sbr.rel (%p121) target = $region16
        $region15: #{qformer_forward.13} parent=11 // pred_region
          _
        $region16: #{qformer_forward.13} parent=11 // pred_fallthru
          _
        // Predicated region
        $region17: #{qformer_forward.13} parent=11 // pred_check
          %p124 = pneg %p80
        $region18: #{qformer_forward.13} parent=11 // pred_check_branch
          %126 = sbr.rel (%p124) target = $region20
        $region19: #{qformer_forward.13} parent=11 // pred_region
          _
        $region20: #{qformer_forward.13} parent=11 // pred_fallthru
          _
      $region12: #{qformer_forward.13} parent=5 // pred_fallthru
        _
      %p127 = scmp.lt.s32.totalorder %s12, 2
      // Predicated region
      $region21: #{qformer_forward.13} parent=5 // pred_check
        %p128 = pneg %p127
      $region22: #{qformer_forward.13} parent=5 // pred_check_branch
        %130 = sbr.rel (%p128) target = $region24
      $region23: #{qformer_forward.13} parent=5 // pred_region
        // Predicated region
        $region25: #{qformer_forward.13} parent=23 // pred_check
          %p131 = pneg %p32
        $region26: #{qformer_forward.13} parent=23 // pred_check_branch
          %133 = sbr.rel (%p131) target = $region28
        $region27: #{qformer_forward.13} parent=23 // pred_region
          %p134 = scmp.lt.s32.totalorder %s12, 1
          %s135 = scalar_select %p134, %s12, 1
          %s136 = smul.addr %s135, 8
          %s137 = scalar_lea.vmem %s0, %s136
        $region28: #{qformer_forward.13} parent=23 // pred_fallthru
          _
      $region24: #{qformer_forward.13} parent=5 // pred_fallthru
        _
      %p138 = scmp.le.s32.totalorder 1, %s12
      %p139 = scmp.lt.s32.totalorder %s12, 3
      %p140 = pnand %p138, %p139
      %p141 = pneg %p140
      // Predicated region
      $region29: #{qformer_forward.13} parent=5 // pred_check
        _
      $region30: #{qformer_forward.13} parent=5 // pred_check_branch
        %143 = sbr.rel (%p140) target = $region32
      $region31: #{qformer_forward.13} parent=5 // pred_region
        %s144 = ssub.s32 %s12, 1
        %p145 = scmp.lt.s32.totalorder %s17, 1
        %s146 = scalar_select %p145, %s17, 1
        %s147 = smul.addr %s146, 8
        %s148 = scalar_lea.vmem %s0, %s147
        %p149 = pneg %p38
        %p150 = pneg %p35
        %p151 = pneg %p59
        %p152 = pneg %p56
        %p153 = pneg %p80
        %p154 = pneg %p77
        %p155 = pneg %p106
        %p156 = pneg %p103
        %s157 = sand.u32 %s93, 1
        %s158 = scalar_lea.sflag [#allocation3], %s157
        %s159 = sand.u32 %s93, 1
        %s160 = smul.addr %s159, 8
        %s161 = scalar_lea.vmem [#allocation2], %s160
        %p162 = scmp.lt.s32.totalorder %s17, 1
        %s163 = scalar_select %p162, %s17, 1
        %s164 = smul.addr %s163, 8
        %s165 = scalar_lea.vmem %s0, %s164
        %v166 = vld [vmem:[%s165] sm:$0xff]
        %v167 = vld [vmem:[%s1] sm:$0x1]
        %v168 = vld [vmem:[%s2] sm:$0x1]
        %vm169 = vcmask 261120
        %v170 = vsel %vm169, %v166, 0.0
        %171 = vadd.xlane.f32.xlu0 %v170
        %v172 = vpop.xlane.xlu0 %171
        %v173 = vrcp.pop 32.0
        %v174 = vmul.f32 %v172, %v173
        %v175 = vsub.f32 %v166, %v174
        %v176 = vmul.f32 %v175, %v175
        %v177 = vsel %vm169, %v176, 0.0
        %178 = vadd.xlane.f32.xlu0 %v177
        %v179 = vpop.xlane.xlu0 %178
        %v180 = vmul.f32 %v179, %v173
        %v181 = vadd.f32 %v180, 1e-05
        %v182 = vrsqrt.pop %v181
        %v183 = vmul.f32 %v175, %v182
        %v185 = vlaneseq
        %v186 = vshrl.u32 %v185, 7
        %v187 = vsub.s32 0, %v186
        %v188 = vrot.slane %v167, %v187
        %v190 = vmul.f32 %v183, %v188
        %v192 = vlaneseq
        %v193 = vshrl.u32 %v192, 7
        %v194 = vsub.s32 0, %v193
        %v195 = vrot.slane %v168, %v194
        %v197 = vadd.f32 %v190, %v195
        %198 = vst.msk [vmem:[%s161] sm:$0xff] %vm169, %v197
        %s199 = sand.u32 %s93, 1
        %s200 = scalar_lea.sflag [#allocation3], %s199
        %s201 = sand.u32 %s93, 1
        %s202 = smul.addr %s201, 8
        %s203 = scalar_lea.vmem [#allocation2], %s202
        // Predicated region
        $region33: #{qformer_forward.13} parent=31 // pred_check
          %p204 = pneg %p103
        $region34: #{qformer_forward.13} parent=31 // pred_check_branch
          %206 = sbr.rel (%p204) target = $region36
        $region35: #{qformer_forward.13} parent=31 // pred_region
          %s208 = ssub.s32 128, 128
          %209 = vsyncadd %s200, %s208
          %s210 = smul.addr %s17, 128
          %s211 = scalar_lea.hbm %s3, %s210
          %s213 = sshll.u32 %s203, 4
          %s214 = int_to_ptr.vmem [resolvable:$true] %s213
          %216 = dma.vmem_to_hbm [thread:$0]  %s214, 128, %s211, %s200
        $region36: #{qformer_forward.13} parent=31 // pred_fallthru
          _
      $region32: #{qformer_forward.13} parent=5 // pred_fallthru
        _
      %p217 = scmp.le.s32.totalorder 2, %s12
      // Predicated region
      $region37: #{qformer_forward.13} parent=5 // pred_check
        %p218 = pneg %p217
      $region38: #{qformer_forward.13} parent=5 // pred_check_branch
        %220 = sbr.rel (%p218) target = $region40
      $region39: #{qformer_forward.13} parent=5 // pred_region
        %s221 = ssub.s32 %s12, 2
        // Predicated region
        $region41: #{qformer_forward.13} parent=39 // pred_check
          %p222 = pneg %p109
        $region42: #{qformer_forward.13} parent=39 // pred_check_branch
          %224 = sbr.rel (%p222) target = $region44
        $region43: #{qformer_forward.13} parent=39 // pred_region
          %s225 = sand.u32 %s94, 1
          %s226 = scalar_lea.sflag [#allocation3], %s225
          %s227 = sand.u32 %s94, 1
          %s228 = smul.addr %s227, 8
          %s229 = scalar_lea.vmem [#allocation2], %s228
          %230 = dma.done %s226, 128
        $region44: #{qformer_forward.13} parent=39 // pred_fallthru
          _
      $region40: #{qformer_forward.13} parent=5 // pred_fallthru
        _
    $region6: #{qformer_forward.13} parent=1 // loop_footer
      %s16 = sadd.s32 1, %s12
    $region7: #{qformer_forward.13} parent=1 // loop_footer_branch
      %11 = sbr.rel target = $region3
    $region8: #{qformer_forward.13} parent=1 // loop_exit
      _
    %231 = vsyncpa [#allocation3], 1
    %s232 = scalar_lea.sflag [#allocation3], 1
    %233 = vsyncpa %s232, 1

// kernel: qformer_forward.10
$region0: #{qformer_forward.10}
  #allocation0 [shape = 'u32[]', space=smem, size = 0x4, offset = 0x4, fixed_abs, tag = 'smem constant byte address 0x4 - core index']
  #allocation1 [shape = 'u32[144,128]{1,0:T(1,128)}', space=vmem, size = 0x12000, scoped, tag = 'internal scratch']
  %s0 = inlined_call_operand.vmem [shape: f32[16,32], index: 0, kind: input, shape index: {}]
  %s1 = inlined_call_operand.vmem [shape: f32[1,32], index: 1, kind: input, shape index: {}]
  %s2 = inlined_call_operand.vmem [shape: f32[1,32], index: 2, kind: input, shape index: {}]
  %s3 = inlined_call_operand.vmem [shape: bf16[32,64], index: 3, kind: input, shape index: {}]
  %s4 = inlined_call_operand.vmem [shape: f32[1,64], index: 4, kind: input, shape index: {}]
  %s5 = inlined_call_operand.vmem [shape: bf16[64,32], index: 5, kind: input, shape index: {}]
  %s6 = inlined_call_operand.vmem [shape: f32[1,32], index: 6, kind: input, shape index: {}]
  %s7 = inlined_call_operand.vmem [shape: f32[16,32], index: 7, kind: output, shape index: {}]
  %s8 = sld [smem:[#allocation0]]
  $region61: #{qformer_forward.10} parent=0
    _
  %s10 = ssub.s32 1, %s8
  %s11 = scalar_select 0, %s10, %s8
  loop: start=0, step=1, limit=4
  $region2: #{qformer_forward.10} parent=0 // loop_pre_header
    _
  $region3: #{qformer_forward.10} parent=0 // loop_header
    %s13 = sphi 0, %s17
    %p14 = scmp.ge.s32.totalorder %s13, 4
    %s23 = sphi 0, %s25
    %s26 = sphi 0, %s23
    %s27 = sphi 0, %s26
    %s43 = sphi 0, %s27
    %s47 = sphi 0, %s47
    %s49 = sphi 0, %s47
    %s50 = sphi 0, %s49
    %s64 = sphi 0, %s50
    %s68 = sphi 0, %s68
    %s70 = sphi 0, %s68
    %s71 = sphi 0, %s70
    %s85 = sphi 0, %s71
    %s89 = sphi 0, %s89
    %s91 = sphi 0, %s89
    %s92 = sphi 0, %s91
    %s106 = sphi 0, %s92
    %s110 = sphi 0, %s110
    %s112 = sphi 0, %s110
    %s113 = sphi 0, %s112
    %s127 = sphi 0, %s113
    %s131 = sphi 0, %s131
    %s133 = sphi 0, %s131
    %s134 = sphi 0, %s133
    %s148 = sphi 0, %s134
    %s152 = sphi 0, %s152
    %s154 = sphi 0, %s152
    %s155 = sphi 0, %s154
    %s169 = sphi 0, %s155
    %s175 = sphi 0, %s177
    %s178 = sphi 0, %s175
    %s179 = sphi 0, %s178
    %s195 = sphi 0, %s179
  $region4: #{qformer_forward.10} parent=0 // loop_header_branch
    %16 = sbr.rel (%p14) target = $region8
  $region5: #{qformer_forward.10} parent=0 // loop_body
    %s18 = ssub.s32 %s13, 1
    %s19 = ssub.s32 %s13, 2
    %s20 = sadd.s32 %s13, 1
    %s21 = ssub.s32 %s13, %s20
    %p22 = scmp.eq.s32.totalorder %s21, 0
    %s24 = sadd.s32 %s23, 1
    %s25 = scalar_select %p22, %s23, %s24
    %p28 = pneg %p22
    %p29 = scmp.eq.s32.totalorder %s13, 1
    %p30 = por %p28, %p29
    %p31 = scmp.ne.s32.totalorder %s23, %s26
    %p32 = scmp.eq.s32.totalorder %s13, 0
    %p33 = por %p31, %p32
    %p34 = scmp.ne.s32.totalorder %s23, %s26
    %p35 = scmp.eq.s32.totalorder %s18, 1
    %p36 = por %p34, %p35
    %p37 = scmp.ne.s32.totalorder %s26, %s27
    %p38 = scmp.eq.s32.totalorder %s18, 0
    %p39 = por %p37, %p38
    %p40 = scmp.ne.s32.totalorder %s26, %s27
    %p41 = scmp.eq.s32.totalorder %s19, 1
    %p42 = por %p40, %p41
    %p44 = scmp.ne.s32.totalorder %s27, %s43
    %p45 = scmp.eq.s32.totalorder %s19, 0
    %p46 = por %p44, %p45
    %s48 = sadd.s32 %s47, 1
    %p51 = scmp.eq.s32.totalorder %s13, 1
    %p52 = scmp.ne.s32.totalorder %s47, %s49
    %p53 = scmp.eq.s32.totalorder %s13, 0
    %p54 = por %p52, %p53
    %p55 = scmp.ne.s32.totalorder %s47, %s49
    %p56 = scmp.eq.s32.totalorder %s18, 1
    %p57 = por %p55, %p56
    %p58 = scmp.ne.s32.totalorder %s49, %s50
    %p59 = scmp.eq.s32.totalorder %s18, 0
    %p60 = por %p58, %p59
    %p61 = scmp.ne.s32.totalorder %s49, %s50
    %p62 = scmp.eq.s32.totalorder %s19, 1
    %p63 = por %p61, %p62
    %p65 = scmp.ne.s32.totalorder %s50, %s64
    %p66 = scmp.eq.s32.totalorder %s19, 0
    %p67 = por %p65, %p66
    %s69 = sadd.s32 %s68, 1
    %p72 = scmp.eq.s32.totalorder %s13, 1
    %p73 = scmp.ne.s32.totalorder %s68, %s70
    %p74 = scmp.eq.s32.totalorder %s13, 0
    %p75 = por %p73, %p74
    %p76 = scmp.ne.s32.totalorder %s68, %s70
    %p77 = scmp.eq.s32.totalorder %s18, 1
    %p78 = por %p76, %p77
    %p79 = scmp.ne.s32.totalorder %s70, %s71
    %p80 = scmp.eq.s32.totalorder %s18, 0
    %p81 = por %p79, %p80
    %p82 = scmp.ne.s32.totalorder %s70, %s71
    %p83 = scmp.eq.s32.totalorder %s19, 1
    %p84 = por %p82, %p83
    %p86 = scmp.ne.s32.totalorder %s71, %s85
    %p87 = scmp.eq.s32.totalorder %s19, 0
    %p88 = por %p86, %p87
    %s90 = sadd.s32 %s89, 1
    %p93 = scmp.eq.s32.totalorder %s13, 1
    %p94 = scmp.ne.s32.totalorder %s89, %s91
    %p95 = scmp.eq.s32.totalorder %s13, 0
    %p96 = por %p94, %p95
    %p97 = scmp.ne.s32.totalorder %s89, %s91
    %p98 = scmp.eq.s32.totalorder %s18, 1
    %p99 = por %p97, %p98
    %p100 = scmp.ne.s32.totalorder %s91, %s92
    %p101 = scmp.eq.s32.totalorder %s18, 0
    %p102 = por %p100, %p101
    %p103 = scmp.ne.s32.totalorder %s91, %s92
    %p104 = scmp.eq.s32.totalorder %s19, 1
    %p105 = por %p103, %p104
    %p107 = scmp.ne.s32.totalorder %s92, %s106
    %p108 = scmp.eq.s32.totalorder %s19, 0
    %p109 = por %p107, %p108
    %s111 = sadd.s32 %s110, 1
    %p114 = scmp.eq.s32.totalorder %s13, 1
    %p115 = scmp.ne.s32.totalorder %s110, %s112
    %p116 = scmp.eq.s32.totalorder %s13, 0
    %p117 = por %p115, %p116
    %p118 = scmp.ne.s32.totalorder %s110, %s112
    %p119 = scmp.eq.s32.totalorder %s18, 1
    %p120 = por %p118, %p119
    %p121 = scmp.ne.s32.totalorder %s112, %s113
    %p122 = scmp.eq.s32.totalorder %s18, 0
    %p123 = por %p121, %p122
    %p124 = scmp.ne.s32.totalorder %s112, %s113
    %p125 = scmp.eq.s32.totalorder %s19, 1
    %p126 = por %p124, %p125
    %p128 = scmp.ne.s32.totalorder %s113, %s127
    %p129 = scmp.eq.s32.totalorder %s19, 0
    %p130 = por %p128, %p129
    %s132 = sadd.s32 %s131, 1
    %p135 = scmp.eq.s32.totalorder %s13, 1
    %p136 = scmp.ne.s32.totalorder %s131, %s133
    %p137 = scmp.eq.s32.totalorder %s13, 0
    %p138 = por %p136, %p137
    %p139 = scmp.ne.s32.totalorder %s131, %s133
    %p140 = scmp.eq.s32.totalorder %s18, 1
    %p141 = por %p139, %p140
    %p142 = scmp.ne.s32.totalorder %s133, %s134
    %p143 = scmp.eq.s32.totalorder %s18, 0
    %p144 = por %p142, %p143
    %p145 = scmp.ne.s32.totalorder %s133, %s134
    %p146 = scmp.eq.s32.totalorder %s19, 1
    %p147 = por %p145, %p146
    %p149 = scmp.ne.s32.totalorder %s134, %s148
    %p150 = scmp.eq.s32.totalorder %s19, 0
    %p151 = por %p149, %p150
    %s153 = sadd.s32 %s152, 1
    %p156 = scmp.eq.s32.totalorder %s13, 1
    %p157 = scmp.ne.s32.totalorder %s152, %s154
    %p158 = scmp.eq.s32.totalorder %s13, 0
    %p159 = por %p157, %p158
    %p160 = scmp.ne.s32.totalorder %s152, %s154
    %p161 = scmp.eq.s32.totalorder %s18, 1
    %p162 = por %p160, %p161
    %p163 = scmp.ne.s32.totalorder %s154, %s155
    %p164 = scmp.eq.s32.totalorder %s18, 0
    %p165 = por %p163, %p164
    %p166 = scmp.ne.s32.totalorder %s154, %s155
    %p167 = scmp.eq.s32.totalorder %s19, 1
    %p168 = por %p166, %p167
    %p170 = scmp.ne.s32.totalorder %s155, %s169
    %p171 = scmp.eq.s32.totalorder %s19, 0
    %p172 = por %p170, %p171
    %s173 = ssub.s32 %s13, %s20
    %p174 = scmp.eq.s32.totalorder %s173, 0
    %s176 = sadd.s32 %s175, 1
    %s177 = scalar_select %p174, %s175, %s176
    %p180 = pneg %p174
    %p181 = scmp.eq.s32.totalorder %s13, 1
    %p182 = por %p180, %p181
    %p183 = scmp.ne.s32.totalorder %s175, %s178
    %p184 = scmp.eq.s32.totalorder %s13, 0
    %p185 = por %p183, %p184
    %p186 = scmp.ne.s32.totalorder %s175, %s178
    %p187 = scmp.eq.s32.totalorder %s18, 1
    %p188 = por %p186, %p187
    %p189 = scmp.ne.s32.totalorder %s178, %s179
    %p190 = scmp.eq.s32.totalorder %s18, 0
    %p191 = por %p189, %p190
    %p192 = scmp.ne.s32.totalorder %s178, %s179
    %p193 = scmp.eq.s32.totalorder %s19, 1
    %p194 = por %p192, %p193
    %p196 = scmp.ne.s32.totalorder %s179, %s195
    %p197 = scmp.eq.s32.totalorder %s19, 0
    %p198 = por %p196, %p197
    %p199 = scmp.le.s32.totalorder 1, %s13
    %p200 = scmp.lt.s32.totalorder %s13, 3
    %p201 = pnand %p199, %p200
    %p202 = pneg %p201
    // Predicated region
    $region9: #{qformer_forward.10} parent=5 // pred_check
      _
    $region10: #{qformer_forward.10} parent=5 // pred_check_branch
      %204 = sbr.rel (%p201) target = $region12
    $region11: #{qformer_forward.10} parent=5 // pred_region
      %s205 = ssub.s32 %s13, 1
      // Predicated region
      $region13: #{qformer_forward.10} parent=11 // pred_check
        %p206 = pneg %p60
      $region14: #{qformer_forward.10} parent=11 // pred_check_branch
        %208 = sbr.rel (%p206) target = $region16
      $region15: #{qformer_forward.10} parent=11 // pred_region
        _
      $region16: #{qformer_forward.10} parent=11 // pred_fallthru
        _
      // Predicated region
      $region17: #{qformer_forward.10} parent=11 // pred_check
        %p209 = pneg %p81
      $region18: #{qformer_forward.10} parent=11 // pred_check_branch
        %211 = sbr.rel (%p209) target = $region20
      $region19: #{qformer_forward.10} parent=11 // pred_region
        _
      $region20: #{qformer_forward.10} parent=11 // pred_fallthru
        _
      // Predicated region
      $region21: #{qformer_forward.10} parent=11 // pred_check
        %p212 = pneg %p102
      $region22: #{qformer_forward.10} parent=11 // pred_check_branch
        %214 = sbr.rel (%p212) target = $region24
      $region23: #{qformer_forward.10} parent=11 // pred_region
        _
      $region24: #{qformer_forward.10} parent=11 // pred_fallthru
        _
      // Predicated region
      $region25: #{qformer_forward.10} parent=11 // pred_check
        %p215 = pneg %p123
      $region26: #{qformer_forward.10} parent=11 // pred_check_branch
        %217 = sbr.rel (%p215) target = $region28
      $region27: #{qformer_forward.10} parent=11 // pred_region
        _
      $region28: #{qformer_forward.10} parent=11 // pred_fallthru
        _
      // Predicated region
      $region29: #{qformer_forward.10} parent=11 // pred_check
        %p218 = pneg %p144
      $region30: #{qformer_forward.10} parent=11 // pred_check_branch
        %220 = sbr.rel (%p218) target = $region32
      $region31: #{qformer_forward.10} parent=11 // pred_region
        _
      $region32: #{qformer_forward.10} parent=11 // pred_fallthru
        _
      // Predicated region
      $region33: #{qformer_forward.10} parent=11 // pred_check
        %p221 = pneg %p165
      $region34: #{qformer_forward.10} parent=11 // pred_check_branch
        %223 = sbr.rel (%p221) target = $region36
      $region35: #{qformer_forward.10} parent=11 // pred_region
        _
      $region36: #{qformer_forward.10} parent=11 // pred_fallthru
        _
    $region12: #{qformer_forward.10} parent=5 // pred_fallthru
      _
    %p224 = scmp.lt.s32.totalorder %s13, 2
    // Predicated region
    $region37: #{qformer_forward.10} parent=5 // pred_check
      %p225 = pneg %p224
    $region38: #{qformer_forward.10} parent=5 // pred_check_branch
      %227 = sbr.rel (%p225) target = $region40
    $region39: #{qformer_forward.10} parent=5 // pred_region
      // Predicated region
      $region41: #{qformer_forward.10} parent=39 // pred_check
        %p228 = pneg %p33
      $region42: #{qformer_forward.10} parent=39 // pred_check_branch
        %230 = sbr.rel (%p228) target = $region44
      $region43: #{qformer_forward.10} parent=39 // pred_region
        %p231 = scmp.lt.s32.totalorder %s13, 1
        %s232 = scalar_select %p231, %s13, 1
        %s233 = smul.addr %s232, 8
        %s234 = scalar_lea.vmem %s0, %s233
      $region44: #{qformer_forward.10} parent=39 // pred_fallthru
        _
    $region40: #{qformer_forward.10} parent=5 // pred_fallthru
      _
    %p235 = scmp.le.s32.totalorder 1, %s13
    %p236 = scmp.lt.s32.totalorder %s13, 3
    %p237 = pnand %p235, %p236
    %p238 = pneg %p237
    // Predicated region
    $region45: #{qformer_forward.10} parent=5 // pred_check
      _
    $region46: #{qformer_forward.10} parent=5 // pred_check_branch
      %240 = sbr.rel (%p237) target = $region48
    $region47: #{qformer_forward.10} parent=5 // pred_region
      %s241 = ssub.s32 %s13, 1
      %p242 = scmp.lt.s32.totalorder %s18, 1
      %s243 = scalar_select %p242, %s18, 1
      %s244 = smul.addr %s243, 8
      %s245 = scalar_lea.vmem %s0, %s244
      %p246 = pneg %p39
      %p247 = pneg %p36
      %p248 = pneg %p60
      %p249 = pneg %p57
      %p250 = pneg %p81
      %p251 = pneg %p78
      %p252 = pneg %p102
      %p253 = pneg %p99
      %p254 = pneg %p123
      %p255 = pneg %p120
      %p256 = pneg %p144
      %p257 = pneg %p141
      %p258 = pneg %p165
      %p259 = pneg %p162
      %p260 = pneg %p191
      %p261 = pneg %p188
      %p262 = scmp.lt.s32.totalorder %s18, 1
      %s263 = scalar_select %p262, %s18, 1
      %s264 = smul.addr %s263, 8
      %s265 = scalar_lea.vmem %s7, %s264
      %p266 = scmp.lt.s32.totalorder %s18, 1
      %s267 = scalar_select %p266, %s18, 1
      %s268 = smul.addr %s267, 8
      %s269 = scalar_lea.vmem %s0, %s268
      %p270 = scmp.lt.s32.totalorder %s18, 1
      %s271 = scalar_select %p270, %s18, 1
      %s272 = smul.addr %s271, 8
      %s273 = scalar_lea.vmem %s7, %s272
      %v275 = vld [vmem:[%s269] sm:$0xff]
      %v276 = vld [vmem:[%s1] sm:$0x1]
      %v277 = vld [vmem:[%s2] sm:$0x1]
      %vm278 = vcmask 261120
      %v279 = vsel %vm278, %v275, 0.0
      %280 = vadd.xlane.f32.xlu0 %v279
      %v281 = vpop.xlane.xlu0 %280
      %v282 = vrcp.pop 32.0
      %v283 = vmul.f32 %v281, %v282
      %v284 = vsub.f32 %v275, %v283
      %v285 = vmul.f32 %v284, %v284
      %v286 = vsel %vm278, %v285, 0.0
      %287 = vadd.xlane.f32.xlu0 %v286
      %v288 = vpop.xlane.xlu0 %287
      %v289 = vmul.f32 %v288, %v282
      %v290 = vadd.f32 %v289, 1e-05
      %v291 = vrsqrt.pop %v290
      %v292 = vmul.f32 %v284, %v291
      %v294 = vlaneseq
      %v295 = vshrl.u32 %v294, 7
      %v296 = vsub.s32 0, %v295
      %v297 = vrot.slane %v276, %v296
      %v299 = vmul.f32 %v292, %v297
      %v301 = vlaneseq
      %v302 = vshrl.u32 %v301, 7
      %v303 = vsub.s32 0, %v302
      %v304 = vrot.slane %v277, %v303
      %v306 = vadd.f32 %v299, %v304
      %v307 = vpack.c.bf16 %v306, %v306
      %v308 = vld [vmem:[%s3] sm:$0xf]
      %v309 = vld [vmem:[%s3 + $0x4] sm:$0xf]
      %v310 = vld [vmem:[%s3 + $0x8] sm:$0xf]
      %v311 = vld [vmem:[%s3 + $0xc] sm:$0xf]
      %v312 = vld [vmem:[%s4] sm:$0x1]
      %v314 = vlaneseq
      %v315 = vshrl.u32 %v314, 7
      %v316 = vsub.s32 0, %v315
      %v317 = vrot.slane %v312, %v316
      %v323 = vunpack.c.l.b16 %v308
      %v324 = vunpack.c.l.b16 %v309
      %v325 = vunpack.c.l.b16 %v310
      %v326 = vunpack.c.l.b16 %v311
      %v327 = vpack.c.b16 %v324, %v323
      %v328 = vpack.c.b16 %v326, %v325
      %v332 = vsel %vm278, %v307, 0
      %334 = vmatprep.subr.bf16.mxu0 0
      %335 = vmatpush1.bf16.msra.mxu0 0
      %336 = vmatprep.subr.bf16.mxu0 0
      %337 = vmatpush1.bf16.msra.mxu0 0
      %338 = vmatprep.subr.bf16.mxu0 0
      %339 = vmatpush1.bf16.msra.mxu0 0
      %340 = vmatprep.subr.bf16.mxu0 0
      %341 = vmatpush1.bf16.msra.mxu0 0
      %342 = vmatprep.subr.bf16.mxu0 0
      %343 = vmatpush1.bf16.msra.mxu0 0
      %344 = vmatprep.subr.bf16.mxu0 0
      %345 = vmatpush1.bf16.msra.mxu0 0
      %346 = vmatprep.subr.bf16.mxu0 0
      %347 = vmatpush1.bf16.msra.mxu0 %v328
      %348 = vmatprep.subr.bf16.mxu0 0
      %349 = vmatpush1.bf16.msra.mxu0 %v327
      %350 = vmatprep.subr.bf16.mxu0 0
      %351 = vmatpush2.bf16.msra.mxu0 0
      %352 = vmatprep.subr.bf16.mxu0 0
      %353 = vmatpush2.bf16.msra.mxu0 0
      %354 = vmatprep.subr.bf16.mxu0 0
      %355 = vmatpush2.bf16.msra.mxu0 0
      %356 = vmatprep.subr.bf16.mxu0 0
      %357 = vmatpush2.bf16.msra.mxu0 0
      %358 = vmatprep.subr.bf16.mxu0 0
      %359 = vmatpush2.bf16.msra.mxu0 0
      %360 = vmatprep.subr.bf16.mxu0 0
      %361 = vmatpush2.bf16.msra.mxu0 0
      %362 = vmatprep.subr.bf16.mxu0 0
      %363 = vmatpush2.bf16.msra.mxu0 0
      %364 = vmatprep.subr.bf16.mxu0 0
      %365 = vmatpush2.bf16.msra.mxu0 0
      %366 = vmatprep.mubr.bf16.mxu0 0
      %367 = vmatmul.mubr.bf16.gmra.mxu0 %v332
      %v368 = vpop.f32.mrf.mxu0
      %v369 = vadd.f32 %v317, %v368
      %v370 = vpop.f32.mrf.mxu0
      %v371 = vpop.f32.mrf.mxu0
      %v372 = vpop.f32.mrf.mxu0
      %373 = vdwg.mxu0
      %v374 = vmul.f32 %v369, 0.5
      %v375 = vmul.f32 %v369, 0.044715
      %v376 = vmul.f32 %v375, %v369
      %v377 = vmul.f32 %v376, %v369
      %v378 = vadd.f32 %v369, %v377
      %v379 = vmul.f32 %v378, 0.7978846
      %v380 = vtanh.pop %v379
      %v381 = vadd.f32 %v380, 1.0
      %v382 = vmul.f32 %v374, %v381
      %v383 = vpack.c.bf16 %v382, %v382
      %v384 = vld [vmem:[%s5] sm:$0xf]
      %v385 = vld [vmem:[%s5 + $0x4] sm:$0xf]
      %v386 = vld [vmem:[%s5 + $0x8] sm:$0xf]
      %v387 = vld [vmem:[%s5 + $0xc] sm:$0xf]
      %v388 = vld [vmem:[%s5 + $0x10] sm:$0xf]
      %v389 = vld [vmem:[%s5 + $0x14] sm:$0xf]
      %v390 = vld [vmem:[%s5 + $0x18] sm:$0xf]
      %v391 = vld [vmem:[%s5 + $0x1c] sm:$0xf]
      %v392 = vld [vmem:[%s6] sm:$0x1]
      %v394 = vlaneseq
      %v395 = vshrl.u32 %v394, 7
      %v396 = vsub.s32 0, %v395
      %v397 = vrot.slane %v392, %v396
      %v407 = vunpack.c.l.b16 %v384
      %v408 = vunpack.c.l.b16 %v385
      %v409 = vunpack.c.l.b16 %v386
      %v410 = vunpack.c.l.b16 %v387
      %v411 = vunpack.c.l.b16 %v388
      %v412 = vunpack.c.l.b16 %v389
      %v413 = vunpack.c.l.b16 %v390
      %v414 = vunpack.c.l.b16 %v391
      %v415 = vpack.c.b16 %v408, %v407
      %v416 = vpack.c.b16 %v410, %v409
      %v417 = vpack.c.b16 %v412, %v411
      %v418 = vpack.c.b16 %v414, %v413
      %vm423 = vcmask 523264
      %v425 = vsel %vm423, %v383, 0
      %427 = vmatprep.subr.bf16.mxu0 0
      %428 = vmatpush1.bf16.msra.mxu0 0
      %429 = vmatprep.subr.bf16.mxu0 0
      %430 = vmatpush1.bf16.msra.mxu0 0
      %431 = vmatprep.subr.bf16.mxu0 0
      %432 = vmatpush1.bf16.msra.mxu0 0
      %433 = vmatprep.subr.bf16.mxu0 0
      %434 = vmatpush1.bf16.msra.mxu0 0
      %435 = vmatprep.subr.bf16.mxu0 0
      %436 = vmatpush1.bf16.msra.mxu0 %v418
      %437 = vmatprep.subr.bf16.mxu0 0
      %438 = vmatpush1.bf16.msra.mxu0 %v417
      %439 = vmatprep.subr.bf16.mxu0 0
      %440 = vmatpush1.bf16.msra.mxu0 %v416
      %441 = vmatprep.subr.bf16.mxu0 0
      %442 = vmatpush1.bf16.msra.mxu0 %v415
      %443 = vmatprep.subr.bf16.mxu0 0
      %444 = vmatpush2.bf16.msra.mxu0 0
      %445 = vmatprep.subr.bf16.mxu0 0
      %446 = vmatpush2.bf16.msra.mxu0 0
      %447 = vmatprep.subr.bf16.mxu0 0
      %448 = vmatpush2.bf16.msra.mxu0 0
      %449 = vmatprep.subr.bf16.mxu0 0
      %450 = vmatpush2.bf16.msra.mxu0 0
      %451 = vmatprep.subr.bf16.mxu0 0
      %452 = vmatpush2.bf16.msra.mxu0 0
      %453 = vmatprep.subr.bf16.mxu0 0
      %454 = vmatpush2.bf16.msra.mxu0 0
      %455 = vmatprep.subr.bf16.mxu0 0
      %456 = vmatpush2.bf16.msra.mxu0 0
      %457 = vmatprep.subr.bf16.mxu0 0
      %458 = vmatpush2.bf16.msra.mxu0 0
      %459 = vmatprep.mubr.bf16.mxu0 0
      %460 = vmatmul.mubr.bf16.gmra.mxu0 %v425
      %v461 = vpop.f32.mrf.mxu0
      %v462 = vadd.f32 %v397, %v461
      %v463 = vpop.f32.mrf.mxu0
      %v464 = vpop.f32.mrf.mxu0
      %v465 = vpop.f32.mrf.mxu0
      %466 = vdwg.mxu0
      %v467 = vadd.f32 %v275, %v462
      %468 = vst.msk [vmem:[%s273] sm:$0xff] %vm278, %v467
      %p469 = scmp.lt.s32.totalorder %s18, 1
      %s470 = scalar_select %p469, %s18, 1
      %s471 = smul.addr %s470, 8
      %s472 = scalar_lea.vmem %s7, %s471
      // Predicated region
      $region49: #{qformer_forward.10} parent=47 // pred_check
        %p473 = pneg %p188
      $region50: #{qformer_forward.10} parent=47 // pred_check_branch
        %475 = sbr.rel (%p473) target = $region52
      $region51: #{qformer_forward.10} parent=47 // pred_region
        _
      $region52: #{qformer_forward.10} parent=47 // pred_fallthru
        _
    $region48: #{qformer_forward.10} parent=5 // pred_fallthru
      _
    %p476 = scmp.le.s32.totalorder 2, %s13
    // Predicated region
    $region53: #{qformer_forward.10} parent=5 // pred_check
      %p477 = pneg %p476
    $region54: #{qformer_forward.10} parent=5 // pred_check_branch
      %479 = sbr.rel (%p477) target = $region56
    $region55: #{qformer_forward.10} parent=5 // pred_region
      %s480 = ssub.s32 %s13, 2
      // Predicated region
      $region57: #{qformer_forward.10} parent=55 // pred_check
        %p481 = pneg %p194
      $region58: #{qformer_forward.10} parent=55 // pred_check_branch
        %483 = sbr.rel (%p481) target = $region60
      $region59: #{qformer_forward.10} parent=55 // pred_region
        %p484 = scmp.lt.s32.totalorder %s19, 1
        %s485 = scalar_select %p484, %s19, 1
        %s486 = smul.addr %s485, 8
        %s487 = scalar_lea.vmem %s7, %s486
      $region60: #{qformer_forward.10} parent=55 // pred_fallthru
        _
    $region56: #{qformer_forward.10} parent=5 // pred_fallthru
      _
  $region6: #{qformer_forward.10} parent=0 // loop_footer
    %s17 = sadd.s32 1, %s13
  $region7: #{qformer_forward.10} parent=0 // loop_footer_branch
    %12 = sbr.rel target = $region3
  $region8: #{qformer_forward.10} parent=0 // loop_exit
    _

// kernel: qformer_forward.9
$region0: #{qformer_forward.9}
  #allocation0 [shape = 'u32[]', space=smem, size = 0x4, offset = 0x4, fixed_abs, tag = 'smem constant byte address 0x4 - core index']
  #allocation1 [shape = 'u32[144,128]{1,0:T(1,128)}', space=vmem, size = 0x12000, scoped, tag = 'internal scratch']
  %s0 = inlined_call_operand.vmem [shape: f32[2,8,32], index: 0, kind: input, shape index: {}]
  %s1 = inlined_call_operand.vmem [shape: bf16[2,128,32], index: 1, kind: input, shape index: {}]
  %s2 = inlined_call_operand.vmem [shape: bf16[2,128,32], index: 2, kind: input, shape index: {}]
  %s3 = inlined_call_operand.vmem [shape: f32[1,32], index: 3, kind: input, shape index: {}]
  %s4 = inlined_call_operand.vmem [shape: f32[1,32], index: 4, kind: input, shape index: {}]
  %s5 = inlined_call_operand.vmem [shape: bf16[32,32], index: 5, kind: input, shape index: {}]
  %s6 = inlined_call_operand.vmem [shape: f32[1,32], index: 6, kind: input, shape index: {}]
  %s7 = inlined_call_operand.vmem [shape: bf16[32,32], index: 7, kind: input, shape index: {}]
  %s8 = inlined_call_operand.vmem [shape: f32[1,32], index: 8, kind: input, shape index: {}]
  %s9 = inlined_call_operand.vmem [shape: f32[2,8,32], index: 9, kind: output, shape index: {}]
  %s10 = sld [smem:[#allocation0]]
  $region69: #{qformer_forward.9} parent=0
    _
  %s12 = ssub.s32 1, %s10
  %s13 = scalar_select 0, %s12, %s10
  loop: start=0, step=1, limit=4
  $region2: #{qformer_forward.9} parent=0 // loop_pre_header
    _
  $region3: #{qformer_forward.9} parent=0 // loop_header
    %s15 = sphi 0, %s19
    %p16 = scmp.ge.s32.totalorder %s15, 4
    %s25 = sphi 0, %s27
    %s28 = sphi 0, %s25
    %s29 = sphi 0, %s28
    %s45 = sphi 0, %s29
    %s51 = sphi 0, %s53
    %s54 = sphi 0, %s51
    %s55 = sphi 0, %s54
    %s71 = sphi 0, %s55
    %s77 = sphi 0, %s79
    %s80 = sphi 0, %s77
    %s81 = sphi 0, %s80
    %s97 = sphi 0, %s81
    %s101 = sphi 0, %s101
    %s103 = sphi 0, %s101
    %s104 = sphi 0, %s103
    %s118 = sphi 0, %s104
    %s122 = sphi 0, %s122
    %s124 = sphi 0, %s122
    %s125 = sphi 0, %s124
    %s139 = sphi 0, %s125
    %s143 = sphi 0, %s143
    %s145 = sphi 0, %s143
    %s146 = sphi 0, %s145
    %s160 = sphi 0, %s146
    %s164 = sphi 0, %s164
    %s166 = sphi 0, %s164
    %s167 = sphi 0, %s166
    %s181 = sphi 0, %s167
    %s185 = sphi 0, %s185
    %s187 = sphi 0, %s185
    %s188 = sphi 0, %s187
    %s202 = sphi 0, %s188
    %s206 = sphi 0, %s206
    %s208 = sphi 0, %s206
    %s209 = sphi 0, %s208
    %s223 = sphi 0, %s209
    %s229 = sphi 0, %s231
    %s232 = sphi 0, %s229
    %s233 = sphi 0, %s232
    %s249 = sphi 0, %s233
  $region4: #{qformer_forward.9} parent=0 // loop_header_branch
    %18 = sbr.rel (%p16) target = $region8
  $region5: #{qformer_forward.9} parent=0 // loop_body
    %s20 = ssub.s32 %s15, 1
    %s21 = ssub.s32 %s15, 2
    %s22 = sadd.s32 %s15, 1
    %s23 = ssub.s32 %s15, %s22
    %p24 = scmp.eq.s32.totalorder %s23, 0
    %s26 = sadd.s32 %s25, 1
    %s27 = scalar_select %p24, %s25, %s26
    %p30 = pneg %p24
    %p31 = scmp.eq.s32.totalorder %s15, 1
    %p32 = por %p30, %p31
    %p33 = scmp.ne.s32.totalorder %s25, %s28
    %p34 = scmp.eq.s32.totalorder %s15, 0
    %p35 = por %p33, %p34
    %p36 = scmp.ne.s32.totalorder %s25, %s28
    %p37 = scmp.eq.s32.totalorder %s20, 1
    %p38 = por %p36, %p37
    %p39 = scmp.ne.s32.totalorder %s28, %s29
    %p40 = scmp.eq.s32.totalorder %s20, 0
    %p41 = por %p39, %p40
    %p42 = scmp.ne.s32.totalorder %s28, %s29
    %p43 = scmp.eq.s32.totalorder %s21, 1
    %p44 = por %p42, %p43
    %p46 = scmp.ne.s32.totalorder %s29, %s45
    %p47 = scmp.eq.s32.totalorder %s21, 0
    %p48 = por %p46, %p47
    %s49 = ssub.s32 %s15, %s22
    %p50 = scmp.eq.s32.totalorder %s49, 0
    %s52 = sadd.s32 %s51, 1
    %s53 = scalar_select %p50, %s51, %s52
    %p56 = pneg %p50
    %p57 = scmp.eq.s32.totalorder %s15, 1
    %p58 = por %p56, %p57
    %p59 = scmp.ne.s32.totalorder %s51, %s54
    %p60 = scmp.eq.s32.totalorder %s15, 0
    %p61 = por %p59, %p60
    %p62 = scmp.ne.s32.totalorder %s51, %s54
    %p63 = scmp.eq.s32.totalorder %s20, 1
    %p64 = por %p62, %p63
    %p65 = scmp.ne.s32.totalorder %s54, %s55
    %p66 = scmp.eq.s32.totalorder %s20, 0
    %p67 = por %p65, %p66
    %p68 = scmp.ne.s32.totalorder %s54, %s55
    %p69 = scmp.eq.s32.totalorder %s21, 1
    %p70 = por %p68, %p69
    %p72 = scmp.ne.s32.totalorder %s55, %s71
    %p73 = scmp.eq.s32.totalorder %s21, 0
    %p74 = por %p72, %p73
    %s75 = ssub.s32 %s15, %s22
    %p76 = scmp.eq.s32.totalorder %s75, 0
    %s78 = sadd.s32 %s77, 1
    %s79 = scalar_select %p76, %s77, %s78
    %p82 = pneg %p76
    %p83 = scmp.eq.s32.totalorder %s15, 1
    %p84 = por %p82, %p83
    %p85 = scmp.ne.s32.totalorder %s77, %s80
    %p86 = scmp.eq.s32.totalorder %s15, 0
    %p87 = por %p85, %p86
    %p88 = scmp.ne.s32.totalorder %s77, %s80
    %p89 = scmp.eq.s32.totalorder %s20, 1
    %p90 = por %p88, %p89
    %p91 = scmp.ne.s32.totalorder %s80, %s81
    %p92 = scmp.eq.s32.totalorder %s20, 0
    %p93 = por %p91, %p92
    %p94 = scmp.ne.s32.totalorder %s80, %s81
    %p95 = scmp.eq.s32.totalorder %s21, 1
    %p96 = por %p94, %p95
    %p98 = scmp.ne.s32.totalorder %s81, %s97
    %p99 = scmp.eq.s32.totalorder %s21, 0
    %p100 = por %p98, %p99
    %s102 = sadd.s32 %s101, 1
    %p105 = scmp.eq.s32.totalorder %s15, 1
    %p106 = scmp.ne.s32.totalorder %s101, %s103
    %p107 = scmp.eq.s32.totalorder %s15, 0
    %p108 = por %p106, %p107
    %p109 = scmp.ne.s32.totalorder %s101, %s103
    %p110 = scmp.eq.s32.totalorder %s20, 1
    %p111 = por %p109, %p110
    %p112 = scmp.ne.s32.totalorder %s103, %s104
    %p113 = scmp.eq.s32.totalorder %s20, 0
    %p114 = por %p112, %p113
    %p115 = scmp.ne.s32.totalorder %s103, %s104
    %p116 = scmp.eq.s32.totalorder %s21, 1
    %p117 = por %p115, %p116
    %p119 = scmp.ne.s32.totalorder %s104, %s118
    %p120 = scmp.eq.s32.totalorder %s21, 0
    %p121 = por %p119, %p120
    %s123 = sadd.s32 %s122, 1
    %p126 = scmp.eq.s32.totalorder %s15, 1
    %p127 = scmp.ne.s32.totalorder %s122, %s124
    %p128 = scmp.eq.s32.totalorder %s15, 0
    %p129 = por %p127, %p128
    %p130 = scmp.ne.s32.totalorder %s122, %s124
    %p131 = scmp.eq.s32.totalorder %s20, 1
    %p132 = por %p130, %p131
    %p133 = scmp.ne.s32.totalorder %s124, %s125
    %p134 = scmp.eq.s32.totalorder %s20, 0
    %p135 = por %p133, %p134
    %p136 = scmp.ne.s32.totalorder %s124, %s125
    %p137 = scmp.eq.s32.totalorder %s21, 1
    %p138 = por %p136, %p137
    %p140 = scmp.ne.s32.totalorder %s125, %s139
    %p141 = scmp.eq.s32.totalorder %s21, 0
    %p142 = por %p140, %p141
    %s144 = sadd.s32 %s143, 1
    %p147 = scmp.eq.s32.totalorder %s15, 1
    %p148 = scmp.ne.s32.totalorder %s143, %s145
    %p149 = scmp.eq.s32.totalorder %s15, 0
    %p150 = por %p148, %p149
    %p151 = scmp.ne.s32.totalorder %s143, %s145
    %p152 = scmp.eq.s32.totalorder %s20, 1
    %p153 = por %p151, %p152
    %p154 = scmp.ne.s32.totalorder %s145, %s146
    %p155 = scmp.eq.s32.totalorder %s20, 0
    %p156 = por %p154, %p155
    %p157 = scmp.ne.s32.totalorder %s145, %s146
    %p158 = scmp.eq.s32.totalorder %s21, 1
    %p159 = por %p157, %p158
    %p161 = scmp.ne.s32.totalorder %s146, %s160
    %p162 = scmp.eq.s32.totalorder %s21, 0
    %p163 = por %p161, %p162
    %s165 = sadd.s32 %s164, 1
    %p168 = scmp.eq.s32.totalorder %s15, 1
    %p169 = scmp.ne.s32.totalorder %s164, %s166
    %p170 = scmp.eq.s32.totalorder %s15, 0
    %p171 = por %p169, %p170
    %p172 = scmp.ne.s32.totalorder %s164, %s166
    %p173 = scmp.eq.s32.totalorder %s20, 1
    %p174 = por %p172, %p173
    %p175 = scmp.ne.s32.totalorder %s166, %s167
    %p176 = scmp.eq.s32.totalorder %s20, 0
    %p177 = por %p175, %p176
    %p178 = scmp.ne.s32.totalorder %s166, %s167
    %p179 = scmp.eq.s32.totalorder %s21, 1
    %p180 = por %p178, %p179
    %p182 = scmp.ne.s32.totalorder %s167, %s181
    %p183 = scmp.eq.s32.totalorder %s21, 0
    %p184 = por %p182, %p183
    %s186 = sadd.s32 %s185, 1
    %p189 = scmp.eq.s32.totalorder %s15, 1
    %p190 = scmp.ne.s32.totalorder %s185, %s187
    %p191 = scmp.eq.s32.totalorder %s15, 0
    %p192 = por %p190, %p191
    %p193 = scmp.ne.s32.totalorder %s185, %s187
    %p194 = scmp.eq.s32.totalorder %s20, 1
    %p195 = por %p193, %p194
    %p196 = scmp.ne.s32.totalorder %s187, %s188
    %p197 = scmp.eq.s32.totalorder %s20, 0
    %p198 = por %p196, %p197
    %p199 = scmp.ne.s32.totalorder %s187, %s188
    %p200 = scmp.eq.s32.totalorder %s21, 1
    %p201 = por %p199, %p200
    %p203 = scmp.ne.s32.totalorder %s188, %s202
    %p204 = scmp.eq.s32.totalorder %s21, 0
    %p205 = por %p203, %p204
    %s207 = sadd.s32 %s206, 1
    %p210 = scmp.eq.s32.totalorder %s15, 1
    %p211 = scmp.ne.s32.totalorder %s206, %s208
    %p212 = scmp.eq.s32.totalorder %s15, 0
    %p213 = por %p211, %p212
    %p214 = scmp.ne.s32.totalorder %s206, %s208
    %p215 = scmp.eq.s32.totalorder %s20, 1
    %p216 = por %p214, %p215
    %p217 = scmp.ne.s32.totalorder %s208, %s209
    %p218 = scmp.eq.s32.totalorder %s20, 0
    %p219 = por %p217, %p218
    %p220 = scmp.ne.s32.totalorder %s208, %s209
    %p221 = scmp.eq.s32.totalorder %s21, 1
    %p222 = por %p220, %p221
    %p224 = scmp.ne.s32.totalorder %s209, %s223
    %p225 = scmp.eq.s32.totalorder %s21, 0
    %p226 = por %p224, %p225
    %s227 = ssub.s32 %s15, %s22
    %p228 = scmp.eq.s32.totalorder %s227, 0
    %s230 = sadd.s32 %s229, 1
    %s231 = scalar_select %p228, %s229, %s230
    %p234 = pneg %p228
    %p235 = scmp.eq.s32.totalorder %s15, 1
    %p236 = por %p234, %p235
    %p237 = scmp.ne.s32.totalorder %s229, %s232
    %p238 = scmp.eq.s32.totalorder %s15, 0
    %p239 = por %p237, %p238
    %p240 = scmp.ne.s32.totalorder %s229, %s232
    %p241 = scmp.eq.s32.totalorder %s20, 1
    %p242 = por %p240, %p241
    %p243 = scmp.ne.s32.totalorder %s232, %s233
    %p244 = scmp.eq.s32.totalorder %s20, 0
    %p245 = por %p243, %p244
    %p246 = scmp.ne.s32.totalorder %s232, %s233
    %p247 = scmp.eq.s32.totalorder %s21, 1
    %p248 = por %p246, %p247
    %p250 = scmp.ne.s32.totalorder %s233, %s249
    %p251 = scmp.eq.s32.totalorder %s21, 0
    %p252 = por %p250, %p251
    %p253 = scmp.le.s32.totalorder 1, %s15
    %p254 = scmp.lt.s32.totalorder %s15, 3
    %p255 = pnand %p253, %p254
    %p256 = pneg %p255
    // Predicated region
    $region9: #{qformer_forward.9} parent=5 // pred_check
      _
    $region10: #{qformer_forward.9} parent=5 // pred_check_branch
      %258 = sbr.rel (%p255) target = $region12
    $region11: #{qformer_forward.9} parent=5 // pred_region
      %s259 = ssub.s32 %s15, 1
      // Predicated region
      $region13: #{qformer_forward.9} parent=11 // pred_check
        %p260 = pneg %p114
      $region14: #{qformer_forward.9} parent=11 // pred_check_branch
        %262 = sbr.rel (%p260) target = $region16
      $region15: #{qformer_forward.9} parent=11 // pred_region
        _
      $region16: #{qformer_forward.9} parent=11 // pred_fallthru
        _
      // Predicated region
      $region17: #{qformer_forward.9} parent=11 // pred_check
        %p263 = pneg %p135
      $region18: #{qformer_forward.9} parent=11 // pred_check_branch
        %265 = sbr.rel (%p263) target = $region20
      $region19: #{qformer_forward.9} parent=11 // pred_region
        _
      $region20: #{qformer_forward.9} parent=11 // pred_fallthru
        _
      // Predicated region
      $region21: #{qformer_forward.9} parent=11 // pred_check
        %p266 = pneg %p156
      $region22: #{qformer_forward.9} parent=11 // pred_check_branch
        %268 = sbr.rel (%p266) target = $region24
      $region23: #{qformer_forward.9} parent=11 // pred_region
        _
      $region24: #{qformer_forward.9} parent=11 // pred_fallthru
        _
      // Predicated region
      $region25: #{qformer_forward.9} parent=11 // pred_check
        %p269 = pneg %p177
      $region26: #{qformer_forward.9} parent=11 // pred_check_branch
        %271 = sbr.rel (%p269) target = $region28
      $region27: #{qformer_forward.9} parent=11 // pred_region
        _
      $region28: #{qformer_forward.9} parent=11 // pred_fallthru
        _
      // Predicated region
      $region29: #{qformer_forward.9} parent=11 // pred_check
        %p272 = pneg %p198
      $region30: #{qformer_forward.9} parent=11 // pred_check_branch
        %274 = sbr.rel (%p272) target = $region32
      $region31: #{qformer_forward.9} parent=11 // pred_region
        _
      $region32: #{qformer_forward.9} parent=11 // pred_fallthru
        _
      // Predicated region
      $region33: #{qformer_forward.9} parent=11 // pred_check
        %p275 = pneg %p219
      $region34: #{qformer_forward.9} parent=11 // pred_check_branch
        %277 = sbr.rel (%p275) target = $region36
      $region35: #{qformer_forward.9} parent=11 // pred_region
        _
      $region36: #{qformer_forward.9} parent=11 // pred_fallthru
        _
    $region12: #{qformer_forward.9} parent=5 // pred_fallthru
      _
    %p278 = scmp.lt.s32.totalorder %s15, 2
    // Predicated region
    $region37: #{qformer_forward.9} parent=5 // pred_check
      %p279 = pneg %p278
    $region38: #{qformer_forward.9} parent=5 // pred_check_branch
      %281 = sbr.rel (%p279) target = $region40
    $region39: #{qformer_forward.9} parent=5 // pred_region
      // Predicated region
      $region41: #{qformer_forward.9} parent=39 // pred_check
        %p282 = pneg %p35
      $region42: #{qformer_forward.9} parent=39 // pred_check_branch
        %284 = sbr.rel (%p282) target = $region44
      $region43: #{qformer_forward.9} parent=39 // pred_region
        %p285 = scmp.lt.s32.totalorder %s15, 1
        %s286 = scalar_select %p285, %s15, 1
        %s287 = smul.addr %s286, 8
        %s288 = scalar_lea.vmem %s0, %s287
      $region44: #{qformer_forward.9} parent=39 // pred_fallthru
        _
      // Predicated region
      $region45: #{qformer_forward.9} parent=39 // pred_check
        %p289 = pneg %p61
      $region46: #{qformer_forward.9} parent=39 // pred_check_branch
        %291 = sbr.rel (%p289) target = $region48
      $region47: #{qformer_forward.9} parent=39 // pred_region
        %p292 = scmp.lt.s32.totalorder %s15, 1
        %s293 = scalar_select %p292, %s15, 1
        %s294 = smul.addr %s293, 16
        %s295 = smul.addr %s294, 4
        %s296 = scalar_lea.vmem %s1, %s295
      $region48: #{qformer_forward.9} parent=39 // pred_fallthru
        _
      // Predicated region
      $region49: #{qformer_forward.9} parent=39 // pred_check
        %p297 = pneg %p87
      $region50: #{qformer_forward.9} parent=39 // pred_check_branch
        %299 = sbr.rel (%p297) target = $region52
      $region51: #{qformer_forward.9} parent=39 // pred_region
        %p300 = scmp.lt.s32.totalorder %s15, 1
        %s301 = scalar_select %p300, %s15, 1
        %s302 = smul.addr %s301, 16
        %s303 = smul.addr %s302, 4
        %s304 = scalar_lea.vmem %s2, %s303
      $region52: #{qformer_forward.9} parent=39 // pred_fallthru
        _
    $region40: #{qformer_forward.9} parent=5 // pred_fallthru
      _
    %p305 = scmp.le.s32.totalorder 1, %s15
    %p306 = scmp.lt.s32.totalorder %s15, 3
    %p307 = pnand %p305, %p306
    %p308 = pneg %p307
    // Predicated region
    $region53: #{qformer_forward.9} parent=5 // pred_check
      _
    $region54: #{qformer_forward.9} parent=5 // pred_check_branch
      %310 = sbr.rel (%p307) target = $region56
    $region55: #{qformer_forward.9} parent=5 // pred_region
      %s311 = ssub.s32 %s15, 1
      %p312 = scmp.lt.s32.totalorder %s20, 1
      %s313 = scalar_select %p312, %s20, 1
      %s314 = smul.addr %s313, 8
      %s315 = scalar_lea.vmem %s0, %s314
      %p316 = pneg %p41
      %p317 = pneg %p38
      %p318 = scmp.lt.s32.totalorder %s20, 1
      %s319 = scalar_select %p318, %s20, 1
      %s320 = smul.addr %s319, 16
      %s321 = smul.addr %s320, 4
      %s322 = scalar_lea.vmem %s1, %s321
      %p323 = pneg %p67
      %p324 = pneg %p64
      %p325 = scmp.lt.s32.totalorder %s20, 1
      %s326 = scalar_select %p325, %s20, 1
      %s327 = smul.addr %s326, 16
      %s328 = smul.addr %s327, 4
      %s329 = scalar_lea.vmem %s2, %s328
      %p330 = pneg %p93
      %p331 = pneg %p90
      %p332 = pneg %p114
      %p333 = pneg %p111
      %p334 = pneg %p135
      %p335 = pneg %p132
      %p336 = pneg %p156
      %p337 = pneg %p153
      %p338 = pneg %p177
      %p339 = pneg %p174
      %p340 = pneg %p198
      %p341 = pneg %p195
      %p342 = pneg %p219
      %p343 = pneg %p216
      %p344 = pneg %p245
      %p345 = pneg %p242
      %p346 = scmp.lt.s32.totalorder %s20, 1
      %s347 = scalar_select %p346, %s20, 1
      %s348 = smul.addr %s347, 8
      %s349 = scalar_lea.vmem %s9, %s348
      %p350 = scmp.lt.s32.totalorder %s20, 1
      %s351 = scalar_select %p350, %s20, 1
      %s352 = smul.addr %s351, 8
      %s353 = scalar_lea.vmem %s0, %s352
      %p354 = scmp.lt.s32.totalorder %s20, 1
      %s355 = scalar_select %p354, %s20, 1
      %s356 = smul.addr %s355, 16
      %s357 = smul.addr %s356, 4
      %s358 = scalar_lea.vmem %s1, %s357
      %p359 = scmp.lt.s32.totalorder %s20, 1
      %s360 = scalar_select %p359, %s20, 1
      %s361 = smul.addr %s360, 16
      %s362 = smul.addr %s361, 4
      %s363 = scalar_lea.vmem %s2, %s362
      %p364 = scmp.lt.s32.totalorder %s20, 1
      %s365 = scalar_select %p364, %s20, 1
      %s366 = smul.addr %s365, 8
      %s367 = scalar_lea.vmem %s9, %s366
      %v369 = vld [vmem:[%s353] sm:$0xff]
      %v370 = vld [vmem:[%s3] sm:$0x1]
      %v371 = vld [vmem:[%s4] sm:$0x1]
      %vm372 = vcmask 261120
      %v373 = vsel %vm372, %v369, 0.0
      %374 = vadd.xlane.f32.xlu0 %v373
      %v375 = vpop.xlane.xlu0 %374
      %v376 = vrcp.pop 32.0
      %v377 = vmul.f32 %v375, %v376
      %v378 = vsub.f32 %v369, %v377
      %v379 = vmul.f32 %v378, %v378
      %v380 = vsel %vm372, %v379, 0.0
      %381 = vadd.xlane.f32.xlu0 %v380
      %v382 = vpop.xlane.xlu0 %381
      %v383 = vmul.f32 %v382, %v376
      %v384 = vadd.f32 %v383, 1e-05
      %v385 = vrsqrt.pop %v384
      %v386 = vmul.f32 %v378, %v385
      %v388 = vlaneseq
      %v389 = vshrl.u32 %v388, 7
      %v390 = vsub.s32 0, %v389
      %v391 = vrot.slane %v370, %v390
      %v393 = vmul.f32 %v386, %v391
      %v395 = vlaneseq
      %v396 = vshrl.u32 %v395, 7
      %v397 = vsub.s32 0, %v396
      %v398 = vrot.slane %v371, %v397
      %v400 = vadd.f32 %v393, %v398
      %v401 = vpack.c.bf16 %v400, %v400
      %v402 = vld [vmem:[%s5] sm:$0xf]
      %v403 = vld [vmem:[%s5 + $0x4] sm:$0xf]
      %v404 = vld [vmem:[%s5 + $0x8] sm:$0xf]
      %v405 = vld [vmem:[%s5 + $0xc] sm:$0xf]
      %v406 = vld [vmem:[%s6] sm:$0x1]
      %v408 = vlaneseq
      %v409 = vshrl.u32 %v408, 7
      %v410 = vsub.s32 0, %v409
      %v411 = vrot.slane %v406, %v410
      %v417 = vunpack.c.l.b16 %v402
      %v418 = vunpack.c.l.b16 %v403
      %v419 = vunpack.c.l.b16 %v404
      %v420 = vunpack.c.l.b16 %v405
      %v421 = vpack.c.b16 %v418, %v417
      %v422 = vpack.c.b16 %v420, %v419
      %v426 = vsel %vm372, %v401, 0
      %428 = vmatprep.subr.bf16.mxu0 0
      %429 = vmatpush1.bf16.msra.mxu0 0
      %430 = vmatprep.subr.bf16.mxu0 0
      %431 = vmatpush1.bf16.msra.mxu0 0
      %432 = vmatprep.subr.bf16.mxu0 0
      %433 = vmatpush1.bf16.msra.mxu0 0
      %434 = vmatprep.subr.bf16.mxu0 0
      %435 = vmatpush1.bf16.msra.mxu0 0
      %436 = vmatprep.subr.bf16.mxu0 0
      %437 = vmatpush1.bf16.msra.mxu0 0
      %438 = vmatprep.subr.bf16.mxu0 0
      %439 = vmatpush1.bf16.msra.mxu0 0
      %440 = vmatprep.subr.bf16.mxu0 0
      %441 = vmatpush1.bf16.msra.mxu0 %v422
      %442 = vmatprep.subr.bf16.mxu0 0
      %443 = vmatpush1.bf16.msra.mxu0 %v421
      %444 = vmatprep.subr.bf16.mxu0 0
      %445 = vmatpush2.bf16.msra.mxu0 0
      %446 = vmatprep.subr.bf16.mxu0 0
      %447 = vmatpush2.bf16.msra.mxu0 0
      %448 = vmatprep.subr.bf16.mxu0 0
      %449 = vmatpush2.bf16.msra.mxu0 0
      %450 = vmatprep.subr.bf16.mxu0 0
      %451 = vmatpush2.bf16.msra.mxu0 0
      %452 = vmatprep.subr.bf16.mxu0 0
      %453 = vmatpush2.bf16.msra.mxu0 0
      %454 = vmatprep.subr.bf16.mxu0 0
      %455 = vmatpush2.bf16.msra.mxu0 0
      %456 = vmatprep.subr.bf16.mxu0 0
      %457 = vmatpush2.bf16.msra.mxu0 0
      %458 = vmatprep.subr.bf16.mxu0 0
      %459 = vmatpush2.bf16.msra.mxu0 0
      %460 = vmatprep.mubr.bf16.mxu0 0
      %461 = vmatmul.mubr.bf16.gmra.mxu0 %v426
      %v462 = vpop.f32.mrf.mxu0
      %v463 = vadd.f32 %v411, %v462
      %v464 = vpop.f32.mrf.mxu0
      %v465 = vpop.f32.mrf.mxu0
      %v466 = vpop.f32.mrf.mxu0
      %467 = vdwg.mxu0
      %v468 = vmul.f32 %v463, 0.35355338
      %v469 = vld [vmem:[%s358] sm:$0xf]
      %v470 = vld [vmem:[%s358 + $0x4] sm:$0xf]
      %v471 = vld [vmem:[%s358 + $0x8] sm:$0xf]
      %v472 = vld [vmem:[%s358 + $0xc] sm:$0xf]
      %v473 = vld [vmem:[%s358 + $0x10] sm:$0xf]
      %v474 = vld [vmem:[%s358 + $0x14] sm:$0xf]
      %v475 = vld [vmem:[%s358 + $0x18] sm:$0xf]
      %v476 = vld [vmem:[%s358 + $0x1c] sm:$0xf]
      %v477 = vld [vmem:[%s358 + $0x20] sm:$0xf]
      %v478 = vld [vmem:[%s358 + $0x24] sm:$0xf]
      %v479 = vld [vmem:[%s358 + $0x28] sm:$0xf]
      %v480 = vld [vmem:[%s358 + $0x2c] sm:$0xf]
      %v481 = vld [vmem:[%s358 + $0x30] sm:$0xf]
      %v482 = vld [vmem:[%s358 + $0x34] sm:$0xf]
      %v483 = vld [vmem:[%s358 + $0x38] sm:$0xf]
      %v484 = vld [vmem:[%s358 + $0x3c] sm:$0xf]
      %v485 = vunpack.c.l.bf16 %v469
      %v486 = vunpack.c.l.bf16 %v470
      %v487 = vunpack.c.l.bf16 %v471
      %v488 = vunpack.c.l.bf16 %v472
      %v489 = vunpack.c.l.bf16 %v473
      %v490 = vunpack.c.l.bf16 %v474
      %v491 = vunpack.c.l.bf16 %v475
      %v492 = vunpack.c.l.bf16 %v476
      %v493 = vunpack.c.l.bf16 %v477
      %v494 = vunpack.c.l.bf16 %v478
      %v495 = vunpack.c.l.bf16 %v479
      %v496 = vunpack.c.l.bf16 %v480
      %v497 = vunpack.c.l.bf16 %v481
      %v498 = vunpack.c.l.bf16 %v482
      %v499 = vunpack.c.l.bf16 %v483
      %v500 = vunpack.c.l.bf16 %v484
      %v501 = vld [vmem:[%s363] sm:$0xf]
      %v502 = vld [vmem:[%s363 + $0x4] sm:$0xf]
      %v503 = vld [vmem:[%s363 + $0x8] sm:$0xf]
      %v504 = vld [vmem:[%s363 + $0xc] sm:$0xf]
      %v505 = vld [vmem:[%s363 + $0x10] sm:$0xf]
      %v506 = vld [vmem:[%s363 + $0x14] sm:$0xf]
      %v507 = vld [vmem:[%s363 + $0x18] sm:$0xf]
      %v508 = vld [vmem:[%s363 + $0x1c] sm:$0xf]
      %v509 = vld [vmem:[%s363 + $0x20] sm:$0xf]
      %v510 = vld [vmem:[%s363 + $0x24] sm:$0xf]
      %v511 = vld [vmem:[%s363 + $0x28] sm:$0xf]
      %v512 = vld [vmem:[%s363 + $0x2c] sm:$0xf]
      %v513 = vld [vmem:[%s363 + $0x30] sm:$0xf]
      %v514 = vld [vmem:[%s363 + $0x34] sm:$0xf]
      %v515 = vld [vmem:[%s363 + $0x38] sm:$0xf]
      %v516 = vld [vmem:[%s363 + $0x3c] sm:$0xf]
      %v517 = vunpack.c.l.bf16 %v501
      %v518 = vunpack.c.l.bf16 %v502
      %v519 = vunpack.c.l.bf16 %v503
      %v520 = vunpack.c.l.bf16 %v504
      %v521 = vunpack.c.l.bf16 %v505
      %v522 = vunpack.c.l.bf16 %v506
      %v523 = vunpack.c.l.bf16 %v507
      %v524 = vunpack.c.l.bf16 %v508
      %v525 = vunpack.c.l.bf16 %v509
      %v526 = vunpack.c.l.bf16 %v510
      %v527 = vunpack.c.l.bf16 %v511
      %v528 = vunpack.c.l.bf16 %v512
      %v529 = vunpack.c.l.bf16 %v513
      %v530 = vunpack.c.l.bf16 %v514
      %v531 = vunpack.c.l.bf16 %v515
      %v532 = vunpack.c.l.bf16 %v516
      %v533 = vlaneseq
      %v534 = vand.u32 %v533, 127
      %vm535 = vcmp.lt.s32.totalorder %v534, 16
      %v536 = vsel %vm535, 0.0, -1e+30
      %538 = vrot.lane.b32.xlu0 %v468, 120
      %v539 = vpop.permute.xlu0 %538
      %541 = vrot.lane.b32.xlu0 %v468, 112
      %v542 = vpop.permute.xlu0 %541
      %544 = vrot.lane.b32.xlu0 %v468, 104
      %v545 = vpop.permute.xlu0 %544
      %v547 = vcombine.low %v468, %v542
      %v548 = vcombine.high %v468, %v542
      %v550 = vunpack.c.l.s4 1983009808
      %v551 = vunpack.c.0.s8 %v550
      %v552 = vlaneseq
      %v553 = vshrl.u32 %v552, 7
      %v554 = vsub.s32 %v551, %v553
      %v555 = vrot.slane %v547, %v554
      %v557 = vunpack.c.l.s4 1983009808
      %v558 = vunpack.c.0.s8 %v557
      %v559 = vlaneseq
      %v560 = vshrl.u32 %v559, 7
      %v561 = vsub.s32 %v558, %v560
      %v562 = vrot.slane %v548, %v561
      %v563 = vcombine.low %v539, %v545
      %v564 = vcombine.high %v539, %v545
      %v566 = vunpack.c.l.s4 1983009808
      %v567 = vunpack.c.0.s8 %v566
      %v568 = vlaneseq
      %v569 = vshrl.u32 %v568, 7
      %v570 = vsub.s32 %v567, %v569
      %v571 = vrot.slane %v563, %v570
      %v573 = vunpack.c.l.s4 1983009808
      %v574 = vunpack.c.0.s8 %v573
      %v575 = vlaneseq
      %v576 = vshrl.u32 %v575, 7
      %v577 = vsub.s32 %v574, %v576
      %v578 = vrot.slane %v564, %v577
      %v579 = vcombine.low %v555, %v571
      %v580 = vcombine.high %v555, %v571
      %v582 = vunpack.c.l.s4 1934713408
      %v583 = vunpack.c.0.s8 %v582
      %v584 = vlaneseq
      %v585 = vshrl.u32 %v584, 7
      %v586 = vsub.s32 %v583, %v585
      %v587 = vrot.slane %v579, %v586
      %v589 = vunpack.c.l.s4 1934713408
      %v590 = vunpack.c.0.s8 %v589
      %v591 = vlaneseq
      %v592 = vshrl.u32 %v591, 7
      %v593 = vsub.s32 %v590, %v592
      %v594 = vrot.slane %v580, %v593
      %v595 = vcombine.low %v562, %v578
      %v596 = vcombine.high %v562, %v578
      %v598 = vunpack.c.l.s4 1934713408
      %v599 = vunpack.c.0.s8 %v598
      %v600 = vlaneseq
      %v601 = vshrl.u32 %v600, 7
      %v602 = vsub.s32 %v599, %v601
      %v603 = vrot.slane %v595, %v602
      %v605 = vunpack.c.l.s4 1934713408
      %v606 = vunpack.c.0.s8 %v605
      %v607 = vlaneseq
      %v608 = vshrl.u32 %v607, 7
      %v609 = vsub.s32 %v606, %v608
      %v610 = vrot.slane %v596, %v609
      %v611 = vcombine.high %v587, 0.0
      %v612 = vcombine.high %v594, 0.0
      %v613 = vcombine.high %v603, 0.0
      %v614 = vcombine.high %v610, 0.0
      %v615 = vcombine.low %v587, %v594
      %v617 = vunpack.c.l.s4 1983009808
      %v618 = vunpack.c.0.s8 %v617
      %v619 = vlaneseq
      %v620 = vshrl.u32 %v619, 7
      %v621 = vsub.s32 %v618, %v620
      %v622 = vrot.slane %v615, %v621
      %v623 = vcombine.low %v611, %v612
      %v625 = vunpack.c.l.s4 1983009808
      %v626 = vunpack.c.0.s8 %v625
      %v627 = vlaneseq
      %v628 = vshrl.u32 %v627, 7
      %v629 = vsub.s32 %v626, %v628
      %v630 = vrot.slane %v623, %v629
      %v631 = vcombine.low %v603, %v610
      %v633 = vunpack.c.l.s4 1983009808
      %v634 = vunpack.c.0.s8 %v633
      %v635 = vlaneseq
      %v636 = vshrl.u32 %v635, 7
      %v637 = vsub.s32 %v634, %v636
      %v638 = vrot.slane %v631, %v637
      %v639 = vcombine.low %v613, %v614
      %v641 = vunpack.c.l.s4 1983009808
      %v642 = vunpack.c.0.s8 %v641
      %v643 = vlaneseq
      %v644 = vshrl.u32 %v643, 7
      %v645 = vsub.s32 %v642, %v644
      %v646 = vrot.slane %v639, %v645
      %v647 = vcombine.low %v622, %v630
      %v648 = vcombine.high %v622, %v630
      %v650 = vunpack.c.l.s4 1934713408
      %v651 = vunpack.c.0.s8 %v650
      %v652 = vlaneseq
      %v653 = vshrl.u32 %v652, 7
      %v654 = vsub.s32 %v651, %v653
      %v655 = vrot.slane %v647, %v654
      %v657 = vunpack.c.l.s4 1934713408
      %v658 = vunpack.c.0.s8 %v657
      %v659 = vlaneseq
      %v660 = vshrl.u32 %v659, 7
      %v661 = vsub.s32 %v658, %v660
      %v662 = vrot.slane %v648, %v661
      %v663 = vcombine.low %v638, %v646
      %v664 = vcombine.high %v638, %v646
      %v666 = vunpack.c.l.s4 1934713408
      %v667 = vunpack.c.0.s8 %v666
      %v668 = vlaneseq
      %v669 = vshrl.u32 %v668, 7
      %v670 = vsub.s32 %v667, %v669
      %v671 = vrot.slane %v663, %v670
      %v673 = vunpack.c.l.s4 1934713408
      %v674 = vunpack.c.0.s8 %v673
      %v675 = vlaneseq
      %v676 = vshrl.u32 %v675, 7
      %v677 = vsub.s32 %v674, %v676
      %v678 = vrot.slane %v664, %v677
      %v679 = vcombine.low %v655, %v671
      %v680 = vcombine.high %v655, %v671
      %v681 = vcombine.low %v662, %v678
      %v682 = vcombine.high %v662, %v678
      %v683 = vpack.c.bf16 %v679, %v679
      %v684 = vpack.c.bf16 %v680, %v680
      %v685 = vpack.c.bf16 %v681, %v681
      %v686 = vpack.c.bf16 %v682, %v682
      %703 = vrot.lane.b32.xlu0 %v485, 120
      %v704 = vpop.permute.xlu0 %703
      %705 = vrot.lane.b32.xlu0 %v486, 120
      %v706 = vpop.permute.xlu0 %705
      %707 = vrot.lane.b32.xlu0 %v487, 120
      %v708 = vpop.permute.xlu0 %707
      %709 = vrot.lane.b32.xlu0 %v488, 120
      %v710 = vpop.permute.xlu0 %709
      %711 = vrot.lane.b32.xlu0 %v489, 120
      %v712 = vpop.permute.xlu0 %711
      %713 = vrot.lane.b32.xlu0 %v490, 120
      %v714 = vpop.permute.xlu0 %713
      %715 = vrot.lane.b32.xlu0 %v491, 120
      %v716 = vpop.permute.xlu0 %715
      %717 = vrot.lane.b32.xlu0 %v492, 120
      %v718 = vpop.permute.xlu0 %717
      %719 = vrot.lane.b32.xlu0 %v493, 120
      %v720 = vpop.permute.xlu0 %719
      %721 = vrot.lane.b32.xlu0 %v494, 120
      %v722 = vpop.permute.xlu0 %721
      %723 = vrot.lane.b32.xlu0 %v495, 120
      %v724 = vpop.permute.xlu0 %723
      %725 = vrot.lane.b32.xlu0 %v496, 120
      %v726 = vpop.permute.xlu0 %725
      %727 = vrot.lane.b32.xlu0 %v497, 120
      %v728 = vpop.permute.xlu0 %727
      %729 = vrot.lane.b32.xlu0 %v498, 120
      %v730 = vpop.permute.xlu0 %729
      %731 = vrot.lane.b32.xlu0 %v499, 120
      %v732 = vpop.permute.xlu0 %731
      %733 = vrot.lane.b32.xlu0 %v500, 120
      %v734 = vpop.permute.xlu0 %733
      %751 = vrot.lane.b32.xlu0 %v485, 112
      %v752 = vpop.permute.xlu0 %751
      %753 = vrot.lane.b32.xlu0 %v486, 112
      %v754 = vpop.permute.xlu0 %753
      %755 = vrot.lane.b32.xlu0 %v487, 112
      %v756 = vpop.permute.xlu0 %755
      %757 = vrot.lane.b32.xlu0 %v488, 112
      %v758 = vpop.permute.xlu0 %757
      %759 = vrot.lane.b32.xlu0 %v489, 112
      %v760 = vpop.permute.xlu0 %759
      %761 = vrot.lane.b32.xlu0 %v490, 112
      %v762 = vpop.permute.xlu0 %761
      %763 = vrot.lane.b32.xlu0 %v491, 112
      %v764 = vpop.permute.xlu0 %763
      %765 = vrot.lane.b32.xlu0 %v492, 112
      %v766 = vpop.permute.xlu0 %765
      %767 = vrot.lane.b32.xlu0 %v493, 112
      %v768 = vpop.permute.xlu0 %767
      %769 = vrot.lane.b32.xlu0 %v494, 112
      %v770 = vpop.permute.xlu0 %769
      %771 = vrot.lane.b32.xlu0 %v495, 112
      %v772 = vpop.permute.xlu0 %771
      %773 = vrot.lane.b32.xlu0 %v496, 112
      %v774 = vpop.permute.xlu0 %773
      %775 = vrot.lane.b32.xlu0 %v497, 112
      %v776 = vpop.permute.xlu0 %775
      %777 = vrot.lane.b32.xlu0 %v498, 112
      %v778 = vpop.permute.xlu0 %777
      %779 = vrot.lane.b32.xlu0 %v499, 112
      %v780 = vpop.permute.xlu0 %779
      %781 = vrot.lane.b32.xlu0 %v500, 112
      %v782 = vpop.permute.xlu0 %781
      %799 = vrot.lane.b32.xlu0 %v485, 104
      %v800 = vpop.permute.xlu0 %799
      %801 = vrot.lane.b32.xlu0 %v486, 104
      %v802 = vpop.permute.xlu0 %801
      %803 = vrot.lane.b32.xlu0 %v487, 104
      %v804 = vpop.permute.xlu0 %803
      %805 = vrot.lane.b32.xlu0 %v488, 104
      %v806 = vpop.permute.xlu0 %805
      %807 = vrot.lane.b32.xlu0 %v489, 104
      %v808 = vpop.permute.xlu0 %807
      %809 = vrot.lane.b32.xlu0 %v490, 104
      %v810 = vpop.permute.xlu0 %809
      %811 = vrot.lane.b32.xlu0 %v491, 104
      %v812 = vpop.permute.xlu0 %811
      %813 = vrot.lane.b32.xlu0 %v492, 104
      %v814 = vpop.permute.xlu0 %813
      %815 = vrot.lane.b32.xlu0 %v493, 104
      %v816 = vpop.permute.xlu0 %815
      %817 = vrot.lane.b32.xlu0 %v494, 104
      %v818 = vpop.permute.xlu0 %817
      %819 = vrot.lane.b32.xlu0 %v495, 104
      %v820 = vpop.permute.xlu0 %819
      %821 = vrot.lane.b32.xlu0 %v496, 104
      %v822 = vpop.permute.xlu0 %821
      %823 = vrot.lane.b32.xlu0 %v497, 104
      %v824 = vpop.permute.xlu0 %823
      %825 = vrot.lane.b32.xlu0 %v498, 104
      %v826 = vpop.permute.xlu0 %825
      %827 = vrot.lane.b32.xlu0 %v499, 104
      %v828 = vpop.permute.xlu0 %827
      %829 = vrot.lane.b32.xlu0 %v500, 104
      %v830 = vpop.permute.xlu0 %829
      %v847 = vcombine.low %v485, %v752
      %v848 = vcombine.high %v485, %v752
      %v850 = vunpack.c.l.s4 1983009808
      %v851 = vunpack.c.0.s8 %v850
      %v852 = vlaneseq
      %v853 = vshrl.u32 %v852, 7
      %v854 = vsub.s32 %v851, %v853
      %v855 = vrot.slane %v847, %v854
      %v857 = vunpack.c.l.s4 1983009808
      %v858 = vunpack.c.0.s8 %v857
      %v859 = vlaneseq
      %v860 = vshrl.u32 %v859, 7
      %v861 = vsub.s32 %v858, %v860
      %v862 = vrot.slane %v848, %v861
      %v863 = vcombine.low %v704, %v800
      %v864 = vcombine.high %v704, %v800
      %v866 = vunpack.c.l.s4 1983009808
      %v867 = vunpack.c.0.s8 %v866
      %v868 = vlaneseq
      %v869 = vshrl.u32 %v868, 7
      %v870 = vsub.s32 %v867, %v869
      %v871 = vrot.slane %v863, %v870
      %v873 = vunpack.c.l.s4 1983009808
      %v874 = vunpack.c.0.s8 %v873
      %v875 = vlaneseq
      %v876 = vshrl.u32 %v875, 7
      %v877 = vsub.s32 %v874, %v876
      %v878 = vrot.slane %v864, %v877
      %v879 = vcombine.low %v855, %v871
      %v880 = vcombine.high %v855, %v871
      %v882 = vunpack.c.l.s4 1934713408
      %v883 = vunpack.c.0.s8 %v882
      %v884 = vlaneseq
      %v885 = vshrl.u32 %v884, 7
      %v886 = vsub.s32 %v883, %v885
      %v887 = vrot.slane %v879, %v886
      %v889 = vunpack.c.l.s4 1934713408
      %v890 = vunpack.c.0.s8 %v889
      %v891 = vlaneseq
      %v892 = vshrl.u32 %v891, 7
      %v893 = vsub.s32 %v890, %v892
      %v894 = vrot.slane %v880, %v893
      %v895 = vcombine.low %v862, %v878
      %v896 = vcombine.high %v862, %v878
      %v898 = vunpack.c.l.s4 1934713408
      %v899 = vunpack.c.0.s8 %v898
      %v900 = vlaneseq
      %v901 = vshrl.u32 %v900, 7
      %v902 = vsub.s32 %v899, %v901
      %v903 = vrot.slane %v895, %v902
      %v905 = vunpack.c.l.s4 1934713408
      %v906 = vunpack.c.0.s8 %v905
      %v907 = vlaneseq
      %v908 = vshrl.u32 %v907, 7
      %v909 = vsub.s32 %v906, %v908
      %v910 = vrot.slane %v896, %v909
      %v911 = vcombine.high %v887, 0.0
      %v912 = vcombine.high %v894, 0.0
      %v913 = vcombine.high %v903, 0.0
      %v914 = vcombine.high %v910, 0.0
      %v915 = vcombine.low %v486, %v754
      %v916 = vcombine.high %v486, %v754
      %v918 = vunpack.c.l.s4 1983009808
      %v919 = vunpack.c.0.s8 %v918
      %v920 = vlaneseq
      %v921 = vshrl.u32 %v920, 7
      %v922 = vsub.s32 %v919, %v921
      %v923 = vrot.slane %v915, %v922
      %v925 = vunpack.c.l.s4 1983009808
      %v926 = vunpack.c.0.s8 %v925
      %v927 = vlaneseq
      %v928 = vshrl.u32 %v927, 7
      %v929 = vsub.s32 %v926, %v928
      %v930 = vrot.slane %v916, %v929
      %v931 = vcombine.low %v706, %v802
      %v932 = vcombine.high %v706, %v802
      %v934 = vunpack.c.l.s4 1983009808
      %v935 = vunpack.c.0.s8 %v934
      %v936 = vlaneseq
      %v937 = vshrl.u32 %v936, 7
      %v938 = vsub.s32 %v935, %v937
      %v939 = vrot.slane %v931, %v938
      %v941 = vunpack.c.l.s4 1983009808
      %v942 = vunpack.c.0.s8 %v941
      %v943 = vlaneseq
      %v944 = vshrl.u32 %v943, 7
      %v945 = vsub.s32 %v942, %v944
      %v946 = vrot.slane %v932, %v945
      %v947 = vcombine.low %v923, %v939
      %v948 = vcombine.high %v923, %v939
      %v950 = vunpack.c.l.s4 1934713408
      %v951 = vunpack.c.0.s8 %v950
      %v952 = vlaneseq
      %v953 = vshrl.u32 %v952, 7
      %v954 = vsub.s32 %v951, %v953
      %v955 = vrot.slane %v947, %v954
      %v957 = vunpack.c.l.s4 1934713408
      %v958 = vunpack.c.0.s8 %v957
      %v959 = vlaneseq
      %v960 = vshrl.u32 %v959, 7
      %v961 = vsub.s32 %v958, %v960
      %v962 = vrot.slane %v948, %v961
      %v963 = vcombine.low %v930, %v946
      %v964 = vcombine.high %v930, %v946
      %v966 = vunpack.c.l.s4 1934713408
      %v967 = vunpack.c.0.s8 %v966
      %v968 = vlaneseq
      %v969 = vshrl.u32 %v968, 7
      %v970 = vsub.s32 %v967, %v969
      %v971 = vrot.slane %v963, %v970
      %v973 = vunpack.c.l.s4 1934713408
      %v974 = vunpack.c.0.s8 %v973
      %v975 = vlaneseq
      %v976 = vshrl.u32 %v975, 7
      %v977 = vsub.s32 %v974, %v976
      %v978 = vrot.slane %v964, %v977
      %v979 = vcombine.high %v955, 0.0
      %v980 = vcombine.high %v962, 0.0
      %v981 = vcombine.high %v971, 0.0
      %v982 = vcombine.high %v978, 0.0
      %v983 = vcombine.low %v487, %v756
      %v984 = vcombine.high %v487, %v756
      %v986 = vunpack.c.l.s4 1983009808
      %v987 = vunpack.c.0.s8 %v986
      %v988 = vlaneseq
      %v989 = vshrl.u32 %v988, 7
      %v990 = vsub.s32 %v987, %v989
      %v991 = vrot.slane %v983, %v990
      %v993 = vunpack.c.l.s4 1983009808
      %v994 = vunpack.c.0.s8 %v993
      %v995 = vlaneseq
      %v996 = vshrl.u32 %v995, 7
      %v997 = vsub.s32 %v994, %v996
      %v998 = vrot.slane %v984, %v997
      %v999 = vcombine.low %v708, %v804
      %v1000 = vcombine.high %v708, %v804
      %v1002 = vunpack.c.l.s4 1983009808
      %v1003 = vunpack.c.0.s8 %v1002
      %v1004 = vlaneseq
      %v1005 = vshrl.u32 %v1004, 7
      %v1006 = vsub.s32 %v1003, %v1005
      %v1007 = vrot.slane %v999, %v1006
      %v1009 = vunpack.c.l.s4 1983009808
      %v1010 = vunpack.c.0.s8 %v1009
      %v1011 = vlaneseq
      %v1012 = vshrl.u32 %v1011, 7
      %v1013 = vsub.s32 %v1010, %v1012
      %v1014 = vrot.slane %v1000, %v1013
      %v1015 = vcombine.low %v991, %v1007
      %v1016 = vcombine.high %v991, %v1007
      %v1018 = vunpack.c.l.s4 1934713408
      %v1019 = vunpack.c.0.s8 %v1018
      %v1020 = vlaneseq
      %v1021 = vshrl.u32 %v1020, 7
      %v1022 = vsub.s32 %v1019, %v1021
      %v1023 = vrot.slane %v1015, %v1022
      %v1025 = vunpack.c.l.s4 1934713408
      %v1026 = vunpack.c.0.s8 %v1025
      %v1027 = vlaneseq
      %v1028 = vshrl.u32 %v1027, 7
      %v1029 = vsub.s32 %v1026, %v1028
      %v1030 = vrot.slane %v1016, %v1029
      %v1031 = vcombine.low %v998, %v1014
      %v1032 = vcombine.high %v998, %v1014
      %v1034 = vunpack.c.l.s4 1934713408
      %v1035 = vunpack.c.0.s8 %v1034
      %v1036 = vlaneseq
      %v1037 = vshrl.u32 %v1036, 7
      %v1038 = vsub.s32 %v1035, %v1037
      %v1039 = vrot.slane %v1031, %v1038
      %v1041 = vunpack.c.l.s4 1934713408
      %v1042 = vunpack.c.0.s8 %v1041
      %v1043 = vlaneseq
      %v1044 = vshrl.u32 %v1043, 7
      %v1045 = vsub.s32 %v1042, %v1044
      %v1046 = vrot.slane %v1032, %v1045
      %v1047 = vcombine.high %v1023, 0.0
      %v1048 = vcombine.high %v1030, 0.0
      %v1049 = vcombine.high %v1039, 0.0
      %v1050 = vcombine.high %v1046, 0.0
      %v1051 = vcombine.low %v488, %v758
      %v1052 = vcombine.high %v488, %v758
      %v1054 = vunpack.c.l.s4 1983009808
      %v1055 = vunpack.c.0.s8 %v1054
      %v1056 = vlaneseq
      %v1057 = vshrl.u32 %v1056, 7
      %v1058 = vsub.s32 %v1055, %v1057
      %v1059 = vrot.slane %v1051, %v1058
      %v1061 = vunpack.c.l.s4 1983009808
      %v1062 = vunpack.c.0.s8 %v1061
      %v1063 = vlaneseq
      %v1064 = vshrl.u32 %v1063, 7
      %v1065 = vsub.s32 %v1062, %v1064
      %v1066 = vrot.slane %v1052, %v1065
      %v1067 = vcombine.low %v710, %v806
      %v1068 = vcombine.high %v710, %v806
      %v1070 = vunpack.c.l.s4 1983009808
      %v1071 = vunpack.c.0.s8 %v1070
      %v1072 = vlaneseq
      %v1073 = vshrl.u32 %v1072, 7
      %v1074 = vsub.s32 %v1071, %v1073
      %v1075 = vrot.slane %v1067, %v1074
      %v1077 = vunpack.c.l.s4 1983009808
      %v1078 = vunpack.c.0.s8 %v1077
      %v1079 = vlaneseq
      %v1080 = vshrl.u32 %v1079, 7
      %v1081 = vsub.s32 %v1078, %v1080
      %v1082 = vrot.slane %v1068, %v1081
      %v1083 = vcombine.low %v1059, %v1075
      %v1084 = vcombine.high %v1059, %v1075
      %v1086 = vunpack.c.l.s4 1934713408
      %v1087 = vunpack.c.0.s8 %v1086
      %v1088 = vlaneseq
      %v1089 = vshrl.u32 %v1088, 7
      %v1090 = vsub.s32 %v1087, %v1089
      %v1091 = vrot.slane %v1083, %v1090
      %v1093 = vunpack.c.l.s4 1934713408
      %v1094 = vunpack.c.0.s8 %v1093
      %v1095 = vlaneseq
      %v1096 = vshrl.u32 %v1095, 7
      %v1097 = vsub.s32 %v1094, %v1096
      %v1098 = vrot.slane %v1084, %v1097
      %v1099 = vcombine.low %v1066, %v1082
      %v1100 = vcombine.high %v1066, %v1082
      %v1102 = vunpack.c.l.s4 1934713408
      %v1103 = vunpack.c.0.s8 %v1102
      %v1104 = vlaneseq
      %v1105 = vshrl.u32 %v1104, 7
      %v1106 = vsub.s32 %v1103, %v1105
      %v1107 = vrot.slane %v1099, %v1106
      %v1109 = vunpack.c.l.s4 1934713408
      %v1110 = vunpack.c.0.s8 %v1109
      %v1111 = vlaneseq
      %v1112 = vshrl.u32 %v1111, 7
      %v1113 = vsub.s32 %v1110, %v1112
      %v1114 = vrot.slane %v1100, %v1113
      %v1115 = vcombine.high %v1091, 0.0
      %v1116 = vcombine.high %v1098, 0.0
      %v1117 = vcombine.high %v1107, 0.0
      %v1118 = vcombine.high %v1114, 0.0
      %v1119 = vcombine.low %v489, %v760
      %v1120 = vcombine.high %v489, %v760
      %v1122 = vunpack.c.l.s4 1983009808
      %v1123 = vunpack.c.0.s8 %v1122
      %v1124 = vlaneseq
      %v1125 = vshrl.u32 %v1124, 7
      %v1126 = vsub.s32 %v1123, %v1125
      %v1127 = vrot.slane %v1119, %v1126
      %v1129 = vunpack.c.l.s4 1983009808
      %v1130 = vunpack.c.0.s8 %v1129
      %v1131 = vlaneseq
      %v1132 = vshrl.u32 %v1131, 7
      %v1133 = vsub.s32 %v1130, %v1132
      %v1134 = vrot.slane %v1120, %v1133
      %v1135 = vcombine.low %v712, %v808
      %v1136 = vcombine.high %v712, %v808
      %v1138 = vunpack.c.l.s4 1983009808
      %v1139 = vunpack.c.0.s8 %v1138
      %v1140 = vlaneseq
      %v1141 = vshrl.u32 %v1140, 7
      %v1142 = vsub.s32 %v1139, %v1141
      %v1143 = vrot.slane %v1135, %v1142
      %v1145 = vunpack.c.l.s4 1983009808
      %v1146 = vunpack.c.0.s8 %v1145
      %v1147 = vlaneseq
      %v1148 = vshrl.u32 %v1147, 7
      %v1149 = vsub.s32 %v1146, %v1148
      %v1150 = vrot.slane %v1136, %v1149
      %v1151 = vcombine.low %v1127, %v1143
      %v1152 = vcombine.high %v1127, %v1143
      %v1154 = vunpack.c.l.s4 1934713408
      %v1155 = vunpack.c.0.s8 %v1154
      %v1156 = vlaneseq
      %v1157 = vshrl.u32 %v1156, 7
      %v1158 = vsub.s32 %v1155, %v1157
      %v1159 = vrot.slane %v1151, %v1158
      %v1161 = vunpack.c.l.s4 1934713408
      %v1162 = vunpack.c.0.s8 %v1161
      %v1163 = vlaneseq
      %v1164 = vshrl.u32 %v1163, 7
      %v1165 = vsub.s32 %v1162, %v1164
      %v1166 = vrot.slane %v1152, %v1165
      %v1167 = vcombine.low %v1134, %v1150
      %v1168 = vcombine.high %v1134, %v1150
      %v1170 = vunpack.c.l.s4 1934713408
      %v1171 = vunpack.c.0.s8 %v1170
      %v1172 = vlaneseq
      %v1173 = vshrl.u32 %v1172, 7
      %v1174 = vsub.s32 %v1171, %v1173
      %v1175 = vrot.slane %v1167, %v1174
      %v1177 = vunpack.c.l.s4 1934713408
      %v1178 = vunpack.c.0.s8 %v1177
      %v1179 = vlaneseq
      %v1180 = vshrl.u32 %v1179, 7
      %v1181 = vsub.s32 %v1178, %v1180
      %v1182 = vrot.slane %v1168, %v1181
      %v1183 = vcombine.high %v1159, 0.0
      %v1184 = vcombine.high %v1166, 0.0
      %v1185 = vcombine.high %v1175, 0.0
      %v1186 = vcombine.high %v1182, 0.0
      %v1187 = vcombine.low %v490, %v762
      %v1188 = vcombine.high %v490, %v762
      %v1190 = vunpack.c.l.s4 1983009808
      %v1191 = vunpack.c.0.s8 %v1190
      %v1192 = vlaneseq
      %v1193 = vshrl.u32 %v1192, 7
      %v1194 = vsub.s32 %v1191, %v1193
      %v1195 = vrot.slane %v1187, %v1194
      %v1197 = vunpack.c.l.s4 1983009808
      %v1198 = vunpack.c.0.s8 %v1197
      %v1199 = vlaneseq
      %v1200 = vshrl.u32 %v1199, 7
      %v1201 = vsub.s32 %v1198, %v1200
      %v1202 = vrot.slane %v1188, %v1201
      %v1203 = vcombine.low %v714, %v810
      %v1204 = vcombine.high %v714, %v810
      %v1206 = vunpack.c.l.s4 1983009808
      %v1207 = vunpack.c.0.s8 %v1206
      %v1208 = vlaneseq
      %v1209 = vshrl.u32 %v1208, 7
      %v1210 = vsub.s32 %v1207, %v1209
      %v1211 = vrot.slane %v1203, %v1210
      %v1213 = vunpack.c.l.s4 1983009808
      %v1214 = vunpack.c.0.s8 %v1213
      %v1215 = vlaneseq
      %v1216 = vshrl.u32 %v1215, 7
      %v1217 = vsub.s32 %v1214, %v1216
      %v1218 = vrot.slane %v1204, %v1217
      %v1219 = vcombine.low %v1195, %v1211
      %v1220 = vcombine.high %v1195, %v1211
      %v1222 = vunpack.c.l.s4 1934713408
      %v1223 = vunpack.c.0.s8 %v1222
      %v1224 = vlaneseq
      %v1225 = vshrl.u32 %v1224, 7
      %v1226 = vsub.s32 %v1223, %v1225
      %v1227 = vrot.slane %v1219, %v1226
      %v1229 = vunpack.c.l.s4 1934713408
      %v1230 = vunpack.c.0.s8 %v1229
      %v1231 = vlaneseq
      %v1232 = vshrl.u32 %v1231, 7
      %v1233 = vsub.s32 %v1230, %v1232
      %v1234 = vrot.slane %v1220, %v1233
      %v1235 = vcombine.low %v1202, %v1218
      %v1236 = vcombine.high %v1202, %v1218
      %v1238 = vunpack.c.l.s4 1934713408
      %v1239 = vunpack.c.0.s8 %v1238
      %v1240 = vlaneseq
      %v1241 = vshrl.u32 %v1240, 7
      %v1242 = vsub.s32 %v1239, %v1241
      %v1243 = vrot.slane %v1235, %v1242
      %v1245 = vunpack.c.l.s4 1934713408
      %v1246 = vunpack.c.0.s8 %v1245
      %v1247 = vlaneseq
      %v1248 = vshrl.u32 %v1247, 7
      %v1249 = vsub.s32 %v1246, %v1248
      %v1250 = vrot.slane %v1236, %v1249
      %v1251 = vcombine.high %v1227, 0.0
      %v1252 = vcombine.high %v1234, 0.0
      %v1253 = vcombine.high %v1243, 0.0
      %v1254 = vcombine.high %v1250, 0.0
      %v1255 = vcombine.low %v491, %v764
      %v1256 = vcombine.high %v491, %v764
      %v1258 = vunpack.c.l.s4 1983009808
      %v1259 = vunpack.c.0.s8 %v1258
      %v1260 = vlaneseq
      %v1261 = vshrl.u32 %v1260, 7
      %v1262 = vsub.s32 %v1259, %v1261
      %v1263 = vrot.slane %v1255, %v1262
      %v1265 = vunpack.c.l.s4 1983009808
      %v1266 = vunpack.c.0.s8 %v1265
      %v1267 = vlaneseq
      %v1268 = vshrl.u32 %v1267, 7
      %v1269 = vsub.s32 %v1266, %v1268
      %v1270 = vrot.slane %v1256, %v1269
      %v1271 = vcombine.low %v716, %v812
      %v1272 = vcombine.high %v716, %v812
      %v1274 = vunpack.c.l.s4 1983009808
      %v1275 = vunpack.c.0.s8 %v1274
      %v1276 = vlaneseq
      %v1277 = vshrl.u32 %v1276, 7
      %v1278 = vsub.s32 %v1275, %v1277
      %v1279 = vrot.slane %v1271, %v1278
      %v1281 = vunpack.c.l.s4 1983009808
      %v1282 = vunpack.c.0.s8 %v1281
      %v1283 = vlaneseq
      %v1284 = vshrl.u32 %v1283, 7
      %v1285 = vsub.s32 %v1282, %v1284
      %v1286 = vrot.slane %v1272, %v1285
      %v1287 = vcombine.low %v1263, %v1279
      %v1288 = vcombine.high %v1263, %v1279
      %v1290 = vunpack.c.l.s4 1934713408
      %v1291 = vunpack.c.0.s8 %v1290
      %v1292 = vlaneseq
      %v1293 = vshrl.u32 %v1292, 7
      %v1294 = vsub.s32 %v1291, %v1293
      %v1295 = vrot.slane %v1287, %v1294
      %v1297 = vunpack.c.l.s4 1934713408
      %v1298 = vunpack.c.0.s8 %v1297
      %v1299 = vlaneseq
      %v1300 = vshrl.u32 %v1299, 7
      %v1301 = vsub.s32 %v1298, %v1300
      %v1302 = vrot.slane %v1288, %v1301
      %v1303 = vcombine.low %v1270, %v1286
      %v1304 = vcombine.high %v1270, %v1286
      %v1306 = vunpack.c.l.s4 1934713408
      %v1307 = vunpack.c.0.s8 %v1306
      %v1308 = vlaneseq
      %v1309 = vshrl.u32 %v1308, 7
      %v1310 = vsub.s32 %v1307, %v1309
      %v1311 = vrot.slane %v1303, %v1310
      %v1313 = vunpack.c.l.s4 1934713408
      %v1314 = vunpack.c.0.s8 %v1313
      %v1315 = vlaneseq
      %v1316 = vshrl.u32 %v1315, 7
      %v1317 = vsub.s32 %v1314, %v1316
      %v1318 = vrot.slane %v1304, %v1317
      %v1319 = vcombine.high %v1295, 0.0
      %v1320 = vcombine.high %v1302, 0.0
      %v1321 = vcombine.high %v1311, 0.0
      %v1322 = vcombine.high %v1318, 0.0
      %v1323 = vcombine.low %v492, %v766
      %v1324 = vcombine.high %v492, %v766
      %v1326 = vunpack.c.l.s4 1983009808
      %v1327 = vunpack.c.0.s8 %v1326
      %v1328 = vlaneseq
      %v1329 = vshrl.u32 %v1328, 7
      %v1330 = vsub.s32 %v1327, %v1329
      %v1331 = vrot.slane %v1323, %v1330
      %v1333 = vunpack.c.l.s4 1983009808
      %v1334 = vunpack.c.0.s8 %v1333
      %v1335 = vlaneseq
      %v1336 = vshrl.u32 %v1335, 7
      %v1337 = vsub.s32 %v1334, %v1336
      %v1338 = vrot.slane %v1324, %v1337
      %v1339 = vcombine.low %v718, %v814
      %v1340 = vcombine.high %v718, %v814
      %v1342 = vunpack.c.l.s4 1983009808
      %v1343 = vunpack.c.0.s8 %v1342
      %v1344 = vlaneseq
      %v1345 = vshrl.u32 %v1344, 7
      %v1346 = vsub.s32 %v1343, %v1345
      %v1347 = vrot.slane %v1339, %v1346
      %v1349 = vunpack.c.l.s4 1983009808
      %v1350 = vunpack.c.0.s8 %v1349
      %v1351 = vlaneseq
      %v1352 = vshrl.u32 %v1351, 7
      %v1353 = vsub.s32 %v1350, %v1352
      %v1354 = vrot.slane %v1340, %v1353
      %v1355 = vcombine.low %v1331, %v1347
      %v1356 = vcombine.high %v1331, %v1347
      %v1358 = vunpack.c.l.s4 1934713408
      %v1359 = vunpack.c.0.s8 %v1358
      %v1360 = vlaneseq
      %v1361 = vshrl.u32 %v1360, 7
      %v1362 = vsub.s32 %v1359, %v1361
      %v1363 = vrot.slane %v1355, %v1362
      %v1365 = vunpack.c.l.s4 1934713408
      %v1366 = vunpack.c.0.s8 %v1365
      %v1367 = vlaneseq
      %v1368 = vshrl.u32 %v1367, 7
      %v1369 = vsub.s32 %v1366, %v1368
      %v1370 = vrot.slane %v1356, %v1369
      %v1371 = vcombine.low %v1338, %v1354
      %v1372 = vcombine.high %v1338, %v1354
      %v1374 = vunpack.c.l.s4 1934713408
      %v1375 = vunpack.c.0.s8 %v1374
      %v1376 = vlaneseq
      %v1377 = vshrl.u32 %v1376, 7
      %v1378 = vsub.s32 %v1375, %v1377
      %v1379 = vrot.slane %v1371, %v1378
      %v1381 = vunpack.c.l.s4 1934713408
      %v1382 = vunpack.c.0.s8 %v1381
      %v1383 = vlaneseq
      %v1384 = vshrl.u32 %v1383, 7
      %v1385 = vsub.s32 %v1382, %v1384
      %v1386 = vrot.slane %v1372, %v1385
      %v1387 = vcombine.high %v1363, 0.0
      %v1388 = vcombine.high %v1370, 0.0
      %v1389 = vcombine.high %v1379, 0.0
      %v1390 = vcombine.high %v1386, 0.0
      %v1391 = vcombine.low %v493, %v768
      %v1392 = vcombine.high %v493, %v768
      %v1394 = vunpack.c.l.s4 1983009808
      %v1395 = vunpack.c.0.s8 %v1394
      %v1396 = vlaneseq
      %v1397 = vshrl.u32 %v1396, 7
      %v1398 = vsub.s32 %v1395, %v1397
      %v1399 = vrot.slane %v1391, %v1398
      %v1401 = vunpack.c.l.s4 1983009808
      %v1402 = vunpack.c.0.s8 %v1401
      %v1403 = vlaneseq
      %v1404 = vshrl.u32 %v1403, 7
      %v1405 = vsub.s32 %v1402, %v1404
      %v1406 = vrot.slane %v1392, %v1405
      %v1407 = vcombine.low %v720, %v816
      %v1408 = vcombine.high %v720, %v816
      %v1410 = vunpack.c.l.s4 1983009808
      %v1411 = vunpack.c.0.s8 %v1410
      %v1412 = vlaneseq
      %v1413 = vshrl.u32 %v1412, 7
      %v1414 = vsub.s32 %v1411, %v1413
      %v1415 = vrot.slane %v1407, %v1414
      %v1417 = vunpack.c.l.s4 1983009808
      %v1418 = vunpack.c.0.s8 %v1417
      %v1419 = vlaneseq
      %v1420 = vshrl.u32 %v1419, 7
      %v1421 = vsub.s32 %v1418, %v1420
      %v1422 = vrot.slane %v1408, %v1421
      %v1423 = vcombine.low %v1399, %v1415
      %v1424 = vcombine.high %v1399, %v1415
      %v1426 = vunpack.c.l.s4 1934713408
      %v1427 = vunpack.c.0.s8 %v1426
      %v1428 = vlaneseq
      %v1429 = vshrl.u32 %v1428, 7
      %v1430 = vsub.s32 %v1427, %v1429
      %v1431 = vrot.slane %v1423, %v1430
      %v1433 = vunpack.c.l.s4 1934713408
      %v1434 = vunpack.c.0.s8 %v1433
      %v1435 = vlaneseq
      %v1436 = vshrl.u32 %v1435, 7
      %v1437 = vsub.s32 %v1434, %v1436
      %v1438 = vrot.slane %v1424, %v1437
      %v1439 = vcombine.low %v1406, %v1422
      %v1440 = vcombine.high %v1406, %v1422
      %v1442 = vunpack.c.l.s4 1934713408
      %v1443 = vunpack.c.0.s8 %v1442
      %v1444 = vlaneseq
      %v1445 = vshrl.u32 %v1444, 7
      %v1446 = vsub.s32 %v1443, %v1445
      %v1447 = vrot.slane %v1439, %v1446
      %v1449 = vunpack.c.l.s4 1934713408
      %v1450 = vunpack.c.0.s8 %v1449
      %v1451 = vlaneseq
      %v1452 = vshrl.u32 %v1451, 7
      %v1453 = vsub.s32 %v1450, %v1452
      %v1454 = vrot.slane %v1440, %v1453
      %v1455 = vcombine.high %v1431, 0.0
      %v1456 = vcombine.high %v1438, 0.0
      %v1457 = vcombine.high %v1447, 0.0
      %v1458 = vcombine.high %v1454, 0.0
      %v1459 = vcombine.low %v494, %v770
      %v1460 = vcombine.high %v494, %v770
      %v1462 = vunpack.c.l.s4 1983009808
      %v1463 = vunpack.c.0.s8 %v1462
      %v1464 = vlaneseq
      %v1465 = vshrl.u32 %v1464, 7
      %v1466 = vsub.s32 %v1463, %v1465
      %v1467 = vrot.slane %v1459, %v1466
      %v1469 = vunpack.c.l.s4 1983009808
      %v1470 = vunpack.c.0.s8 %v1469
      %v1471 = vlaneseq
      %v1472 = vshrl.u32 %v1471, 7
      %v1473 = vsub.s32 %v1470, %v1472
      %v1474 = vrot.slane %v1460, %v1473
      %v1475 = vcombine.low %v722, %v818
      %v1476 = vcombine.high %v722, %v818
      %v1478 = vunpack.c.l.s4 1983009808
      %v1479 = vunpack.c.0.s8 %v1478
      %v1480 = vlaneseq
      %v1481 = vshrl.u32 %v1480, 7
      %v1482 = vsub.s32 %v1479, %v1481
      %v1483 = vrot.slane %v1475, %v1482
      %v1485 = vunpack.c.l.s4 1983009808
      %v1486 = vunpack.c.0.s8 %v1485
      %v1487 = vlaneseq
      %v1488 = vshrl.u32 %v1487, 7
      %v1489 = vsub.s32 %v1486, %v1488
      %v1490 = vrot.slane %v1476, %v1489
      %v1491 = vcombine.low %v1467, %v1483
      %v1492 = vcombine.high %v1467, %v1483
      %v1494 = vunpack.c.l.s4 1934713408
      %v1495 = vunpack.c.0.s8 %v1494
      %v1496 = vlaneseq
      %v1497 = vshrl.u32 %v1496, 7
      %v1498 = vsub.s32 %v1495, %v1497
      %v1499 = vrot.slane %v1491, %v1498
      %v1501 = vunpack.c.l.s4 1934713408
      %v1502 = vunpack.c.0.s8 %v1501
      %v1503 = vlaneseq
      %v1504 = vshrl.u32 %v1503, 7
      %v1505 = vsub.s32 %v1502, %v1504
      %v1506 = vrot.slane %v1492, %v1505
      %v1507 = vcombine.low %v1474, %v1490
      %v1508 = vcombine.high %v1474, %v1490
      %v1510 = vunpack.c.l.s4 1934713408
      %v1511 = vunpack.c.0.s8 %v1510
      %v1512 = vlaneseq
      %v1513 = vshrl.u32 %v1512, 7
      %v1514 = vsub.s32 %v1511, %v1513
      %v1515 = vrot.slane %v1507, %v1514
      %v1517 = vunpack.c.l.s4 1934713408
      %v1518 = vunpack.c.0.s8 %v1517
      %v1519 = vlaneseq
      %v1520 = vshrl.u32 %v1519, 7
      %v1521 = vsub.s32 %v1518, %v1520
      %v1522 = vrot.slane %v1508, %v1521
      %v1523 = vcombine.high %v1499, 0.0
      %v1524 = vcombine.high %v1506, 0.0
      %v1525 = vcombine.high %v1515, 0.0
      %v1526 = vcombine.high %v1522, 0.0
      %v1527 = vcombine.low %v495, %v772
      %v1528 = vcombine.high %v495, %v772
      %v1530 = vunpack.c.l.s4 1983009808
      %v1531 = vunpack.c.0.s8 %v1530
      %v1532 = vlaneseq
      %v1533 = vshrl.u32 %v1532, 7
      %v1534 = vsub.s32 %v1531, %v1533
      %v1535 = vrot.slane %v1527, %v1534
      %v1537 = vunpack.c.l.s4 1983009808
      %v1538 = vunpack.c.0.s8 %v1537
      %v1539 = vlaneseq
      %v1540 = vshrl.u32 %v1539, 7
      %v1541 = vsub.s32 %v1538, %v1540
      %v1542 = vrot.slane %v1528, %v1541
      %v1543 = vcombine.low %v724, %v820
      %v1544 = vcombine.high %v724, %v820
      %v1546 = vunpack.c.l.s4 1983009808
      %v1547 = vunpack.c.0.s8 %v1546
      %v1548 = vlaneseq
      %v1549 = vshrl.u32 %v1548, 7
      %v1550 = vsub.s32 %v1547, %v1549
      %v1551 = vrot.slane %v1543, %v1550
      %v1553 = vunpack.c.l.s4 1983009808
      %v1554 = vunpack.c.0.s8 %v1553
      %v1555 = vlaneseq
      %v1556 = vshrl.u32 %v1555, 7
      %v1557 = vsub.s32 %v1554, %v1556
      %v1558 = vrot.slane %v1544, %v1557
      %v1559 = vcombine.low %v1535, %v1551
      %v1560 = vcombine.high %v1535, %v1551
      %v1562 = vunpack.c.l.s4 1934713408
      %v1563 = vunpack.c.0.s8 %v1562
      %v1564 = vlaneseq
      %v1565 = vshrl.u32 %v1564, 7
      %v1566 = vsub.s32 %v1563, %v1565
      %v1567 = vrot.slane %v1559, %v1566
      %v1569 = vunpack.c.l.s4 1934713408
      %v1570 = vunpack.c.0.s8 %v1569
      %v1571 = vlaneseq
      %v1572 = vshrl.u32 %v1571, 7
      %v1573 = vsub.s32 %v1570, %v1572
      %v1574 = vrot.slane %v1560, %v1573
      %v1575 = vcombine.low %v1542, %v1558
      %v1576 = vcombine.high %v1542, %v1558
      %v1578 = vunpack.c.l.s4 1934713408
      %v1579 = vunpack.c.0.s8 %v1578
      %v1580 = vlaneseq
      %v1581 = vshrl.u32 %v1580, 7
      %v1582 = vsub.s32 %v1579, %v1581
      %v1583 = vrot.slane %v1575, %v1582
      %v1585 = vunpack.c.l.s4 1934713408
      %v1586 = vunpack.c.0.s8 %v1585
      %v1587 = vlaneseq
      %v1588 = vshrl.u32 %v1587, 7
      %v1589 = vsub.s32 %v1586, %v1588
      %v1590 = vrot.slane %v1576, %v1589
      %v1591 = vcombine.high %v1567, 0.0
      %v1592 = vcombine.high %v1574, 0.0
      %v1593 = vcombine.high %v1583, 0.0
      %v1594 = vcombine.high %v1590, 0.0
      %v1595 = vcombine.low %v496, %v774
      %v1596 = vcombine.high %v496, %v774
      %v1598 = vunpack.c.l.s4 1983009808
      %v1599 = vunpack.c.0.s8 %v1598
      %v1600 = vlaneseq
      %v1601 = vshrl.u32 %v1600, 7
      %v1602 = vsub.s32 %v1599, %v1601
      %v1603 = vrot.slane %v1595, %v1602
      %v1605 = vunpack.c.l.s4 1983009808
      %v1606 = vunpack.c.0.s8 %v1605
      %v1607 = vlaneseq
      %v1608 = vshrl.u32 %v1607, 7
      %v1609 = vsub.s32 %v1606, %v1608
      %v1610 = vrot.slane %v1596, %v1609
      %v1611 = vcombine.low %v726, %v822
      %v1612 = vcombine.high %v726, %v822
      %v1614 = vunpack.c.l.s4 1983009808
      %v1615 = vunpack.c.0.s8 %v1614
      %v1616 = vlaneseq
      %v1617 = vshrl.u32 %v1616, 7
      %v1618 = vsub.s32 %v1615, %v1617
      %v1619 = vrot.slane %v1611, %v1618
      %v1621 = vunpack.c.l.s4 1983009808
      %v1622 = vunpack.c.0.s8 %v1621
      %v1623 = vlaneseq
      %v1624 = vshrl.u32 %v1623, 7
      %v1625 = vsub.s32 %v1622, %v1624
      %v1626 = vrot.slane %v1612, %v1625
      %v1627 = vcombine.low %v1603, %v1619
      %v1628 = vcombine.high %v1603, %v1619
      %v1630 = vunpack.c.l.s4 1934713408
      %v1631 = vunpack.c.0.s8 %v1630
      %v1632 = vlaneseq
      %v1633 = vshrl.u32 %v1632, 7
      %v1634 = vsub.s32 %v1631, %v1633
      %v1635 = vrot.slane %v1627, %v1634
      %v1637 = vunpack.c.l.s4 1934713408
      %v1638 = vunpack.c.0.s8 %v1637
      %v1639 = vlaneseq
      %v1640 = vshrl.u32 %v1639, 7
      %v1641 = vsub.s32 %v1638, %v1640
      %v1642 = vrot.slane %v1628, %v1641
      %v1643 = vcombine.low %v1610, %v1626
      %v1644 = vcombine.high %v1610, %v1626
      %v1646 = vunpack.c.l.s4 1934713408
      %v1647 = vunpack.c.0.s8 %v1646
      %v1648 = vlaneseq
      %v1649 = vshrl.u32 %v1648, 7
      %v1650 = vsub.s32 %v1647, %v1649
      %v1651 = vrot.slane %v1643, %v1650
      %v1653 = vunpack.c.l.s4 1934713408
      %v1654 = vunpack.c.0.s8 %v1653
      %v1655 = vlaneseq
      %v1656 = vshrl.u32 %v1655, 7
      %v1657 = vsub.s32 %v1654, %v1656
      %v1658 = vrot.slane %v1644, %v1657
      %v1659 = vcombine.high %v1635, 0.0
      %v1660 = vcombine.high %v1642, 0.0
      %v1661 = vcombine.high %v1651, 0.0
      %v1662 = vcombine.high %v1658, 0.0
      %v1663 = vcombine.low %v497, %v776
      %v1664 = vcombine.high %v497, %v776
      %v1666 = vunpack.c.l.s4 1983009808
      %v1667 = vunpack.c.0.s8 %v1666
      %v1668 = vlaneseq
      %v1669 = vshrl.u32 %v1668, 7
      %v1670 = vsub.s32 %v1667, %v1669
      %v1671 = vrot.slane %v1663, %v1670
      %v1673 = vunpack.c.l.s4 1983009808
      %v1674 = vunpack.c.0.s8 %v1673
      %v1675 = vlaneseq
      %v1676 = vshrl.u32 %v1675, 7
      %v1677 = vsub.s32 %v1674, %v1676
      %v1678 = vrot.slane %v1664, %v1677
      %v1679 = vcombine.low %v728, %v824
      %v1680 = vcombine.high %v728, %v824
      %v1682 = vunpack.c.l.s4 1983009808
      %v1683 = vunpack.c.0.s8 %v1682
      %v1684 = vlaneseq
      %v1685 = vshrl.u32 %v1684, 7
      %v1686 = vsub.s32 %v1683, %v1685
      %v1687 = vrot.slane %v1679, %v1686
      %v1689 = vunpack.c.l.s4 1983009808
      %v1690 = vunpack.c.0.s8 %v1689
      %v1691 = vlaneseq
      %v1692 = vshrl.u32 %v1691, 7
      %v1693 = vsub.s32 %v1690, %v1692
      %v1694 = vrot.slane %v1680, %v1693
      %v1695 = vcombine.low %v1671, %v1687
      %v1696 = vcombine.high %v1671, %v1687
      %v1698 = vunpack.c.l.s4 1934713408
      %v1699 = vunpack.c.0.s8 %v1698
      %v1700 = vlaneseq
      %v1701 = vshrl.u32 %v1700, 7
      %v1702 = vsub.s32 %v1699, %v1701
      %v1703 = vrot.slane %v1695, %v1702
      %v1705 = vunpack.c.l.s4 1934713408
      %v1706 = vunpack.c.0.s8 %v1705
      %v1707 = vlaneseq
      %v1708 = vshrl.u32 %v1707, 7
      %v1709 = vsub.s32 %v1706, %v1708
      %v1710 = vrot.slane %v1696, %v1709
      %v1711 = vcombine.low %v1678, %v1694
      %v1712 = vcombine.high %v1678, %v1694
      %v1714 = vunpack.c.l.s4 1934713408
      %v1715 = vunpack.c.0.s8 %v1714
      %v1716 = vlaneseq
      %v1717 = vshrl.u32 %v1716, 7
      %v1718 = vsub.s32 %v1715, %v1717
      %v1719 = vrot.slane %v1711, %v1718
      %v1721 = vunpack.c.l.s4 1934713408
      %v1722 = vunpack.c.0.s8 %v1721
      %v1723 = vlaneseq
      %v1724 = vshrl.u32 %v1723, 7
      %v1725 = vsub.s32 %v1722, %v1724
      %v1726 = vrot.slane %v1712, %v1725
      %v1727 = vcombine.high %v1703, 0.0
      %v1728 = vcombine.high %v1710, 0.0
      %v1729 = vcombine.high %v1719, 0.0
      %v1730 = vcombine.high %v1726, 0.0
      %v1731 = vcombine.low %v498, %v778
      %v1732 = vcombine.high %v498, %v778
      %v1734 = vunpack.c.l.s4 1983009808
      %v1735 = vunpack.c.0.s8 %v1734
      %v1736 = vlaneseq
      %v1737 = vshrl.u32 %v1736, 7
      %v1738 = vsub.s32 %v1735, %v1737
      %v1739 = vrot.slane %v1731, %v1738
      %v1741 = vunpack.c.l.s4 1983009808
      %v1742 = vunpack.c.0.s8 %v1741
      %v1743 = vlaneseq
      %v1744 = vshrl.u32 %v1743, 7
      %v1745 = vsub.s32 %v1742, %v1744
      %v1746 = vrot.slane %v1732, %v1745
      %v1747 = vcombine.low %v730, %v826
      %v1748 = vcombine.high %v730, %v826
      %v1750 = vunpack.c.l.s4 1983009808
      %v1751 = vunpack.c.0.s8 %v1750
      %v1752 = vlaneseq
      %v1753 = vshrl.u32 %v1752, 7
      %v1754 = vsub.s32 %v1751, %v1753
      %v1755 = vrot.slane %v1747, %v1754
      %v1757 = vunpack.c.l.s4 1983009808
      %v1758 = vunpack.c.0.s8 %v1757
      %v1759 = vlaneseq
      %v1760 = vshrl.u32 %v1759, 7
      %v1761 = vsub.s32 %v1758, %v1760
      %v1762 = vrot.slane %v1748, %v1761
      %v1763 = vcombine.low %v1739, %v1755
      %v1764 = vcombine.high %v1739, %v1755
      %v1766 = vunpack.c.l.s4 1934713408
      %v1767 = vunpack.c.0.s8 %v1766
      %v1768 = vlaneseq
      %v1769 = vshrl.u32 %v1768, 7
      %v1770 = vsub.s32 %v1767, %v1769
      %v1771 = vrot.slane %v1763, %v1770
      %v1773 = vunpack.c.l.s4 1934713408
      %v1774 = vunpack.c.0.s8 %v1773
      %v1775 = vlaneseq
      %v1776 = vshrl.u32 %v1775, 7
      %v1777 = vsub.s32 %v1774, %v1776
      %v1778 = vrot.slane %v1764, %v1777
      %v1779 = vcombine.low %v1746, %v1762
      %v1780 = vcombine.high %v1746, %v1762
      %v1782 = vunpack.c.l.s4 1934713408
      %v1783 = vunpack.c.0.s8 %v1782
      %v1784 = vlaneseq
      %v1785 = vshrl.u32 %v1784, 7
      %v1786 = vsub.s32 %v1783, %v1785
      %v1787 = vrot.slane %v1779, %v1786
      %v1789 = vunpack.c.l.s4 1934713408
      %v1790 = vunpack.c.0.s8 %v1789
      %v1791 = vlaneseq
      %v1792 = vshrl.u32 %v1791, 7
      %v1793 = vsub.s32 %v1790, %v1792
      %v1794 = vrot.slane %v1780, %v1793
      %v1795 = vcombine.high %v1771, 0.0
      %v1796 = vcombine.high %v1778, 0.0
      %v1797 = vcombine.high %v1787, 0.0
      %v1798 = vcombine.high %v1794, 0.0
      %v1799 = vcombine.low %v499, %v780
      %v1800 = vcombine.high %v499, %v780
      %v1802 = vunpack.c.l.s4 1983009808
      %v1803 = vunpack.c.0.s8 %v1802
      %v1804 = vlaneseq
      %v1805 = vshrl.u32 %v1804, 7
      %v1806 = vsub.s32 %v1803, %v1805
      %v1807 = vrot.slane %v1799, %v1806
      %v1809 = vunpack.c.l.s4 1983009808
      %v1810 = vunpack.c.0.s8 %v1809
      %v1811 = vlaneseq
      %v1812 = vshrl.u32 %v1811, 7
      %v1813 = vsub.s32 %v1810, %v1812
      %v1814 = vrot.slane %v1800, %v1813
      %v1815 = vcombine.low %v732, %v828
      %v1816 = vcombine.high %v732, %v828
      %v1818 = vunpack.c.l.s4 1983009808
      %v1819 = vunpack.c.0.s8 %v1818
      %v1820 = vlaneseq
      %v1821 = vshrl.u32 %v1820, 7
      %v1822 = vsub.s32 %v1819, %v1821
      %v1823 = vrot.slane %v1815, %v1822
      %v1825 = vunpack.c.l.s4 1983009808
      %v1826 = vunpack.c.0.s8 %v1825
      %v1827 = vlaneseq
      %v1828 = vshrl.u32 %v1827, 7
      %v1829 = vsub.s32 %v1826, %v1828
      %v1830 = vrot.slane %v1816, %v1829
      %v1831 = vcombine.low %v1807, %v1823
      %v1832 = vcombine.high %v1807, %v1823
      %v1834 = vunpack.c.l.s4 1934713408
      %v1835 = vunpack.c.0.s8 %v1834
      %v1836 = vlaneseq
      %v1837 = vshrl.u32 %v1836, 7
      %v1838 = vsub.s32 %v1835, %v1837
      %v1839 = vrot.slane %v1831, %v1838
      %v1841 = vunpack.c.l.s4 1934713408
      %v1842 = vunpack.c.0.s8 %v1841
      %v1843 = vlaneseq
      %v1844 = vshrl.u32 %v1843, 7
      %v1845 = vsub.s32 %v1842, %v1844
      %v1846 = vrot.slane %v1832, %v1845
      %v1847 = vcombine.low %v1814, %v1830
      %v1848 = vcombine.high %v1814, %v1830
      %v1850 = vunpack.c.l.s4 1934713408
      %v1851 = vunpack.c.0.s8 %v1850
      %v1852 = vlaneseq
      %v1853 = vshrl.u32 %v1852, 7
      %v1854 = vsub.s32 %v1851, %v1853
      %v1855 = vrot.slane %v1847, %v1854
      %v1857 = vunpack.c.l.s4 1934713408
      %v1858 = vunpack.c.0.s8 %v1857
      %v1859 = vlaneseq
      %v1860 = vshrl.u32 %v1859, 7
      %v1861 = vsub.s32 %v1858, %v1860
      %v1862 = vrot.slane %v1848, %v1861
      %v1863 = vcombine.high %v1839, 0.0
      %v1864 = vcombine.high %v1846, 0.0
      %v1865 = vcombine.high %v1855, 0.0
      %v1866 = vcombine.high %v1862, 0.0
      %v1867 = vcombine.low %v500, %v782
      %v1868 = vcombine.high %v500, %v782
      %v1870 = vunpack.c.l.s4 1983009808
      %v1871 = vunpack.c.0.s8 %v1870
      %v1872 = vlaneseq
      %v1873 = vshrl.u32 %v1872, 7
      %v1874 = vsub.s32 %v1871, %v1873
      %v1875 = vrot.slane %v1867, %v1874
      %v1877 = vunpack.c.l.s4 1983009808
      %v1878 = vunpack.c.0.s8 %v1877
      %v1879 = vlaneseq
      %v1880 = vshrl.u32 %v1879, 7
      %v1881 = vsub.s32 %v1878, %v1880
      %v1882 = vrot.slane %v1868, %v1881
      %v1883 = vcombine.low %v734, %v830
      %v1884 = vcombine.high %v734, %v830
      %v1886 = vunpack.c.l.s4 1983009808
      %v1887 = vunpack.c.0.s8 %v1886
      %v1888 = vlaneseq
      %v1889 = vshrl.u32 %v1888, 7
      %v1890 = vsub.s32 %v1887, %v1889
      %v1891 = vrot.slane %v1883, %v1890
      %v1893 = vunpack.c.l.s4 1983009808
      %v1894 = vunpack.c.0.s8 %v1893
      %v1895 = vlaneseq
      %v1896 = vshrl.u32 %v1895, 7
      %v1897 = vsub.s32 %v1894, %v1896
      %v1898 = vrot.slane %v1884, %v1897
      %v1899 = vcombine.low %v1875, %v1891
      %v1900 = vcombine.high %v1875, %v1891
      %v1902 = vunpack.c.l.s4 1934713408
      %v1903 = vunpack.c.0.s8 %v1902
      %v1904 = vlaneseq
      %v1905 = vshrl.u32 %v1904, 7
      %v1906 = vsub.s32 %v1903, %v1905
      %v1907 = vrot.slane %v1899, %v1906
      %v1909 = vunpack.c.l.s4 1934713408
      %v1910 = vunpack.c.0.s8 %v1909
      %v1911 = vlaneseq
      %v1912 = vshrl.u32 %v1911, 7
      %v1913 = vsub.s32 %v1910, %v1912
      %v1914 = vrot.slane %v1900, %v1913
      %v1915 = vcombine.low %v1882, %v1898
      %v1916 = vcombine.high %v1882, %v1898
      %v1918 = vunpack.c.l.s4 1934713408
      %v1919 = vunpack.c.0.s8 %v1918
      %v1920 = vlaneseq
      %v1921 = vshrl.u32 %v1920, 7
      %v1922 = vsub.s32 %v1919, %v1921
      %v1923 = vrot.slane %v1915, %v1922
      %v1925 = vunpack.c.l.s4 1934713408
      %v1926 = vunpack.c.0.s8 %v1925
      %v1927 = vlaneseq
      %v1928 = vshrl.u32 %v1927, 7
      %v1929 = vsub.s32 %v1926, %v1928
      %v1930 = vrot.slane %v1916, %v1929
      %v1931 = vcombine.high %v1907, 0.0
      %v1932 = vcombine.high %v1914, 0.0
      %v1933 = vcombine.high %v1923, 0.0
      %v1934 = vcombine.high %v1930, 0.0
      %v1935 = vcombine.low %v887, %v894
      %v1937 = vunpack.c.l.s4 1983009808
      %v1938 = vunpack.c.0.s8 %v1937
      %v1939 = vlaneseq
      %v1940 = vshrl.u32 %v1939, 7
      %v1941 = vsub.s32 %v1938, %v1940
      %v1942 = vrot.slane %v1935, %v1941
      %v1943 = vcombine.low %v911, %v912
      %v1945 = vunpack.c.l.s4 1983009808
      %v1946 = vunpack.c.0.s8 %v1945
      %v1947 = vlaneseq
      %v1948 = vshrl.u32 %v1947, 7
      %v1949 = vsub.s32 %v1946, %v1948
      %v1950 = vrot.slane %v1943, %v1949
      %v1951 = vcombine.low %v903, %v910
      %v1953 = vunpack.c.l.s4 1983009808
      %v1954 = vunpack.c.0.s8 %v1953
      %v1955 = vlaneseq
      %v1956 = vshrl.u32 %v1955, 7
      %v1957 = vsub.s32 %v1954, %v1956
      %v1958 = vrot.slane %v1951, %v1957
      %v1959 = vcombine.low %v913, %v914
      %v1961 = vunpack.c.l.s4 1983009808
      %v1962 = vunpack.c.0.s8 %v1961
      %v1963 = vlaneseq
      %v1964 = vshrl.u32 %v1963, 7
      %v1965 = vsub.s32 %v1962, %v1964
      %v1966 = vrot.slane %v1959, %v1965
      %v1967 = vcombine.low %v1942, %v1950
      %v1968 = vcombine.high %v1942, %v1950
      %v1970 = vunpack.c.l.s4 1934713408
      %v1971 = vunpack.c.0.s8 %v1970
      %v1972 = vlaneseq
      %v1973 = vshrl.u32 %v1972, 7
      %v1974 = vsub.s32 %v1971, %v1973
      %v1975 = vrot.slane %v1967, %v1974
      %v1977 = vunpack.c.l.s4 1934713408
      %v1978 = vunpack.c.0.s8 %v1977
      %v1979 = vlaneseq
      %v1980 = vshrl.u32 %v1979, 7
      %v1981 = vsub.s32 %v1978, %v1980
      %v1982 = vrot.slane %v1968, %v1981
      %v1983 = vcombine.low %v1958, %v1966
      %v1984 = vcombine.high %v1958, %v1966
      %v1986 = vunpack.c.l.s4 1934713408
      %v1987 = vunpack.c.0.s8 %v1986
      %v1988 = vlaneseq
      %v1989 = vshrl.u32 %v1988, 7
      %v1990 = vsub.s32 %v1987, %v1989
      %v1991 = vrot.slane %v1983, %v1990
      %v1993 = vunpack.c.l.s4 1934713408
      %v1994 = vunpack.c.0.s8 %v1993
      %v1995 = vlaneseq
      %v1996 = vshrl.u32 %v1995, 7
      %v1997 = vsub.s32 %v1994, %v1996
      %v1998 = vrot.slane %v1984, %v1997
      %v1999 = vcombine.low %v1975, %v1991
      %v2000 = vcombine.high %v1975, %v1991
      %v2001 = vcombine.low %v1982, %v1998
      %v2002 = vcombine.high %v1982, %v1998
      %v2003 = vcombine.low %v955, %v962
      %v2005 = vunpack.c.l.s4 1983009808
      %v2006 = vunpack.c.0.s8 %v2005
      %v2007 = vlaneseq
      %v2008 = vshrl.u32 %v2007, 7
      %v2009 = vsub.s32 %v2006, %v2008
      %v2010 = vrot.slane %v2003, %v2009
      %v2011 = vcombine.low %v979, %v980
      %v2013 = vunpack.c.l.s4 1983009808
      %v2014 = vunpack.c.0.s8 %v2013
      %v2015 = vlaneseq
      %v2016 = vshrl.u32 %v2015, 7
      %v2017 = vsub.s32 %v2014, %v2016
      %v2018 = vrot.slane %v2011, %v2017
      %v2019 = vcombine.low %v971, %v978
      %v2021 = vunpack.c.l.s4 1983009808
      %v2022 = vunpack.c.0.s8 %v2021
      %v2023 = vlaneseq
      %v2024 = vshrl.u32 %v2023, 7
      %v2025 = vsub.s32 %v2022, %v2024
      %v2026 = vrot.slane %v2019, %v2025
      %v2027 = vcombine.low %v981, %v982
      %v2029 = vunpack.c.l.s4 1983009808
      %v2030 = vunpack.c.0.s8 %v2029
      %v2031 = vlaneseq
      %v2032 = vshrl.u32 %v2031, 7
      %v2033 = vsub.s32 %v2030, %v2032
      %v2034 = vrot.slane %v2027, %v2033
      %v2035 = vcombine.low %v2010, %v2018
      %v2036 = vcombine.high %v2010, %v2018
      %v2038 = vunpack.c.l.s4 1934713408
      %v2039 = vunpack.c.0.s8 %v2038
      %v2040 = vlaneseq
      %v2041 = vshrl.u32 %v2040, 7
      %v2042 = vsub.s32 %v2039, %v2041
      %v2043 = vrot.slane %v2035, %v2042
      %v2045 = vunpack.c.l.s4 1934713408
      %v2046 = vunpack.c.0.s8 %v2045
      %v2047 = vlaneseq
      %v2048 = vshrl.u32 %v2047, 7
      %v2049 = vsub.s32 %v2046, %v2048
      %v2050 = vrot.slane %v2036, %v2049
      %v2051 = vcombine.low %v2026, %v2034
      %v2052 = vcombine.high %v2026, %v2034
      %v2054 = vunpack.c.l.s4 1934713408
      %v2055 = vunpack.c.0.s8 %v2054
      %v2056 = vlaneseq
      %v2057 = vshrl.u32 %v2056, 7
      %v2058 = vsub.s32 %v2055, %v2057
      %v2059 = vrot.slane %v2051, %v2058
      %v2061 = vunpack.c.l.s4 1934713408
      %v2062 = vunpack.c.0.s8 %v2061
      %v2063 = vlaneseq
      %v2064 = vshrl.u32 %v2063, 7
      %v2065 = vsub.s32 %v2062, %v2064
      %v2066 = vrot.slane %v2052, %v2065
      %v2067 = vcombine.low %v2043, %v2059
      %v2068 = vcombine.high %v2043, %v2059
      %v2069 = vcombine.low %v2050, %v2066
      %v2070 = vcombine.high %v2050, %v2066
      %v2071 = vcombine.low %v1023, %v1030
      %v2073 = vunpack.c.l.s4 1983009808
      %v2074 = vunpack.c.0.s8 %v2073
      %v2075 = vlaneseq
      %v2076 = vshrl.u32 %v2075, 7
      %v2077 = vsub.s32 %v2074, %v2076
      %v2078 = vrot.slane %v2071, %v2077
      %v2079 = vcombine.low %v1047, %v1048
      %v2081 = vunpack.c.l.s4 1983009808
      %v2082 = vunpack.c.0.s8 %v2081
      %v2083 = vlaneseq
      %v2084 = vshrl.u32 %v2083, 7
      %v2085 = vsub.s32 %v2082, %v2084
      %v2086 = vrot.slane %v2079, %v2085
      %v2087 = vcombine.low %v1039, %v1046
      %v2089 = vunpack.c.l.s4 1983009808
      %v2090 = vunpack.c.0.s8 %v2089
      %v2091 = vlaneseq
      %v2092 = vshrl.u32 %v2091, 7
      %v2093 = vsub.s32 %v2090, %v2092
      %v2094 = vrot.slane %v2087, %v2093
      %v2095 = vcombine.low %v1049, %v1050
      %v2097 = vunpack.c.l.s4 1983009808
      %v2098 = vunpack.c.0.s8 %v2097
      %v2099 = vlaneseq
      %v2100 = vshrl.u32 %v2099, 7
      %v2101 = vsub.s32 %v2098, %v2100
      %v2102 = vrot.slane %v2095, %v2101
      %v2103 = vcombine.low %v2078, %v2086
      %v2104 = vcombine.high %v2078, %v2086
      %v2106 = vunpack.c.l.s4 1934713408
      %v2107 = vunpack.c.0.s8 %v2106
      %v2108 = vlaneseq
      %v2109 = vshrl.u32 %v2108, 7
      %v2110 = vsub.s32 %v2107, %v2109
      %v2111 = vrot.slane %v2103, %v2110
      %v2113 = vunpack.c.l.s4 1934713408
      %v2114 = vunpack.c.0.s8 %v2113
      %v2115 = vlaneseq
      %v2116 = vshrl.u32 %v2115, 7
      %v2117 = vsub.s32 %v2114, %v2116
      %v2118 = vrot.slane %v2104, %v2117
      %v2119 = vcombine.low %v2094, %v2102
      %v2120 = vcombine.high %v2094, %v2102
      %v2122 = vunpack.c.l.s4 1934713408
      %v2123 = vunpack.c.0.s8 %v2122
      %v2124 = vlaneseq
      %v2125 = vshrl.u32 %v2124, 7
      %v2126 = vsub.s32 %v2123, %v2125
      %v2127 = vrot.slane %v2119, %v2126
      %v2129 = vunpack.c.l.s4 1934713408
      %v2130 = vunpack.c.0.s8 %v2129
      %v2131 = vlaneseq
      %v2132 = vshrl.u32 %v2131, 7
      %v2133 = vsub.s32 %v2130, %v2132
      %v2134 = vrot.slane %v2120, %v2133
      %v2135 = vcombine.low %v2111, %v2127
      %v2136 = vcombine.high %v2111, %v2127
      %v2137 = vcombine.low %v2118, %v2134
      %v2138 = vcombine.high %v2118, %v2134
      %v2139 = vcombine.low %v1091, %v1098
      %v2141 = vunpack.c.l.s4 1983009808
      %v2142 = vunpack.c.0.s8 %v2141
      %v2143 = vlaneseq
      %v2144 = vshrl.u32 %v2143, 7
      %v2145 = vsub.s32 %v2142, %v2144
      %v2146 = vrot.slane %v2139, %v2145
      %v2147 = vcombine.low %v1115, %v1116
      %v2149 = vunpack.c.l.s4 1983009808
      %v2150 = vunpack.c.0.s8 %v2149
      %v2151 = vlaneseq
      %v2152 = vshrl.u32 %v2151, 7
      %v2153 = vsub.s32 %v2150, %v2152
      %v2154 = vrot.slane %v2147, %v2153
      %v2155 = vcombine.low %v1107, %v1114
      %v2157 = vunpack.c.l.s4 1983009808
      %v2158 = vunpack.c.0.s8 %v2157
      %v2159 = vlaneseq
      %v2160 = vshrl.u32 %v2159, 7
      %v2161 = vsub.s32 %v2158, %v2160
      %v2162 = vrot.slane %v2155, %v2161
      %v2163 = vcombine.low %v1117, %v1118
      %v2165 = vunpack.c.l.s4 1983009808
      %v2166 = vunpack.c.0.s8 %v2165
      %v2167 = vlaneseq
      %v2168 = vshrl.u32 %v2167, 7
      %v2169 = vsub.s32 %v2166, %v2168
      %v2170 = vrot.slane %v2163, %v2169
      %v2171 = vcombine.low %v2146, %v2154
      %v2172 = vcombine.high %v2146, %v2154
      %v2174 = vunpack.c.l.s4 1934713408
      %v2175 = vunpack.c.0.s8 %v2174
      %v2176 = vlaneseq
      %v2177 = vshrl.u32 %v2176, 7
      %v2178 = vsub.s32 %v2175, %v2177
      %v2179 = vrot.slane %v2171, %v2178
      %v2181 = vunpack.c.l.s4 1934713408
      %v2182 = vunpack.c.0.s8 %v2181
      %v2183 = vlaneseq
      %v2184 = vshrl.u32 %v2183, 7
      %v2185 = vsub.s32 %v2182, %v2184
      %v2186 = vrot.slane %v2172, %v2185
      %v2187 = vcombine.low %v2162, %v2170
      %v2188 = vcombine.high %v2162, %v2170
      %v2190 = vunpack.c.l.s4 1934713408
      %v2191 = vunpack.c.0.s8 %v2190
      %v2192 = vlaneseq
      %v2193 = vshrl.u32 %v2192, 7
      %v2194 = vsub.s32 %v2191, %v2193
      %v2195 = vrot.slane %v2187, %v2194
      %v2197 = vunpack.c.l.s4 1934713408
      %v2198 = vunpack.c.0.s8 %v2197
      %v2199 = vlaneseq
      %v2200 = vshrl.u32 %v2199, 7
      %v2201 = vsub.s32 %v2198, %v2200
      %v2202 = vrot.slane %v2188, %v2201
      %v2203 = vcombine.low %v2179, %v2195
      %v2204 = vcombine.high %v2179, %v2195
      %v2205 = vcombine.low %v2186, %v2202
      %v2206 = vcombine.high %v2186, %v2202
      %v2207 = vcombine.low %v1159, %v1166
      %v2209 = vunpack.c.l.s4 1983009808
      %v2210 = vunpack.c.0.s8 %v2209
      %v2211 = vlaneseq
      %v2212 = vshrl.u32 %v2211, 7
      %v2213 = vsub.s32 %v2210, %v2212
      %v2214 = vrot.slane %v2207, %v2213
      %v2215 = vcombine.low %v1183, %v1184
      %v2217 = vunpack.c.l.s4 1983009808
      %v2218 = vunpack.c.0.s8 %v2217
      %v2219 = vlaneseq
      %v2220 = vshrl.u32 %v2219, 7
      %v2221 = vsub.s32 %v2218, %v2220
      %v2222 = vrot.slane %v2215, %v2221
      %v2223 = vcombine.low %v1175, %v1182
      %v2225 = vunpack.c.l.s4 1983009808
      %v2226 = vunpack.c.0.s8 %v2225
      %v2227 = vlaneseq
      %v2228 = vshrl.u32 %v2227, 7
      %v2229 = vsub.s32 %v2226, %v2228
      %v2230 = vrot.slane %v2223, %v2229
      %v2231 = vcombine.low %v1185, %v1186
      %v2233 = vunpack.c.l.s4 1983009808
      %v2234 = vunpack.c.0.s8 %v2233
      %v2235 = vlaneseq
      %v2236 = vshrl.u32 %v2235, 7
      %v2237 = vsub.s32 %v2234, %v2236
      %v2238 = vrot.slane %v2231, %v2237
      %v2239 = vcombine.low %v2214, %v2222
      %v2240 = vcombine.high %v2214, %v2222
      %v2242 = vunpack.c.l.s4 1934713408
      %v2243 = vunpack.c.0.s8 %v2242
      %v2244 = vlaneseq
      %v2245 = vshrl.u32 %v2244, 7
      %v2246 = vsub.s32 %v2243, %v2245
      %v2247 = vrot.slane %v2239, %v2246
      %v2249 = vunpack.c.l.s4 1934713408
      %v2250 = vunpack.c.0.s8 %v2249
      %v2251 = vlaneseq
      %v2252 = vshrl.u32 %v2251, 7
      %v2253 = vsub.s32 %v2250, %v2252
      %v2254 = vrot.slane %v2240, %v2253
      %v2255 = vcombine.low %v2230, %v2238
      %v2256 = vcombine.high %v2230, %v2238
      %v2258 = vunpack.c.l.s4 1934713408
      %v2259 = vunpack.c.0.s8 %v2258
      %v2260 = vlaneseq
      %v2261 = vshrl.u32 %v2260, 7
      %v2262 = vsub.s32 %v2259, %v2261
      %v2263 = vrot.slane %v2255, %v2262
      %v2265 = vunpack.c.l.s4 1934713408
      %v2266 = vunpack.c.0.s8 %v2265
      %v2267 = vlaneseq
      %v2268 = vshrl.u32 %v2267, 7
      %v2269 = vsub.s32 %v2266, %v2268
      %v2270 = vrot.slane %v2256, %v2269
      %v2271 = vcombine.low %v2247, %v2263
      %v2272 = vcombine.high %v2247, %v2263
      %v2273 = vcombine.low %v2254, %v2270
      %v2274 = vcombine.high %v2254, %v2270
      %v2275 = vcombine.low %v1227, %v1234
      %v2277 = vunpack.c.l.s4 1983009808
      %v2278 = vunpack.c.0.s8 %v2277
      %v2279 = vlaneseq
      %v2280 = vshrl.u32 %v2279, 7
      %v2281 = vsub.s32 %v2278, %v2280
      %v2282 = vrot.slane %v2275, %v2281
      %v2283 = vcombine.low %v1251, %v1252
      %v2285 = vunpack.c.l.s4 1983009808
      %v2286 = vunpack.c.0.s8 %v2285
      %v2287 = vlaneseq
      %v2288 = vshrl.u32 %v2287, 7
      %v2289 = vsub.s32 %v2286, %v2288
      %v2290 = vrot.slane %v2283, %v2289
      %v2291 = vcombine.low %v1243, %v1250
      %v2293 = vunpack.c.l.s4 1983009808
      %v2294 = vunpack.c.0.s8 %v2293
      %v2295 = vlaneseq
      %v2296 = vshrl.u32 %v2295, 7
      %v2297 = vsub.s32 %v2294, %v2296
      %v2298 = vrot.slane %v2291, %v2297
      %v2299 = vcombine.low %v1253, %v1254
      %v2301 = vunpack.c.l.s4 1983009808
      %v2302 = vunpack.c.0.s8 %v2301
      %v2303 = vlaneseq
      %v2304 = vshrl.u32 %v2303, 7
      %v2305 = vsub.s32 %v2302, %v2304
      %v2306 = vrot.slane %v2299, %v2305
      %v2307 = vcombine.low %v2282, %v2290
      %v2308 = vcombine.high %v2282, %v2290
      %v2310 = vunpack.c.l.s4 1934713408
      %v2311 = vunpack.c.0.s8 %v2310
      %v2312 = vlaneseq
      %v2313 = vshrl.u32 %v2312, 7
      %v2314 = vsub.s32 %v2311, %v2313
      %v2315 = vrot.slane %v2307, %v2314
      %v2317 = vunpack.c.l.s4 1934713408
      %v2318 = vunpack.c.0.s8 %v2317
      %v2319 = vlaneseq
      %v2320 = vshrl.u32 %v2319, 7
      %v2321 = vsub.s32 %v2318, %v2320
      %v2322 = vrot.slane %v2308, %v2321
      %v2323 = vcombine.low %v2298, %v2306
      %v2324 = vcombine.high %v2298, %v2306
      %v2326 = vunpack.c.l.s4 1934713408
      %v2327 = vunpack.c.0.s8 %v2326
      %v2328 = vlaneseq
      %v2329 = vshrl.u32 %v2328, 7
      %v2330 = vsub.s32 %v2327, %v2329
      %v2331 = vrot.slane %v2323, %v2330
      %v2333 = vunpack.c.l.s4 1934713408
      %v2334 = vunpack.c.0.s8 %v2333
      %v2335 = vlaneseq
      %v2336 = vshrl.u32 %v2335, 7
      %v2337 = vsub.s32 %v2334, %v2336
      %v2338 = vrot.slane %v2324, %v2337
      %v2339 = vcombine.low %v2315, %v2331
      %v2340 = vcombine.high %v2315, %v2331
      %v2341 = vcombine.low %v2322, %v2338
      %v2342 = vcombine.high %v2322, %v2338
      %v2343 = vcombine.low %v1295, %v1302
      %v2345 = vunpack.c.l.s4 1983009808
      %v2346 = vunpack.c.0.s8 %v2345
      %v2347 = vlaneseq
      %v2348 = vshrl.u32 %v2347, 7
      %v2349 = vsub.s32 %v2346, %v2348
      %v2350 = vrot.slane %v2343, %v2349
      %v2351 = vcombine.low %v1319, %v1320
      %v2353 = vunpack.c.l.s4 1983009808
      %v2354 = vunpack.c.0.s8 %v2353
      %v2355 = vlaneseq
      %v2356 = vshrl.u32 %v2355, 7
      %v2357 = vsub.s32 %v2354, %v2356
      %v2358 = vrot.slane %v2351, %v2357
      %v2359 = vcombine.low %v1311, %v1318
      %v2361 = vunpack.c.l.s4 1983009808
      %v2362 = vunpack.c.0.s8 %v2361
      %v2363 = vlaneseq
      %v2364 = vshrl.u32 %v2363, 7
      %v2365 = vsub.s32 %v2362, %v2364
      %v2366 = vrot.slane %v2359, %v2365
      %v2367 = vcombine.low %v1321, %v1322
      %v2369 = vunpack.c.l.s4 1983009808
      %v2370 = vunpack.c.0.s8 %v2369
      %v2371 = vlaneseq
      %v2372 = vshrl.u32 %v2371, 7
      %v2373 = vsub.s32 %v2370, %v2372
      %v2374 = vrot.slane %v2367, %v2373
      %v2375 = vcombine.low %v2350, %v2358
      %v2376 = vcombine.high %v2350, %v2358
      %v2378 = vunpack.c.l.s4 1934713408
      %v2379 = vunpack.c.0.s8 %v2378
      %v2380 = vlaneseq
      %v2381 = vshrl.u32 %v2380, 7
      %v2382 = vsub.s32 %v2379, %v2381
      %v2383 = vrot.slane %v2375, %v2382
      %v2385 = vunpack.c.l.s4 1934713408
      %v2386 = vunpack.c.0.s8 %v2385
      %v2387 = vlaneseq
      %v2388 = vshrl.u32 %v2387, 7
      %v2389 = vsub.s32 %v2386, %v2388
      %v2390 = vrot.slane %v2376, %v2389
      %v2391 = vcombine.low %v2366, %v2374
      %v2392 = vcombine.high %v2366, %v2374
      %v2394 = vunpack.c.l.s4 1934713408
      %v2395 = vunpack.c.0.s8 %v2394
      %v2396 = vlaneseq
      %v2397 = vshrl.u32 %v2396, 7
      %v2398 = vsub.s32 %v2395, %v2397
      %v2399 = vrot.slane %v2391, %v2398
      %v2401 = vunpack.c.l.s4 1934713408
      %v2402 = vunpack.c.0.s8 %v2401
      %v2403 = vlaneseq
      %v2404 = vshrl.u32 %v2403, 7
      %v2405 = vsub.s32 %v2402, %v2404
      %v2406 = vrot.slane %v2392, %v2405
      %v2407 = vcombine.low %v2383, %v2399
      %v2408 = vcombine.high %v2383, %v2399
      %v2409 = vcombine.low %v2390, %v2406
      %v2410 = vcombine.high %v2390, %v2406
      %v2411 = vcombine.low %v1363, %v1370
      %v2413 = vunpack.c.l.s4 1983009808
      %v2414 = vunpack.c.0.s8 %v2413
      %v2415 = vlaneseq
      %v2416 = vshrl.u32 %v2415, 7
      %v2417 = vsub.s32 %v2414, %v2416
      %v2418 = vrot.slane %v2411, %v2417
      %v2419 = vcombine.low %v1387, %v1388
      %v2421 = vunpack.c.l.s4 1983009808
      %v2422 = vunpack.c.0.s8 %v2421
      %v2423 = vlaneseq
      %v2424 = vshrl.u32 %v2423, 7
      %v2425 = vsub.s32 %v2422, %v2424
      %v2426 = vrot.slane %v2419, %v2425
      %v2427 = vcombine.low %v1379, %v1386
      %v2429 = vunpack.c.l.s4 1983009808
      %v2430 = vunpack.c.0.s8 %v2429
      %v2431 = vlaneseq
      %v2432 = vshrl.u32 %v2431, 7
      %v2433 = vsub.s32 %v2430, %v2432
      %v2434 = vrot.slane %v2427, %v2433
      %v2435 = vcombine.low %v1389, %v1390
      %v2437 = vunpack.c.l.s4 1983009808
      %v2438 = vunpack.c.0.s8 %v2437
      %v2439 = vlaneseq
      %v2440 = vshrl.u32 %v2439, 7
      %v2441 = vsub.s32 %v2438, %v2440
      %v2442 = vrot.slane %v2435, %v2441
      %v2443 = vcombine.low %v2418, %v2426
      %v2444 = vcombine.high %v2418, %v2426
      %v2446 = vunpack.c.l.s4 1934713408
      %v2447 = vunpack.c.0.s8 %v2446
      %v2448 = vlaneseq
      %v2449 = vshrl.u32 %v2448, 7
      %v2450 = vsub.s32 %v2447, %v2449
      %v2451 = vrot.slane %v2443, %v2450
      %v2453 = vunpack.c.l.s4 1934713408
      %v2454 = vunpack.c.0.s8 %v2453
      %v2455 = vlaneseq
      %v2456 = vshrl.u32 %v2455, 7
      %v2457 = vsub.s32 %v2454, %v2456
      %v2458 = vrot.slane %v2444, %v2457
      %v2459 = vcombine.low %v2434, %v2442
      %v2460 = vcombine.high %v2434, %v2442
      %v2462 = vunpack.c.l.s4 1934713408
      %v2463 = vunpack.c.0.s8 %v2462
      %v2464 = vlaneseq
      %v2465 = vshrl.u32 %v2464, 7
      %v2466 = vsub.s32 %v2463, %v2465
      %v2467 = vrot.slane %v2459, %v2466
      %v2469 = vunpack.c.l.s4 1934713408
      %v2470 = vunpack.c.0.s8 %v2469
      %v2471 = vlaneseq
      %v2472 = vshrl.u32 %v2471, 7
      %v2473 = vsub.s32 %v2470, %v2472
      %v2474 = vrot.slane %v2460, %v2473
      %v2475 = vcombine.low %v2451, %v2467
      %v2476 = vcombine.high %v2451, %v2467
      %v2477 = vcombine.low %v2458, %v2474
      %v2478 = vcombine.high %v2458, %v2474
      %v2479 = vcombine.low %v1431, %v1438
      %v2481 = vunpack.c.l.s4 1983009808
      %v2482 = vunpack.c.0.s8 %v2481
      %v2483 = vlaneseq
      %v2484 = vshrl.u32 %v2483, 7
      %v2485 = vsub.s32 %v2482, %v2484
      %v2486 = vrot.slane %v2479, %v2485
      %v2487 = vcombine.low %v1455, %v1456
      %v2489 = vunpack.c.l.s4 1983009808
      %v2490 = vunpack.c.0.s8 %v2489
      %v2491 = vlaneseq
      %v2492 = vshrl.u32 %v2491, 7
      %v2493 = vsub.s32 %v2490, %v2492
      %v2494 = vrot.slane %v2487, %v2493
      %v2495 = vcombine.low %v1447, %v1454
      %v2497 = vunpack.c.l.s4 1983009808
      %v2498 = vunpack.c.0.s8 %v2497
      %v2499 = vlaneseq
      %v2500 = vshrl.u32 %v2499, 7
      %v2501 = vsub.s32 %v2498, %v2500
      %v2502 = vrot.slane %v2495, %v2501
      %v2503 = vcombine.low %v1457, %v1458
      %v2505 = vunpack.c.l.s4 1983009808
      %v2506 = vunpack.c.0.s8 %v2505
      %v2507 = vlaneseq
      %v2508 = vshrl.u32 %v2507, 7
      %v2509 = vsub.s32 %v2506, %v2508
      %v2510 = vrot.slane %v2503, %v2509
      %v2511 = vcombine.low %v2486, %v2494
      %v2512 = vcombine.high %v2486, %v2494
      %v2514 = vunpack.c.l.s4 1934713408
      %v2515 = vunpack.c.0.s8 %v2514
      %v2516 = vlaneseq
      %v2517 = vshrl.u32 %v2516, 7
      %v2518 = vsub.s32 %v2515, %v2517
      %v2519 = vrot.slane %v2511, %v2518
      %v2521 = vunpack.c.l.s4 1934713408
      %v2522 = vunpack.c.0.s8 %v2521
      %v2523 = vlaneseq
      %v2524 = vshrl.u32 %v2523, 7
      %v2525 = vsub.s32 %v2522, %v2524
      %v2526 = vrot.slane %v2512, %v2525
      %v2527 = vcombine.low %v2502, %v2510
      %v2528 = vcombine.high %v2502, %v2510
      %v2530 = vunpack.c.l.s4 1934713408
      %v2531 = vunpack.c.0.s8 %v2530
      %v2532 = vlaneseq
      %v2533 = vshrl.u32 %v2532, 7
      %v2534 = vsub.s32 %v2531, %v2533
      %v2535 = vrot.slane %v2527, %v2534
      %v2537 = vunpack.c.l.s4 1934713408
      %v2538 = vunpack.c.0.s8 %v2537
      %v2539 = vlaneseq
      %v2540 = vshrl.u32 %v2539, 7
      %v2541 = vsub.s32 %v2538, %v2540
      %v2542 = vrot.slane %v2528, %v2541
      %v2543 = vcombine.low %v2519, %v2535
      %v2544 = vcombine.high %v2519, %v2535
      %v2545 = vcombine.low %v2526, %v2542
      %v2546 = vcombine.high %v2526, %v2542
      %v2547 = vcombine.low %v1499, %v1506
      %v2549 = vunpack.c.l.s4 1983009808
      %v2550 = vunpack.c.0.s8 %v2549
      %v2551 = vlaneseq
      %v2552 = vshrl.u32 %v2551, 7
      %v2553 = vsub.s32 %v2550, %v2552
      %v2554 = vrot.slane %v2547, %v2553
      %v2555 = vcombine.low %v1523, %v1524
      %v2557 = vunpack.c.l.s4 1983009808
      %v2558 = vunpack.c.0.s8 %v2557
      %v2559 = vlaneseq
      %v2560 = vshrl.u32 %v2559, 7
      %v2561 = vsub.s32 %v2558, %v2560
      %v2562 = vrot.slane %v2555, %v2561
      %v2563 = vcombine.low %v1515, %v1522
      %v2565 = vunpack.c.l.s4 1983009808
      %v2566 = vunpack.c.0.s8 %v2565
      %v2567 = vlaneseq
      %v2568 = vshrl.u32 %v2567, 7
      %v2569 = vsub.s32 %v2566, %v2568
      %v2570 = vrot.slane %v2563, %v2569
      %v2571 = vcombine.low %v1525, %v1526
      %v2573 = vunpack.c.l.s4 1983009808
      %v2574 = vunpack.c.0.s8 %v2573
      %v2575 = vlaneseq
      %v2576 = vshrl.u32 %v2575, 7
      %v2577 = vsub.s32 %v2574, %v2576
      %v2578 = vrot.slane %v2571, %v2577
      %v2579 = vcombine.low %v2554, %v2562
      %v2580 = vcombine.high %v2554, %v2562
      %v2582 = vunpack.c.l.s4 1934713408
      %v2583 = vunpack.c.0.s8 %v2582
      %v2584 = vlaneseq
      %v2585 = vshrl.u32 %v2584, 7
      %v2586 = vsub.s32 %v2583, %v2585
      %v2587 = vrot.slane %v2579, %v2586
      %v2589 = vunpack.c.l.s4 1934713408
      %v2590 = vunpack.c.0.s8 %v2589
      %v2591 = vlaneseq
      %v2592 = vshrl.u32 %v2591, 7
      %v2593 = vsub.s32 %v2590, %v2592
      %v2594 = vrot.slane %v2580, %v2593
      %v2595 = vcombine.low %v2570, %v2578
      %v2596 = vcombine.high %v2570, %v2578
      %v2598 = vunpack.c.l.s4 1934713408
      %v2599 = vunpack.c.0.s8 %v2598
      %v2600 = vlaneseq
      %v2601 = vshrl.u32 %v2600, 7
      %v2602 = vsub.s32 %v2599, %v2601
      %v2603 = vrot.slane %v2595, %v2602
      %v2605 = vunpack.c.l.s4 1934713408
      %v2606 = vunpack.c.0.s8 %v2605
      %v2607 = vlaneseq
      %v2608 = vshrl.u32 %v2607, 7
      %v2609 = vsub.s32 %v2606, %v2608
      %v2610 = vrot.slane %v2596, %v2609
      %v2611 = vcombine.low %v2587, %v2603
      %v2612 = vcombine.high %v2587, %v2603
      %v2613 = vcombine.low %v2594, %v2610
      %v2614 = vcombine.high %v2594, %v2610
      %v2615 = vcombine.low %v1567, %v1574
      %v2617 = vunpack.c.l.s4 1983009808
      %v2618 = vunpack.c.0.s8 %v2617
      %v2619 = vlaneseq
      %v2620 = vshrl.u32 %v2619, 7
      %v2621 = vsub.s32 %v2618, %v2620
      %v2622 = vrot.slane %v2615, %v2621
      %v2623 = vcombine.low %v1591, %v1592
      %v2625 = vunpack.c.l.s4 1983009808
      %v2626 = vunpack.c.0.s8 %v2625
      %v2627 = vlaneseq
      %v2628 = vshrl.u32 %v2627, 7
      %v2629 = vsub.s32 %v2626, %v2628
      %v2630 = vrot.slane %v2623, %v2629
      %v2631 = vcombine.low %v1583, %v1590
      %v2633 = vunpack.c.l.s4 1983009808
      %v2634 = vunpack.c.0.s8 %v2633
      %v2635 = vlaneseq
      %v2636 = vshrl.u32 %v2635, 7
      %v2637 = vsub.s32 %v2634, %v2636
      %v2638 = vrot.slane %v2631, %v2637
      %v2639 = vcombine.low %v1593, %v1594
      %v2641 = vunpack.c.l.s4 1983009808
      %v2642 = vunpack.c.0.s8 %v2641
      %v2643 = vlaneseq
      %v2644 = vshrl.u32 %v2643, 7
      %v2645 = vsub.s32 %v2642, %v2644
      %v2646 = vrot.slane %v2639, %v2645
      %v2647 = vcombine.low %v2622, %v2630
      %v2648 = vcombine.high %v2622, %v2630
      %v2650 = vunpack.c.l.s4 1934713408
      %v2651 = vunpack.c.0.s8 %v2650
      %v2652 = vlaneseq
      %v2653 = vshrl.u32 %v2652, 7
      %v2654 = vsub.s32 %v2651, %v2653
      %v2655 = vrot.slane %v2647, %v2654
      %v2657 = vunpack.c.l.s4 1934713408
      %v2658 = vunpack.c.0.s8 %v2657
      %v2659 = vlaneseq
      %v2660 = vshrl.u32 %v2659, 7
      %v2661 = vsub.s32 %v2658, %v2660
      %v2662 = vrot.slane %v2648, %v2661
      %v2663 = vcombine.low %v2638, %v2646
      %v2664 = vcombine.high %v2638, %v2646
      %v2666 = vunpack.c.l.s4 1934713408
      %v2667 = vunpack.c.0.s8 %v2666
      %v2668 = vlaneseq
      %v2669 = vshrl.u32 %v2668, 7
      %v2670 = vsub.s32 %v2667, %v2669
      %v2671 = vrot.slane %v2663, %v2670
      %v2673 = vunpack.c.l.s4 1934713408
      %v2674 = vunpack.c.0.s8 %v2673
      %v2675 = vlaneseq
      %v2676 = vshrl.u32 %v2675, 7
      %v2677 = vsub.s32 %v2674, %v2676
      %v2678 = vrot.slane %v2664, %v2677
      %v2679 = vcombine.low %v2655, %v2671
      %v2680 = vcombine.high %v2655, %v2671
      %v2681 = vcombine.low %v2662, %v2678
      %v2682 = vcombine.high %v2662, %v2678
      %v2683 = vcombine.low %v1635, %v1642
      %v2685 = vunpack.c.l.s4 1983009808
      %v2686 = vunpack.c.0.s8 %v2685
      %v2687 = vlaneseq
      %v2688 = vshrl.u32 %v2687, 7
      %v2689 = vsub.s32 %v2686, %v2688
      %v2690 = vrot.slane %v2683, %v2689
      %v2691 = vcombine.low %v1659, %v1660
      %v2693 = vunpack.c.l.s4 1983009808
      %v2694 = vunpack.c.0.s8 %v2693
      %v2695 = vlaneseq
      %v2696 = vshrl.u32 %v2695, 7
      %v2697 = vsub.s32 %v2694, %v2696
      %v2698 = vrot.slane %v2691, %v2697
      %v2699 = vcombine.low %v1651, %v1658
      %v2701 = vunpack.c.l.s4 1983009808
      %v2702 = vunpack.c.0.s8 %v2701
      %v2703 = vlaneseq
      %v2704 = vshrl.u32 %v2703, 7
      %v2705 = vsub.s32 %v2702, %v2704
      %v2706 = vrot.slane %v2699, %v2705
      %v2707 = vcombine.low %v1661, %v1662
      %v2709 = vunpack.c.l.s4 1983009808
      %v2710 = vunpack.c.0.s8 %v2709
      %v2711 = vlaneseq
      %v2712 = vshrl.u32 %v2711, 7
      %v2713 = vsub.s32 %v2710, %v2712
      %v2714 = vrot.slane %v2707, %v2713
      %v2715 = vcombine.low %v2690, %v2698
      %v2716 = vcombine.high %v2690, %v2698
      %v2718 = vunpack.c.l.s4 1934713408
      %v2719 = vunpack.c.0.s8 %v2718
      %v2720 = vlaneseq
      %v2721 = vshrl.u32 %v2720, 7
      %v2722 = vsub.s32 %v2719, %v2721
      %v2723 = vrot.slane %v2715, %v2722
      %v2725 = vunpack.c.l.s4 1934713408
      %v2726 = vunpack.c.0.s8 %v2725
      %v2727 = vlaneseq
      %v2728 = vshrl.u32 %v2727, 7
      %v2729 = vsub.s32 %v2726, %v2728
      %v2730 = vrot.slane %v2716, %v2729
      %v2731 = vcombine.low %v2706, %v2714
      %v2732 = vcombine.high %v2706, %v2714
      %v2734 = vunpack.c.l.s4 1934713408
      %v2735 = vunpack.c.0.s8 %v2734
      %v2736 = vlaneseq
      %v2737 = vshrl.u32 %v2736, 7
      %v2738 = vsub.s32 %v2735, %v2737
      %v2739 = vrot.slane %v2731, %v2738
      %v2741 = vunpack.c.l.s4 1934713408
      %v2742 = vunpack.c.0.s8 %v2741
      %v2743 = vlaneseq
      %v2744 = vshrl.u32 %v2743, 7
      %v2745 = vsub.s32 %v2742, %v2744
      %v2746 = vrot.slane %v2732, %v2745
      %v2747 = vcombine.low %v2723, %v2739
      %v2748 = vcombine.high %v2723, %v2739
      %v2749 = vcombine.low %v2730, %v2746
      %v2750 = vcombine.high %v2730, %v2746
      %v2751 = vcombine.low %v1703, %v1710
      %v2753 = vunpack.c.l.s4 1983009808
      %v2754 = vunpack.c.0.s8 %v2753
      %v2755 = vlaneseq
      %v2756 = vshrl.u32 %v2755, 7
      %v2757 = vsub.s32 %v2754, %v2756
      %v2758 = vrot.slane %v2751, %v2757
      %v2759 = vcombine.low %v1727, %v1728
      %v2761 = vunpack.c.l.s4 1983009808
      %v2762 = vunpack.c.0.s8 %v2761
      %v2763 = vlaneseq
      %v2764 = vshrl.u32 %v2763, 7
      %v2765 = vsub.s32 %v2762, %v2764
      %v2766 = vrot.slane %v2759, %v2765
      %v2767 = vcombine.low %v1719, %v1726
      %v2769 = vunpack.c.l.s4 1983009808
      %v2770 = vunpack.c.0.s8 %v2769
      %v2771 = vlaneseq
      %v2772 = vshrl.u32 %v2771, 7
      %v2773 = vsub.s32 %v2770, %v2772
      %v2774 = vrot.slane %v2767, %v2773
      %v2775 = vcombine.low %v1729, %v1730
      %v2777 = vunpack.c.l.s4 1983009808
      %v2778 = vunpack.c.0.s8 %v2777
      %v2779 = vlaneseq
      %v2780 = vshrl.u32 %v2779, 7
      %v2781 = vsub.s32 %v2778, %v2780
      %v2782 = vrot.slane %v2775, %v2781
      %v2783 = vcombine.low %v2758, %v2766
      %v2784 = vcombine.high %v2758, %v2766
      %v2786 = vunpack.c.l.s4 1934713408
      %v2787 = vunpack.c.0.s8 %v2786
      %v2788 = vlaneseq
      %v2789 = vshrl.u32 %v2788, 7
      %v2790 = vsub.s32 %v2787, %v2789
      %v2791 = vrot.slane %v2783, %v2790
      %v2793 = vunpack.c.l.s4 1934713408
      %v2794 = vunpack.c.0.s8 %v2793
      %v2795 = vlaneseq
      %v2796 = vshrl.u32 %v2795, 7
      %v2797 = vsub.s32 %v2794, %v2796
      %v2798 = vrot.slane %v2784, %v2797
      %v2799 = vcombine.low %v2774, %v2782
      %v2800 = vcombine.high %v2774, %v2782
      %v2802 = vunpack.c.l.s4 1934713408
      %v2803 = vunpack.c.0.s8 %v2802
      %v2804 = vlaneseq
      %v2805 = vshrl.u32 %v2804, 7
      %v2806 = vsub.s32 %v2803, %v2805
      %v2807 = vrot.slane %v2799, %v2806
      %v2809 = vunpack.c.l.s4 1934713408
      %v2810 = vunpack.c.0.s8 %v2809
      %v2811 = vlaneseq
      %v2812 = vshrl.u32 %v2811, 7
      %v2813 = vsub.s32 %v2810, %v2812
      %v2814 = vrot.slane %v2800, %v2813
      %v2815 = vcombine.low %v2791, %v2807
      %v2816 = vcombine.high %v2791, %v2807
      %v2817 = vcombine.low %v2798, %v2814
      %v2818 = vcombine.high %v2798, %v2814
      %v2819 = vcombine.low %v1771, %v1778
      %v2821 = vunpack.c.l.s4 1983009808
      %v2822 = vunpack.c.0.s8 %v2821
      %v2823 = vlaneseq
      %v2824 = vshrl.u32 %v2823, 7
      %v2825 = vsub.s32 %v2822, %v2824
      %v2826 = vrot.slane %v2819, %v2825
      %v2827 = vcombine.low %v1795, %v1796
      %v2829 = vunpack.c.l.s4 1983009808
      %v2830 = vunpack.c.0.s8 %v2829
      %v2831 = vlaneseq
      %v2832 = vshrl.u32 %v2831, 7
      %v2833 = vsub.s32 %v2830, %v2832
      %v2834 = vrot.slane %v2827, %v2833
      %v2835 = vcombine.low %v1787, %v1794
      %v2837 = vunpack.c.l.s4 1983009808
      %v2838 = vunpack.c.0.s8 %v2837
      %v2839 = vlaneseq
      %v2840 = vshrl.u32 %v2839, 7
      %v2841 = vsub.s32 %v2838, %v2840
      %v2842 = vrot.slane %v2835, %v2841
      %v2843 = vcombine.low %v1797, %v1798
      %v2845 = vunpack.c.l.s4 1983009808
      %v2846 = vunpack.c.0.s8 %v2845
      %v2847 = vlaneseq
      %v2848 = vshrl.u32 %v2847, 7
      %v2849 = vsub.s32 %v2846, %v2848
      %v2850 = vrot.slane %v2843, %v2849
      %v2851 = vcombine.low %v2826, %v2834
      %v2852 = vcombine.high %v2826, %v2834
      %v2854 = vunpack.c.l.s4 1934713408
      %v2855 = vunpack.c.0.s8 %v2854
      %v2856 = vlaneseq
      %v2857 = vshrl.u32 %v2856, 7
      %v2858 = vsub.s32 %v2855, %v2857
      %v2859 = vrot.slane %v2851, %v2858
      %v2861 = vunpack.c.l.s4 1934713408
      %v2862 = vunpack.c.0.s8 %v2861
      %v2863 = vlaneseq
      %v2864 = vshrl.u32 %v2863, 7
      %v2865 = vsub.s32 %v2862, %v2864
      %v2866 = vrot.slane %v2852, %v2865
      %v2867 = vcombine.low %v2842, %v2850
      %v2868 = vcombine.high %v2842, %v2850
      %v2870 = vunpack.c.l.s4 1934713408
      %v2871 = vunpack.c.0.s8 %v2870
      %v2872 = vlaneseq
      %v2873 = vshrl.u32 %v2872, 7
      %v2874 = vsub.s32 %v2871, %v2873
      %v2875 = vrot.slane %v2867, %v2874
      %v2877 = vunpack.c.l.s4 1934713408
      %v2878 = vunpack.c.0.s8 %v2877
      %v2879 = vlaneseq
      %v2880 = vshrl.u32 %v2879, 7
      %v2881 = vsub.s32 %v2878, %v2880
      %v2882 = vrot.slane %v2868, %v2881
      %v2883 = vcombine.low %v2859, %v2875
      %v2884 = vcombine.high %v2859, %v2875
      %v2885 = vcombine.low %v2866, %v2882
      %v2886 = vcombine.high %v2866, %v2882
      %v2887 = vcombine.low %v1839, %v1846
      %v2889 = vunpack.c.l.s4 1983009808
      %v2890 = vunpack.c.0.s8 %v2889
      %v2891 = vlaneseq
      %v2892 = vshrl.u32 %v2891, 7
      %v2893 = vsub.s32 %v2890, %v2892
      %v2894 = vrot.slane %v2887, %v2893
      %v2895 = vcombine.low %v1863, %v1864
      %v2897 = vunpack.c.l.s4 1983009808
      %v2898 = vunpack.c.0.s8 %v2897
      %v2899 = vlaneseq
      %v2900 = vshrl.u32 %v2899, 7
      %v2901 = vsub.s32 %v2898, %v2900
      %v2902 = vrot.slane %v2895, %v2901
      %v2903 = vcombine.low %v1855, %v1862
      %v2905 = vunpack.c.l.s4 1983009808
      %v2906 = vunpack.c.0.s8 %v2905
      %v2907 = vlaneseq
      %v2908 = vshrl.u32 %v2907, 7
      %v2909 = vsub.s32 %v2906, %v2908
      %v2910 = vrot.slane %v2903, %v2909
      %v2911 = vcombine.low %v1865, %v1866
      %v2913 = vunpack.c.l.s4 1983009808
      %v2914 = vunpack.c.0.s8 %v2913
      %v2915 = vlaneseq
      %v2916 = vshrl.u32 %v2915, 7
      %v2917 = vsub.s32 %v2914, %v2916
      %v2918 = vrot.slane %v2911, %v2917
      %v2919 = vcombine.low %v2894, %v2902
      %v2920 = vcombine.high %v2894, %v2902
      %v2922 = vunpack.c.l.s4 1934713408
      %v2923 = vunpack.c.0.s8 %v2922
      %v2924 = vlaneseq
      %v2925 = vshrl.u32 %v2924, 7
      %v2926 = vsub.s32 %v2923, %v2925
      %v2927 = vrot.slane %v2919, %v2926
      %v2929 = vunpack.c.l.s4 1934713408
      %v2930 = vunpack.c.0.s8 %v2929
      %v2931 = vlaneseq
      %v2932 = vshrl.u32 %v2931, 7
      %v2933 = vsub.s32 %v2930, %v2932
      %v2934 = vrot.slane %v2920, %v2933
      %v2935 = vcombine.low %v2910, %v2918
      %v2936 = vcombine.high %v2910, %v2918
      %v2938 = vunpack.c.l.s4 1934713408
      %v2939 = vunpack.c.0.s8 %v2938
      %v2940 = vlaneseq
      %v2941 = vshrl.u32 %v2940, 7
      %v2942 = vsub.s32 %v2939, %v2941
      %v2943 = vrot.slane %v2935, %v2942
      %v2945 = vunpack.c.l.s4 1934713408
      %v2946 = vunpack.c.0.s8 %v2945
      %v2947 = vlaneseq
      %v2948 = vshrl.u32 %v2947, 7
      %v2949 = vsub.s32 %v2946, %v2948
      %v2950 = vrot.slane %v2936, %v2949
      %v2951 = vcombine.low %v2927, %v2943
      %v2952 = vcombine.high %v2927, %v2943
      %v2953 = vcombine.low %v2934, %v2950
      %v2954 = vcombine.high %v2934, %v2950
      %v2955 = vcombine.low %v1907, %v1914
      %v2957 = vunpack.c.l.s4 1983009808
      %v2958 = vunpack.c.0.s8 %v2957
      %v2959 = vlaneseq
      %v2960 = vshrl.u32 %v2959, 7
      %v2961 = vsub.s32 %v2958, %v2960
      %v2962 = vrot.slane %v2955, %v2961
      %v2963 = vcombine.low %v1931, %v1932
      %v2965 = vunpack.c.l.s4 1983009808
      %v2966 = vunpack.c.0.s8 %v2965
      %v2967 = vlaneseq
      %v2968 = vshrl.u32 %v2967, 7
      %v2969 = vsub.s32 %v2966, %v2968
      %v2970 = vrot.slane %v2963, %v2969
      %v2971 = vcombine.low %v1923, %v1930
      %v2973 = vunpack.c.l.s4 1983009808
      %v2974 = vunpack.c.0.s8 %v2973
      %v2975 = vlaneseq
      %v2976 = vshrl.u32 %v2975, 7
      %v2977 = vsub.s32 %v2974, %v2976
      %v2978 = vrot.slane %v2971, %v2977
      %v2979 = vcombine.low %v1933, %v1934
      %v2981 = vunpack.c.l.s4 1983009808
      %v2982 = vunpack.c.0.s8 %v2981
      %v2983 = vlaneseq
      %v2984 = vshrl.u32 %v2983, 7
      %v2985 = vsub.s32 %v2982, %v2984
      %v2986 = vrot.slane %v2979, %v2985
      %v2987 = vcombine.low %v2962, %v2970
      %v2988 = vcombine.high %v2962, %v2970
      %v2990 = vunpack.c.l.s4 1934713408
      %v2991 = vunpack.c.0.s8 %v2990
      %v2992 = vlaneseq
      %v2993 = vshrl.u32 %v2992, 7
      %v2994 = vsub.s32 %v2991, %v2993
      %v2995 = vrot.slane %v2987, %v2994
      %v2997 = vunpack.c.l.s4 1934713408
      %v2998 = vunpack.c.0.s8 %v2997
      %v2999 = vlaneseq
      %v3000 = vshrl.u32 %v2999, 7
      %v3001 = vsub.s32 %v2998, %v3000
      %v3002 = vrot.slane %v2988, %v3001
      %v3003 = vcombine.low %v2978, %v2986
      %v3004 = vcombine.high %v2978, %v2986
      %v3006 = vunpack.c.l.s4 1934713408
      %v3007 = vunpack.c.0.s8 %v3006
      %v3008 = vlaneseq
      %v3009 = vshrl.u32 %v3008, 7
      %v3010 = vsub.s32 %v3007, %v3009
      %v3011 = vrot.slane %v3003, %v3010
      %v3013 = vunpack.c.l.s4 1934713408
      %v3014 = vunpack.c.0.s8 %v3013
      %v3015 = vlaneseq
      %v3016 = vshrl.u32 %v3015, 7
      %v3017 = vsub.s32 %v3014, %v3016
      %v3018 = vrot.slane %v3004, %v3017
      %v3019 = vcombine.low %v2995, %v3011
      %v3020 = vcombine.high %v2995, %v3011
      %v3021 = vcombine.low %v3002, %v3018
      %v3022 = vcombine.high %v3002, %v3018
      %v3023 = vpack.c.bf16 %v2067, %v1999
      %v3024 = vpack.c.bf16 %v2203, %v2135
      %v3025 = vpack.c.bf16 %v2339, %v2271
      %v3026 = vpack.c.bf16 %v2475, %v2407
      %v3027 = vpack.c.bf16 %v2611, %v2543
      %v3028 = vpack.c.bf16 %v2747, %v2679
      %v3029 = vpack.c.bf16 %v2883, %v2815
      %v3030 = vpack.c.bf16 %v3019, %v2951
      %v3031 = vpack.c.bf16 %v2068, %v2000
      %v3032 = vpack.c.bf16 %v2204, %v2136
      %v3033 = vpack.c.bf16 %v2340, %v2272
      %v3034 = vpack.c.bf16 %v2476, %v2408
      %v3035 = vpack.c.bf16 %v2612, %v2544
      %v3036 = vpack.c.bf16 %v2748, %v2680
      %v3037 = vpack.c.bf16 %v2884, %v2816
      %v3038 = vpack.c.bf16 %v3020, %v2952
      %v3039 = vpack.c.bf16 %v2069, %v2001
      %v3040 = vpack.c.bf16 %v2205, %v2137
      %v3041 = vpack.c.bf16 %v2341, %v2273
      %v3042 = vpack.c.bf16 %v2477, %v2409
      %v3043 = vpack.c.bf16 %v2613, %v2545
      %v3044 = vpack.c.bf16 %v2749, %v2681
      %v3045 = vpack.c.bf16 %v2885, %v2817
      %v3046 = vpack.c.bf16 %v3021, %v2953
      %v3047 = vpack.c.bf16 %v2070, %v2002
      %v3048 = vpack.c.bf16 %v2206, %v2138
      %v3049 = vpack.c.bf16 %v2342, %v2274
      %v3050 = vpack.c.bf16 %v2478, %v2410
      %v3051 = vpack.c.bf16 %v2614, %v2546
      %v3052 = vpack.c.bf16 %v2750, %v2682
      %v3053 = vpack.c.bf16 %v2886, %v2818
      %v3054 = vpack.c.bf16 %v3022, %v2954
      %3071 = vrot.lane.b32.xlu0 %v517, 120
      %v3072 = vpop.permute.xlu0 %3071
      %3073 = vrot.lane.b32.xlu0 %v518, 120
      %v3074 = vpop.permute.xlu0 %3073
      %3075 = vrot.lane.b32.xlu0 %v519, 120
      %v3076 = vpop.permute.xlu0 %3075
      %3077 = vrot.lane.b32.xlu0 %v520, 120
      %v3078 = vpop.permute.xlu0 %3077
      %3079 = vrot.lane.b32.xlu0 %v521, 120
      %v3080 = vpop.permute.xlu0 %3079
      %3081 = vrot.lane.b32.xlu0 %v522, 120
      %v3082 = vpop.permute.xlu0 %3081
      %3083 = vrot.lane.b32.xlu0 %v523, 120
      %v3084 = vpop.permute.xlu0 %3083
      %3085 = vrot.lane.b32.xlu0 %v524, 120
      %v3086 = vpop.permute.xlu0 %3085
      %3087 = vrot.lane.b32.xlu0 %v525, 120
      %v3088 = vpop.permute.xlu0 %3087
      %3089 = vrot.lane.b32.xlu0 %v526, 120
      %v3090 = vpop.permute.xlu0 %3089
      %3091 = vrot.lane.b32.xlu0 %v527, 120
      %v3092 = vpop.permute.xlu0 %3091
      %3093 = vrot.lane.b32.xlu0 %v528, 120
      %v3094 = vpop.permute.xlu0 %3093
      %3095 = vrot.lane.b32.xlu0 %v529, 120
      %v3096 = vpop.permute.xlu0 %3095
      %3097 = vrot.lane.b32.xlu0 %v530, 120
      %v3098 = vpop.permute.xlu0 %3097
      %3099 = vrot.lane.b32.xlu0 %v531, 120
      %v3100 = vpop.permute.xlu0 %3099
      %3101 = vrot.lane.b32.xlu0 %v532, 120
      %v3102 = vpop.permute.xlu0 %3101
      %3119 = vrot.lane.b32.xlu0 %v517, 112
      %v3120 = vpop.permute.xlu0 %3119
      %3121 = vrot.lane.b32.xlu0 %v518, 112
      %v3122 = vpop.permute.xlu0 %3121
      %3123 = vrot.lane.b32.xlu0 %v519, 112
      %v3124 = vpop.permute.xlu0 %3123
      %3125 = vrot.lane.b32.xlu0 %v520, 112
      %v3126 = vpop.permute.xlu0 %3125
      %3127 = vrot.lane.b32.xlu0 %v521, 112
      %v3128 = vpop.permute.xlu0 %3127
      %3129 = vrot.lane.b32.xlu0 %v522, 112
      %v3130 = vpop.permute.xlu0 %3129
      %3131 = vrot.lane.b32.xlu0 %v523, 112
      %v3132 = vpop.permute.xlu0 %3131
      %3133 = vrot.lane.b32.xlu0 %v524, 112
      %v3134 = vpop.permute.xlu0 %3133
      %3135 = vrot.lane.b32.xlu0 %v525, 112
      %v3136 = vpop.permute.xlu0 %3135
      %3137 = vrot.lane.b32.xlu0 %v526, 112
      %v3138 = vpop.permute.xlu0 %3137
      %3139 = vrot.lane.b32.xlu0 %v527, 112
      %v3140 = vpop.permute.xlu0 %3139
      %3141 = vrot.lane.b32.xlu0 %v528, 112
      %v3142 = vpop.permute.xlu0 %3141
      %3143 = vrot.lane.b32.xlu0 %v529, 112
      %v3144 = vpop.permute.xlu0 %3143
      %3145 = vrot.lane.b32.xlu0 %v530, 112
      %v3146 = vpop.permute.xlu0 %3145
      %3147 = vrot.lane.b32.xlu0 %v531, 112
      %v3148 = vpop.permute.xlu0 %3147
      %3149 = vrot.lane.b32.xlu0 %v532, 112
      %v3150 = vpop.permute.xlu0 %3149
      %3167 = vrot.lane.b32.xlu0 %v517, 104
      %v3168 = vpop.permute.xlu0 %3167
      %3169 = vrot.lane.b32.xlu0 %v518, 104
      %v3170 = vpop.permute.xlu0 %3169
      %3171 = vrot.lane.b32.xlu0 %v519, 104
      %v3172 = vpop.permute.xlu0 %3171
      %3173 = vrot.lane.b32.xlu0 %v520, 104
      %v3174 = vpop.permute.xlu0 %3173
      %3175 = vrot.lane.b32.xlu0 %v521, 104
      %v3176 = vpop.permute.xlu0 %3175
      %3177 = vrot.lane.b32.xlu0 %v522, 104
      %v3178 = vpop.permute.xlu0 %3177
      %3179 = vrot.lane.b32.xlu0 %v523, 104
      %v3180 = vpop.permute.xlu0 %3179
      %3181 = vrot.lane.b32.xlu0 %v524, 104
      %v3182 = vpop.permute.xlu0 %3181
      %3183 = vrot.lane.b32.xlu0 %v525, 104
      %v3184 = vpop.permute.xlu0 %3183
      %3185 = vrot.lane.b32.xlu0 %v526, 104
      %v3186 = vpop.permute.xlu0 %3185
      %3187 = vrot.lane.b32.xlu0 %v527, 104
      %v3188 = vpop.permute.xlu0 %3187
      %3189 = vrot.lane.b32.xlu0 %v528, 104
      %v3190 = vpop.permute.xlu0 %3189
      %3191 = vrot.lane.b32.xlu0 %v529, 104
      %v3192 = vpop.permute.xlu0 %3191
      %3193 = vrot.lane.b32.xlu0 %v530, 104
      %v3194 = vpop.permute.xlu0 %3193
      %3195 = vrot.lane.b32.xlu0 %v531, 104
      %v3196 = vpop.permute.xlu0 %3195
      %3197 = vrot.lane.b32.xlu0 %v532, 104
      %v3198 = vpop.permute.xlu0 %3197
      %v3215 = vcombine.low %v517, %v3120
      %v3216 = vcombine.high %v517, %v3120
      %v3218 = vunpack.c.l.s4 1983009808
      %v3219 = vunpack.c.0.s8 %v3218
      %v3220 = vlaneseq
      %v3221 = vshrl.u32 %v3220, 7
      %v3222 = vsub.s32 %v3219, %v3221
      %v3223 = vrot.slane %v3215, %v3222
      %v3225 = vunpack.c.l.s4 1983009808
      %v3226 = vunpack.c.0.s8 %v3225
      %v3227 = vlaneseq
      %v3228 = vshrl.u32 %v3227, 7
      %v3229 = vsub.s32 %v3226, %v3228
      %v3230 = vrot.slane %v3216, %v3229
      %v3231 = vcombine.low %v3072, %v3168
      %v3232 = vcombine.high %v3072, %v3168
      %v3234 = vunpack.c.l.s4 1983009808
      %v3235 = vunpack.c.0.s8 %v3234
      %v3236 = vlaneseq
      %v3237 = vshrl.u32 %v3236, 7
      %v3238 = vsub.s32 %v3235, %v3237
      %v3239 = vrot.slane %v3231, %v3238
      %v3241 = vunpack.c.l.s4 1983009808
      %v3242 = vunpack.c.0.s8 %v3241
      %v3243 = vlaneseq
      %v3244 = vshrl.u32 %v3243, 7
      %v3245 = vsub.s32 %v3242, %v3244
      %v3246 = vrot.slane %v3232, %v3245
      %v3247 = vcombine.low %v3223, %v3239
      %v3248 = vcombine.high %v3223, %v3239
      %v3250 = vunpack.c.l.s4 1934713408
      %v3251 = vunpack.c.0.s8 %v3250
      %v3252 = vlaneseq
      %v3253 = vshrl.u32 %v3252, 7
      %v3254 = vsub.s32 %v3251, %v3253
      %v3255 = vrot.slane %v3247, %v3254
      %v3257 = vunpack.c.l.s4 1934713408
      %v3258 = vunpack.c.0.s8 %v3257
      %v3259 = vlaneseq
      %v3260 = vshrl.u32 %v3259, 7
      %v3261 = vsub.s32 %v3258, %v3260
      %v3262 = vrot.slane %v3248, %v3261
      %v3263 = vcombine.low %v3230, %v3246
      %v3264 = vcombine.high %v3230, %v3246
      %v3266 = vunpack.c.l.s4 1934713408
      %v3267 = vunpack.c.0.s8 %v3266
      %v3268 = vlaneseq
      %v3269 = vshrl.u32 %v3268, 7
      %v3270 = vsub.s32 %v3267, %v3269
      %v3271 = vrot.slane %v3263, %v3270
      %v3273 = vunpack.c.l.s4 1934713408
      %v3274 = vunpack.c.0.s8 %v3273
      %v3275 = vlaneseq
      %v3276 = vshrl.u32 %v3275, 7
      %v3277 = vsub.s32 %v3274, %v3276
      %v3278 = vrot.slane %v3264, %v3277
      %v3279 = vcombine.high %v3255, 0.0
      %v3280 = vcombine.high %v3262, 0.0
      %v3281 = vcombine.high %v3271, 0.0
      %v3282 = vcombine.high %v3278, 0.0
      %v3283 = vcombine.low %v518, %v3122
      %v3284 = vcombine.high %v518, %v3122
      %v3286 = vunpack.c.l.s4 1983009808
      %v3287 = vunpack.c.0.s8 %v3286
      %v3288 = vlaneseq
      %v3289 = vshrl.u32 %v3288, 7
      %v3290 = vsub.s32 %v3287, %v3289
      %v3291 = vrot.slane %v3283, %v3290
      %v3293 = vunpack.c.l.s4 1983009808
      %v3294 = vunpack.c.0.s8 %v3293
      %v3295 = vlaneseq
      %v3296 = vshrl.u32 %v3295, 7
      %v3297 = vsub.s32 %v3294, %v3296
      %v3298 = vrot.slane %v3284, %v3297
      %v3299 = vcombine.low %v3074, %v3170
      %v3300 = vcombine.high %v3074, %v3170
      %v3302 = vunpack.c.l.s4 1983009808
      %v3303 = vunpack.c.0.s8 %v3302
      %v3304 = vlaneseq
      %v3305 = vshrl.u32 %v3304, 7
      %v3306 = vsub.s32 %v3303, %v3305
      %v3307 = vrot.slane %v3299, %v3306
      %v3309 = vunpack.c.l.s4 1983009808
      %v3310 = vunpack.c.0.s8 %v3309
      %v3311 = vlaneseq
      %v3312 = vshrl.u32 %v3311, 7
      %v3313 = vsub.s32 %v3310, %v3312
      %v3314 = vrot.slane %v3300, %v3313
      %v3315 = vcombine.low %v3291, %v3307
      %v3316 = vcombine.high %v3291, %v3307
      %v3318 = vunpack.c.l.s4 1934713408
      %v3319 = vunpack.c.0.s8 %v3318
      %v3320 = vlaneseq
      %v3321 = vshrl.u32 %v3320, 7
      %v3322 = vsub.s32 %v3319, %v3321
      %v3323 = vrot.slane %v3315, %v3322
      %v3325 = vunpack.c.l.s4 1934713408
      %v3326 = vunpack.c.0.s8 %v3325
      %v3327 = vlaneseq
      %v3328 = vshrl.u32 %v3327, 7
      %v3329 = vsub.s32 %v3326, %v3328
      %v3330 = vrot.slane %v3316, %v3329
      %v3331 = vcombine.low %v3298, %v3314
      %v3332 = vcombine.high %v3298, %v3314
      %v3334 = vunpack.c.l.s4 1934713408
      %v3335 = vunpack.c.0.s8 %v3334
      %v3336 = vlaneseq
      %v3337 = vshrl.u32 %v3336, 7
      %v3338 = vsub.s32 %v3335, %v3337
      %v3339 = vrot.slane %v3331, %v3338
      %v3341 = vunpack.c.l.s4 1934713408
      %v3342 = vunpack.c.0.s8 %v3341
      %v3343 = vlaneseq
      %v3344 = vshrl.u32 %v3343, 7
      %v3345 = vsub.s32 %v3342, %v3344
      %v3346 = vrot.slane %v3332, %v3345
      %v3347 = vcombine.high %v3323, 0.0
      %v3348 = vcombine.high %v3330, 0.0
      %v3349 = vcombine.high %v3339, 0.0
      %v3350 = vcombine.high %v3346, 0.0
      %v3351 = vcombine.low %v519, %v3124
      %v3352 = vcombine.high %v519, %v3124
      %v3354 = vunpack.c.l.s4 1983009808
      %v3355 = vunpack.c.0.s8 %v3354
      %v3356 = vlaneseq
      %v3357 = vshrl.u32 %v3356, 7
      %v3358 = vsub.s32 %v3355, %v3357
      %v3359 = vrot.slane %v3351, %v3358
      %v3361 = vunpack.c.l.s4 1983009808
      %v3362 = vunpack.c.0.s8 %v3361
      %v3363 = vlaneseq
      %v3364 = vshrl.u32 %v3363, 7
      %v3365 = vsub.s32 %v3362, %v3364
      %v3366 = vrot.slane %v3352, %v3365
      %v3367 = vcombine.low %v3076, %v3172
      %v3368 = vcombine.high %v3076, %v3172
      %v3370 = vunpack.c.l.s4 1983009808
      %v3371 = vunpack.c.0.s8 %v3370
      %v3372 = vlaneseq
      %v3373 = vshrl.u32 %v3372, 7
      %v3374 = vsub.s32 %v3371, %v3373
      %v3375 = vrot.slane %v3367, %v3374
      %v3377 = vunpack.c.l.s4 1983009808
      %v3378 = vunpack.c.0.s8 %v3377
      %v3379 = vlaneseq
      %v3380 = vshrl.u32 %v3379, 7
      %v3381 = vsub.s32 %v3378, %v3380
      %v3382 = vrot.slane %v3368, %v3381
      %v3383 = vcombine.low %v3359, %v3375
      %v3384 = vcombine.high %v3359, %v3375
      %v3386 = vunpack.c.l.s4 1934713408
      %v3387 = vunpack.c.0.s8 %v3386
      %v3388 = vlaneseq
      %v3389 = vshrl.u32 %v3388, 7
      %v3390 = vsub.s32 %v3387, %v3389
      %v3391 = vrot.slane %v3383, %v3390
      %v3393 = vunpack.c.l.s4 1934713408
      %v3394 = vunpack.c.0.s8 %v3393
      %v3395 = vlaneseq
      %v3396 = vshrl.u32 %v3395, 7
      %v3397 = vsub.s32 %v3394, %v3396
      %v3398 = vrot.slane %v3384, %v3397
      %v3399 = vcombine.low %v3366, %v3382
      %v3400 = vcombine.high %v3366, %v3382
      %v3402 = vunpack.c.l.s4 1934713408
      %v3403 = vunpack.c.0.s8 %v3402
      %v3404 = vlaneseq
      %v3405 = vshrl.u32 %v3404, 7
      %v3406 = vsub.s32 %v3403, %v3405
      %v3407 = vrot.slane %v3399, %v3406
      %v3409 = vunpack.c.l.s4 1934713408
      %v3410 = vunpack.c.0.s8 %v3409
      %v3411 = vlaneseq
      %v3412 = vshrl.u32 %v3411, 7
      %v3413 = vsub.s32 %v3410, %v3412
      %v3414 = vrot.slane %v3400, %v3413
      %v3415 = vcombine.high %v3391, 0.0
      %v3416 = vcombine.high %v3398, 0.0
      %v3417 = vcombine.high %v3407, 0.0
      %v3418 = vcombine.high %v3414, 0.0
      %v3419 = vcombine.low %v520, %v3126
      %v3420 = vcombine.high %v520, %v3126
      %v3422 = vunpack.c.l.s4 1983009808
      %v3423 = vunpack.c.0.s8 %v3422
      %v3424 = vlaneseq
      %v3425 = vshrl.u32 %v3424, 7
      %v3426 = vsub.s32 %v3423, %v3425
      %v3427 = vrot.slane %v3419, %v3426
      %v3429 = vunpack.c.l.s4 1983009808
      %v3430 = vunpack.c.0.s8 %v3429
      %v3431 = vlaneseq
      %v3432 = vshrl.u32 %v3431, 7
      %v3433 = vsub.s32 %v3430, %v3432
      %v3434 = vrot.slane %v3420, %v3433
      %v3435 = vcombine.low %v3078, %v3174
      %v3436 = vcombine.high %v3078, %v3174
      %v3438 = vunpack.c.l.s4 1983009808
      %v3439 = vunpack.c.0.s8 %v3438
      %v3440 = vlaneseq
      %v3441 = vshrl.u32 %v3440, 7
      %v3442 = vsub.s32 %v3439, %v3441
      %v3443 = vrot.slane %v3435, %v3442
      %v3445 = vunpack.c.l.s4 1983009808
      %v3446 = vunpack.c.0.s8 %v3445
      %v3447 = vlaneseq
      %v3448 = vshrl.u32 %v3447, 7
      %v3449 = vsub.s32 %v3446, %v3448
      %v3450 = vrot.slane %v3436, %v3449
      %v3451 = vcombine.low %v3427, %v3443
      %v3452 = vcombine.high %v3427, %v3443
      %v3454 = vunpack.c.l.s4 1934713408
      %v3455 = vunpack.c.0.s8 %v3454
      %v3456 = vlaneseq
      %v3457 = vshrl.u32 %v3456, 7
      %v3458 = vsub.s32 %v3455, %v3457
      %v3459 = vrot.slane %v3451, %v3458
      %v3461 = vunpack.c.l.s4 1934713408
      %v3462 = vunpack.c.0.s8 %v3461
      %v3463 = vlaneseq
      %v3464 = vshrl.u32 %v3463, 7
      %v3465 = vsub.s32 %v3462, %v3464
      %v3466 = vrot.slane %v3452, %v3465
      %v3467 = vcombine.low %v3434, %v3450
      %v3468 = vcombine.high %v3434, %v3450
      %v3470 = vunpack.c.l.s4 1934713408
      %v3471 = vunpack.c.0.s8 %v3470
      %v3472 = vlaneseq
      %v3473 = vshrl.u32 %v3472, 7
      %v3474 = vsub.s32 %v3471, %v3473
      %v3475 = vrot.slane %v3467, %v3474
      %v3477 = vunpack.c.l.s4 1934713408
      %v3478 = vunpack.c.0.s8 %v3477
      %v3479 = vlaneseq
      %v3480 = vshrl.u32 %v3479, 7
      %v3481 = vsub.s32 %v3478, %v3480
      %v3482 = vrot.slane %v3468, %v3481
      %v3483 = vcombine.high %v3459, 0.0
      %v3484 = vcombine.high %v3466, 0.0
      %v3485 = vcombine.high %v3475, 0.0
      %v3486 = vcombine.high %v3482, 0.0
      %v3487 = vcombine.low %v521, %v3128
      %v3488 = vcombine.high %v521, %v3128
      %v3490 = vunpack.c.l.s4 1983009808
      %v3491 = vunpack.c.0.s8 %v3490
      %v3492 = vlaneseq
      %v3493 = vshrl.u32 %v3492, 7
      %v3494 = vsub.s32 %v3491, %v3493
      %v3495 = vrot.slane %v3487, %v3494
      %v3497 = vunpack.c.l.s4 1983009808
      %v3498 = vunpack.c.0.s8 %v3497
      %v3499 = vlaneseq
      %v3500 = vshrl.u32 %v3499, 7
      %v3501 = vsub.s32 %v3498, %v3500
      %v3502 = vrot.slane %v3488, %v3501
      %v3503 = vcombine.low %v3080, %v3176
      %v3504 = vcombine.high %v3080, %v3176
      %v3506 = vunpack.c.l.s4 1983009808
      %v3507 = vunpack.c.0.s8 %v3506
      %v3508 = vlaneseq
      %v3509 = vshrl.u32 %v3508, 7
      %v3510 = vsub.s32 %v3507, %v3509
      %v3511 = vrot.slane %v3503, %v3510
      %v3513 = vunpack.c.l.s4 1983009808
      %v3514 = vunpack.c.0.s8 %v3513
      %v3515 = vlaneseq
      %v3516 = vshrl.u32 %v3515, 7
      %v3517 = vsub.s32 %v3514, %v3516
      %v3518 = vrot.slane %v3504, %v3517
      %v3519 = vcombine.low %v3495, %v3511
      %v3520 = vcombine.high %v3495, %v3511
      %v3522 = vunpack.c.l.s4 1934713408
      %v3523 = vunpack.c.0.s8 %v3522
      %v3524 = vlaneseq
      %v3525 = vshrl.u32 %v3524, 7
      %v3526 = vsub.s32 %v3523, %v3525
      %v3527 = vrot.slane %v3519, %v3526
      %v3529 = vunpack.c.l.s4 1934713408
      %v3530 = vunpack.c.0.s8 %v3529
      %v3531 = vlaneseq
      %v3532 = vshrl.u32 %v3531, 7
      %v3533 = vsub.s32 %v3530, %v3532
      %v3534 = vrot.slane %v3520, %v3533
      %v3535 = vcombine.low %v3502, %v3518
      %v3536 = vcombine.high %v3502, %v3518
      %v3538 = vunpack.c.l.s4 1934713408
      %v3539 = vunpack.c.0.s8 %v3538
      %v3540 = vlaneseq
      %v3541 = vshrl.u32 %v3540, 7
      %v3542 = vsub.s32 %v3539, %v3541
      %v3543 = vrot.slane %v3535, %v3542
      %v3545 = vunpack.c.l.s4 1934713408
      %v3546 = vunpack.c.0.s8 %v3545
      %v3547 = vlaneseq
      %v3548 = vshrl.u32 %v3547, 7
      %v3549 = vsub.s32 %v3546, %v3548
      %v3550 = vrot.slane %v3536, %v3549
      %v3551 = vcombine.high %v3527, 0.0
      %v3552 = vcombine.high %v3534, 0.0
      %v3553 = vcombine.high %v3543, 0.0
      %v3554 = vcombine.high %v3550, 0.0
      %v3555 = vcombine.low %v522, %v3130
      %v3556 = vcombine.high %v522, %v3130
      %v3558 = vunpack.c.l.s4 1983009808
      %v3559 = vunpack.c.0.s8 %v3558
      %v3560 = vlaneseq
      %v3561 = vshrl.u32 %v3560, 7
      %v3562 = vsub.s32 %v3559, %v3561
      %v3563 = vrot.slane %v3555, %v3562
      %v3565 = vunpack.c.l.s4 1983009808
      %v3566 = vunpack.c.0.s8 %v3565
      %v3567 = vlaneseq
      %v3568 = vshrl.u32 %v3567, 7
      %v3569 = vsub.s32 %v3566, %v3568
      %v3570 = vrot.slane %v3556, %v3569
      %v3571 = vcombine.low %v3082, %v3178
      %v3572 = vcombine.high %v3082, %v3178
      %v3574 = vunpack.c.l.s4 1983009808
      %v3575 = vunpack.c.0.s8 %v3574
      %v3576 = vlaneseq
      %v3577 = vshrl.u32 %v3576, 7
      %v3578 = vsub.s32 %v3575, %v3577
      %v3579 = vrot.slane %v3571, %v3578
      %v3581 = vunpack.c.l.s4 1983009808
      %v3582 = vunpack.c.0.s8 %v3581
      %v3583 = vlaneseq
      %v3584 = vshrl.u32 %v3583, 7
      %v3585 = vsub.s32 %v3582, %v3584
      %v3586 = vrot.slane %v3572, %v3585
      %v3587 = vcombine.low %v3563, %v3579
      %v3588 = vcombine.high %v3563, %v3579
      %v3590 = vunpack.c.l.s4 1934713408
      %v3591 = vunpack.c.0.s8 %v3590
      %v3592 = vlaneseq
      %v3593 = vshrl.u32 %v3592, 7
      %v3594 = vsub.s32 %v3591, %v3593
      %v3595 = vrot.slane %v3587, %v3594
      %v3597 = vunpack.c.l.s4 1934713408
      %v3598 = vunpack.c.0.s8 %v3597
      %v3599 = vlaneseq
      %v3600 = vshrl.u32 %v3599, 7
      %v3601 = vsub.s32 %v3598, %v3600
      %v3602 = vrot.slane %v3588, %v3601
      %v3603 = vcombine.low %v3570, %v3586
      %v3604 = vcombine.high %v3570, %v3586
      %v3606 = vunpack.c.l.s4 1934713408
      %v3607 = vunpack.c.0.s8 %v3606
      %v3608 = vlaneseq
      %v3609 = vshrl.u32 %v3608, 7
      %v3610 = vsub.s32 %v3607, %v3609
      %v3611 = vrot.slane %v3603, %v3610
      %v3613 = vunpack.c.l.s4 1934713408
      %v3614 = vunpack.c.0.s8 %v3613
      %v3615 = vlaneseq
      %v3616 = vshrl.u32 %v3615, 7
      %v3617 = vsub.s32 %v3614, %v3616
      %v3618 = vrot.slane %v3604, %v3617
      %v3619 = vcombine.high %v3595, 0.0
      %v3620 = vcombine.high %v3602, 0.0
      %v3621 = vcombine.high %v3611, 0.0
      %v3622 = vcombine.high %v3618, 0.0
      %v3623 = vcombine.low %v523, %v3132
      %v3624 = vcombine.high %v523, %v3132
      %v3626 = vunpack.c.l.s4 1983009808
      %v3627 = vunpack.c.0.s8 %v3626
      %v3628 = vlaneseq
      %v3629 = vshrl.u32 %v3628, 7
      %v3630 = vsub.s32 %v3627, %v3629
      %v3631 = vrot.slane %v3623, %v3630
      %v3633 = vunpack.c.l.s4 1983009808
      %v3634 = vunpack.c.0.s8 %v3633
      %v3635 = vlaneseq
      %v3636 = vshrl.u32 %v3635, 7
      %v3637 = vsub.s32 %v3634, %v3636
      %v3638 = vrot.slane %v3624, %v3637
      %v3639 = vcombine.low %v3084, %v3180
      %v3640 = vcombine.high %v3084, %v3180
      %v3642 = vunpack.c.l.s4 1983009808
      %v3643 = vunpack.c.0.s8 %v3642
      %v3644 = vlaneseq
      %v3645 = vshrl.u32 %v3644, 7
      %v3646 = vsub.s32 %v3643, %v3645
      %v3647 = vrot.slane %v3639, %v3646
      %v3649 = vunpack.c.l.s4 1983009808
      %v3650 = vunpack.c.0.s8 %v3649
      %v3651 = vlaneseq
      %v3652 = vshrl.u32 %v3651, 7
      %v3653 = vsub.s32 %v3650, %v3652
      %v3654 = vrot.slane %v3640, %v3653
      %v3655 = vcombine.low %v3631, %v3647
      %v3656 = vcombine.high %v3631, %v3647
      %v3658 = vunpack.c.l.s4 1934713408
      %v3659 = vunpack.c.0.s8 %v3658
      %v3660 = vlaneseq
      %v3661 = vshrl.u32 %v3660, 7
      %v3662 = vsub.s32 %v3659, %v3661
      %v3663 = vrot.slane %v3655, %v3662
      %v3665 = vunpack.c.l.s4 1934713408
      %v3666 = vunpack.c.0.s8 %v3665
      %v3667 = vlaneseq
      %v3668 = vshrl.u32 %v3667, 7
      %v3669 = vsub.s32 %v3666, %v3668
      %v3670 = vrot.slane %v3656, %v3669
      %v3671 = vcombine.low %v3638, %v3654
      %v3672 = vcombine.high %v3638, %v3654
      %v3674 = vunpack.c.l.s4 1934713408
      %v3675 = vunpack.c.0.s8 %v3674
      %v3676 = vlaneseq
      %v3677 = vshrl.u32 %v3676, 7
      %v3678 = vsub.s32 %v3675, %v3677
      %v3679 = vrot.slane %v3671, %v3678
      %v3681 = vunpack.c.l.s4 1934713408
      %v3682 = vunpack.c.0.s8 %v3681
      %v3683 = vlaneseq
      %v3684 = vshrl.u32 %v3683, 7
      %v3685 = vsub.s32 %v3682, %v3684
      %v3686 = vrot.slane %v3672, %v3685
      %v3687 = vcombine.high %v3663, 0.0
      %v3688 = vcombine.high %v3670, 0.0
      %v3689 = vcombine.high %v3679, 0.0
      %v3690 = vcombine.high %v3686, 0.0
      %v3691 = vcombine.low %v524, %v3134
      %v3692 = vcombine.high %v524, %v3134
      %v3694 = vunpack.c.l.s4 1983009808
      %v3695 = vunpack.c.0.s8 %v3694
      %v3696 = vlaneseq
      %v3697 = vshrl.u32 %v3696, 7
      %v3698 = vsub.s32 %v3695, %v3697
      %v3699 = vrot.slane %v3691, %v3698
      %v3701 = vunpack.c.l.s4 1983009808
      %v3702 = vunpack.c.0.s8 %v3701
      %v3703 = vlaneseq
      %v3704 = vshrl.u32 %v3703, 7
      %v3705 = vsub.s32 %v3702, %v3704
      %v3706 = vrot.slane %v3692, %v3705
      %v3707 = vcombine.low %v3086, %v3182
      %v3708 = vcombine.high %v3086, %v3182
      %v3710 = vunpack.c.l.s4 1983009808
      %v3711 = vunpack.c.0.s8 %v3710
      %v3712 = vlaneseq
      %v3713 = vshrl.u32 %v3712, 7
      %v3714 = vsub.s32 %v3711, %v3713
      %v3715 = vrot.slane %v3707, %v3714
      %v3717 = vunpack.c.l.s4 1983009808
      %v3718 = vunpack.c.0.s8 %v3717
      %v3719 = vlaneseq
      %v3720 = vshrl.u32 %v3719, 7
      %v3721 = vsub.s32 %v3718, %v3720
      %v3722 = vrot.slane %v3708, %v3721
      %v3723 = vcombine.low %v3699, %v3715
      %v3724 = vcombine.high %v3699, %v3715
      %v3726 = vunpack.c.l.s4 1934713408
      %v3727 = vunpack.c.0.s8 %v3726
      %v3728 = vlaneseq
      %v3729 = vshrl.u32 %v3728, 7
      %v3730 = vsub.s32 %v3727, %v3729
      %v3731 = vrot.slane %v3723, %v3730
      %v3733 = vunpack.c.l.s4 1934713408
      %v3734 = vunpack.c.0.s8 %v3733
      %v3735 = vlaneseq
      %v3736 = vshrl.u32 %v3735, 7
      %v3737 = vsub.s32 %v3734, %v3736
      %v3738 = vrot.slane %v3724, %v3737
      %v3739 = vcombine.low %v3706, %v3722
      %v3740 = vcombine.high %v3706, %v3722
      %v3742 = vunpack.c.l.s4 1934713408
      %v3743 = vunpack.c.0.s8 %v3742
      %v3744 = vlaneseq
      %v3745 = vshrl.u32 %v3744, 7
      %v3746 = vsub.s32 %v3743, %v3745
      %v3747 = vrot.slane %v3739, %v3746
      %v3749 = vunpack.c.l.s4 1934713408
      %v3750 = vunpack.c.0.s8 %v3749
      %v3751 = vlaneseq
      %v3752 = vshrl.u32 %v3751, 7
      %v3753 = vsub.s32 %v3750, %v3752
      %v3754 = vrot.slane %v3740, %v3753
      %v3755 = vcombine.high %v3731, 0.0
      %v3756 = vcombine.high %v3738, 0.0
      %v3757 = vcombine.high %v3747, 0.0
      %v3758 = vcombine.high %v3754, 0.0
      %v3759 = vcombine.low %v525, %v3136
      %v3760 = vcombine.high %v525, %v3136
      %v3762 = vunpack.c.l.s4 1983009808
      %v3763 = vunpack.c.0.s8 %v3762
      %v3764 = vlaneseq
      %v3765 = vshrl.u32 %v3764, 7
      %v3766 = vsub.s32 %v3763, %v3765
      %v3767 = vrot.slane %v3759, %v3766
      %v3769 = vunpack.c.l.s4 1983009808
      %v3770 = vunpack.c.0.s8 %v3769
      %v3771 = vlaneseq
      %v3772 = vshrl.u32 %v3771, 7
      %v3773 = vsub.s32 %v3770, %v3772
      %v3774 = vrot.slane %v3760, %v3773
      %v3775 = vcombine.low %v3088, %v3184
      %v3776 = vcombine.high %v3088, %v3184
      %v3778 = vunpack.c.l.s4 1983009808
      %v3779 = vunpack.c.0.s8 %v3778
      %v3780 = vlaneseq
      %v3781 = vshrl.u32 %v3780, 7
      %v3782 = vsub.s32 %v3779, %v3781
      %v3783 = vrot.slane %v3775, %v3782
      %v3785 = vunpack.c.l.s4 1983009808
      %v3786 = vunpack.c.0.s8 %v3785
      %v3787 = vlaneseq
      %v3788 = vshrl.u32 %v3787, 7
      %v3789 = vsub.s32 %v3786, %v3788
      %v3790 = vrot.slane %v3776, %v3789
      %v3791 = vcombine.low %v3767, %v3783
      %v3792 = vcombine.high %v3767, %v3783
      %v3794 = vunpack.c.l.s4 1934713408
      %v3795 = vunpack.c.0.s8 %v3794
      %v3796 = vlaneseq
      %v3797 = vshrl.u32 %v3796, 7
      %v3798 = vsub.s32 %v3795, %v3797
      %v3799 = vrot.slane %v3791, %v3798
      %v3801 = vunpack.c.l.s4 1934713408
      %v3802 = vunpack.c.0.s8 %v3801
      %v3803 = vlaneseq
      %v3804 = vshrl.u32 %v3803, 7
      %v3805 = vsub.s32 %v3802, %v3804
      %v3806 = vrot.slane %v3792, %v3805
      %v3807 = vcombine.low %v3774, %v3790
      %v3808 = vcombine.high %v3774, %v3790
      %v3810 = vunpack.c.l.s4 1934713408
      %v3811 = vunpack.c.0.s8 %v3810
      %v3812 = vlaneseq
      %v3813 = vshrl.u32 %v3812, 7
      %v3814 = vsub.s32 %v3811, %v3813
      %v3815 = vrot.slane %v3807, %v3814
      %v3817 = vunpack.c.l.s4 1934713408
      %v3818 = vunpack.c.0.s8 %v3817
      %v3819 = vlaneseq
      %v3820 = vshrl.u32 %v3819, 7
      %v3821 = vsub.s32 %v3818, %v3820
      %v3822 = vrot.slane %v3808, %v3821
      %v3823 = vcombine.high %v3799, 0.0
      %v3824 = vcombine.high %v3806, 0.0
      %v3825 = vcombine.high %v3815, 0.0
      %v3826 = vcombine.high %v3822, 0.0
      %v3827 = vcombine.low %v526, %v3138
      %v3828 = vcombine.high %v526, %v3138
      %v3830 = vunpack.c.l.s4 1983009808
      %v3831 = vunpack.c.0.s8 %v3830
      %v3832 = vlaneseq
      %v3833 = vshrl.u32 %v3832, 7
      %v3834 = vsub.s32 %v3831, %v3833
      %v3835 = vrot.slane %v3827, %v3834
      %v3837 = vunpack.c.l.s4 1983009808
      %v3838 = vunpack.c.0.s8 %v3837
      %v3839 = vlaneseq
      %v3840 = vshrl.u32 %v3839, 7
      %v3841 = vsub.s32 %v3838, %v3840
      %v3842 = vrot.slane %v3828, %v3841
      %v3843 = vcombine.low %v3090, %v3186
      %v3844 = vcombine.high %v3090, %v3186
      %v3846 = vunpack.c.l.s4 1983009808
      %v3847 = vunpack.c.0.s8 %v3846
      %v3848 = vlaneseq
      %v3849 = vshrl.u32 %v3848, 7
      %v3850 = vsub.s32 %v3847, %v3849
      %v3851 = vrot.slane %v3843, %v3850
      %v3853 = vunpack.c.l.s4 1983009808
      %v3854 = vunpack.c.0.s8 %v3853
      %v3855 = vlaneseq
      %v3856 = vshrl.u32 %v3855, 7
      %v3857 = vsub.s32 %v3854, %v3856
      %v3858 = vrot.slane %v3844, %v3857
      %v3859 = vcombine.low %v3835, %v3851
      %v3860 = vcombine.high %v3835, %v3851
      %v3862 = vunpack.c.l.s4 1934713408
      %v3863 = vunpack.c.0.s8 %v3862
      %v3864 = vlaneseq
      %v3865 = vshrl.u32 %v3864, 7
      %v3866 = vsub.s32 %v3863, %v3865
      %v3867 = vrot.slane %v3859, %v3866
      %v3869 = vunpack.c.l.s4 1934713408
      %v3870 = vunpack.c.0.s8 %v3869
      %v3871 = vlaneseq
      %v3872 = vshrl.u32 %v3871, 7
      %v3873 = vsub.s32 %v3870, %v3872
      %v3874 = vrot.slane %v3860, %v3873
      %v3875 = vcombine.low %v3842, %v3858
      %v3876 = vcombine.high %v3842, %v3858
      %v3878 = vunpack.c.l.s4 1934713408
      %v3879 = vunpack.c.0.s8 %v3878
      %v3880 = vlaneseq
      %v3881 = vshrl.u32 %v3880, 7
      %v3882 = vsub.s32 %v3879, %v3881
      %v3883 = vrot.slane %v3875, %v3882
      %v3885 = vunpack.c.l.s4 1934713408
      %v3886 = vunpack.c.0.s8 %v3885
      %v3887 = vlaneseq
      %v3888 = vshrl.u32 %v3887, 7
      %v3889 = vsub.s32 %v3886, %v3888
      %v3890 = vrot.slane %v3876, %v3889
      %v3891 = vcombine.high %v3867, 0.0
      %v3892 = vcombine.high %v3874, 0.0
      %v3893 = vcombine.high %v3883, 0.0
      %v3894 = vcombine.high %v3890, 0.0
      %v3895 = vcombine.low %v527, %v3140
      %v3896 = vcombine.high %v527, %v3140
      %v3898 = vunpack.c.l.s4 1983009808
      %v3899 = vunpack.c.0.s8 %v3898
      %v3900 = vlaneseq
      %v3901 = vshrl.u32 %v3900, 7
      %v3902 = vsub.s32 %v3899, %v3901
      %v3903 = vrot.slane %v3895, %v3902
      %v3905 = vunpack.c.l.s4 1983009808
      %v3906 = vunpack.c.0.s8 %v3905
      %v3907 = vlaneseq
      %v3908 = vshrl.u32 %v3907, 7
      %v3909 = vsub.s32 %v3906, %v3908
      %v3910 = vrot.slane %v3896, %v3909
      %v3911 = vcombine.low %v3092, %v3188
      %v3912 = vcombine.high %v3092, %v3188
      %v3914 = vunpack.c.l.s4 1983009808
      %v3915 = vunpack.c.0.s8 %v3914
      %v3916 = vlaneseq
      %v3917 = vshrl.u32 %v3916, 7
      %v3918 = vsub.s32 %v3915, %v3917
      %v3919 = vrot.slane %v3911, %v3918
      %v3921 = vunpack.c.l.s4 1983009808
      %v3922 = vunpack.c.0.s8 %v3921
      %v3923 = vlaneseq
      %v3924 = vshrl.u32 %v3923, 7
      %v3925 = vsub.s32 %v3922, %v3924
      %v3926 = vrot.slane %v3912, %v3925
      %v3927 = vcombine.low %v3903, %v3919
      %v3928 = vcombine.high %v3903, %v3919
      %v3930 = vunpack.c.l.s4 1934713408
      %v3931 = vunpack.c.0.s8 %v3930
      %v3932 = vlaneseq
      %v3933 = vshrl.u32 %v3932, 7
      %v3934 = vsub.s32 %v3931, %v3933
      %v3935 = vrot.slane %v3927, %v3934
      %v3937 = vunpack.c.l.s4 1934713408
      %v3938 = vunpack.c.0.s8 %v3937
      %v3939 = vlaneseq
      %v3940 = vshrl.u32 %v3939, 7
      %v3941 = vsub.s32 %v3938, %v3940
      %v3942 = vrot.slane %v3928, %v3941
      %v3943 = vcombine.low %v3910, %v3926
      %v3944 = vcombine.high %v3910, %v3926
      %v3946 = vunpack.c.l.s4 1934713408
      %v3947 = vunpack.c.0.s8 %v3946
      %v3948 = vlaneseq
      %v3949 = vshrl.u32 %v3948, 7
      %v3950 = vsub.s32 %v3947, %v3949
      %v3951 = vrot.slane %v3943, %v3950
      %v3953 = vunpack.c.l.s4 1934713408
      %v3954 = vunpack.c.0.s8 %v3953
      %v3955 = vlaneseq
      %v3956 = vshrl.u32 %v3955, 7
      %v3957 = vsub.s32 %v3954, %v3956
      %v3958 = vrot.slane %v3944, %v3957
      %v3959 = vcombine.high %v3935, 0.0
      %v3960 = vcombine.high %v3942, 0.0
      %v3961 = vcombine.high %v3951, 0.0
      %v3962 = vcombine.high %v3958, 0.0
      %v3963 = vcombine.low %v528, %v3142
      %v3964 = vcombine.high %v528, %v3142
      %v3966 = vunpack.c.l.s4 1983009808
      %v3967 = vunpack.c.0.s8 %v3966
      %v3968 = vlaneseq
      %v3969 = vshrl.u32 %v3968, 7
      %v3970 = vsub.s32 %v3967, %v3969
      %v3971 = vrot.slane %v3963, %v3970
      %v3973 = vunpack.c.l.s4 1983009808
      %v3974 = vunpack.c.0.s8 %v3973
      %v3975 = vlaneseq
      %v3976 = vshrl.u32 %v3975, 7
      %v3977 = vsub.s32 %v3974, %v3976
      %v3978 = vrot.slane %v3964, %v3977
      %v3979 = vcombine.low %v3094, %v3190
      %v3980 = vcombine.high %v3094, %v3190
      %v3982 = vunpack.c.l.s4 1983009808
      %v3983 = vunpack.c.0.s8 %v3982
      %v3984 = vlaneseq
      %v3985 = vshrl.u32 %v3984, 7
      %v3986 = vsub.s32 %v3983, %v3985
      %v3987 = vrot.slane %v3979, %v3986
      %v3989 = vunpack.c.l.s4 1983009808
      %v3990 = vunpack.c.0.s8 %v3989
      %v3991 = vlaneseq
      %v3992 = vshrl.u32 %v3991, 7
      %v3993 = vsub.s32 %v3990, %v3992
      %v3994 = vrot.slane %v3980, %v3993
      %v3995 = vcombine.low %v3971, %v3987
      %v3996 = vcombine.high %v3971, %v3987
      %v3998 = vunpack.c.l.s4 1934713408
      %v3999 = vunpack.c.0.s8 %v3998
      %v4000 = vlaneseq
      %v4001 = vshrl.u32 %v4000, 7
      %v4002 = vsub.s32 %v3999, %v4001
      %v4003 = vrot.slane %v3995, %v4002
      %v4005 = vunpack.c.l.s4 1934713408
      %v4006 = vunpack.c.0.s8 %v4005
      %v4007 = vlaneseq
      %v4008 = vshrl.u32 %v4007, 7
      %v4009 = vsub.s32 %v4006, %v4008
      %v4010 = vrot.slane %v3996, %v4009
      %v4011 = vcombine.low %v3978, %v3994
      %v4012 = vcombine.high %v3978, %v3994
      %v4014 = vunpack.c.l.s4 1934713408
      %v4015 = vunpack.c.0.s8 %v4014
      %v4016 = vlaneseq
      %v4017 = vshrl.u32 %v4016, 7
      %v4018 = vsub.s32 %v4015, %v4017
      %v4019 = vrot.slane %v4011, %v4018
      %v4021 = vunpack.c.l.s4 1934713408
      %v4022 = vunpack.c.0.s8 %v4021
      %v4023 = vlaneseq
      %v4024 = vshrl.u32 %v4023, 7
      %v4025 = vsub.s32 %v4022, %v4024
      %v4026 = vrot.slane %v4012, %v4025
      %v4027 = vcombine.high %v4003, 0.0
      %v4028 = vcombine.high %v4010, 0.0
      %v4029 = vcombine.high %v4019, 0.0
      %v4030 = vcombine.high %v4026, 0.0
      %v4031 = vcombine.low %v529, %v3144
      %v4032 = vcombine.high %v529, %v3144
      %v4034 = vunpack.c.l.s4 1983009808
      %v4035 = vunpack.c.0.s8 %v4034
      %v4036 = vlaneseq
      %v4037 = vshrl.u32 %v4036, 7
      %v4038 = vsub.s32 %v4035, %v4037
      %v4039 = vrot.slane %v4031, %v4038
      %v4041 = vunpack.c.l.s4 1983009808
      %v4042 = vunpack.c.0.s8 %v4041
      %v4043 = vlaneseq
      %v4044 = vshrl.u32 %v4043, 7
      %v4045 = vsub.s32 %v4042, %v4044
      %v4046 = vrot.slane %v4032, %v4045
      %v4047 = vcombine.low %v3096, %v3192
      %v4048 = vcombine.high %v3096, %v3192
      %v4050 = vunpack.c.l.s4 1983009808
      %v4051 = vunpack.c.0.s8 %v4050
      %v4052 = vlaneseq
      %v4053 = vshrl.u32 %v4052, 7
      %v4054 = vsub.s32 %v4051, %v4053
      %v4055 = vrot.slane %v4047, %v4054
      %v4057 = vunpack.c.l.s4 1983009808
      %v4058 = vunpack.c.0.s8 %v4057
      %v4059 = vlaneseq
      %v4060 = vshrl.u32 %v4059, 7
      %v4061 = vsub.s32 %v4058, %v4060
      %v4062 = vrot.slane %v4048, %v4061
      %v4063 = vcombine.low %v4039, %v4055
      %v4064 = vcombine.high %v4039, %v4055
      %v4066 = vunpack.c.l.s4 1934713408
      %v4067 = vunpack.c.0.s8 %v4066
      %v4068 = vlaneseq
      %v4069 = vshrl.u32 %v4068, 7
      %v4070 = vsub.s32 %v4067, %v4069
      %v4071 = vrot.slane %v4063, %v4070
      %v4073 = vunpack.c.l.s4 1934713408
      %v4074 = vunpack.c.0.s8 %v4073
      %v4075 = vlaneseq
      %v4076 = vshrl.u32 %v4075, 7
      %v4077 = vsub.s32 %v4074, %v4076
      %v4078 = vrot.slane %v4064, %v4077
      %v4079 = vcombine.low %v4046, %v4062
      %v4080 = vcombine.high %v4046, %v4062
      %v4082 = vunpack.c.l.s4 1934713408
      %v4083 = vunpack.c.0.s8 %v4082
      %v4084 = vlaneseq
      %v4085 = vshrl.u32 %v4084, 7
      %v4086 = vsub.s32 %v4083, %v4085
      %v4087 = vrot.slane %v4079, %v4086
      %v4089 = vunpack.c.l.s4 1934713408
      %v4090 = vunpack.c.0.s8 %v4089
      %v4091 = vlaneseq
      %v4092 = vshrl.u32 %v4091, 7
      %v4093 = vsub.s32 %v4090, %v4092
      %v4094 = vrot.slane %v4080, %v4093
      %v4095 = vcombine.high %v4071, 0.0
      %v4096 = vcombine.high %v4078, 0.0
      %v4097 = vcombine.high %v4087, 0.0
      %v4098 = vcombine.high %v4094, 0.0
      %v4099 = vcombine.low %v530, %v3146
      %v4100 = vcombine.high %v530, %v3146
      %v4102 = vunpack.c.l.s4 1983009808
      %v4103 = vunpack.c.0.s8 %v4102
      %v4104 = vlaneseq
      %v4105 = vshrl.u32 %v4104, 7
      %v4106 = vsub.s32 %v4103, %v4105
      %v4107 = vrot.slane %v4099, %v4106
      %v4109 = vunpack.c.l.s4 1983009808
      %v4110 = vunpack.c.0.s8 %v4109
      %v4111 = vlaneseq
      %v4112 = vshrl.u32 %v4111, 7
      %v4113 = vsub.s32 %v4110, %v4112
      %v4114 = vrot.slane %v4100, %v4113
      %v4115 = vcombine.low %v3098, %v3194
      %v4116 = vcombine.high %v3098, %v3194
      %v4118 = vunpack.c.l.s4 1983009808
      %v4119 = vunpack.c.0.s8 %v4118
      %v4120 = vlaneseq
      %v4121 = vshrl.u32 %v4120, 7
      %v4122 = vsub.s32 %v4119, %v4121
      %v4123 = vrot.slane %v4115, %v4122
      %v4125 = vunpack.c.l.s4 1983009808
      %v4126 = vunpack.c.0.s8 %v4125
      %v4127 = vlaneseq
      %v4128 = vshrl.u32 %v4127, 7
      %v4129 = vsub.s32 %v4126, %v4128
      %v4130 = vrot.slane %v4116, %v4129
      %v4131 = vcombine.low %v4107, %v4123
      %v4132 = vcombine.high %v4107, %v4123
      %v4134 = vunpack.c.l.s4 1934713408
      %v4135 = vunpack.c.0.s8 %v4134
      %v4136 = vlaneseq
      %v4137 = vshrl.u32 %v4136, 7
      %v4138 = vsub.s32 %v4135, %v4137
      %v4139 = vrot.slane %v4131, %v4138
      %v4141 = vunpack.c.l.s4 1934713408
      %v4142 = vunpack.c.0.s8 %v4141
      %v4143 = vlaneseq
      %v4144 = vshrl.u32 %v4143, 7
      %v4145 = vsub.s32 %v4142, %v4144
      %v4146 = vrot.slane %v4132, %v4145
      %v4147 = vcombine.low %v4114, %v4130
      %v4148 = vcombine.high %v4114, %v4130
      %v4150 = vunpack.c.l.s4 1934713408
      %v4151 = vunpack.c.0.s8 %v4150
      %v4152 = vlaneseq
      %v4153 = vshrl.u32 %v4152, 7
      %v4154 = vsub.s32 %v4151, %v4153
      %v4155 = vrot.slane %v4147, %v4154
      %v4157 = vunpack.c.l.s4 1934713408
      %v4158 = vunpack.c.0.s8 %v4157
      %v4159 = vlaneseq
      %v4160 = vshrl.u32 %v4159, 7
      %v4161 = vsub.s32 %v4158, %v4160
      %v4162 = vrot.slane %v4148, %v4161
      %v4163 = vcombine.high %v4139, 0.0
      %v4164 = vcombine.high %v4146, 0.0
      %v4165 = vcombine.high %v4155, 0.0
      %v4166 = vcombine.high %v4162, 0.0
      %v4167 = vcombine.low %v531, %v3148
      %v4168 = vcombine.high %v531, %v3148
      %v4170 = vunpack.c.l.s4 1983009808
      %v4171 = vunpack.c.0.s8 %v4170
      %v4172 = vlaneseq
      %v4173 = vshrl.u32 %v4172, 7
      %v4174 = vsub.s32 %v4171, %v4173
      %v4175 = vrot.slane %v4167, %v4174
      %v4177 = vunpack.c.l.s4 1983009808
      %v4178 = vunpack.c.0.s8 %v4177
      %v4179 = vlaneseq
      %v4180 = vshrl.u32 %v4179, 7
      %v4181 = vsub.s32 %v4178, %v4180
      %v4182 = vrot.slane %v4168, %v4181
      %v4183 = vcombine.low %v3100, %v3196
      %v4184 = vcombine.high %v3100, %v3196
      %v4186 = vunpack.c.l.s4 1983009808
      %v4187 = vunpack.c.0.s8 %v4186
      %v4188 = vlaneseq
      %v4189 = vshrl.u32 %v4188, 7
      %v4190 = vsub.s32 %v4187, %v4189
      %v4191 = vrot.slane %v4183, %v4190
      %v4193 = vunpack.c.l.s4 1983009808
      %v4194 = vunpack.c.0.s8 %v4193
      %v4195 = vlaneseq
      %v4196 = vshrl.u32 %v4195, 7
      %v4197 = vsub.s32 %v4194, %v4196
      %v4198 = vrot.slane %v4184, %v4197
      %v4199 = vcombine.low %v4175, %v4191
      %v4200 = vcombine.high %v4175, %v4191
      %v4202 = vunpack.c.l.s4 1934713408
      %v4203 = vunpack.c.0.s8 %v4202
      %v4204 = vlaneseq
      %v4205 = vshrl.u32 %v4204, 7
      %v4206 = vsub.s32 %v4203, %v4205
      %v4207 = vrot.slane %v4199, %v4206
      %v4209 = vunpack.c.l.s4 1934713408
      %v4210 = vunpack.c.0.s8 %v4209
      %v4211 = vlaneseq
      %v4212 = vshrl.u32 %v4211, 7
      %v4213 = vsub.s32 %v4210, %v4212
      %v4214 = vrot.slane %v4200, %v4213
      %v4215 = vcombine.low %v4182, %v4198
      %v4216 = vcombine.high %v4182, %v4198
      %v4218 = vunpack.c.l.s4 1934713408
      %v4219 = vunpack.c.0.s8 %v4218
      %v4220 = vlaneseq
      %v4221 = vshrl.u32 %v4220, 7
      %v4222 = vsub.s32 %v4219, %v4221
      %v4223 = vrot.slane %v4215, %v4222
      %v4225 = vunpack.c.l.s4 1934713408
      %v4226 = vunpack.c.0.s8 %v4225
      %v4227 = vlaneseq
      %v4228 = vshrl.u32 %v4227, 7
      %v4229 = vsub.s32 %v4226, %v4228
      %v4230 = vrot.slane %v4216, %v4229
      %v4231 = vcombine.high %v4207, 0.0
      %v4232 = vcombine.high %v4214, 0.0
      %v4233 = vcombine.high %v4223, 0.0
      %v4234 = vcombine.high %v4230, 0.0
      %v4235 = vcombine.low %v532, %v3150
      %v4236 = vcombine.high %v532, %v3150
      %v4238 = vunpack.c.l.s4 1983009808
      %v4239 = vunpack.c.0.s8 %v4238
      %v4240 = vlaneseq
      %v4241 = vshrl.u32 %v4240, 7
      %v4242 = vsub.s32 %v4239, %v4241
      %v4243 = vrot.slane %v4235, %v4242
      %v4245 = vunpack.c.l.s4 1983009808
      %v4246 = vunpack.c.0.s8 %v4245
      %v4247 = vlaneseq
      %v4248 = vshrl.u32 %v4247, 7
      %v4249 = vsub.s32 %v4246, %v4248
      %v4250 = vrot.slane %v4236, %v4249
      %v4251 = vcombine.low %v3102, %v3198
      %v4252 = vcombine.high %v3102, %v3198
      %v4254 = vunpack.c.l.s4 1983009808
      %v4255 = vunpack.c.0.s8 %v4254
      %v4256 = vlaneseq
      %v4257 = vshrl.u32 %v4256, 7
      %v4258 = vsub.s32 %v4255, %v4257
      %v4259 = vrot.slane %v4251, %v4258
      %v4261 = vunpack.c.l.s4 1983009808
      %v4262 = vunpack.c.0.s8 %v4261
      %v4263 = vlaneseq
      %v4264 = vshrl.u32 %v4263, 7
      %v4265 = vsub.s32 %v4262, %v4264
      %v4266 = vrot.slane %v4252, %v4265
      %v4267 = vcombine.low %v4243, %v4259
      %v4268 = vcombine.high %v4243, %v4259
      %v4270 = vunpack.c.l.s4 1934713408
      %v4271 = vunpack.c.0.s8 %v4270
      %v4272 = vlaneseq
      %v4273 = vshrl.u32 %v4272, 7
      %v4274 = vsub.s32 %v4271, %v4273
      %v4275 = vrot.slane %v4267, %v4274
      %v4277 = vunpack.c.l.s4 1934713408
      %v4278 = vunpack.c.0.s8 %v4277
      %v4279 = vlaneseq
      %v4280 = vshrl.u32 %v4279, 7
      %v4281 = vsub.s32 %v4278, %v4280
      %v4282 = vrot.slane %v4268, %v4281
      %v4283 = vcombine.low %v4250, %v4266
      %v4284 = vcombine.high %v4250, %v4266
      %v4286 = vunpack.c.l.s4 1934713408
      %v4287 = vunpack.c.0.s8 %v4286
      %v4288 = vlaneseq
      %v4289 = vshrl.u32 %v4288, 7
      %v4290 = vsub.s32 %v4287, %v4289
      %v4291 = vrot.slane %v4283, %v4290
      %v4293 = vunpack.c.l.s4 1934713408
      %v4294 = vunpack.c.0.s8 %v4293
      %v4295 = vlaneseq
      %v4296 = vshrl.u32 %v4295, 7
      %v4297 = vsub.s32 %v4294, %v4296
      %v4298 = vrot.slane %v4284, %v4297
      %v4299 = vcombine.high %v4275, 0.0
      %v4300 = vcombine.high %v4282, 0.0
      %v4301 = vcombine.high %v4291, 0.0
      %v4302 = vcombine.high %v4298, 0.0
      %v4303 = vcombine.low %v3255, %v3262
      %v4305 = vunpack.c.l.s4 1983009808
      %v4306 = vunpack.c.0.s8 %v4305
      %v4307 = vlaneseq
      %v4308 = vshrl.u32 %v4307, 7
      %v4309 = vsub.s32 %v4306, %v4308
      %v4310 = vrot.slane %v4303, %v4309
      %v4311 = vcombine.low %v3279, %v3280
      %v4313 = vunpack.c.l.s4 1983009808
      %v4314 = vunpack.c.0.s8 %v4313
      %v4315 = vlaneseq
      %v4316 = vshrl.u32 %v4315, 7
      %v4317 = vsub.s32 %v4314, %v4316
      %v4318 = vrot.slane %v4311, %v4317
      %v4319 = vcombine.low %v3271, %v3278
      %v4321 = vunpack.c.l.s4 1983009808
      %v4322 = vunpack.c.0.s8 %v4321
      %v4323 = vlaneseq
      %v4324 = vshrl.u32 %v4323, 7
      %v4325 = vsub.s32 %v4322, %v4324
      %v4326 = vrot.slane %v4319, %v4325
      %v4327 = vcombine.low %v3281, %v3282
      %v4329 = vunpack.c.l.s4 1983009808
      %v4330 = vunpack.c.0.s8 %v4329
      %v4331 = vlaneseq
      %v4332 = vshrl.u32 %v4331, 7
      %v4333 = vsub.s32 %v4330, %v4332
      %v4334 = vrot.slane %v4327, %v4333
      %v4335 = vcombine.low %v4310, %v4318
      %v4336 = vcombine.high %v4310, %v4318
      %v4338 = vunpack.c.l.s4 1934713408
      %v4339 = vunpack.c.0.s8 %v4338
      %v4340 = vlaneseq
      %v4341 = vshrl.u32 %v4340, 7
      %v4342 = vsub.s32 %v4339, %v4341
      %v4343 = vrot.slane %v4335, %v4342
      %v4345 = vunpack.c.l.s4 1934713408
      %v4346 = vunpack.c.0.s8 %v4345
      %v4347 = vlaneseq
      %v4348 = vshrl.u32 %v4347, 7
      %v4349 = vsub.s32 %v4346, %v4348
      %v4350 = vrot.slane %v4336, %v4349
      %v4351 = vcombine.low %v4326, %v4334
      %v4352 = vcombine.high %v4326, %v4334
      %v4354 = vunpack.c.l.s4 1934713408
      %v4355 = vunpack.c.0.s8 %v4354
      %v4356 = vlaneseq
      %v4357 = vshrl.u32 %v4356, 7
      %v4358 = vsub.s32 %v4355, %v4357
      %v4359 = vrot.slane %v4351, %v4358
      %v4361 = vunpack.c.l.s4 1934713408
      %v4362 = vunpack.c.0.s8 %v4361
      %v4363 = vlaneseq
      %v4364 = vshrl.u32 %v4363, 7
      %v4365 = vsub.s32 %v4362, %v4364
      %v4366 = vrot.slane %v4352, %v4365
      %v4367 = vcombine.low %v4343, %v4359
      %v4368 = vcombine.high %v4343, %v4359
      %v4369 = vcombine.low %v4350, %v4366
      %v4370 = vcombine.high %v4350, %v4366
      %v4371 = vcombine.low %v3323, %v3330
      %v4373 = vunpack.c.l.s4 1983009808
      %v4374 = vunpack.c.0.s8 %v4373
      %v4375 = vlaneseq
      %v4376 = vshrl.u32 %v4375, 7
      %v4377 = vsub.s32 %v4374, %v4376
      %v4378 = vrot.slane %v4371, %v4377
      %v4379 = vcombine.low %v3347, %v3348
      %v4381 = vunpack.c.l.s4 1983009808
      %v4382 = vunpack.c.0.s8 %v4381
      %v4383 = vlaneseq
      %v4384 = vshrl.u32 %v4383, 7
      %v4385 = vsub.s32 %v4382, %v4384
      %v4386 = vrot.slane %v4379, %v4385
      %v4387 = vcombine.low %v3339, %v3346
      %v4389 = vunpack.c.l.s4 1983009808
      %v4390 = vunpack.c.0.s8 %v4389
      %v4391 = vlaneseq
      %v4392 = vshrl.u32 %v4391, 7
      %v4393 = vsub.s32 %v4390, %v4392
      %v4394 = vrot.slane %v4387, %v4393
      %v4395 = vcombine.low %v3349, %v3350
      %v4397 = vunpack.c.l.s4 1983009808
      %v4398 = vunpack.c.0.s8 %v4397
      %v4399 = vlaneseq
      %v4400 = vshrl.u32 %v4399, 7
      %v4401 = vsub.s32 %v4398, %v4400
      %v4402 = vrot.slane %v4395, %v4401
      %v4403 = vcombine.low %v4378, %v4386
      %v4404 = vcombine.high %v4378, %v4386
      %v4406 = vunpack.c.l.s4 1934713408
      %v4407 = vunpack.c.0.s8 %v4406
      %v4408 = vlaneseq
      %v4409 = vshrl.u32 %v4408, 7
      %v4410 = vsub.s32 %v4407, %v4409
      %v4411 = vrot.slane %v4403, %v4410
      %v4413 = vunpack.c.l.s4 1934713408
      %v4414 = vunpack.c.0.s8 %v4413
      %v4415 = vlaneseq
      %v4416 = vshrl.u32 %v4415, 7
      %v4417 = vsub.s32 %v4414, %v4416
      %v4418 = vrot.slane %v4404, %v4417
      %v4419 = vcombine.low %v4394, %v4402
      %v4420 = vcombine.high %v4394, %v4402
      %v4422 = vunpack.c.l.s4 1934713408
      %v4423 = vunpack.c.0.s8 %v4422
      %v4424 = vlaneseq
      %v4425 = vshrl.u32 %v4424, 7
      %v4426 = vsub.s32 %v4423, %v4425
      %v4427 = vrot.slane %v4419, %v4426
      %v4429 = vunpack.c.l.s4 1934713408
      %v4430 = vunpack.c.0.s8 %v4429
      %v4431 = vlaneseq
      %v4432 = vshrl.u32 %v4431, 7
      %v4433 = vsub.s32 %v4430, %v4432
      %v4434 = vrot.slane %v4420, %v4433
      %v4435 = vcombine.low %v4411, %v4427
      %v4436 = vcombine.high %v4411, %v4427
      %v4437 = vcombine.low %v4418, %v4434
      %v4438 = vcombine.high %v4418, %v4434
      %v4439 = vcombine.low %v3391, %v3398
      %v4441 = vunpack.c.l.s4 1983009808
      %v4442 = vunpack.c.0.s8 %v4441
      %v4443 = vlaneseq
      %v4444 = vshrl.u32 %v4443, 7
      %v4445 = vsub.s32 %v4442, %v4444
      %v4446 = vrot.slane %v4439, %v4445
      %v4447 = vcombine.low %v3415, %v3416
      %v4449 = vunpack.c.l.s4 1983009808
      %v4450 = vunpack.c.0.s8 %v4449
      %v4451 = vlaneseq
      %v4452 = vshrl.u32 %v4451, 7
      %v4453 = vsub.s32 %v4450, %v4452
      %v4454 = vrot.slane %v4447, %v4453
      %v4455 = vcombine.low %v3407, %v3414
      %v4457 = vunpack.c.l.s4 1983009808
      %v4458 = vunpack.c.0.s8 %v4457
      %v4459 = vlaneseq
      %v4460 = vshrl.u32 %v4459, 7
      %v4461 = vsub.s32 %v4458, %v4460
      %v4462 = vrot.slane %v4455, %v4461
      %v4463 = vcombine.low %v3417, %v3418
      %v4465 = vunpack.c.l.s4 1983009808
      %v4466 = vunpack.c.0.s8 %v4465
      %v4467 = vlaneseq
      %v4468 = vshrl.u32 %v4467, 7
      %v4469 = vsub.s32 %v4466, %v4468
      %v4470 = vrot.slane %v4463, %v4469
      %v4471 = vcombine.low %v4446, %v4454
      %v4472 = vcombine.high %v4446, %v4454
      %v4474 = vunpack.c.l.s4 1934713408
      %v4475 = vunpack.c.0.s8 %v4474
      %v4476 = vlaneseq
      %v4477 = vshrl.u32 %v4476, 7
      %v4478 = vsub.s32 %v4475, %v4477
      %v4479 = vrot.slane %v4471, %v4478
      %v4481 = vunpack.c.l.s4 1934713408
      %v4482 = vunpack.c.0.s8 %v4481
      %v4483 = vlaneseq
      %v4484 = vshrl.u32 %v4483, 7
      %v4485 = vsub.s32 %v4482, %v4484
      %v4486 = vrot.slane %v4472, %v4485
      %v4487 = vcombine.low %v4462, %v4470
      %v4488 = vcombine.high %v4462, %v4470
      %v4490 = vunpack.c.l.s4 1934713408
      %v4491 = vunpack.c.0.s8 %v4490
      %v4492 = vlaneseq
      %v4493 = vshrl.u32 %v4492, 7
      %v4494 = vsub.s32 %v4491, %v4493
      %v4495 = vrot.slane %v4487, %v4494
      %v4497 = vunpack.c.l.s4 1934713408
      %v4498 = vunpack.c.0.s8 %v4497
      %v4499 = vlaneseq
      %v4500 = vshrl.u32 %v4499, 7
      %v4501 = vsub.s32 %v4498, %v4500
      %v4502 = vrot.slane %v4488, %v4501
      %v4503 = vcombine.low %v4479, %v4495
      %v4504 = vcombine.high %v4479, %v4495
      %v4505 = vcombine.low %v4486, %v4502
      %v4506 = vcombine.high %v4486, %v4502
      %v4507 = vcombine.low %v3459, %v3466
      %v4509 = vunpack.c.l.s4 1983009808
      %v4510 = vunpack.c.0.s8 %v4509
      %v4511 = vlaneseq
      %v4512 = vshrl.u32 %v4511, 7
      %v4513 = vsub.s32 %v4510, %v4512
      %v4514 = vrot.slane %v4507, %v4513
      %v4515 = vcombine.low %v3483, %v3484
      %v4517 = vunpack.c.l.s4 1983009808
      %v4518 = vunpack.c.0.s8 %v4517
      %v4519 = vlaneseq
      %v4520 = vshrl.u32 %v4519, 7
      %v4521 = vsub.s32 %v4518, %v4520
      %v4522 = vrot.slane %v4515, %v4521
      %v4523 = vcombine.low %v3475, %v3482
      %v4525 = vunpack.c.l.s4 1983009808
      %v4526 = vunpack.c.0.s8 %v4525
      %v4527 = vlaneseq
      %v4528 = vshrl.u32 %v4527, 7
      %v4529 = vsub.s32 %v4526, %v4528
      %v4530 = vrot.slane %v4523, %v4529
      %v4531 = vcombine.low %v3485, %v3486
      %v4533 = vunpack.c.l.s4 1983009808
      %v4534 = vunpack.c.0.s8 %v4533
      %v4535 = vlaneseq
      %v4536 = vshrl.u32 %v4535, 7
      %v4537 = vsub.s32 %v4534, %v4536
      %v4538 = vrot.slane %v4531, %v4537
      %v4539 = vcombine.low %v4514, %v4522
      %v4540 = vcombine.high %v4514, %v4522
      %v4542 = vunpack.c.l.s4 1934713408
      %v4543 = vunpack.c.0.s8 %v4542
      %v4544 = vlaneseq
      %v4545 = vshrl.u32 %v4544, 7
      %v4546 = vsub.s32 %v4543, %v4545
      %v4547 = vrot.slane %v4539, %v4546
      %v4549 = vunpack.c.l.s4 1934713408
      %v4550 = vunpack.c.0.s8 %v4549
      %v4551 = vlaneseq
      %v4552 = vshrl.u32 %v4551, 7
      %v4553 = vsub.s32 %v4550, %v4552
      %v4554 = vrot.slane %v4540, %v4553
      %v4555 = vcombine.low %v4530, %v4538
      %v4556 = vcombine.high %v4530, %v4538
      %v4558 = vunpack.c.l.s4 1934713408
      %v4559 = vunpack.c.0.s8 %v4558
      %v4560 = vlaneseq
      %v4561 = vshrl.u32 %v4560, 7
      %v4562 = vsub.s32 %v4559, %v4561
      %v4563 = vrot.slane %v4555, %v4562
      %v4565 = vunpack.c.l.s4 1934713408
      %v4566 = vunpack.c.0.s8 %v4565
      %v4567 = vlaneseq
      %v4568 = vshrl.u32 %v4567, 7
      %v4569 = vsub.s32 %v4566, %v4568
      %v4570 = vrot.slane %v4556, %v4569
      %v4571 = vcombine.low %v4547, %v4563
      %v4572 = vcombine.high %v4547, %v4563
      %v4573 = vcombine.low %v4554, %v4570
      %v4574 = vcombine.high %v4554, %v4570
      %v4575 = vcombine.low %v3527, %v3534
      %v4577 = vunpack.c.l.s4 1983009808
      %v4578 = vunpack.c.0.s8 %v4577
      %v4579 = vlaneseq
      %v4580 = vshrl.u32 %v4579, 7
      %v4581 = vsub.s32 %v4578, %v4580
      %v4582 = vrot.slane %v4575, %v4581
      %v4583 = vcombine.low %v3551, %v3552
      %v4585 = vunpack.c.l.s4 1983009808
      %v4586 = vunpack.c.0.s8 %v4585
      %v4587 = vlaneseq
      %v4588 = vshrl.u32 %v4587, 7
      %v4589 = vsub.s32 %v4586, %v4588
      %v4590 = vrot.slane %v4583, %v4589
      %v4591 = vcombine.low %v3543, %v3550
      %v4593 = vunpack.c.l.s4 1983009808
      %v4594 = vunpack.c.0.s8 %v4593
      %v4595 = vlaneseq
      %v4596 = vshrl.u32 %v4595, 7
      %v4597 = vsub.s32 %v4594, %v4596
      %v4598 = vrot.slane %v4591, %v4597
      %v4599 = vcombine.low %v3553, %v3554
      %v4601 = vunpack.c.l.s4 1983009808
      %v4602 = vunpack.c.0.s8 %v4601
      %v4603 = vlaneseq
      %v4604 = vshrl.u32 %v4603, 7
      %v4605 = vsub.s32 %v4602, %v4604
      %v4606 = vrot.slane %v4599, %v4605
      %v4607 = vcombine.low %v4582, %v4590
      %v4608 = vcombine.high %v4582, %v4590
      %v4610 = vunpack.c.l.s4 1934713408
      %v4611 = vunpack.c.0.s8 %v4610
      %v4612 = vlaneseq
      %v4613 = vshrl.u32 %v4612, 7
      %v4614 = vsub.s32 %v4611, %v4613
      %v4615 = vrot.slane %v4607, %v4614
      %v4617 = vunpack.c.l.s4 1934713408
      %v4618 = vunpack.c.0.s8 %v4617
      %v4619 = vlaneseq
      %v4620 = vshrl.u32 %v4619, 7
      %v4621 = vsub.s32 %v4618, %v4620
      %v4622 = vrot.slane %v4608, %v4621
      %v4623 = vcombine.low %v4598, %v4606
      %v4624 = vcombine.high %v4598, %v4606
      %v4626 = vunpack.c.l.s4 1934713408
      %v4627 = vunpack.c.0.s8 %v4626
      %v4628 = vlaneseq
      %v4629 = vshrl.u32 %v4628, 7
      %v4630 = vsub.s32 %v4627, %v4629
      %v4631 = vrot.slane %v4623, %v4630
      %v4633 = vunpack.c.l.s4 1934713408
      %v4634 = vunpack.c.0.s8 %v4633
      %v4635 = vlaneseq
      %v4636 = vshrl.u32 %v4635, 7
      %v4637 = vsub.s32 %v4634, %v4636
      %v4638 = vrot.slane %v4624, %v4637
      %v4639 = vcombine.low %v4615, %v4631
      %v4640 = vcombine.high %v4615, %v4631
      %v4641 = vcombine.low %v4622, %v4638
      %v4642 = vcombine.high %v4622, %v4638
      %v4643 = vcombine.low %v3595, %v3602
      %v4645 = vunpack.c.l.s4 1983009808
      %v4646 = vunpack.c.0.s8 %v4645
      %v4647 = vlaneseq
      %v4648 = vshrl.u32 %v4647, 7
      %v4649 = vsub.s32 %v4646, %v4648
      %v4650 = vrot.slane %v4643, %v4649
      %v4651 = vcombine.low %v3619, %v3620
      %v4653 = vunpack.c.l.s4 1983009808
      %v4654 = vunpack.c.0.s8 %v4653
      %v4655 = vlaneseq
      %v4656 = vshrl.u32 %v4655, 7
      %v4657 = vsub.s32 %v4654, %v4656
      %v4658 = vrot.slane %v4651, %v4657
      %v4659 = vcombine.low %v3611, %v3618
      %v4661 = vunpack.c.l.s4 1983009808
      %v4662 = vunpack.c.0.s8 %v4661
      %v4663 = vlaneseq
      %v4664 = vshrl.u32 %v4663, 7
      %v4665 = vsub.s32 %v4662, %v4664
      %v4666 = vrot.slane %v4659, %v4665
      %v4667 = vcombine.low %v3621, %v3622
      %v4669 = vunpack.c.l.s4 1983009808
      %v4670 = vunpack.c.0.s8 %v4669
      %v4671 = vlaneseq
      %v4672 = vshrl.u32 %v4671, 7
      %v4673 = vsub.s32 %v4670, %v4672
      %v4674 = vrot.slane %v4667, %v4673
      %v4675 = vcombine.low %v4650, %v4658
      %v4676 = vcombine.high %v4650, %v4658
      %v4678 = vunpack.c.l.s4 1934713408
      %v4679 = vunpack.c.0.s8 %v4678
      %v4680 = vlaneseq
      %v4681 = vshrl.u32 %v4680, 7
      %v4682 = vsub.s32 %v4679, %v4681
      %v4683 = vrot.slane %v4675, %v4682
      %v4685 = vunpack.c.l.s4 1934713408
      %v4686 = vunpack.c.0.s8 %v4685
      %v4687 = vlaneseq
      %v4688 = vshrl.u32 %v4687, 7
      %v4689 = vsub.s32 %v4686, %v4688
      %v4690 = vrot.slane %v4676, %v4689
      %v4691 = vcombine.low %v4666, %v4674
      %v4692 = vcombine.high %v4666, %v4674
      %v4694 = vunpack.c.l.s4 1934713408
      %v4695 = vunpack.c.0.s8 %v4694
      %v4696 = vlaneseq
      %v4697 = vshrl.u32 %v4696, 7
      %v4698 = vsub.s32 %v4695, %v4697
      %v4699 = vrot.slane %v4691, %v4698
      %v4701 = vunpack.c.l.s4 1934713408
      %v4702 = vunpack.c.0.s8 %v4701
      %v4703 = vlaneseq
      %v4704 = vshrl.u32 %v4703, 7
      %v4705 = vsub.s32 %v4702, %v4704
      %v4706 = vrot.slane %v4692, %v4705
      %v4707 = vcombine.low %v4683, %v4699
      %v4708 = vcombine.high %v4683, %v4699
      %v4709 = vcombine.low %v4690, %v4706
      %v4710 = vcombine.high %v4690, %v4706
      %v4711 = vcombine.low %v3663, %v3670
      %v4713 = vunpack.c.l.s4 1983009808
      %v4714 = vunpack.c.0.s8 %v4713
      %v4715 = vlaneseq
      %v4716 = vshrl.u32 %v4715, 7
      %v4717 = vsub.s32 %v4714, %v4716
      %v4718 = vrot.slane %v4711, %v4717
      %v4719 = vcombine.low %v3687, %v3688
      %v4721 = vunpack.c.l.s4 1983009808
      %v4722 = vunpack.c.0.s8 %v4721
      %v4723 = vlaneseq
      %v4724 = vshrl.u32 %v4723, 7
      %v4725 = vsub.s32 %v4722, %v4724
      %v4726 = vrot.slane %v4719, %v4725
      %v4727 = vcombine.low %v3679, %v3686
      %v4729 = vunpack.c.l.s4 1983009808
      %v4730 = vunpack.c.0.s8 %v4729
      %v4731 = vlaneseq
      %v4732 = vshrl.u32 %v4731, 7
      %v4733 = vsub.s32 %v4730, %v4732
      %v4734 = vrot.slane %v4727, %v4733
      %v4735 = vcombine.low %v3689, %v3690
      %v4737 = vunpack.c.l.s4 1983009808
      %v4738 = vunpack.c.0.s8 %v4737
      %v4739 = vlaneseq
      %v4740 = vshrl.u32 %v4739, 7
      %v4741 = vsub.s32 %v4738, %v4740
      %v4742 = vrot.slane %v4735, %v4741
      %v4743 = vcombine.low %v4718, %v4726
      %v4744 = vcombine.high %v4718, %v4726
      %v4746 = vunpack.c.l.s4 1934713408
      %v4747 = vunpack.c.0.s8 %v4746
      %v4748 = vlaneseq
      %v4749 = vshrl.u32 %v4748, 7
      %v4750 = vsub.s32 %v4747, %v4749
      %v4751 = vrot.slane %v4743, %v4750
      %v4753 = vunpack.c.l.s4 1934713408
      %v4754 = vunpack.c.0.s8 %v4753
      %v4755 = vlaneseq
      %v4756 = vshrl.u32 %v4755, 7
      %v4757 = vsub.s32 %v4754, %v4756
      %v4758 = vrot.slane %v4744, %v4757
      %v4759 = vcombine.low %v4734, %v4742
      %v4760 = vcombine.high %v4734, %v4742
      %v4762 = vunpack.c.l.s4 1934713408
      %v4763 = vunpack.c.0.s8 %v4762
      %v4764 = vlaneseq
      %v4765 = vshrl.u32 %v4764, 7
      %v4766 = vsub.s32 %v4763, %v4765
      %v4767 = vrot.slane %v4759, %v4766
      %v4769 = vunpack.c.l.s4 1934713408
      %v4770 = vunpack.c.0.s8 %v4769
      %v4771 = vlaneseq
      %v4772 = vshrl.u32 %v4771, 7
      %v4773 = vsub.s32 %v4770, %v4772
      %v4774 = vrot.slane %v4760, %v4773
      %v4775 = vcombine.low %v4751, %v4767
      %v4776 = vcombine.high %v4751, %v4767
      %v4777 = vcombine.low %v4758, %v4774
      %v4778 = vcombine.high %v4758, %v4774
      %v4779 = vcombine.low %v3731, %v3738
      %v4781 = vunpack.c.l.s4 1983009808
      %v4782 = vunpack.c.0.s8 %v4781
      %v4783 = vlaneseq
      %v4784 = vshrl.u32 %v4783, 7
      %v4785 = vsub.s32 %v4782, %v4784
      %v4786 = vrot.slane %v4779, %v4785
      %v4787 = vcombine.low %v3755, %v3756
      %v4789 = vunpack.c.l.s4 1983009808
      %v4790 = vunpack.c.0.s8 %v4789
      %v4791 = vlaneseq
      %v4792 = vshrl.u32 %v4791, 7
      %v4793 = vsub.s32 %v4790, %v4792
      %v4794 = vrot.slane %v4787, %v4793
      %v4795 = vcombine.low %v3747, %v3754
      %v4797 = vunpack.c.l.s4 1983009808
      %v4798 = vunpack.c.0.s8 %v4797
      %v4799 = vlaneseq
      %v4800 = vshrl.u32 %v4799, 7
      %v4801 = vsub.s32 %v4798, %v4800
      %v4802 = vrot.slane %v4795, %v4801
      %v4803 = vcombine.low %v3757, %v3758
      %v4805 = vunpack.c.l.s4 1983009808
      %v4806 = vunpack.c.0.s8 %v4805
      %v4807 = vlaneseq
      %v4808 = vshrl.u32 %v4807, 7
      %v4809 = vsub.s32 %v4806, %v4808
      %v4810 = vrot.slane %v4803, %v4809
      %v4811 = vcombine.low %v4786, %v4794
      %v4812 = vcombine.high %v4786, %v4794
      %v4814 = vunpack.c.l.s4 1934713408
      %v4815 = vunpack.c.0.s8 %v4814
      %v4816 = vlaneseq
      %v4817 = vshrl.u32 %v4816, 7
      %v4818 = vsub.s32 %v4815, %v4817
      %v4819 = vrot.slane %v4811, %v4818
      %v4821 = vunpack.c.l.s4 1934713408
      %v4822 = vunpack.c.0.s8 %v4821
      %v4823 = vlaneseq
      %v4824 = vshrl.u32 %v4823, 7
      %v4825 = vsub.s32 %v4822, %v4824
      %v4826 = vrot.slane %v4812, %v4825
      %v4827 = vcombine.low %v4802, %v4810
      %v4828 = vcombine.high %v4802, %v4810
      %v4830 = vunpack.c.l.s4 1934713408
      %v4831 = vunpack.c.0.s8 %v4830
      %v4832 = vlaneseq
      %v4833 = vshrl.u32 %v4832, 7
      %v4834 = vsub.s32 %v4831, %v4833
      %v4835 = vrot.slane %v4827, %v4834
      %v4837 = vunpack.c.l.s4 1934713408
      %v4838 = vunpack.c.0.s8 %v4837
      %v4839 = vlaneseq
      %v4840 = vshrl.u32 %v4839, 7
      %v4841 = vsub.s32 %v4838, %v4840
      %v4842 = vrot.slane %v4828, %v4841
      %v4843 = vcombine.low %v4819, %v4835
      %v4844 = vcombine.high %v4819, %v4835
      %v4845 = vcombine.low %v4826, %v4842
      %v4846 = vcombine.high %v4826, %v4842
      %v4847 = vcombine.low %v3799, %v3806
      %v4849 = vunpack.c.l.s4 1983009808
      %v4850 = vunpack.c.0.s8 %v4849
      %v4851 = vlaneseq
      %v4852 = vshrl.u32 %v4851, 7
      %v4853 = vsub.s32 %v4850, %v4852
      %v4854 = vrot.slane %v4847, %v4853
      %v4855 = vcombine.low %v3823, %v3824
      %v4857 = vunpack.c.l.s4 1983009808
      %v4858 = vunpack.c.0.s8 %v4857
      %v4859 = vlaneseq
      %v4860 = vshrl.u32 %v4859, 7
      %v4861 = vsub.s32 %v4858, %v4860
      %v4862 = vrot.slane %v4855, %v4861
      %v4863 = vcombine.low %v3815, %v3822
      %v4865 = vunpack.c.l.s4 1983009808
      %v4866 = vunpack.c.0.s8 %v4865
      %v4867 = vlaneseq
      %v4868 = vshrl.u32 %v4867, 7
      %v4869 = vsub.s32 %v4866, %v4868
      %v4870 = vrot.slane %v4863, %v4869
      %v4871 = vcombine.low %v3825, %v3826
      %v4873 = vunpack.c.l.s4 1983009808
      %v4874 = vunpack.c.0.s8 %v4873
      %v4875 = vlaneseq
      %v4876 = vshrl.u32 %v4875, 7
      %v4877 = vsub.s32 %v4874, %v4876
      %v4878 = vrot.slane %v4871, %v4877
      %v4879 = vcombine.low %v4854, %v4862
      %v4880 = vcombine.high %v4854, %v4862
      %v4882 = vunpack.c.l.s4 1934713408
      %v4883 = vunpack.c.0.s8 %v4882
      %v4884 = vlaneseq
      %v4885 = vshrl.u32 %v4884, 7
      %v4886 = vsub.s32 %v4883, %v4885
      %v4887 = vrot.slane %v4879, %v4886
      %v4889 = vunpack.c.l.s4 1934713408
      %v4890 = vunpack.c.0.s8 %v4889
      %v4891 = vlaneseq
      %v4892 = vshrl.u32 %v4891, 7
      %v4893 = vsub.s32 %v4890, %v4892
      %v4894 = vrot.slane %v4880, %v4893
      %v4895 = vcombine.low %v4870, %v4878
      %v4896 = vcombine.high %v4870, %v4878
      %v4898 = vunpack.c.l.s4 1934713408
      %v4899 = vunpack.c.0.s8 %v4898
      %v4900 = vlaneseq
      %v4901 = vshrl.u32 %v4900, 7
      %v4902 = vsub.s32 %v4899, %v4901
      %v4903 = vrot.slane %v4895, %v4902
      %v4905 = vunpack.c.l.s4 1934713408
      %v4906 = vunpack.c.0.s8 %v4905
      %v4907 = vlaneseq
      %v4908 = vshrl.u32 %v4907, 7
      %v4909 = vsub.s32 %v4906, %v4908
      %v4910 = vrot.slane %v4896, %v4909
      %v4911 = vcombine.low %v4887, %v4903
      %v4912 = vcombine.high %v4887, %v4903
      %v4913 = vcombine.low %v4894, %v4910
      %v4914 = vcombine.high %v4894, %v4910
      %v4915 = vcombine.low %v3867, %v3874
      %v4917 = vunpack.c.l.s4 1983009808
      %v4918 = vunpack.c.0.s8 %v4917
      %v4919 = vlaneseq
      %v4920 = vshrl.u32 %v4919, 7
      %v4921 = vsub.s32 %v4918, %v4920
      %v4922 = vrot.slane %v4915, %v4921
      %v4923 = vcombine.low %v3891, %v3892
      %v4925 = vunpack.c.l.s4 1983009808
      %v4926 = vunpack.c.0.s8 %v4925
      %v4927 = vlaneseq
      %v4928 = vshrl.u32 %v4927, 7
      %v4929 = vsub.s32 %v4926, %v4928
      %v4930 = vrot.slane %v4923, %v4929
      %v4931 = vcombine.low %v3883, %v3890
      %v4933 = vunpack.c.l.s4 1983009808
      %v4934 = vunpack.c.0.s8 %v4933
      %v4935 = vlaneseq
      %v4936 = vshrl.u32 %v4935, 7
      %v4937 = vsub.s32 %v4934, %v4936
      %v4938 = vrot.slane %v4931, %v4937
      %v4939 = vcombine.low %v3893, %v3894
      %v4941 = vunpack.c.l.s4 1983009808
      %v4942 = vunpack.c.0.s8 %v4941
      %v4943 = vlaneseq
      %v4944 = vshrl.u32 %v4943, 7
      %v4945 = vsub.s32 %v4942, %v4944
      %v4946 = vrot.slane %v4939, %v4945
      %v4947 = vcombine.low %v4922, %v4930
      %v4948 = vcombine.high %v4922, %v4930
      %v4950 = vunpack.c.l.s4 1934713408
      %v4951 = vunpack.c.0.s8 %v4950
      %v4952 = vlaneseq
      %v4953 = vshrl.u32 %v4952, 7
      %v4954 = vsub.s32 %v4951, %v4953
      %v4955 = vrot.slane %v4947, %v4954
      %v4957 = vunpack.c.l.s4 1934713408
      %v4958 = vunpack.c.0.s8 %v4957
      %v4959 = vlaneseq
      %v4960 = vshrl.u32 %v4959, 7
      %v4961 = vsub.s32 %v4958, %v4960
      %v4962 = vrot.slane %v4948, %v4961
      %v4963 = vcombine.low %v4938, %v4946
      %v4964 = vcombine.high %v4938, %v4946
      %v4966 = vunpack.c.l.s4 1934713408
      %v4967 = vunpack.c.0.s8 %v4966
      %v4968 = vlaneseq
      %v4969 = vshrl.u32 %v4968, 7
      %v4970 = vsub.s32 %v4967, %v4969
      %v4971 = vrot.slane %v4963, %v4970
      %v4973 = vunpack.c.l.s4 1934713408
      %v4974 = vunpack.c.0.s8 %v4973
      %v4975 = vlaneseq
      %v4976 = vshrl.u32 %v4975, 7
      %v4977 = vsub.s32 %v4974, %v4976
      %v4978 = vrot.slane %v4964, %v4977
      %v4979 = vcombine.low %v4955, %v4971
      %v4980 = vcombine.high %v4955, %v4971
      %v4981 = vcombine.low %v4962, %v4978
      %v4982 = vcombine.high %v4962, %v4978
      %v4983 = vcombine.low %v3935, %v3942
      %v4985 = vunpack.c.l.s4 1983009808
      %v4986 = vunpack.c.0.s8 %v4985
      %v4987 = vlaneseq
      %v4988 = vshrl.u32 %v4987, 7
      %v4989 = vsub.s32 %v4986, %v4988
      %v4990 = vrot.slane %v4983, %v4989
      %v4991 = vcombine.low %v3959, %v3960
      %v4993 = vunpack.c.l.s4 1983009808
      %v4994 = vunpack.c.0.s8 %v4993
      %v4995 = vlaneseq
      %v4996 = vshrl.u32 %v4995, 7
      %v4997 = vsub.s32 %v4994, %v4996
      %v4998 = vrot.slane %v4991, %v4997
      %v4999 = vcombine.low %v3951, %v3958
      %v5001 = vunpack.c.l.s4 1983009808
      %v5002 = vunpack.c.0.s8 %v5001
      %v5003 = vlaneseq
      %v5004 = vshrl.u32 %v5003, 7
      %v5005 = vsub.s32 %v5002, %v5004
      %v5006 = vrot.slane %v4999, %v5005
      %v5007 = vcombine.low %v3961, %v3962
      %v5009 = vunpack.c.l.s4 1983009808
      %v5010 = vunpack.c.0.s8 %v5009
      %v5011 = vlaneseq
      %v5012 = vshrl.u32 %v5011, 7
      %v5013 = vsub.s32 %v5010, %v5012
      %v5014 = vrot.slane %v5007, %v5013
      %v5015 = vcombine.low %v4990, %v4998
      %v5016 = vcombine.high %v4990, %v4998
      %v5018 = vunpack.c.l.s4 1934713408
      %v5019 = vunpack.c.0.s8 %v5018
      %v5020 = vlaneseq
      %v5021 = vshrl.u32 %v5020, 7
      %v5022 = vsub.s32 %v5019, %v5021
      %v5023 = vrot.slane %v5015, %v5022
      %v5025 = vunpack.c.l.s4 1934713408
      %v5026 = vunpack.c.0.s8 %v5025
      %v5027 = vlaneseq
      %v5028 = vshrl.u32 %v5027, 7
      %v5029 = vsub.s32 %v5026, %v5028
      %v5030 = vrot.slane %v5016, %v5029
      %v5031 = vcombine.low %v5006, %v5014
      %v5032 = vcombine.high %v5006, %v5014
      %v5034 = vunpack.c.l.s4 1934713408
      %v5035 = vunpack.c.0.s8 %v5034
      %v5036 = vlaneseq
      %v5037 = vshrl.u32 %v5036, 7
      %v5038 = vsub.s32 %v5035, %v5037
      %v5039 = vrot.slane %v5031, %v5038
      %v5041 = vunpack.c.l.s4 1934713408
      %v5042 = vunpack.c.0.s8 %v5041
      %v5043 = vlaneseq
      %v5044 = vshrl.u32 %v5043, 7
      %v5045 = vsub.s32 %v5042, %v5044
      %v5046 = vrot.slane %v5032, %v5045
      %v5047 = vcombine.low %v5023, %v5039
      %v5048 = vcombine.high %v5023, %v5039
      %v5049 = vcombine.low %v5030, %v5046
      %v5050 = vcombine.high %v5030, %v5046
      %v5051 = vcombine.low %v4003, %v4010
      %v5053 = vunpack.c.l.s4 1983009808
      %v5054 = vunpack.c.0.s8 %v5053
      %v5055 = vlaneseq
      %v5056 = vshrl.u32 %v5055, 7
      %v5057 = vsub.s32 %v5054, %v5056
      %v5058 = vrot.slane %v5051, %v5057
      %v5059 = vcombine.low %v4027, %v4028
      %v5061 = vunpack.c.l.s4 1983009808
      %v5062 = vunpack.c.0.s8 %v5061
      %v5063 = vlaneseq
      %v5064 = vshrl.u32 %v5063, 7
      %v5065 = vsub.s32 %v5062, %v5064
      %v5066 = vrot.slane %v5059, %v5065
      %v5067 = vcombine.low %v4019, %v4026
      %v5069 = vunpack.c.l.s4 1983009808
      %v5070 = vunpack.c.0.s8 %v5069
      %v5071 = vlaneseq
      %v5072 = vshrl.u32 %v5071, 7
      %v5073 = vsub.s32 %v5070, %v5072
      %v5074 = vrot.slane %v5067, %v5073
      %v5075 = vcombine.low %v4029, %v4030
      %v5077 = vunpack.c.l.s4 1983009808
      %v5078 = vunpack.c.0.s8 %v5077
      %v5079 = vlaneseq
      %v5080 = vshrl.u32 %v5079, 7
      %v5081 = vsub.s32 %v5078, %v5080
      %v5082 = vrot.slane %v5075, %v5081
      %v5083 = vcombine.low %v5058, %v5066
      %v5084 = vcombine.high %v5058, %v5066
      %v5086 = vunpack.c.l.s4 1934713408
      %v5087 = vunpack.c.0.s8 %v5086
      %v5088 = vlaneseq
      %v5089 = vshrl.u32 %v5088, 7
      %v5090 = vsub.s32 %v5087, %v5089
      %v5091 = vrot.slane %v5083, %v5090
      %v5093 = vunpack.c.l.s4 1934713408
      %v5094 = vunpack.c.0.s8 %v5093
      %v5095 = vlaneseq
      %v5096 = vshrl.u32 %v5095, 7
      %v5097 = vsub.s32 %v5094, %v5096
      %v5098 = vrot.slane %v5084, %v5097
      %v5099 = vcombine.low %v5074, %v5082
      %v5100 = vcombine.high %v5074, %v5082
      %v5102 = vunpack.c.l.s4 1934713408
      %v5103 = vunpack.c.0.s8 %v5102
      %v5104 = vlaneseq
      %v5105 = vshrl.u32 %v5104, 7
      %v5106 = vsub.s32 %v5103, %v5105
      %v5107 = vrot.slane %v5099, %v5106
      %v5109 = vunpack.c.l.s4 1934713408
      %v5110 = vunpack.c.0.s8 %v5109
      %v5111 = vlaneseq
      %v5112 = vshrl.u32 %v5111, 7
      %v5113 = vsub.s32 %v5110, %v5112
      %v5114 = vrot.slane %v5100, %v5113
      %v5115 = vcombine.low %v5091, %v5107
      %v5116 = vcombine.high %v5091, %v5107
      %v5117 = vcombine.low %v5098, %v5114
      %v5118 = vcombine.high %v5098, %v5114
      %v5119 = vcombine.low %v4071, %v4078
      %v5121 = vunpack.c.l.s4 1983009808
      %v5122 = vunpack.c.0.s8 %v5121
      %v5123 = vlaneseq
      %v5124 = vshrl.u32 %v5123, 7
      %v5125 = vsub.s32 %v5122, %v5124
      %v5126 = vrot.slane %v5119, %v5125
      %v5127 = vcombine.low %v4095, %v4096
      %v5129 = vunpack.c.l.s4 1983009808
      %v5130 = vunpack.c.0.s8 %v5129
      %v5131 = vlaneseq
      %v5132 = vshrl.u32 %v5131, 7
      %v5133 = vsub.s32 %v5130, %v5132
      %v5134 = vrot.slane %v5127, %v5133
      %v5135 = vcombine.low %v4087, %v4094
      %v5137 = vunpack.c.l.s4 1983009808
      %v5138 = vunpack.c.0.s8 %v5137
      %v5139 = vlaneseq
      %v5140 = vshrl.u32 %v5139, 7
      %v5141 = vsub.s32 %v5138, %v5140
      %v5142 = vrot.slane %v5135, %v5141
      %v5143 = vcombine.low %v4097, %v4098
      %v5145 = vunpack.c.l.s4 1983009808
      %v5146 = vunpack.c.0.s8 %v5145
      %v5147 = vlaneseq
      %v5148 = vshrl.u32 %v5147, 7
      %v5149 = vsub.s32 %v5146, %v5148
      %v5150 = vrot.slane %v5143, %v5149
      %v5151 = vcombine.low %v5126, %v5134
      %v5152 = vcombine.high %v5126, %v5134
      %v5154 = vunpack.c.l.s4 1934713408
      %v5155 = vunpack.c.0.s8 %v5154
      %v5156 = vlaneseq
      %v5157 = vshrl.u32 %v5156, 7
      %v5158 = vsub.s32 %v5155, %v5157
      %v5159 = vrot.slane %v5151, %v5158
      %v5161 = vunpack.c.l.s4 1934713408
      %v5162 = vunpack.c.0.s8 %v5161
      %v5163 = vlaneseq
      %v5164 = vshrl.u32 %v5163, 7
      %v5165 = vsub.s32 %v5162, %v5164
      %v5166 = vrot.slane %v5152, %v5165
      %v5167 = vcombine.low %v5142, %v5150
      %v5168 = vcombine.high %v5142, %v5150
      %v5170 = vunpack.c.l.s4 1934713408
      %v5171 = vunpack.c.0.s8 %v5170
      %v5172 = vlaneseq
      %v5173 = vshrl.u32 %v5172, 7
      %v5174 = vsub.s32 %v5171, %v5173
      %v5175 = vrot.slane %v5167, %v5174
      %v5177 = vunpack.c.l.s4 1934713408
      %v5178 = vunpack.c.0.s8 %v5177
      %v5179 = vlaneseq
      %v5180 = vshrl.u32 %v5179, 7
      %v5181 = vsub.s32 %v5178, %v5180
      %v5182 = vrot.slane %v5168, %v5181
      %v5183 = vcombine.low %v5159, %v5175
      %v5184 = vcombine.high %v5159, %v5175
      %v5185 = vcombine.low %v5166, %v5182
      %v5186 = vcombine.high %v5166, %v5182
      %v5187 = vcombine.low %v4139, %v4146
      %v5189 = vunpack.c.l.s4 1983009808
      %v5190 = vunpack.c.0.s8 %v5189
      %v5191 = vlaneseq
      %v5192 = vshrl.u32 %v5191, 7
      %v5193 = vsub.s32 %v5190, %v5192
      %v5194 = vrot.slane %v5187, %v5193
      %v5195 = vcombine.low %v4163, %v4164
      %v5197 = vunpack.c.l.s4 1983009808
      %v5198 = vunpack.c.0.s8 %v5197
      %v5199 = vlaneseq
      %v5200 = vshrl.u32 %v5199, 7
      %v5201 = vsub.s32 %v5198, %v5200
      %v5202 = vrot.slane %v5195, %v5201
      %v5203 = vcombine.low %v4155, %v4162
      %v5205 = vunpack.c.l.s4 1983009808
      %v5206 = vunpack.c.0.s8 %v5205
      %v5207 = vlaneseq
      %v5208 = vshrl.u32 %v5207, 7
      %v5209 = vsub.s32 %v5206, %v5208
      %v5210 = vrot.slane %v5203, %v5209
      %v5211 = vcombine.low %v4165, %v4166
      %v5213 = vunpack.c.l.s4 1983009808
      %v5214 = vunpack.c.0.s8 %v5213
      %v5215 = vlaneseq
      %v5216 = vshrl.u32 %v5215, 7
      %v5217 = vsub.s32 %v5214, %v5216
      %v5218 = vrot.slane %v5211, %v5217
      %v5219 = vcombine.low %v5194, %v5202
      %v5220 = vcombine.high %v5194, %v5202
      %v5222 = vunpack.c.l.s4 1934713408
      %v5223 = vunpack.c.0.s8 %v5222
      %v5224 = vlaneseq
      %v5225 = vshrl.u32 %v5224, 7
      %v5226 = vsub.s32 %v5223, %v5225
      %v5227 = vrot.slane %v5219, %v5226
      %v5229 = vunpack.c.l.s4 1934713408
      %v5230 = vunpack.c.0.s8 %v5229
      %v5231 = vlaneseq
      %v5232 = vshrl.u32 %v5231, 7
      %v5233 = vsub.s32 %v5230, %v5232
      %v5234 = vrot.slane %v5220, %v5233
      %v5235 = vcombine.low %v5210, %v5218
      %v5236 = vcombine.high %v5210, %v5218
      %v5238 = vunpack.c.l.s4 1934713408
      %v5239 = vunpack.c.0.s8 %v5238
      %v5240 = vlaneseq
      %v5241 = vshrl.u32 %v5240, 7
      %v5242 = vsub.s32 %v5239, %v5241
      %v5243 = vrot.slane %v5235, %v5242
      %v5245 = vunpack.c.l.s4 1934713408
      %v5246 = vunpack.c.0.s8 %v5245
      %v5247 = vlaneseq
      %v5248 = vshrl.u32 %v5247, 7
      %v5249 = vsub.s32 %v5246, %v5248
      %v5250 = vrot.slane %v5236, %v5249
      %v5251 = vcombine.low %v5227, %v5243
      %v5252 = vcombine.high %v5227, %v5243
      %v5253 = vcombine.low %v5234, %v5250
      %v5254 = vcombine.high %v5234, %v5250
      %v5255 = vcombine.low %v4207, %v4214
      %v5257 = vunpack.c.l.s4 1983009808
      %v5258 = vunpack.c.0.s8 %v5257
      %v5259 = vlaneseq
      %v5260 = vshrl.u32 %v5259, 7
      %v5261 = vsub.s32 %v5258, %v5260
      %v5262 = vrot.slane %v5255, %v5261
      %v5263 = vcombine.low %v4231, %v4232
      %v5265 = vunpack.c.l.s4 1983009808
      %v5266 = vunpack.c.0.s8 %v5265
      %v5267 = vlaneseq
      %v5268 = vshrl.u32 %v5267, 7
      %v5269 = vsub.s32 %v5266, %v5268
      %v5270 = vrot.slane %v5263, %v5269
      %v5271 = vcombine.low %v4223, %v4230
      %v5273 = vunpack.c.l.s4 1983009808
      %v5274 = vunpack.c.0.s8 %v5273
      %v5275 = vlaneseq
      %v5276 = vshrl.u32 %v5275, 7
      %v5277 = vsub.s32 %v5274, %v5276
      %v5278 = vrot.slane %v5271, %v5277
      %v5279 = vcombine.low %v4233, %v4234
      %v5281 = vunpack.c.l.s4 1983009808
      %v5282 = vunpack.c.0.s8 %v5281
      %v5283 = vlaneseq
      %v5284 = vshrl.u32 %v5283, 7
      %v5285 = vsub.s32 %v5282, %v5284
      %v5286 = vrot.slane %v5279, %v5285
      %v5287 = vcombine.low %v5262, %v5270
      %v5288 = vcombine.high %v5262, %v5270
      %v5290 = vunpack.c.l.s4 1934713408
      %v5291 = vunpack.c.0.s8 %v5290
      %v5292 = vlaneseq
      %v5293 = vshrl.u32 %v5292, 7
      %v5294 = vsub.s32 %v5291, %v5293
      %v5295 = vrot.slane %v5287, %v5294
      %v5297 = vunpack.c.l.s4 1934713408
      %v5298 = vunpack.c.0.s8 %v5297
      %v5299 = vlaneseq
      %v5300 = vshrl.u32 %v5299, 7
      %v5301 = vsub.s32 %v5298, %v5300
      %v5302 = vrot.slane %v5288, %v5301
      %v5303 = vcombine.low %v5278, %v5286
      %v5304 = vcombine.high %v5278, %v5286
      %v5306 = vunpack.c.l.s4 1934713408
      %v5307 = vunpack.c.0.s8 %v5306
      %v5308 = vlaneseq
      %v5309 = vshrl.u32 %v5308, 7
      %v5310 = vsub.s32 %v5307, %v5309
      %v5311 = vrot.slane %v5303, %v5310
      %v5313 = vunpack.c.l.s4 1934713408
      %v5314 = vunpack.c.0.s8 %v5313
      %v5315 = vlaneseq
      %v5316 = vshrl.u32 %v5315, 7
      %v5317 = vsub.s32 %v5314, %v5316
      %v5318 = vrot.slane %v5304, %v5317
      %v5319 = vcombine.low %v5295, %v5311
      %v5320 = vcombine.high %v5295, %v5311
      %v5321 = vcombine.low %v5302, %v5318
      %v5322 = vcombine.high %v5302, %v5318
      %v5323 = vcombine.low %v4275, %v4282
      %v5325 = vunpack.c.l.s4 1983009808
      %v5326 = vunpack.c.0.s8 %v5325
      %v5327 = vlaneseq
      %v5328 = vshrl.u32 %v5327, 7
      %v5329 = vsub.s32 %v5326, %v5328
      %v5330 = vrot.slane %v5323, %v5329
      %v5331 = vcombine.low %v4299, %v4300
      %v5333 = vunpack.c.l.s4 1983009808
      %v5334 = vunpack.c.0.s8 %v5333
      %v5335 = vlaneseq
      %v5336 = vshrl.u32 %v5335, 7
      %v5337 = vsub.s32 %v5334, %v5336
      %v5338 = vrot.slane %v5331, %v5337
      %v5339 = vcombine.low %v4291, %v4298
      %v5341 = vunpack.c.l.s4 1983009808
      %v5342 = vunpack.c.0.s8 %v5341
      %v5343 = vlaneseq
      %v5344 = vshrl.u32 %v5343, 7
      %v5345 = vsub.s32 %v5342, %v5344
      %v5346 = vrot.slane %v5339, %v5345
      %v5347 = vcombine.low %v4301, %v4302
      %v5349 = vunpack.c.l.s4 1983009808
      %v5350 = vunpack.c.0.s8 %v5349
      %v5351 = vlaneseq
      %v5352 = vshrl.u32 %v5351, 7
      %v5353 = vsub.s32 %v5350, %v5352
      %v5354 = vrot.slane %v5347, %v5353
      %v5355 = vcombine.low %v5330, %v5338
      %v5356 = vcombine.high %v5330, %v5338
      %v5358 = vunpack.c.l.s4 1934713408
      %v5359 = vunpack.c.0.s8 %v5358
      %v5360 = vlaneseq
      %v5361 = vshrl.u32 %v5360, 7
      %v5362 = vsub.s32 %v5359, %v5361
      %v5363 = vrot.slane %v5355, %v5362
      %v5365 = vunpack.c.l.s4 1934713408
      %v5366 = vunpack.c.0.s8 %v5365
      %v5367 = vlaneseq
      %v5368 = vshrl.u32 %v5367, 7
      %v5369 = vsub.s32 %v5366, %v5368
      %v5370 = vrot.slane %v5356, %v5369
      %v5371 = vcombine.low %v5346, %v5354
      %v5372 = vcombine.high %v5346, %v5354
      %v5374 = vunpack.c.l.s4 1934713408
      %v5375 = vunpack.c.0.s8 %v5374
      %v5376 = vlaneseq
      %v5377 = vshrl.u32 %v5376, 7
      %v5378 = vsub.s32 %v5375, %v5377
      %v5379 = vrot.slane %v5371, %v5378
      %v5381 = vunpack.c.l.s4 1934713408
      %v5382 = vunpack.c.0.s8 %v5381
      %v5383 = vlaneseq
      %v5384 = vshrl.u32 %v5383, 7
      %v5385 = vsub.s32 %v5382, %v5384
      %v5386 = vrot.slane %v5372, %v5385
      %v5387 = vcombine.low %v5363, %v5379
      %v5388 = vcombine.high %v5363, %v5379
      %v5389 = vcombine.low %v5370, %v5386
      %v5390 = vcombine.high %v5370, %v5386
      %v5391 = vpack.c.bf16 %v4435, %v4367
      %v5392 = vpack.c.bf16 %v4571, %v4503
      %v5393 = vpack.c.bf16 %v4707, %v4639
      %v5394 = vpack.c.bf16 %v4843, %v4775
      %v5395 = vpack.c.bf16 %v4979, %v4911
      %v5396 = vpack.c.bf16 %v5115, %v5047
      %v5397 = vpack.c.bf16 %v5251, %v5183
      %v5398 = vpack.c.bf16 %v5387, %v5319
      %v5399 = vpack.c.bf16 %v4436, %v4368
      %v5400 = vpack.c.bf16 %v4572, %v4504
      %v5401 = vpack.c.bf16 %v4708, %v4640
      %v5402 = vpack.c.bf16 %v4844, %v4776
      %v5403 = vpack.c.bf16 %v4980, %v4912
      %v5404 = vpack.c.bf16 %v5116, %v5048
      %v5405 = vpack.c.bf16 %v5252, %v5184
      %v5406 = vpack.c.bf16 %v5388, %v5320
      %v5407 = vpack.c.bf16 %v4437, %v4369
      %v5408 = vpack.c.bf16 %v4573, %v4505
      %v5409 = vpack.c.bf16 %v4709, %v4641
      %v5410 = vpack.c.bf16 %v4845, %v4777
      %v5411 = vpack.c.bf16 %v4981, %v4913
      %v5412 = vpack.c.bf16 %v5117, %v5049
      %v5413 = vpack.c.bf16 %v5253, %v5185
      %v5414 = vpack.c.bf16 %v5389, %v5321
      %v5415 = vpack.c.bf16 %v4438, %v4370
      %v5416 = vpack.c.bf16 %v4574, %v4506
      %v5417 = vpack.c.bf16 %v4710, %v4642
      %v5418 = vpack.c.bf16 %v4846, %v4778
      %v5419 = vpack.c.bf16 %v4982, %v4914
      %v5420 = vpack.c.bf16 %v5118, %v5050
      %v5421 = vpack.c.bf16 %v5254, %v5186
      %v5422 = vpack.c.bf16 %v5390, %v5322
      %vm5423 = vcmask 64512
      %v5425 = vsel %vm5423, %v683, 0
      %v5428 = vsel %vm5423, %v3023, 0
      %v5431 = vsel %vm5423, %v3024, 0
      %v5434 = vsel %vm5423, %v3025, 0
      %v5437 = vsel %vm5423, %v3026, 0
      %v5440 = vsel %vm5423, %v3027, 0
      %v5443 = vsel %vm5423, %v3028, 0
      %v5446 = vsel %vm5423, %v3029, 0
      %v5449 = vsel %vm5423, %v3030, 0
      %5451 = vmatprep.subr.bf16.mxu0 0
      %5452 = vmatpush1.bf16.xpose.msra.mxu0 %v5449
      %5453 = vmatprep.subr.bf16.mxu0 0
      %5454 = vmatpush1.bf16.xpose.msra.mxu0 %v5446
      %5455 = vmatprep.subr.bf16.mxu0 0
      %5456 = vmatpush1.bf16.xpose.msra.mxu0 %v5443
      %5457 = vmatprep.subr.bf16.mxu0 0
      %5458 = vmatpush1.bf16.xpose.msra.mxu0 %v5440
      %5459 = vmatprep.subr.bf16.mxu0 0
      %5460 = vmatpush1.bf16.xpose.msra.mxu0 %v5437
      %5461 = vmatprep.subr.bf16.mxu0 0
      %5462 = vmatpush1.bf16.xpose.msra.mxu0 %v5434
      %5463 = vmatprep.subr.bf16.mxu0 0
      %5464 = vmatpush1.bf16.xpose.msra.mxu0 %v5431
      %5465 = vmatprep.subr.bf16.mxu0 0
      %5466 = vmatpush1.bf16.xpose.msra.mxu0 %v5428
      %5467 = vmatprep.subr.bf16.mxu0 0
      %5468 = vmatpush2.bf16.xpose.msra.mxu0 0
      %5469 = vmatprep.subr.bf16.mxu0 0
      %5470 = vmatpush2.bf16.xpose.msra.mxu0 0
      %5471 = vmatprep.subr.bf16.mxu0 0
      %5472 = vmatpush2.bf16.xpose.msra.mxu0 0
      %5473 = vmatprep.subr.bf16.mxu0 0
      %5474 = vmatpush2.bf16.xpose.msra.mxu0 0
      %5475 = vmatprep.subr.bf16.mxu0 0
      %5476 = vmatpush2.bf16.xpose.msra.mxu0 0
      %5477 = vmatprep.subr.bf16.mxu0 0
      %5478 = vmatpush2.bf16.xpose.msra.mxu0 0
      %5479 = vmatprep.subr.bf16.mxu0 0
      %5480 = vmatpush2.bf16.xpose.msra.mxu0 0
      %5481 = vmatprep.subr.bf16.mxu0 0
      %5482 = vmatpush2.bf16.xpose.msra.mxu0 0
      %5483 = vmatprep.mubr.bf16.mxu0 0
      %5484 = vmatmul.mubr.bf16.gmra.mxu0 %v5425
      %v5485 = vpop.f32.mrf.mxu0
      %v5486 = vadd.f32 %v536, %v5485
      %v5487 = vpop.f32.mrf.mxu0
      %v5488 = vpop.f32.mrf.mxu0
      %v5489 = vpop.f32.mrf.mxu0
      %5490 = vdwg.mxu0
      %v5492 = vsel %vm5423, %v684, 0
      %v5495 = vsel %vm5423, %v3031, 0
      %v5498 = vsel %vm5423, %v3032, 0
      %v5501 = vsel %vm5423, %v3033, 0
      %v5504 = vsel %vm5423, %v3034, 0
      %v5507 = vsel %vm5423, %v3035, 0
      %v5510 = vsel %vm5423, %v3036, 0
      %v5513 = vsel %vm5423, %v3037, 0
      %v5516 = vsel %vm5423, %v3038, 0
      %5518 = vmatprep.subr.bf16.mxu0 0
      %5519 = vmatpush1.bf16.xpose.msra.mxu0 %v5516
      %5520 = vmatprep.subr.bf16.mxu0 0
      %5521 = vmatpush1.bf16.xpose.msra.mxu0 %v5513
      %5522 = vmatprep.subr.bf16.mxu0 0
      %5523 = vmatpush1.bf16.xpose.msra.mxu0 %v5510
      %5524 = vmatprep.subr.bf16.mxu0 0
      %5525 = vmatpush1.bf16.xpose.msra.mxu0 %v5507
      %5526 = vmatprep.subr.bf16.mxu0 0
      %5527 = vmatpush1.bf16.xpose.msra.mxu0 %v5504
      %5528 = vmatprep.subr.bf16.mxu0 0
      %5529 = vmatpush1.bf16.xpose.msra.mxu0 %v5501
      %5530 = vmatprep.subr.bf16.mxu0 0
      %5531 = vmatpush1.bf16.xpose.msra.mxu0 %v5498
      %5532 = vmatprep.subr.bf16.mxu0 0
      %5533 = vmatpush1.bf16.xpose.msra.mxu0 %v5495
      %5534 = vmatprep.subr.bf16.mxu0 0
      %5535 = vmatpush2.bf16.xpose.msra.mxu0 0
      %5536 = vmatprep.subr.bf16.mxu0 0
      %5537 = vmatpush2.bf16.xpose.msra.mxu0 0
      %5538 = vmatprep.subr.bf16.mxu0 0
      %5539 = vmatpush2.bf16.xpose.msra.mxu0 0
      %5540 = vmatprep.subr.bf16.mxu0 0
      %5541 = vmatpush2.bf16.xpose.msra.mxu0 0
      %5542 = vmatprep.subr.bf16.mxu0 0
      %5543 = vmatpush2.bf16.xpose.msra.mxu0 0
      %5544 = vmatprep.subr.bf16.mxu0 0
      %5545 = vmatpush2.bf16.xpose.msra.mxu0 0
      %5546 = vmatprep.subr.bf16.mxu0 0
      %5547 = vmatpush2.bf16.xpose.msra.mxu0 0
      %5548 = vmatprep.subr.bf16.mxu0 0
      %5549 = vmatpush2.bf16.xpose.msra.mxu0 0
      %5550 = vmatprep.mubr.bf16.mxu0 0
      %5551 = vmatmul.mubr.bf16.gmra.mxu0 %v5492
      %v5552 = vpop.f32.mrf.mxu0
      %v5553 = vadd.f32 %v536, %v5552
      %v5554 = vpop.f32.mrf.mxu0
      %v5555 = vpop.f32.mrf.mxu0
      %v5556 = vpop.f32.mrf.mxu0
      %5557 = vdwg.mxu0
      %v5559 = vsel %vm5423, %v685, 0
      %v5562 = vsel %vm5423, %v3039, 0
      %v5565 = vsel %vm5423, %v3040, 0
      %v5568 = vsel %vm5423, %v3041, 0
      %v5571 = vsel %vm5423, %v3042, 0
      %v5574 = vsel %vm5423, %v3043, 0
      %v5577 = vsel %vm5423, %v3044, 0
      %v5580 = vsel %vm5423, %v3045, 0
      %v5583 = vsel %vm5423, %v3046, 0
      %5585 = vmatprep.subr.bf16.mxu0 0
      %5586 = vmatpush1.bf16.xpose.msra.mxu0 %v5583
      %5587 = vmatprep.subr.bf16.mxu0 0
      %5588 = vmatpush1.bf16.xpose.msra.mxu0 %v5580
      %5589 = vmatprep.subr.bf16.mxu0 0
      %5590 = vmatpush1.bf16.xpose.msra.mxu0 %v5577
      %5591 = vmatprep.subr.bf16.mxu0 0
      %5592 = vmatpush1.bf16.xpose.msra.mxu0 %v5574
      %5593 = vmatprep.subr.bf16.mxu0 0
      %5594 = vmatpush1.bf16.xpose.msra.mxu0 %v5571
      %5595 = vmatprep.subr.bf16.mxu0 0
      %5596 = vmatpush1.bf16.xpose.msra.mxu0 %v5568
      %5597 = vmatprep.subr.bf16.mxu0 0
      %5598 = vmatpush1.bf16.xpose.msra.mxu0 %v5565
      %5599 = vmatprep.subr.bf16.mxu0 0
      %5600 = vmatpush1.bf16.xpose.msra.mxu0 %v5562
      %5601 = vmatprep.subr.bf16.mxu0 0
      %5602 = vmatpush2.bf16.xpose.msra.mxu0 0
      %5603 = vmatprep.subr.bf16.mxu0 0
      %5604 = vmatpush2.bf16.xpose.msra.mxu0 0
      %5605 = vmatprep.subr.bf16.mxu0 0
      %5606 = vmatpush2.bf16.xpose.msra.mxu0 0
      %5607 = vmatprep.subr.bf16.mxu0 0
      %5608 = vmatpush2.bf16.xpose.msra.mxu0 0
      %5609 = vmatprep.subr.bf16.mxu0 0
      %5610 = vmatpush2.bf16.xpose.msra.mxu0 0
      %5611 = vmatprep.subr.bf16.mxu0 0
      %5612 = vmatpush2.bf16.xpose.msra.mxu0 0
      %5613 = vmatprep.subr.bf16.mxu0 0
      %5614 = vmatpush2.bf16.xpose.msra.mxu0 0
      %5615 = vmatprep.subr.bf16.mxu0 0
      %5616 = vmatpush2.bf16.xpose.msra.mxu0 0
      %5617 = vmatprep.mubr.bf16.mxu0 0
      %5618 = vmatmul.mubr.bf16.gmra.mxu0 %v5559
      %v5619 = vpop.f32.mrf.mxu0
      %v5620 = vadd.f32 %v536, %v5619
      %v5621 = vpop.f32.mrf.mxu0
      %v5622 = vpop.f32.mrf.mxu0
      %v5623 = vpop.f32.mrf.mxu0
      %5624 = vdwg.mxu0
      %v5626 = vsel %vm5423, %v686, 0
      %v5629 = vsel %vm5423, %v3047, 0
      %v5632 = vsel %vm5423, %v3048, 0
      %v5635 = vsel %vm5423, %v3049, 0
      %v5638 = vsel %vm5423, %v3050, 0
      %v5641 = vsel %vm5423, %v3051, 0
      %v5644 = vsel %vm5423, %v3052, 0
      %v5647 = vsel %vm5423, %v3053, 0
      %v5650 = vsel %vm5423, %v3054, 0
      %5652 = vmatprep.subr.bf16.mxu0 0
      %5653 = vmatpush1.bf16.xpose.msra.mxu0 %v5650
      %5654 = vmatprep.subr.bf16.mxu0 0
      %5655 = vmatpush1.bf16.xpose.msra.mxu0 %v5647
      %5656 = vmatprep.subr.bf16.mxu0 0
      %5657 = vmatpush1.bf16.xpose.msra.mxu0 %v5644
      %5658 = vmatprep.subr.bf16.mxu0 0
      %5659 = vmatpush1.bf16.xpose.msra.mxu0 %v5641
      %5660 = vmatprep.subr.bf16.mxu0 0
      %5661 = vmatpush1.bf16.xpose.msra.mxu0 %v5638
      %5662 = vmatprep.subr.bf16.mxu0 0
      %5663 = vmatpush1.bf16.xpose.msra.mxu0 %v5635
      %5664 = vmatprep.subr.bf16.mxu0 0
      %5665 = vmatpush1.bf16.xpose.msra.mxu0 %v5632
      %5666 = vmatprep.subr.bf16.mxu0 0
      %5667 = vmatpush1.bf16.xpose.msra.mxu0 %v5629
      %5668 = vmatprep.subr.bf16.mxu0 0
      %5669 = vmatpush2.bf16.xpose.msra.mxu0 0
      %5670 = vmatprep.subr.bf16.mxu0 0
      %5671 = vmatpush2.bf16.xpose.msra.mxu0 0
      %5672 = vmatprep.subr.bf16.mxu0 0
      %5673 = vmatpush2.bf16.xpose.msra.mxu0 0
      %5674 = vmatprep.subr.bf16.mxu0 0
      %5675 = vmatpush2.bf16.xpose.msra.mxu0 0
      %5676 = vmatprep.subr.bf16.mxu0 0
      %5677 = vmatpush2.bf16.xpose.msra.mxu0 0
      %5678 = vmatprep.subr.bf16.mxu0 0
      %5679 = vmatpush2.bf16.xpose.msra.mxu0 0
      %5680 = vmatprep.subr.bf16.mxu0 0
      %5681 = vmatpush2.bf16.xpose.msra.mxu0 0
      %5682 = vmatprep.subr.bf16.mxu0 0
      %5683 = vmatpush2.bf16.xpose.msra.mxu0 0
      %5684 = vmatprep.mubr.bf16.mxu0 0
      %5685 = vmatmul.mubr.bf16.gmra.mxu0 %v5626
      %v5686 = vpop.f32.mrf.mxu0
      %v5687 = vadd.f32 %v536, %v5686
      %v5688 = vpop.f32.mrf.mxu0
      %v5689 = vpop.f32.mrf.mxu0
      %v5690 = vpop.f32.mrf.mxu0
      %5691 = vdwg.mxu0
      %5692 = vmax.xlane.f32.xlu0 %v5486
      %v5693 = vpop.xlane.xlu0 %5692
      %5694 = vmax.xlane.f32.xlu0 %v5553
      %v5695 = vpop.xlane.xlu0 %5694
      %5696 = vmax.xlane.f32.xlu0 %v5620
      %v5697 = vpop.xlane.xlu0 %5696
      %5698 = vmax.xlane.f32.xlu0 %v5687
      %v5699 = vpop.xlane.xlu0 %5698
      %v5700 = vsub.f32 %v5486, %v5693
      %v5701 = vsub.f32 %v5553, %v5695
      %v5702 = vsub.f32 %v5620, %v5697
      %v5703 = vsub.f32 %v5687, %v5699
      %v5704 = vmul.f32 %v5700, 1.442695
      %v5705 = vpow.pop %v5704
      %v5706 = vmul.f32 %v5701, 1.442695
      %v5707 = vpow.pop %v5706
      %v5708 = vmul.f32 %v5702, 1.442695
      %v5709 = vpow.pop %v5708
      %v5710 = vmul.f32 %v5703, 1.442695
      %v5711 = vpow.pop %v5710
      %5712 = vadd.xlane.f32.xlu0 %v5705
      %v5713 = vpop.xlane.xlu0 %5712
      %5714 = vadd.xlane.f32.xlu0 %v5707
      %v5715 = vpop.xlane.xlu0 %5714
      %5716 = vadd.xlane.f32.xlu0 %v5709
      %v5717 = vpop.xlane.xlu0 %5716
      %5718 = vadd.xlane.f32.xlu0 %v5711
      %v5719 = vpop.xlane.xlu0 %5718
      %v5720 = vrcp.pop %v5713
      %v5721 = vmul.f32 %v5705, %v5720
      %v5722 = vrcp.pop %v5715
      %v5723 = vmul.f32 %v5707, %v5722
      %v5724 = vrcp.pop %v5717
      %v5725 = vmul.f32 %v5709, %v5724
      %v5726 = vrcp.pop %v5719
      %v5727 = vmul.f32 %v5711, %v5726
      %v5728 = vpack.c.bf16 %v5721, %v5721
      %v5729 = vpack.c.bf16 %v5723, %v5723
      %v5730 = vpack.c.bf16 %v5725, %v5725
      %v5731 = vpack.c.bf16 %v5727, %v5727
      %5732 = vmatprep.subr.bf16.mxu0 0
      %5733 = vmatpush1.bf16.msra.mxu0 %v5398
      %5734 = vmatprep.subr.bf16.mxu0 0
      %5735 = vmatpush1.bf16.msra.mxu0 %v5397
      %5736 = vmatprep.subr.bf16.mxu0 0
      %5737 = vmatpush1.bf16.msra.mxu0 %v5396
      %5738 = vmatprep.subr.bf16.mxu0 0
      %5739 = vmatpush1.bf16.msra.mxu0 %v5395
      %5740 = vmatprep.subr.bf16.mxu0 0
      %5741 = vmatpush1.bf16.msra.mxu0 %v5394
      %5742 = vmatprep.subr.bf16.mxu0 0
      %5743 = vmatpush1.bf16.msra.mxu0 %v5393
      %5744 = vmatprep.subr.bf16.mxu0 0
      %5745 = vmatpush1.bf16.msra.mxu0 %v5392
      %5746 = vmatprep.subr.bf16.mxu0 0
      %5747 = vmatpush1.bf16.msra.mxu0 %v5391
      %5748 = vmatprep.subr.bf16.mxu0 0
      %5749 = vmatpush2.bf16.msra.mxu0 0
      %5750 = vmatprep.subr.bf16.mxu0 0
      %5751 = vmatpush2.bf16.msra.mxu0 0
      %5752 = vmatprep.subr.bf16.mxu0 0
      %5753 = vmatpush2.bf16.msra.mxu0 0
      %5754 = vmatprep.subr.bf16.mxu0 0
      %5755 = vmatpush2.bf16.msra.mxu0 0
      %5756 = vmatprep.subr.bf16.mxu0 0
      %5757 = vmatpush2.bf16.msra.mxu0 0
      %5758 = vmatprep.subr.bf16.mxu0 0
      %5759 = vmatpush2.bf16.msra.mxu0 0
      %5760 = vmatprep.subr.bf16.mxu0 0
      %5761 = vmatpush2.bf16.msra.mxu0 0
      %5762 = vmatprep.subr.bf16.mxu0 0
      %5763 = vmatpush2.bf16.msra.mxu0 0
      %5764 = vmatprep.mubr.bf16.mxu0 0
      %5765 = vmatmul.mubr.bf16.gmra.mxu0 %v5728
      %v5766 = vpop.f32.mrf.mxu0
      %v5767 = vadd.f32 0.0, %v5766
      %v5768 = vpop.f32.mrf.mxu0
      %v5769 = vpop.f32.mrf.mxu0
      %v5770 = vpop.f32.mrf.mxu0
      %5771 = vdwg.mxu0
      %5772 = vmatprep.subr.bf16.mxu0 0
      %5773 = vmatpush1.bf16.msra.mxu0 %v5406
      %5774 = vmatprep.subr.bf16.mxu0 0
      %5775 = vmatpush1.bf16.msra.mxu0 %v5405
      %5776 = vmatprep.subr.bf16.mxu0 0
      %5777 = vmatpush1.bf16.msra.mxu0 %v5404
      %5778 = vmatprep.subr.bf16.mxu0 0
      %5779 = vmatpush1.bf16.msra.mxu0 %v5403
      %5780 = vmatprep.subr.bf16.mxu0 0
      %5781 = vmatpush1.bf16.msra.mxu0 %v5402
      %5782 = vmatprep.subr.bf16.mxu0 0
      %5783 = vmatpush1.bf16.msra.mxu0 %v5401
      %5784 = vmatprep.subr.bf16.mxu0 0
      %5785 = vmatpush1.bf16.msra.mxu0 %v5400
      %5786 = vmatprep.subr.bf16.mxu0 0
      %5787 = vmatpush1.bf16.msra.mxu0 %v5399
      %5788 = vmatprep.subr.bf16.mxu0 0
      %5789 = vmatpush2.bf16.msra.mxu0 0
      %5790 = vmatprep.subr.bf16.mxu0 0
      %5791 = vmatpush2.bf16.msra.mxu0 0
      %5792 = vmatprep.subr.bf16.mxu0 0
      %5793 = vmatpush2.bf16.msra.mxu0 0
      %5794 = vmatprep.subr.bf16.mxu0 0
      %5795 = vmatpush2.bf16.msra.mxu0 0
      %5796 = vmatprep.subr.bf16.mxu0 0
      %5797 = vmatpush2.bf16.msra.mxu0 0
      %5798 = vmatprep.subr.bf16.mxu0 0
      %5799 = vmatpush2.bf16.msra.mxu0 0
      %5800 = vmatprep.subr.bf16.mxu0 0
      %5801 = vmatpush2.bf16.msra.mxu0 0
      %5802 = vmatprep.subr.bf16.mxu0 0
      %5803 = vmatpush2.bf16.msra.mxu0 0
      %5804 = vmatprep.mubr.bf16.mxu0 0
      %5805 = vmatmul.mubr.bf16.gmra.mxu0 %v5729
      %v5806 = vpop.f32.mrf.mxu0
      %v5807 = vadd.f32 0.0, %v5806
      %v5808 = vpop.f32.mrf.mxu0
      %v5809 = vpop.f32.mrf.mxu0
      %v5810 = vpop.f32.mrf.mxu0
      %5811 = vdwg.mxu0
      %5812 = vmatprep.subr.bf16.mxu0 0
      %5813 = vmatpush1.bf16.msra.mxu0 %v5414
      %5814 = vmatprep.subr.bf16.mxu0 0
      %5815 = vmatpush1.bf16.msra.mxu0 %v5413
      %5816 = vmatprep.subr.bf16.mxu0 0
      %5817 = vmatpush1.bf16.msra.mxu0 %v5412
      %5818 = vmatprep.subr.bf16.mxu0 0
      %5819 = vmatpush1.bf16.msra.mxu0 %v5411
      %5820 = vmatprep.subr.bf16.mxu0 0
      %5821 = vmatpush1.bf16.msra.mxu0 %v5410
      %5822 = vmatprep.subr.bf16.mxu0 0
      %5823 = vmatpush1.bf16.msra.mxu0 %v5409
      %5824 = vmatprep.subr.bf16.mxu0 0
      %5825 = vmatpush1.bf16.msra.mxu0 %v5408
      %5826 = vmatprep.subr.bf16.mxu0 0
      %5827 = vmatpush1.bf16.msra.mxu0 %v5407
      %5828 = vmatprep.subr.bf16.mxu0 0
      %5829 = vmatpush2.bf16.msra.mxu0 0
      %5830 = vmatprep.subr.bf16.mxu0 0
      %5831 = vmatpush2.bf16.msra.mxu0 0
      %5832 = vmatprep.subr.bf16.mxu0 0
      %5833 = vmatpush2.bf16.msra.mxu0 0
      %5834 = vmatprep.subr.bf16.mxu0 0
      %5835 = vmatpush2.bf16.msra.mxu0 0
      %5836 = vmatprep.subr.bf16.mxu0 0
      %5837 = vmatpush2.bf16.msra.mxu0 0
      %5838 = vmatprep.subr.bf16.mxu0 0
      %5839 = vmatpush2.bf16.msra.mxu0 0
      %5840 = vmatprep.subr.bf16.mxu0 0
      %5841 = vmatpush2.bf16.msra.mxu0 0
      %5842 = vmatprep.subr.bf16.mxu0 0
      %5843 = vmatpush2.bf16.msra.mxu0 0
      %5844 = vmatprep.mubr.bf16.mxu0 0
      %5845 = vmatmul.mubr.bf16.gmra.mxu0 %v5730
      %v5846 = vpop.f32.mrf.mxu0
      %v5847 = vadd.f32 0.0, %v5846
      %v5848 = vpop.f32.mrf.mxu0
      %v5849 = vpop.f32.mrf.mxu0
      %v5850 = vpop.f32.mrf.mxu0
      %5851 = vdwg.mxu0
      %5852 = vmatprep.subr.bf16.mxu0 0
      %5853 = vmatpush1.bf16.msra.mxu0 %v5422
      %5854 = vmatprep.subr.bf16.mxu0 0
      %5855 = vmatpush1.bf16.msra.mxu0 %v5421
      %5856 = vmatprep.subr.bf16.mxu0 0
      %5857 = vmatpush1.bf16.msra.mxu0 %v5420
      %5858 = vmatprep.subr.bf16.mxu0 0
      %5859 = vmatpush1.bf16.msra.mxu0 %v5419
      %5860 = vmatprep.subr.bf16.mxu0 0
      %5861 = vmatpush1.bf16.msra.mxu0 %v5418
      %5862 = vmatprep.subr.bf16.mxu0 0
      %5863 = vmatpush1.bf16.msra.mxu0 %v5417
      %5864 = vmatprep.subr.bf16.mxu0 0
      %5865 = vmatpush1.bf16.msra.mxu0 %v5416
      %5866 = vmatprep.subr.bf16.mxu0 0
      %5867 = vmatpush1.bf16.msra.mxu0 %v5415
      %5868 = vmatprep.subr.bf16.mxu0 0
      %5869 = vmatpush2.bf16.msra.mxu0 0
      %5870 = vmatprep.subr.bf16.mxu0 0
      %5871 = vmatpush2.bf16.msra.mxu0 0
      %5872 = vmatprep.subr.bf16.mxu0 0
      %5873 = vmatpush2.bf16.msra.mxu0 0
      %5874 = vmatprep.subr.bf16.mxu0 0
      %5875 = vmatpush2.bf16.msra.mxu0 0
      %5876 = vmatprep.subr.bf16.mxu0 0
      %5877 = vmatpush2.bf16.msra.mxu0 0
      %5878 = vmatprep.subr.bf16.mxu0 0
      %5879 = vmatpush2.bf16.msra.mxu0 0
      %5880 = vmatprep.subr.bf16.mxu0 0
      %5881 = vmatpush2.bf16.msra.mxu0 0
      %5882 = vmatprep.subr.bf16.mxu0 0
      %5883 = vmatpush2.bf16.msra.mxu0 0
      %5884 = vmatprep.mubr.bf16.mxu0 0
      %5885 = vmatmul.mubr.bf16.gmra.mxu0 %v5731
      %v5886 = vpop.f32.mrf.mxu0
      %v5887 = vadd.f32 0.0, %v5886
      %v5888 = vpop.f32.mrf.mxu0
      %v5889 = vpop.f32.mrf.mxu0
      %v5890 = vpop.f32.mrf.mxu0
      %5891 = vdwg.mxu0
      %v5892 = vcombine.low %v5767, %v5847
      %v5893 = vcombine.high %v5767, %v5847
      %v5895 = vunpack.c.l.s4 1983009808
      %v5896 = vunpack.c.0.s8 %v5895
      %v5897 = vlaneseq
      %v5898 = vshrl.u32 %v5897, 7
      %v5899 = vsub.s32 %v5896, %v5898
      %v5900 = vrot.slane %v5892, %v5899
      %v5902 = vunpack.c.l.s4 1983009808
      %v5903 = vunpack.c.0.s8 %v5902
      %v5904 = vlaneseq
      %v5905 = vshrl.u32 %v5904, 7
      %v5906 = vsub.s32 %v5903, %v5905
      %v5907 = vrot.slane %v5893, %v5906
      %v5908 = vcombine.low %v5807, %v5887
      %v5909 = vcombine.high %v5807, %v5887
      %v5911 = vunpack.c.l.s4 1983009808
      %v5912 = vunpack.c.0.s8 %v5911
      %v5913 = vlaneseq
      %v5914 = vshrl.u32 %v5913, 7
      %v5915 = vsub.s32 %v5912, %v5914
      %v5916 = vrot.slane %v5908, %v5915
      %v5918 = vunpack.c.l.s4 1983009808
      %v5919 = vunpack.c.0.s8 %v5918
      %v5920 = vlaneseq
      %v5921 = vshrl.u32 %v5920, 7
      %v5922 = vsub.s32 %v5919, %v5921
      %v5923 = vrot.slane %v5909, %v5922
      %v5924 = vcombine.low %v5900, %v5916
      %v5925 = vcombine.high %v5900, %v5916
      %v5927 = vunpack.c.l.s4 1934713408
      %v5928 = vunpack.c.0.s8 %v5927
      %v5929 = vlaneseq
      %v5930 = vshrl.u32 %v5929, 7
      %v5931 = vsub.s32 %v5928, %v5930
      %v5932 = vrot.slane %v5924, %v5931
      %v5934 = vunpack.c.l.s4 1934713408
      %v5935 = vunpack.c.0.s8 %v5934
      %v5936 = vlaneseq
      %v5937 = vshrl.u32 %v5936, 7
      %v5938 = vsub.s32 %v5935, %v5937
      %v5939 = vrot.slane %v5925, %v5938
      %v5940 = vcombine.low %v5907, %v5923
      %v5941 = vcombine.high %v5907, %v5923
      %v5943 = vunpack.c.l.s4 1934713408
      %v5944 = vunpack.c.0.s8 %v5943
      %v5945 = vlaneseq
      %v5946 = vshrl.u32 %v5945, 7
      %v5947 = vsub.s32 %v5944, %v5946
      %v5948 = vrot.slane %v5940, %v5947
      %v5950 = vunpack.c.l.s4 1934713408
      %v5951 = vunpack.c.0.s8 %v5950
      %v5952 = vlaneseq
      %v5953 = vshrl.u32 %v5952, 7
      %v5954 = vsub.s32 %v5951, %v5953
      %v5955 = vrot.slane %v5941, %v5954
      %v5956 = vcombine.high %v5932, 0.0
      %v5957 = vcombine.high %v5939, 0.0
      %v5958 = vcombine.high %v5948, 0.0
      %v5959 = vcombine.high %v5955, 0.0
      %v5960 = vcombine.low %v5932, %v5939
      %v5962 = vunpack.c.l.s4 1983009808
      %v5963 = vunpack.c.0.s8 %v5962
      %v5964 = vlaneseq
      %v5965 = vshrl.u32 %v5964, 7
      %v5966 = vsub.s32 %v5963, %v5965
      %v5967 = vrot.slane %v5960, %v5966
      %v5968 = vcombine.low %v5956, %v5957
      %v5970 = vunpack.c.l.s4 1983009808
      %v5971 = vunpack.c.0.s8 %v5970
      %v5972 = vlaneseq
      %v5973 = vshrl.u32 %v5972, 7
      %v5974 = vsub.s32 %v5971, %v5973
      %v5975 = vrot.slane %v5968, %v5974
      %v5976 = vcombine.low %v5948, %v5955
      %v5978 = vunpack.c.l.s4 1983009808
      %v5979 = vunpack.c.0.s8 %v5978
      %v5980 = vlaneseq
      %v5981 = vshrl.u32 %v5980, 7
      %v5982 = vsub.s32 %v5979, %v5981
      %v5983 = vrot.slane %v5976, %v5982
      %v5984 = vcombine.low %v5958, %v5959
      %v5986 = vunpack.c.l.s4 1983009808
      %v5987 = vunpack.c.0.s8 %v5986
      %v5988 = vlaneseq
      %v5989 = vshrl.u32 %v5988, 7
      %v5990 = vsub.s32 %v5987, %v5989
      %v5991 = vrot.slane %v5984, %v5990
      %v5992 = vcombine.low %v5967, %v5975
      %v5993 = vcombine.high %v5967, %v5975
      %v5995 = vunpack.c.l.s4 1934713408
      %v5996 = vunpack.c.0.s8 %v5995
      %v5997 = vlaneseq
      %v5998 = vshrl.u32 %v5997, 7
      %v5999 = vsub.s32 %v5996, %v5998
      %v6000 = vrot.slane %v5992, %v5999
      %v6002 = vunpack.c.l.s4 1934713408
      %v6003 = vunpack.c.0.s8 %v6002
      %v6004 = vlaneseq
      %v6005 = vshrl.u32 %v6004, 7
      %v6006 = vsub.s32 %v6003, %v6005
      %v6007 = vrot.slane %v5993, %v6006
      %v6008 = vcombine.low %v5983, %v5991
      %v6009 = vcombine.high %v5983, %v5991
      %v6011 = vunpack.c.l.s4 1934713408
      %v6012 = vunpack.c.0.s8 %v6011
      %v6013 = vlaneseq
      %v6014 = vshrl.u32 %v6013, 7
      %v6015 = vsub.s32 %v6012, %v6014
      %v6016 = vrot.slane %v6008, %v6015
      %v6018 = vunpack.c.l.s4 1934713408
      %v6019 = vunpack.c.0.s8 %v6018
      %v6020 = vlaneseq
      %v6021 = vshrl.u32 %v6020, 7
      %v6022 = vsub.s32 %v6019, %v6021
      %v6023 = vrot.slane %v6009, %v6022
      %v6024 = vcombine.low %v6000, %v6016
      %v6025 = vcombine.high %v6000, %v6016
      %v6026 = vcombine.low %v6007, %v6023
      %v6027 = vcombine.high %v6007, %v6023
      %6029 = vrot.lane.b32.xlu0 %v6025, 8
      %v6030 = vpop.permute.xlu0 %6029
      %6033 = vrot.lane.b32.xlu0 %v6026, 16
      %v6034 = vpop.permute.xlu0 %6033
      %6037 = vrot.lane.b32.xlu0 %v6027, 24
      %v6038 = vpop.permute.xlu0 %6037
      %v6040 = vsel %vm5423, %v6024, %v6030
      %vm6041 = vcmask 130048
      %v6042 = vsel %vm6041, %v6040, %v6034
      %vm6043 = vcmask 195584
      %v6044 = vsel %vm6043, %v6042, %v6038
      %v6045 = vld [vmem:[%s8] sm:$0x1]
      %v6047 = vlaneseq
      %v6048 = vshrl.u32 %v6047, 7
      %v6049 = vsub.s32 0, %v6048
      %v6050 = vrot.slane %v6045, %v6049
      %v6052 = vadd.f32 %v369, %v6050
      %v6053 = vpack.c.bf16 %v6044, %v6044
      %v6054 = vld [vmem:[%s7] sm:$0xf]
      %v6055 = vld [vmem:[%s7 + $0x4] sm:$0xf]
      %v6056 = vld [vmem:[%s7 + $0x8] sm:$0xf]
      %v6057 = vld [vmem:[%s7 + $0xc] sm:$0xf]
      %v6062 = vunpack.c.l.b16 %v6054
      %v6063 = vunpack.c.l.b16 %v6055
      %v6064 = vunpack.c.l.b16 %v6056
      %v6065 = vunpack.c.l.b16 %v6057
      %v6066 = vpack.c.b16 %v6063, %v6062
      %v6067 = vpack.c.b16 %v6065, %v6064
      %v6071 = vsel %vm372, %v6053, 0
      %6073 = vmatprep.subr.bf16.mxu0 0
      %6074 = vmatpush1.bf16.msra.mxu0 0
      %6075 = vmatprep.subr.bf16.mxu0 0
      %6076 = vmatpush1.bf16.msra.mxu0 0
      %6077 = vmatprep.subr.bf16.mxu0 0
      %6078 = vmatpush1.bf16.msra.mxu0 0
      %6079 = vmatprep.subr.bf16.mxu0 0
      %6080 = vmatpush1.bf16.msra.mxu0 0
      %6081 = vmatprep.subr.bf16.mxu0 0
      %6082 = vmatpush1.bf16.msra.mxu0 0
      %6083 = vmatprep.subr.bf16.mxu0 0
      %6084 = vmatpush1.bf16.msra.mxu0 0
      %6085 = vmatprep.subr.bf16.mxu0 0
      %6086 = vmatpush1.bf16.msra.mxu0 %v6067
      %6087 = vmatprep.subr.bf16.mxu0 0
      %6088 = vmatpush1.bf16.msra.mxu0 %v6066
      %6089 = vmatprep.subr.bf16.mxu0 0
      %6090 = vmatpush2.bf16.msra.mxu0 0
      %6091 = vmatprep.subr.bf16.mxu0 0
      %6092 = vmatpush2.bf16.msra.mxu0 0
      %6093 = vmatprep.subr.bf16.mxu0 0
      %6094 = vmatpush2.bf16.msra.mxu0 0
      %6095 = vmatprep.subr.bf16.mxu0 0
      %6096 = vmatpush2.bf16.msra.mxu0 0
      %6097 = vmatprep.subr.bf16.mxu0 0
      %6098 = vmatpush2.bf16.msra.mxu0 0
      %6099 = vmatprep.subr.bf16.mxu0 0
      %6100 = vmatpush2.bf16.msra.mxu0 0
      %6101 = vmatprep.subr.bf16.mxu0 0
      %6102 = vmatpush2.bf16.msra.mxu0 0
      %6103 = vmatprep.subr.bf16.mxu0 0
      %6104 = vmatpush2.bf16.msra.mxu0 0
      %6105 = vmatprep.mubr.bf16.mxu0 0
      %6106 = vmatmul.mubr.bf16.gmra.mxu0 %v6071
      %v6107 = vpop.f32.mrf.mxu0
      %v6108 = vadd.f32 0.0, %v6107
      %v6109 = vpop.f32.mrf.mxu0
      %v6110 = vpop.f32.mrf.mxu0
      %v6111 = vpop.f32.mrf.mxu0
      %6112 = vdwg.mxu0
      %v6113 = vadd.f32 %v6052, %v6108
      %6114 = vst.msk [vmem:[%s367] sm:$0xff] %vm372, %v6113
      %p6115 = scmp.lt.s32.totalorder %s20, 1
      %s6116 = scalar_select %p6115, %s20, 1
      %s6117 = smul.addr %s6116, 8
      %s6118 = scalar_lea.vmem %s9, %s6117
      // Predicated region
      $region57: #{qformer_forward.9} parent=55 // pred_check
        %p6119 = pneg %p242
      $region58: #{qformer_forward.9} parent=55 // pred_check_branch
        %6121 = sbr.rel (%p6119) target = $region60
      $region59: #{qformer_forward.9} parent=55 // pred_region
        _
      $region60: #{qformer_forward.9} parent=55 // pred_fallthru
        _
    $region56: #{qformer_forward.9} parent=5 // pred_fallthru
      _
    %p6122 = scmp.le.s32.totalorder 2, %s15
    // Predicated region
    $region61: #{qformer_forward.9} parent=5 // pred_check
      %p6123 = pneg %p6122
    $region62: #{qformer_forward.9} parent=5 // pred_check_branch
      %6125 = sbr.rel (%p6123) target = $region64
    $region63: #{qformer_forward.9} parent=5 // pred_region
      %s6126 = ssub.s32 %s15, 2
      // Predicated region
      $region65: #{qformer_forward.9} parent=63 // pred_check
        %p6127 = pneg %p248
      $region66: #{qformer_forward.9} parent=63 // pred_check_branch
        %6129 = sbr.rel (%p6127) target = $region68
      $region67: #{qformer_forward.9} parent=63 // pred_region
        %p6130 = scmp.lt.s32.totalorder %s21, 1
        %s6131 = scalar_select %p6130, %s21, 1
        %s6132 = smul.addr %s6131, 8
        %s6133 = scalar_lea.vmem %s9, %s6132
      $region68: #{qformer_forward.9} parent=63 // pred_fallthru
        _
    $region64: #{qformer_forward.9} parent=5 // pred_fallthru
      _
  $region6: #{qformer_forward.9} parent=0 // loop_footer
    %s19 = sadd.s32 1, %s15
  $region7: #{qformer_forward.9} parent=0 // loop_footer_branch
    %14 = sbr.rel target = $region3
  $region8: #{qformer_forward.9} parent=0 // loop_exit
    _

</llo_original>
